<compile_context>
chip_gen: v6e
topology: v6e:2x2x1
jax: 0.10.0
libtpu: 0.0.40
codegen_flags: <defaults>
</compile_context>

<pallas_src>
import functools

import jax
import jax.numpy as jnp
from jax.experimental import pallas as pl
from jax.experimental.pallas import tpu as pltpu

BN_EPS = 1e-3


def _inception_aux_kernel(p_ref, wcf_ref, shift_ref, w1t_ref, b1_ref,
                          w2t_ref, b2_ref, out_ref, zf_scr):
    """conv1x1 + BN + ReLU -> flatten -> fc1 + ReLU -> fc2 (one invocation)."""
    n_pad = out_ref.shape[0]                      # padded batch (multiple of 8)

    # 1x1 conv over all 16 pooling bins at once: (16*Np, C) @ (C, 128).
    # BN eval-mode scale is folded into wcf in the wrapper; only shift remains.
    z = jnp.dot(p_ref[...], wcf_ref[...], preferred_element_type=jnp.float32)
    z = jnp.maximum(z + shift_ref[...], 0.0)      # (16*Np, 128)

    # Re-tile bin-major rows (s*Np + n, m) into batch-major (n, s*128 + m);
    # the fc1 weight was permuted in the wrapper to match this layout, so fc1
    # becomes a single K=2048 contraction (best MXU weight-push cadence).
    for s in range(16):
        zf_scr[:, s * 128:(s + 1) * 128] = z[s * n_pad:(s + 1) * n_pad, :]

    zf = zf_scr[...].astype(jnp.bfloat16)         # (Np, 2048)
    h = jnp.dot(zf, w1t_ref[...], preferred_element_type=jnp.float32)
    h = jnp.maximum(h + b1_ref[...], 0.0)         # fc1 bias + ReLU
    # dropout(p=0.7) is identity in eval mode.
    logits = jnp.dot(h.astype(jnp.bfloat16), w2t_ref[...],
                     preferred_element_type=jnp.float32) + b2_ref[...]
    out_ref[...] = logits.astype(out_ref.dtype)


def adaptive_avg_pool_4x4(x):
    """F.adaptive_avg_pool2d(x, (4, 4)) with PyTorch's general bin rule."""
    _, _, H, W = x.shape

    def bins(length):
        return [((i * length) // 4, -((-(i + 1) * length) // 4))
                for i in range(4)]

    hb, wb = bins(H), bins(W)
    rows = []
    for h0, h1 in hb:
        cols = [x[:, :, h0:h1, w0:w1].mean(axis=(2, 3)) for (w0, w1) in wb]
        rows.append(jnp.stack(cols, axis=-1))
    return jnp.stack(rows, axis=-2)               # (N, C, 4, 4)


def prepare_inception_aux_params(params):
    """One-time weight preprocessing: fold BN, permute/cast/pad weights.

    Call once and reuse the result: this touches ~4.3 MB of weights and must
    not sit on the per-step critical path.
    """
    scale = params["bn_gamma"] / jnp.sqrt(params["bn_var"] + BN_EPS)   # (128,)
    wcf = (params["conv_w"][:, :, 0, 0] * scale[:, None]).T            # (C, 128)
    shift = (params["bn_beta"] - params["bn_mean"] * scale).reshape(1, 128)

    # fc1 weight (1024, 2048) has torch-flatten column index m*16 + s; permute
    # so the contraction row index is s*128 + m, matching the kernel's
    # (n, s*128+m) activations.
    w1t = (params["fc1_w"].reshape(1024, 128, 16).transpose(2, 1, 0)
           .reshape(2048, 1024).astype(jnp.bfloat16))
    b1 = params["fc1_b"].reshape(1, 1024).astype(jnp.float32)

    nc = params["fc2_w"].shape[0]
    nc_pad = -(-nc // 128) * 128                  # lane-dense output / w2 block
    w2t = jnp.zeros((1024, nc_pad), jnp.bfloat16)
    w2t = w2t.at[:, :nc].set(params["fc2_w"].T.astype(jnp.bfloat16))
    b2 = jnp.zeros((1, nc_pad), jnp.float32).at[:, :nc].set(params["fc2_b"])

    prep = {"wcf": wcf, "shift": shift, "w1t": w1t, "b1": b1,
            "w2t": w2t, "b2": b2}
    return prep, nc


@functools.partial(jax.jit, static_argnames=("num_classes",))
def inception_aux_forward(x, prep, *, num_classes):
    """x: (N, C, H, W) float32. Returns (N, num_classes) logits (eval mode)."""
    N = x.shape[0]

    # --- wrapper: adaptive avg-pool + layout plumbing (activations only) ---
    pooled = adaptive_avg_pool_4x4(x)                           # (N, C, 4, 4)
    pooled = pooled.transpose(2, 3, 0, 1).reshape(16, N, -1)    # [s=ph*4+pw, n, c]
    n_pad = -(-N // 8) * 8                                      # sublane-aligned
    pooled = jnp.pad(pooled, ((0, 0), (0, n_pad - N), (0, 0)))
    pooled = pooled.reshape(16 * n_pad, -1)                     # row = s*n_pad + n

    nc_pad = prep["w2t"].shape[1]
    vmem = pl.BlockSpec(memory_space=pltpu.MemorySpace.VMEM)
    out = pl.pallas_call(
        _inception_aux_kernel,
        out_shape=jax.ShapeDtypeStruct((n_pad, nc_pad), jnp.float32),
        in_specs=[vmem] * 7,
        out_specs=vmem,
        scratch_shapes=[pltpu.VMEM((n_pad, 2048), jnp.float32)],
    )(pooled, prep["wcf"], prep["shift"], prep["w1t"], prep["b1"],
      prep["w2t"], prep["b2"])
    return out[:N, :num_classes]


def inception_aux_reference(x, params):
    """Pure-JAX reference matching the PyTorch forward (eval mode)."""
    N = x.shape[0]
    pooled = adaptive_avg_pool_4x4(x)                           # (N, C, 4, 4)
    wc = params["conv_w"][:, :, 0, 0]                           # (128, C)
    conv = jnp.einsum("oc,nchw->nohw", wc, pooled)              # (N, 128, 4, 4)
    bn = ((conv - params["bn_mean"][None, :, None, None])
          / jnp.sqrt(params["bn_var"] + BN_EPS)[None, :, None, None]
          * params["bn_gamma"][None, :, None, None]
          + params["bn_beta"][None, :, None, None])
    r = jnp.maximum(bn, 0.0)
    flat = r.reshape(N, 2048)
    h = jnp.maximum(flat @ params["fc1_w"].T + params["fc1_b"], 0.0)
    return h @ params["fc2_w"].T + params["fc2_b"]


def make_params(key, in_channels, num_classes):
    ks = jax.random.split(key, 9)
    return {
        "conv_w": 0.1 * jax.random.normal(ks[0], (128, in_channels, 1, 1), jnp.float32),
        "bn_gamma": jax.random.uniform(ks[1], (128,), jnp.float32, 0.5, 1.5),
        "bn_beta": 0.1 * jax.random.normal(ks[2], (128,), jnp.float32),
        "bn_mean": 0.1 * jax.random.normal(ks[3], (128,), jnp.float32),
        "bn_var": jax.random.uniform(ks[4], (128,), jnp.float32, 0.5, 1.5),
        "fc1_w": 0.02 * jax.random.normal(ks[5], (1024, 2048), jnp.float32),
        "fc1_b": 0.1 * jax.random.normal(ks[6], (1024,), jnp.float32),
        "fc2_w": 0.02 * jax.random.normal(ks[7], (num_classes, 1024), jnp.float32),
        "fc2_b": 0.1 * jax.random.normal(ks[8], (num_classes,), jnp.float32),
    }


if __name__ == "__main__":
    key = jax.random.PRNGKey(0)
    kx, kp = jax.random.split(key)

    N, C, H, W = 2, 4, 16, 16        # small NCHW input (in_channels=4)
    num_classes = 10
    x = jax.random.normal(kx, (N, C, H, W), jnp.float32)
    params = make_params(kp, C, num_classes)

    prep, nc = prepare_inception_aux_params(params)   # one-time weight prep
    out = inception_aux_forward(x, prep, num_classes=nc)
    out = jax.block_until_ready(out)

    ref = inception_aux_reference(x, params)
    assert out.shape == (N, num_classes)
    assert jnp.allclose(out, ref, rtol=2e-2, atol=2e-2), (
        f"max abs err {jnp.max(jnp.abs(out - ref))}")

    print("KERNEL_OK")
</pallas_src>

<mosaic_0001>
module attributes {stable_mosaic.version = 11 : i64} {
  func.func @_inception_aux_kernel(%arg0: memref<128x4xf32, #tpu.memory_space<vmem>>, %arg1: memref<4x128xf32, #tpu.memory_space<vmem>>, %arg2: memref<1x128xf32, #tpu.memory_space<vmem>>, %arg3: memref<2048x1024xbf16, #tpu.memory_space<vmem>>, %arg4: memref<1x1024xf32, #tpu.memory_space<vmem>>, %arg5: memref<1024x128xbf16, #tpu.memory_space<vmem>>, %arg6: memref<1x128xf32, #tpu.memory_space<vmem>>, %arg7: memref<8x128xf32, #tpu.memory_space<vmem>>, %arg8: memref<8x2048xf32, #tpu.memory_space<vmem>>) attributes {dimension_semantics = [], scalar_prefetch = 0 : i64, scratch_operands = 1 : i64, tpu.core_type = #tpu.core_type<tc>} {
    %c0 = arith.constant 0 : index
    %c0_0 = arith.constant 0 : index
    %0 = vector.load %arg0[%c0, %c0_0] : memref<128x4xf32, #tpu.memory_space<vmem>>, vector<128x4xf32>
    %c0_1 = arith.constant 0 : index
    %c0_2 = arith.constant 0 : index
    %1 = vector.load %arg1[%c0_1, %c0_2] : memref<4x128xf32, #tpu.memory_space<vmem>>, vector<4x128xf32>
    %cst = arith.constant dense<0.000000e+00> : vector<128x128xf32>
    %2 = tpu.matmul %0, %1, %cst {dimension_numbers = #tpu.dot_dimension_numbers<[1], [0], [0], [1], [0, 0, 1, 1], [], []>} : vector<128x4xf32>, vector<4x128xf32>, vector<128x128xf32> -> vector<128x128xf32>
    %c0_3 = arith.constant 0 : index
    %c0_4 = arith.constant 0 : index
    %3 = vector.load %arg2[%c0_3, %c0_4] : memref<1x128xf32, #tpu.memory_space<vmem>>, vector<1x128xf32>
    %4 = vector.broadcast %3 : vector<1x128xf32> to vector<128x128xf32>
    %5 = arith.addf %2, %4 : vector<128x128xf32>
    %cst_5 = arith.constant 0.000000e+00 : f32
    %6 = vector.broadcast %cst_5 : f32 to vector<128x128xf32>
    %7 = arith.maximumf %5, %6 : vector<128x128xf32>
    %8 = vector.extract_strided_slice %7 {offsets = [0, 0], sizes = [8, 128], strides = [1, 1]} : vector<128x128xf32> to vector<8x128xf32>
    %c0_6 = arith.constant 0 : index
    %c0_7 = arith.constant 0 : index
    %9 = vector.load %arg8[%c0_6, %c0_7] : memref<8x2048xf32, #tpu.memory_space<vmem>>, vector<8x128xf32>
    tpu.vector_store %arg8[%c0_6, %c0_7], %8 {strides = array<i32>} : memref<8x2048xf32, #tpu.memory_space<vmem>>, vector<8x128xf32>,
    %10 = vector.extract_strided_slice %7 {offsets = [8, 0], sizes = [8, 128], strides = [1, 1]} : vector<128x128xf32> to vector<8x128xf32>
    %c0_8 = arith.constant 0 : index
    %c128 = arith.constant 128 : index
    %11 = vector.load %arg8[%c0_8, %c128] : memref<8x2048xf32, #tpu.memory_space<vmem>>, vector<8x128xf32>
    tpu.vector_store %arg8[%c0_8, %c128], %10 {strides = array<i32>} : memref<8x2048xf32, #tpu.memory_space<vmem>>, vector<8x128xf32>,
    %12 = vector.extract_strided_slice %7 {offsets = [16, 0], sizes = [8, 128], strides = [1, 1]} : vector<128x128xf32> to vector<8x128xf32>
    %c0_9 = arith.constant 0 : index
    %c256 = arith.constant 256 : index
    %13 = vector.load %arg8[%c0_9, %c256] : memref<8x2048xf32, #tpu.memory_space<vmem>>, vector<8x128xf32>
    tpu.vector_store %arg8[%c0_9, %c256], %12 {strides = array<i32>} : memref<8x2048xf32, #tpu.memory_space<vmem>>, vector<8x128xf32>,
    %14 = vector.extract_strided_slice %7 {offsets = [24, 0], sizes = [8, 128], strides = [1, 1]} : vector<128x128xf32> to vector<8x128xf32>
    %c0_10 = arith.constant 0 : index
    %c384 = arith.constant 384 : index
    %15 = vector.load %arg8[%c0_10, %c384] : memref<8x2048xf32, #tpu.memory_space<vmem>>, vector<8x128xf32>
    tpu.vector_store %arg8[%c0_10, %c384], %14 {strides = array<i32>} : memref<8x2048xf32, #tpu.memory_space<vmem>>, vector<8x128xf32>,
    %16 = vector.extract_strided_slice %7 {offsets = [32, 0], sizes = [8, 128], strides = [1, 1]} : vector<128x128xf32> to vector<8x128xf32>
    %c0_11 = arith.constant 0 : index
    %c512 = arith.constant 512 : index
    %17 = vector.load %arg8[%c0_11, %c512] : memref<8x2048xf32, #tpu.memory_space<vmem>>, vector<8x128xf32>
    tpu.vector_store %arg8[%c0_11, %c512], %16 {strides = array<i32>} : memref<8x2048xf32, #tpu.memory_space<vmem>>, vector<8x128xf32>,
    %18 = vector.extract_strided_slice %7 {offsets = [40, 0], sizes = [8, 128], strides = [1, 1]} : vector<128x128xf32> to vector<8x128xf32>
    %c0_12 = arith.constant 0 : index
    %c640 = arith.constant 640 : index
    %19 = vector.load %arg8[%c0_12, %c640] : memref<8x2048xf32, #tpu.memory_space<vmem>>, vector<8x128xf32>
    tpu.vector_store %arg8[%c0_12, %c640], %18 {strides = array<i32>} : memref<8x2048xf32, #tpu.memory_space<vmem>>, vector<8x128xf32>,
    %20 = vector.extract_strided_slice %7 {offsets = [48, 0], sizes = [8, 128], strides = [1, 1]} : vector<128x128xf32> to vector<8x128xf32>
    %c0_13 = arith.constant 0 : index
    %c768 = arith.constant 768 : index
    %21 = vector.load %arg8[%c0_13, %c768] : memref<8x2048xf32, #tpu.memory_space<vmem>>, vector<8x128xf32>
    tpu.vector_store %arg8[%c0_13, %c768], %20 {strides = array<i32>} : memref<8x2048xf32, #tpu.memory_space<vmem>>, vector<8x128xf32>,
    %22 = vector.extract_strided_slice %7 {offsets = [56, 0], sizes = [8, 128], strides = [1, 1]} : vector<128x128xf32> to vector<8x128xf32>
    %c0_14 = arith.constant 0 : index
    %c896 = arith.constant 896 : index
    %23 = vector.load %arg8[%c0_14, %c896] : memref<8x2048xf32, #tpu.memory_space<vmem>>, vector<8x128xf32>
    tpu.vector_store %arg8[%c0_14, %c896], %22 {strides = array<i32>} : memref<8x2048xf32, #tpu.memory_space<vmem>>, vector<8x128xf32>,
    %24 = vector.extract_strided_slice %7 {offsets = [64, 0], sizes = [8, 128], strides = [1, 1]} : vector<128x128xf32> to vector<8x128xf32>
    %c0_15 = arith.constant 0 : index
    %c1024 = arith.constant 1024 : index
    %25 = vector.load %arg8[%c0_15, %c1024] : memref<8x2048xf32, #tpu.memory_space<vmem>>, vector<8x128xf32>
    tpu.vector_store %arg8[%c0_15, %c1024], %24 {strides = array<i32>} : memref<8x2048xf32, #tpu.memory_space<vmem>>, vector<8x128xf32>,
    %26 = vector.extract_strided_slice %7 {offsets = [72, 0], sizes = [8, 128], strides = [1, 1]} : vector<128x128xf32> to vector<8x128xf32>
    %c0_16 = arith.constant 0 : index
    %c1152 = arith.constant 1152 : index
    %27 = vector.load %arg8[%c0_16, %c1152] : memref<8x2048xf32, #tpu.memory_space<vmem>>, vector<8x128xf32>
    tpu.vector_store %arg8[%c0_16, %c1152], %26 {strides = array<i32>} : memref<8x2048xf32, #tpu.memory_space<vmem>>, vector<8x128xf32>,
    %28 = vector.extract_strided_slice %7 {offsets = [80, 0], sizes = [8, 128], strides = [1, 1]} : vector<128x128xf32> to vector<8x128xf32>
    %c0_17 = arith.constant 0 : index
    %c1280 = arith.constant 1280 : index
    %29 = vector.load %arg8[%c0_17, %c1280] : memref<8x2048xf32, #tpu.memory_space<vmem>>, vector<8x128xf32>
    tpu.vector_store %arg8[%c0_17, %c1280], %28 {strides = array<i32>} : memref<8x2048xf32, #tpu.memory_space<vmem>>, vector<8x128xf32>,
    %30 = vector.extract_strided_slice %7 {offsets = [88, 0], sizes = [8, 128], strides = [1, 1]} : vector<128x128xf32> to vector<8x128xf32>
    %c0_18 = arith.constant 0 : index
    %c1408 = arith.constant 1408 : index
    %31 = vector.load %arg8[%c0_18, %c1408] : memref<8x2048xf32, #tpu.memory_space<vmem>>, vector<8x128xf32>
    tpu.vector_store %arg8[%c0_18, %c1408], %30 {strides = array<i32>} : memref<8x2048xf32, #tpu.memory_space<vmem>>, vector<8x128xf32>,
    %32 = vector.extract_strided_slice %7 {offsets = [96, 0], sizes = [8, 128], strides = [1, 1]} : vector<128x128xf32> to vector<8x128xf32>
    %c0_19 = arith.constant 0 : index
    %c1536 = arith.constant 1536 : index
    %33 = vector.load %arg8[%c0_19, %c1536] : memref<8x2048xf32, #tpu.memory_space<vmem>>, vector<8x128xf32>
    tpu.vector_store %arg8[%c0_19, %c1536], %32 {strides = array<i32>} : memref<8x2048xf32, #tpu.memory_space<vmem>>, vector<8x128xf32>,
    %34 = vector.extract_strided_slice %7 {offsets = [104, 0], sizes = [8, 128], strides = [1, 1]} : vector<128x128xf32> to vector<8x128xf32>
    %c0_20 = arith.constant 0 : index
    %c1664 = arith.constant 1664 : index
    %35 = vector.load %arg8[%c0_20, %c1664] : memref<8x2048xf32, #tpu.memory_space<vmem>>, vector<8x128xf32>
    tpu.vector_store %arg8[%c0_20, %c1664], %34 {strides = array<i32>} : memref<8x2048xf32, #tpu.memory_space<vmem>>, vector<8x128xf32>,
    %36 = vector.extract_strided_slice %7 {offsets = [112, 0], sizes = [8, 128], strides = [1, 1]} : vector<128x128xf32> to vector<8x128xf32>
    %c0_21 = arith.constant 0 : index
    %c1792 = arith.constant 1792 : index
    %37 = vector.load %arg8[%c0_21, %c1792] : memref<8x2048xf32, #tpu.memory_space<vmem>>, vector<8x128xf32>
    tpu.vector_store %arg8[%c0_21, %c1792], %36 {strides = array<i32>} : memref<8x2048xf32, #tpu.memory_space<vmem>>, vector<8x128xf32>,
    %38 = vector.extract_strided_slice %7 {offsets = [120, 0], sizes = [8, 128], strides = [1, 1]} : vector<128x128xf32> to vector<8x128xf32>
    %c0_22 = arith.constant 0 : index
    %c1920 = arith.constant 1920 : index
    %39 = vector.load %arg8[%c0_22, %c1920] : memref<8x2048xf32, #tpu.memory_space<vmem>>, vector<8x128xf32>
    tpu.vector_store %arg8[%c0_22, %c1920], %38 {strides = array<i32>} : memref<8x2048xf32, #tpu.memory_space<vmem>>, vector<8x128xf32>,
    %c0_23 = arith.constant 0 : index
    %c0_24 = arith.constant 0 : index
    %40 = vector.load %arg8[%c0_23, %c0_24] : memref<8x2048xf32, #tpu.memory_space<vmem>>, vector<8x2048xf32>
    %41 = arith.truncf %40 : vector<8x2048xf32> to vector<8x2048xbf16>
    %c0_25 = arith.constant 0 : index
    %c0_26 = arith.constant 0 : index
    %42 = vector.load %arg3[%c0_25, %c0_26] : memref<2048x1024xbf16, #tpu.memory_space<vmem>>, vector<2048x1024xbf16>
    %cst_27 = arith.constant dense<0.000000e+00> : vector<8x1024xf32>
    %43 = tpu.matmul %41, %42, %cst_27 {dimension_numbers = #tpu.dot_dimension_numbers<[1], [0], [0], [1], [0, 0, 1, 1], [], []>} : vector<8x2048xbf16>, vector<2048x1024xbf16>, vector<8x1024xf32> -> vector<8x1024xf32>
    %c0_28 = arith.constant 0 : index
    %c0_29 = arith.constant 0 : index
    %44 = vector.load %arg4[%c0_28, %c0_29] : memref<1x1024xf32, #tpu.memory_space<vmem>>, vector<1x1024xf32>
    %45 = vector.broadcast %44 : vector<1x1024xf32> to vector<8x1024xf32>
    %46 = arith.addf %43, %45 : vector<8x1024xf32>
    %cst_30 = arith.constant 0.000000e+00 : f32
    %47 = vector.broadcast %cst_30 : f32 to vector<8x1024xf32>
    %48 = arith.maximumf %46, %47 : vector<8x1024xf32>
    %49 = arith.truncf %48 : vector<8x1024xf32> to vector<8x1024xbf16>
    %c0_31 = arith.constant 0 : index
    %c0_32 = arith.constant 0 : index
    %50 = vector.load %arg5[%c0_31, %c0_32] : memref<1024x128xbf16, #tpu.memory_space<vmem>>, vector<1024x128xbf16>
    %cst_33 = arith.constant dense<0.000000e+00> : vector<8x128xf32>
    %51 = tpu.matmul %49, %50, %cst_33 {dimension_numbers = #tpu.dot_dimension_numbers<[1], [0], [0], [1], [0, 0, 1, 1], [], []>} : vector<8x1024xbf16>, vector<1024x128xbf16>, vector<8x128xf32> -> vector<8x128xf32>
    %c0_34 = arith.constant 0 : index
    %c0_35 = arith.constant 0 : index
    %52 = vector.load %arg6[%c0_34, %c0_35] : memref<1x128xf32, #tpu.memory_space<vmem>>, vector<1x128xf32>
    %53 = vector.broadcast %52 : vector<1x128xf32> to vector<8x128xf32>
    %54 = arith.addf %51, %53 : vector<8x128xf32>
    %c0_36 = arith.constant 0 : index
    %c0_37 = arith.constant 0 : index
    %55 = vector.load %arg7[%c0_36, %c0_37] : memref<8x128xf32, #tpu.memory_space<vmem>>, vector<8x128xf32>
    tpu.vector_store %arg7[%c0_36, %c0_37], %54 {strides = array<i32>} : memref<8x128xf32, #tpu.memory_space<vmem>>, vector<8x128xf32>,
    return
  }
}

</mosaic_0001>

<llo_original>
// kernel: inception_aux_forward.1
$region0: #{inception_aux_forward.1}
  #allocation0 [shape = 'u32[]', space=smem, size = 0x4, offset = 0x4, fixed_abs, tag = 'smem constant byte address 0x4 - core index']
  #allocation1 [shape = 'u32[144,128]{1,0:T(1,128)}', space=vmem, size = 0x12000, scoped, tag = 'internal scratch']
  #allocation2 [shape = 'f32[8,2048]{1,0:T(8,128)}', space=vmem, size = 0x10000, scoped, tag = 'scratch operand']
  %s0 = inlined_call_operand.vmem [shape: f32[128,4], index: 0, kind: input, shape index: {}]
  %s1 = inlined_call_operand.hbm [shape: f32[4,128], index: 1, kind: input, shape index: {}]
  %s2 = inlined_call_operand.hbm [shape: f32[1,128], index: 2, kind: input, shape index: {}]
  %s3 = inlined_call_operand.hbm [shape: bf16[2048,1024], index: 3, kind: input, shape index: {}]
  %s4 = inlined_call_operand.hbm [shape: f32[1,1024], index: 4, kind: input, shape index: {}]
  %s5 = inlined_call_operand.hbm [shape: bf16[1024,128], index: 5, kind: input, shape index: {}]
  %s6 = inlined_call_operand.hbm [shape: f32[1,128], index: 6, kind: input, shape index: {}]
  %s7 = inlined_call_operand.vmem [shape: f32[8,128], index: 7, kind: output, shape index: {}]
  %s8 = sld [smem:[#allocation0]]
  $region62: #{inception_aux_forward.1} parent=0
    _
  %s10 = ssub.s32 1, %s8
  %s11 = scalar_select 0, %s10, %s8
  $region1: #{inception_aux_forward.1} parent=0
    #allocation3 [shape = 'u8[2048]{0}', space=vmem, size = 0x800, scoped, tag = 'input window, operand 1, single buffered']
    #allocation4 [shape = 's32[1]{0}', space=sflag, size = 0x4, scoped, tag = 'scoped memory for inception_aux_forward.1']
    #allocation5 [shape = 'u8[512]{0}', space=vmem, size = 0x400, scoped, tag = 'input window, operand 2, single buffered']
    #allocation6 [shape = 's32[1]{0}', space=sflag, size = 0x4, scoped, tag = 'scoped memory for inception_aux_forward.1']
    #allocation7 [shape = 'u8[4194304]{0}', space=vmem, size = 0x400000, scoped, tag = 'input window, operand 3, single buffered']
    #allocation8 [shape = 'u8[4096]{0}', space=vmem, size = 0x1000, scoped, tag = 'input window, operand 4, single buffered']
    #allocation9 [shape = 's32[1]{0}', space=sflag, size = 0x4, scoped, tag = 'scoped memory for inception_aux_forward.1']
    #allocation10 [shape = 'u8[262144]{0}', space=vmem, size = 0x40000, scoped, tag = 'input window, operand 5, single buffered']
    #allocation11 [shape = 'u8[512]{0}', space=vmem, size = 0x400, scoped, tag = 'input window, operand 6, single buffered']
    #allocation12 [shape = 's32[1]{0}', space=sflag, size = 0x4, scoped, tag = 'scoped memory for inception_aux_forward.1']
    %12 = vsyncpa [#allocation4], 0
    %13 = vsyncpa [#allocation6], 0
    %14 = vsyncpa [#allocation9], 0
    %15 = vsyncpa [#allocation12], 0
    // Predicated region
    $region2: #{inception_aux_forward.1} parent=1 // pred_check
      _
    $region3: #{inception_aux_forward.1} parent=1 // pred_check_branch
      %17 = sbr.rel (0) target = $region5
    $region4: #{inception_aux_forward.1} parent=1 // pred_region
      _
    $region5: #{inception_aux_forward.1} parent=1 // pred_fallthru
      _
    // Predicated region
    $region6: #{inception_aux_forward.1} parent=1 // pred_check
      _
    $region7: #{inception_aux_forward.1} parent=1 // pred_check_branch
      %19 = sbr.rel (0) target = $region9
    $region8: #{inception_aux_forward.1} parent=1 // pred_region
      %s21 = ssub.s32 64, 64
      %22 = vsyncadd [#allocation4], %s21
      %s24 = sshll.u32 [#allocation3], 4
      %s25 = int_to_ptr.vmem [resolvable:$true] %s24
      %27 = dma.hbm_to_vmem [thread:$0]  %s1, 64, %s25, [#allocation4]
    $region9: #{inception_aux_forward.1} parent=1 // pred_fallthru
      _
    // Predicated region
    $region10: #{inception_aux_forward.1} parent=1 // pred_check
      _
    $region11: #{inception_aux_forward.1} parent=1 // pred_check_branch
      %29 = sbr.rel (0) target = $region13
    $region12: #{inception_aux_forward.1} parent=1 // pred_region
      %s31 = ssub.s32 16, 16
      %32 = vsyncadd [#allocation6], %s31
      %s34 = sshll.u32 [#allocation5], 4
      %s35 = int_to_ptr.vmem [resolvable:$true] %s34
      %37 = dma.hbm_to_vmem [thread:$0]  %s2, 16, %s35, [#allocation6]
    $region13: #{inception_aux_forward.1} parent=1 // pred_fallthru
      _
    // Predicated region
    $region14: #{inception_aux_forward.1} parent=1 // pred_check
      _
    $region15: #{inception_aux_forward.1} parent=1 // pred_check_branch
      %39 = sbr.rel (0) target = $region17
    $region16: #{inception_aux_forward.1} parent=1 // pred_region
      %s41 = ssub.s32 131072, 131072
      %42 = vsyncadd [#allocation6], %s41
      %s43 = sshll.u32 [#allocation7], 4
      %s44 = int_to_ptr.vmem [resolvable:$true] %s43
      %49 = dma.hbm_to_vmem [thread:$0]  %s3, 131072, %s44, [#allocation6], 512, 512, 32
    $region17: #{inception_aux_forward.1} parent=1 // pred_fallthru
      _
    // Predicated region
    $region18: #{inception_aux_forward.1} parent=1 // pred_check
      _
    $region19: #{inception_aux_forward.1} parent=1 // pred_check_branch
      %51 = sbr.rel (0) target = $region21
    $region20: #{inception_aux_forward.1} parent=1 // pred_region
      %s53 = ssub.s32 128, 128
      %54 = vsyncadd [#allocation9], %s53
      %s56 = sshll.u32 [#allocation8], 4
      %s57 = int_to_ptr.vmem [resolvable:$true] %s56
      %59 = dma.hbm_to_vmem [thread:$0]  %s4, 128, %s57, [#allocation9]
    $region21: #{inception_aux_forward.1} parent=1 // pred_fallthru
      _
    // Predicated region
    $region22: #{inception_aux_forward.1} parent=1 // pred_check
      _
    $region23: #{inception_aux_forward.1} parent=1 // pred_check_branch
      %61 = sbr.rel (0) target = $region25
    $region24: #{inception_aux_forward.1} parent=1 // pred_region
      %s63 = ssub.s32 8192, 8192
      %64 = vsyncadd [#allocation9], %s63
      %s65 = sshll.u32 [#allocation10], 4
      %s66 = int_to_ptr.vmem [resolvable:$true] %s65
      %71 = dma.hbm_to_vmem [thread:$0]  %s5, 8192, %s66, [#allocation9], 64, 64, 4
    $region25: #{inception_aux_forward.1} parent=1 // pred_fallthru
      _
    // Predicated region
    $region26: #{inception_aux_forward.1} parent=1 // pred_check
      _
    $region27: #{inception_aux_forward.1} parent=1 // pred_check_branch
      %73 = sbr.rel (0) target = $region29
    $region28: #{inception_aux_forward.1} parent=1 // pred_region
      %s75 = ssub.s32 16, 16
      %76 = vsyncadd [#allocation12], %s75
      %s78 = sshll.u32 [#allocation11], 4
      %s79 = int_to_ptr.vmem [resolvable:$true] %s78
      %81 = dma.hbm_to_vmem [thread:$0]  %s6, 16, %s79, [#allocation12]
    $region29: #{inception_aux_forward.1} parent=1 // pred_fallthru
      _
    // Predicated region
    $region30: #{inception_aux_forward.1} parent=1 // pred_check
      _
    $region31: #{inception_aux_forward.1} parent=1 // pred_check_branch
      %83 = sbr.rel (0) target = $region33
    $region32: #{inception_aux_forward.1} parent=1 // pred_region
      %84 = dma.done [#allocation4], 64
    $region33: #{inception_aux_forward.1} parent=1 // pred_fallthru
      _
    // Predicated region
    $region34: #{inception_aux_forward.1} parent=1 // pred_check
      _
    $region35: #{inception_aux_forward.1} parent=1 // pred_check_branch
      %86 = sbr.rel (0) target = $region37
    $region36: #{inception_aux_forward.1} parent=1 // pred_region
      %87 = dma.done [#allocation6], 16
    $region37: #{inception_aux_forward.1} parent=1 // pred_fallthru
      _
    // Predicated region
    $region38: #{inception_aux_forward.1} parent=1 // pred_check
      _
    $region39: #{inception_aux_forward.1} parent=1 // pred_check_branch
      %89 = sbr.rel (0) target = $region41
    $region40: #{inception_aux_forward.1} parent=1 // pred_region
      %90 = dma.done [#allocation6], 131072
    $region41: #{inception_aux_forward.1} parent=1 // pred_fallthru
      _
    // Predicated region
    $region42: #{inception_aux_forward.1} parent=1 // pred_check
      _
    $region43: #{inception_aux_forward.1} parent=1 // pred_check_branch
      %92 = sbr.rel (0) target = $region45
    $region44: #{inception_aux_forward.1} parent=1 // pred_region
      %93 = dma.done [#allocation9], 128
    $region45: #{inception_aux_forward.1} parent=1 // pred_fallthru
      _
    // Predicated region
    $region46: #{inception_aux_forward.1} parent=1 // pred_check
      _
    $region47: #{inception_aux_forward.1} parent=1 // pred_check_branch
      %95 = sbr.rel (0) target = $region49
    $region48: #{inception_aux_forward.1} parent=1 // pred_region
      %96 = dma.done [#allocation9], 8192
    $region49: #{inception_aux_forward.1} parent=1 // pred_fallthru
      _
    // Predicated region
    $region50: #{inception_aux_forward.1} parent=1 // pred_check
      _
    $region51: #{inception_aux_forward.1} parent=1 // pred_check_branch
      %98 = sbr.rel (0) target = $region53
    $region52: #{inception_aux_forward.1} parent=1 // pred_region
      %99 = dma.done [#allocation12], 16
    $region53: #{inception_aux_forward.1} parent=1 // pred_fallthru
      _
    %v101 = vld [vmem:[%s0] sm:$0xff]
    %v102 = vld [vmem:[%s0 + $0x8] sm:$0xff]
    %v103 = vld [vmem:[%s0 + $0x10] sm:$0xff]
    %v104 = vld [vmem:[%s0 + $0x18] sm:$0xff]
    %v105 = vld [vmem:[%s0 + $0x20] sm:$0xff]
    %v106 = vld [vmem:[%s0 + $0x28] sm:$0xff]
    %v107 = vld [vmem:[%s0 + $0x30] sm:$0xff]
    %v108 = vld [vmem:[%s0 + $0x38] sm:$0xff]
    %v109 = vld [vmem:[%s0 + $0x40] sm:$0xff]
    %v110 = vld [vmem:[%s0 + $0x48] sm:$0xff]
    %v111 = vld [vmem:[%s0 + $0x50] sm:$0xff]
    %v112 = vld [vmem:[%s0 + $0x58] sm:$0xff]
    %v113 = vld [vmem:[%s0 + $0x60] sm:$0xff]
    %v114 = vld [vmem:[%s0 + $0x68] sm:$0xff]
    %v115 = vld [vmem:[%s0 + $0x70] sm:$0xff]
    %v116 = vld [vmem:[%s0 + $0x78] sm:$0xff]
    %v117 = vld [vmem:[#allocation3] sm:$0xf]
    %v118 = vld [vmem:[#allocation5] sm:$0x1]
    %v120 = vlaneseq
    %v121 = vshrl.u32 %v120, 7
    %v122 = vsub.s32 0, %v121
    %v123 = vrot.slane %v118, %v122
    %vm125 = vcmask 31744
    %v127 = vsel %vm125, %v101, 0
    %v130 = vsel %vm125, %v102, 0
    %v133 = vsel %vm125, %v103, 0
    %v136 = vsel %vm125, %v104, 0
    %v139 = vsel %vm125, %v105, 0
    %v142 = vsel %vm125, %v106, 0
    %v145 = vsel %vm125, %v107, 0
    %v148 = vsel %vm125, %v108, 0
    %v151 = vsel %vm125, %v109, 0
    %v154 = vsel %vm125, %v110, 0
    %v157 = vsel %vm125, %v111, 0
    %v160 = vsel %vm125, %v112, 0
    %v163 = vsel %vm125, %v113, 0
    %v166 = vsel %vm125, %v114, 0
    %v169 = vsel %vm125, %v115, 0
    %v172 = vsel %vm125, %v116, 0
    %vm174 = vcmask 1043456
    %v176 = vsel %vm174, %v117, 0
    %178 = vmatprep.subr.mxu0 0.0
    %179 = vmatpush1.msra.mxu0 0.0
    %180 = vmatprep.subr.mxu0 0.0
    %181 = vmatpush1.msra.mxu0 0.0
    %182 = vmatprep.subr.mxu0 0.0
    %183 = vmatpush1.msra.mxu0 0.0
    %184 = vmatprep.subr.mxu0 0.0
    %185 = vmatpush1.msra.mxu0 0.0
    %186 = vmatprep.subr.mxu0 0.0
    %187 = vmatpush1.msra.mxu0 0.0
    %188 = vmatprep.subr.mxu0 0.0
    %189 = vmatpush1.msra.mxu0 0.0
    %190 = vmatprep.subr.mxu0 0.0
    %191 = vmatpush1.msra.mxu0 0.0
    %192 = vmatprep.subr.mxu0 0.0
    %193 = vmatpush1.msra.mxu0 0.0
    %194 = vmatprep.subr.mxu0 0.0
    %195 = vmatpush1.msra.mxu0 0.0
    %196 = vmatprep.subr.mxu0 0.0
    %197 = vmatpush1.msra.mxu0 0.0
    %198 = vmatprep.subr.mxu0 0.0
    %199 = vmatpush1.msra.mxu0 0.0
    %200 = vmatprep.subr.mxu0 0.0
    %201 = vmatpush1.msra.mxu0 0.0
    %202 = vmatprep.subr.mxu0 0.0
    %203 = vmatpush1.msra.mxu0 0.0
    %204 = vmatprep.subr.mxu0 0.0
    %205 = vmatpush1.msra.mxu0 0.0
    %206 = vmatprep.subr.mxu0 0.0
    %207 = vmatpush1.msra.mxu0 0.0
    %208 = vmatprep.subr.mxu0 0.0
    %209 = vmatpush1.msra.mxu0 %v176
    %210 = vmatprep.subr.mxu0 0.0
    %211 = vmatpush2.msra.mxu0 0.0
    %212 = vmatprep.subr.mxu0 0.0
    %213 = vmatpush2.msra.mxu0 0.0
    %214 = vmatprep.subr.mxu0 0.0
    %215 = vmatpush2.msra.mxu0 0.0
    %216 = vmatprep.subr.mxu0 0.0
    %217 = vmatpush2.msra.mxu0 0.0
    %218 = vmatprep.subr.mxu0 0.0
    %219 = vmatpush2.msra.mxu0 0.0
    %220 = vmatprep.subr.mxu0 0.0
    %221 = vmatpush2.msra.mxu0 0.0
    %222 = vmatprep.subr.mxu0 0.0
    %223 = vmatpush2.msra.mxu0 0.0
    %224 = vmatprep.subr.mxu0 0.0
    %225 = vmatpush2.msra.mxu0 0.0
    %226 = vmatprep.subr.mxu0 0.0
    %227 = vmatpush2.msra.mxu0 0.0
    %228 = vmatprep.subr.mxu0 0.0
    %229 = vmatpush2.msra.mxu0 0.0
    %230 = vmatprep.subr.mxu0 0.0
    %231 = vmatpush2.msra.mxu0 0.0
    %232 = vmatprep.subr.mxu0 0.0
    %233 = vmatpush2.msra.mxu0 0.0
    %234 = vmatprep.subr.mxu0 0.0
    %235 = vmatpush2.msra.mxu0 0.0
    %236 = vmatprep.subr.mxu0 0.0
    %237 = vmatpush2.msra.mxu0 0.0
    %238 = vmatprep.subr.mxu0 0.0
    %239 = vmatpush2.msra.mxu0 0.0
    %240 = vmatprep.subr.mxu0 0.0
    %241 = vmatpush2.msra.mxu0 0.0
    %242 = vmatprep.mubr.f32.mxu0 0.0
    %243 = vmatmul.mubr.f32.gmra.mxu0 %v127
    %v244 = vpop.f32.mrf.mxu0
    %v245 = vadd.f32 %v123, %v244
    %v246 = vpop.f32.mrf.mxu0
    %247 = vmatprep.mubr.f32.mxu0 0.0
    %248 = vmatmul.mubr.f32.gmra.mxu0 %v130
    %v249 = vpop.f32.mrf.mxu0
    %v250 = vadd.f32 %v123, %v249
    %v251 = vpop.f32.mrf.mxu0
    %252 = vmatprep.mubr.f32.mxu0 0.0
    %253 = vmatmul.mubr.f32.gmra.mxu0 %v133
    %v254 = vpop.f32.mrf.mxu0
    %v255 = vadd.f32 %v123, %v254
    %v256 = vpop.f32.mrf.mxu0
    %257 = vmatprep.mubr.f32.mxu0 0.0
    %258 = vmatmul.mubr.f32.gmra.mxu0 %v136
    %v259 = vpop.f32.mrf.mxu0
    %v260 = vadd.f32 %v123, %v259
    %v261 = vpop.f32.mrf.mxu0
    %262 = vmatprep.mubr.f32.mxu0 0.0
    %263 = vmatmul.mubr.f32.gmra.mxu0 %v139
    %v264 = vpop.f32.mrf.mxu0
    %v265 = vadd.f32 %v123, %v264
    %v266 = vpop.f32.mrf.mxu0
    %267 = vmatprep.mubr.f32.mxu0 0.0
    %268 = vmatmul.mubr.f32.gmra.mxu0 %v142
    %v269 = vpop.f32.mrf.mxu0
    %v270 = vadd.f32 %v123, %v269
    %v271 = vpop.f32.mrf.mxu0
    %272 = vmatprep.mubr.f32.mxu0 0.0
    %273 = vmatmul.mubr.f32.gmra.mxu0 %v145
    %v274 = vpop.f32.mrf.mxu0
    %v275 = vadd.f32 %v123, %v274
    %v276 = vpop.f32.mrf.mxu0
    %277 = vmatprep.mubr.f32.mxu0 0.0
    %278 = vmatmul.mubr.f32.gmra.mxu0 %v148
    %v279 = vpop.f32.mrf.mxu0
    %v280 = vadd.f32 %v123, %v279
    %v281 = vpop.f32.mrf.mxu0
    %282 = vmatprep.mubr.f32.mxu0 0.0
    %283 = vmatmul.mubr.f32.gmra.mxu0 %v151
    %v284 = vpop.f32.mrf.mxu0
    %v285 = vadd.f32 %v123, %v284
    %v286 = vpop.f32.mrf.mxu0
    %287 = vmatprep.mubr.f32.mxu0 0.0
    %288 = vmatmul.mubr.f32.gmra.mxu0 %v154
    %v289 = vpop.f32.mrf.mxu0
    %v290 = vadd.f32 %v123, %v289
    %v291 = vpop.f32.mrf.mxu0
    %292 = vmatprep.mubr.f32.mxu0 0.0
    %293 = vmatmul.mubr.f32.gmra.mxu0 %v157
    %v294 = vpop.f32.mrf.mxu0
    %v295 = vadd.f32 %v123, %v294
    %v296 = vpop.f32.mrf.mxu0
    %297 = vmatprep.mubr.f32.mxu0 0.0
    %298 = vmatmul.mubr.f32.gmra.mxu0 %v160
    %v299 = vpop.f32.mrf.mxu0
    %v300 = vadd.f32 %v123, %v299
    %v301 = vpop.f32.mrf.mxu0
    %302 = vmatprep.mubr.f32.mxu0 0.0
    %303 = vmatmul.mubr.f32.gmra.mxu0 %v163
    %v304 = vpop.f32.mrf.mxu0
    %v305 = vadd.f32 %v123, %v304
    %v306 = vpop.f32.mrf.mxu0
    %307 = vmatprep.mubr.f32.mxu0 0.0
    %308 = vmatmul.mubr.f32.gmra.mxu0 %v166
    %v309 = vpop.f32.mrf.mxu0
    %v310 = vadd.f32 %v123, %v309
    %v311 = vpop.f32.mrf.mxu0
    %312 = vmatprep.mubr.f32.mxu0 0.0
    %313 = vmatmul.mubr.f32.gmra.mxu0 %v169
    %v314 = vpop.f32.mrf.mxu0
    %v315 = vadd.f32 %v123, %v314
    %v316 = vpop.f32.mrf.mxu0
    %317 = vmatprep.mubr.f32.mxu0 0.0
    %318 = vmatmul.mubr.f32.gmra.mxu0 %v172
    %v319 = vpop.f32.mrf.mxu0
    %v320 = vadd.f32 %v123, %v319
    %v321 = vpop.f32.mrf.mxu0
    %322 = vdwg.mxu0
    %v323 = vmax.f32 %v245, 0.0
    %v324 = vmax.f32 %v250, 0.0
    %v325 = vmax.f32 %v255, 0.0
    %v326 = vmax.f32 %v260, 0.0
    %v327 = vmax.f32 %v265, 0.0
    %v328 = vmax.f32 %v270, 0.0
    %v329 = vmax.f32 %v275, 0.0
    %v330 = vmax.f32 %v280, 0.0
    %v331 = vmax.f32 %v285, 0.0
    %v332 = vmax.f32 %v290, 0.0
    %v333 = vmax.f32 %v295, 0.0
    %v334 = vmax.f32 %v300, 0.0
    %v335 = vmax.f32 %v305, 0.0
    %v336 = vmax.f32 %v310, 0.0
    %v337 = vmax.f32 %v315, 0.0
    %v338 = vmax.f32 %v320, 0.0
    %339 = vst [vmem:[#allocation2] sm:$0xff] %v323
    %340 = vst [vmem:[#allocation2 + $0x8] sm:$0xff] %v324
    %341 = vst [vmem:[#allocation2 + $0x10] sm:$0xff] %v325
    %342 = vst [vmem:[#allocation2 + $0x18] sm:$0xff] %v326
    %343 = vst [vmem:[#allocation2 + $0x20] sm:$0xff] %v327
    %344 = vst [vmem:[#allocation2 + $0x28] sm:$0xff] %v328
    %345 = vst [vmem:[#allocation2 + $0x30] sm:$0xff] %v329
    %346 = vst [vmem:[#allocation2 + $0x38] sm:$0xff] %v330
    %347 = vst [vmem:[#allocation2 + $0x40] sm:$0xff] %v331
    %348 = vst [vmem:[#allocation2 + $0x48] sm:$0xff] %v332
    %349 = vst [vmem:[#allocation2 + $0x50] sm:$0xff] %v333
    %350 = vst [vmem:[#allocation2 + $0x58] sm:$0xff] %v334
    %351 = vst [vmem:[#allocation2 + $0x60] sm:$0xff] %v335
    %352 = vst [vmem:[#allocation2 + $0x68] sm:$0xff] %v336
    %353 = vst [vmem:[#allocation2 + $0x70] sm:$0xff] %v337
    %354 = vst [vmem:[#allocation2 + $0x78] sm:$0xff] %v338
    %v355 = vld [vmem:[#allocation2] sm:$0xff]
    %v356 = vld [vmem:[#allocation2 + $0x8] sm:$0xff]
    %v357 = vld [vmem:[#allocation2 + $0x10] sm:$0xff]
    %v358 = vld [vmem:[#allocation2 + $0x18] sm:$0xff]
    %v359 = vld [vmem:[#allocation2 + $0x20] sm:$0xff]
    %v360 = vld [vmem:[#allocation2 + $0x28] sm:$0xff]
    %v361 = vld [vmem:[#allocation2 + $0x30] sm:$0xff]
    %v362 = vld [vmem:[#allocation2 + $0x38] sm:$0xff]
    %v363 = vld [vmem:[#allocation2 + $0x40] sm:$0xff]
    %v364 = vld [vmem:[#allocation2 + $0x48] sm:$0xff]
    %v365 = vld [vmem:[#allocation2 + $0x50] sm:$0xff]
    %v366 = vld [vmem:[#allocation2 + $0x58] sm:$0xff]
    %v367 = vld [vmem:[#allocation2 + $0x60] sm:$0xff]
    %v368 = vld [vmem:[#allocation2 + $0x68] sm:$0xff]
    %v369 = vld [vmem:[#allocation2 + $0x70] sm:$0xff]
    %v370 = vld [vmem:[#allocation2 + $0x78] sm:$0xff]
    %v371 = vpack.c.bf16 %v355, %v355
    %v372 = vpack.c.bf16 %v356, %v356
    %v373 = vpack.c.bf16 %v357, %v357
    %v374 = vpack.c.bf16 %v358, %v358
    %v375 = vpack.c.bf16 %v359, %v359
    %v376 = vpack.c.bf16 %v360, %v360
    %v377 = vpack.c.bf16 %v361, %v361
    %v378 = vpack.c.bf16 %v362, %v362
    %v379 = vpack.c.bf16 %v363, %v363
    %v380 = vpack.c.bf16 %v364, %v364
    %v381 = vpack.c.bf16 %v365, %v365
    %v382 = vpack.c.bf16 %v366, %v366
    %v383 = vpack.c.bf16 %v367, %v367
    %v384 = vpack.c.bf16 %v368, %v368
    %v385 = vpack.c.bf16 %v369, %v369
    %v386 = vpack.c.bf16 %v370, %v370
    %v387 = vld [vmem:[#allocation7] sm:$0xff]
    %v388 = vld [vmem:[#allocation7 + $0x8] sm:$0xff]
    %v389 = vld [vmem:[#allocation7 + $0x10] sm:$0xff]
    %v390 = vld [vmem:[#allocation7 + $0x18] sm:$0xff]
    %v391 = vld [vmem:[#allocation7 + $0x20] sm:$0xff]
    %v392 = vld [vmem:[#allocation7 + $0x28] sm:$0xff]
    %v393 = vld [vmem:[#allocation7 + $0x30] sm:$0xff]
    %v394 = vld [vmem:[#allocation7 + $0x38] sm:$0xff]
    %v395 = vld [vmem:[#allocation7 + $0x40] sm:$0xff]
    %v396 = vld [vmem:[#allocation7 + $0x48] sm:$0xff]
    %v397 = vld [vmem:[#allocation7 + $0x50] sm:$0xff]
    %v398 = vld [vmem:[#allocation7 + $0x58] sm:$0xff]
    %v399 = vld [vmem:[#allocation7 + $0x60] sm:$0xff]
    %v400 = vld [vmem:[#allocation7 + $0x68] sm:$0xff]
    %v401 = vld [vmem:[#allocation7 + $0x70] sm:$0xff]
    %v402 = vld [vmem:[#allocation7 + $0x78] sm:$0xff]
    %v403 = vld [vmem:[#allocation7 + $0x80] sm:$0xff]
    %v404 = vld [vmem:[#allocation7 + $0x88] sm:$0xff]
    %v405 = vld [vmem:[#allocation7 + $0x90] sm:$0xff]
    %v406 = vld [vmem:[#allocation7 + $0x98] sm:$0xff]
    %v407 = vld [vmem:[#allocation7 + $0xa0] sm:$0xff]
    %v408 = vld [vmem:[#allocation7 + $0xa8] sm:$0xff]
    %v409 = vld [vmem:[#allocation7 + $0xb0] sm:$0xff]
    %v410 = vld [vmem:[#allocation7 + $0xb8] sm:$0xff]
    %v411 = vld [vmem:[#allocation7 + $0xc0] sm:$0xff]
    %v412 = vld [vmem:[#allocation7 + $0xc8] sm:$0xff]
    %v413 = vld [vmem:[#allocation7 + $0xd0] sm:$0xff]
    %v414 = vld [vmem:[#allocation7 + $0xd8] sm:$0xff]
    %v415 = vld [vmem:[#allocation7 + $0xe0] sm:$0xff]
    %v416 = vld [vmem:[#allocation7 + $0xe8] sm:$0xff]
    %v417 = vld [vmem:[#allocation7 + $0xf0] sm:$0xff]
    %v418 = vld [vmem:[#allocation7 + $0xf8] sm:$0xff]
    %v419 = vld [vmem:[#allocation7 + $0x100] sm:$0xff]
    %v420 = vld [vmem:[#allocation7 + $0x108] sm:$0xff]
    %v421 = vld [vmem:[#allocation7 + $0x110] sm:$0xff]
    %v422 = vld [vmem:[#allocation7 + $0x118] sm:$0xff]
    %v423 = vld [vmem:[#allocation7 + $0x120] sm:$0xff]
    %v424 = vld [vmem:[#allocation7 + $0x128] sm:$0xff]
    %v425 = vld [vmem:[#allocation7 + $0x130] sm:$0xff]
    %v426 = vld [vmem:[#allocation7 + $0x138] sm:$0xff]
    %v427 = vld [vmem:[#allocation7 + $0x140] sm:$0xff]
    %v428 = vld [vmem:[#allocation7 + $0x148] sm:$0xff]
    %v429 = vld [vmem:[#allocation7 + $0x150] sm:$0xff]
    %v430 = vld [vmem:[#allocation7 + $0x158] sm:$0xff]
    %v431 = vld [vmem:[#allocation7 + $0x160] sm:$0xff]
    %v432 = vld [vmem:[#allocation7 + $0x168] sm:$0xff]
    %v433 = vld [vmem:[#allocation7 + $0x170] sm:$0xff]
    %v434 = vld [vmem:[#allocation7 + $0x178] sm:$0xff]
    %v435 = vld [vmem:[#allocation7 + $0x180] sm:$0xff]
    %v436 = vld [vmem:[#allocation7 + $0x188] sm:$0xff]
    %v437 = vld [vmem:[#allocation7 + $0x190] sm:$0xff]
    %v438 = vld [vmem:[#allocation7 + $0x198] sm:$0xff]
    %v439 = vld [vmem:[#allocation7 + $0x1a0] sm:$0xff]
    %v440 = vld [vmem:[#allocation7 + $0x1a8] sm:$0xff]
    %v441 = vld [vmem:[#allocation7 + $0x1b0] sm:$0xff]
    %v442 = vld [vmem:[#allocation7 + $0x1b8] sm:$0xff]
    %v443 = vld [vmem:[#allocation7 + $0x1c0] sm:$0xff]
    %v444 = vld [vmem:[#allocation7 + $0x1c8] sm:$0xff]
    %v445 = vld [vmem:[#allocation7 + $0x1d0] sm:$0xff]
    %v446 = vld [vmem:[#allocation7 + $0x1d8] sm:$0xff]
    %v447 = vld [vmem:[#allocation7 + $0x1e0] sm:$0xff]
    %v448 = vld [vmem:[#allocation7 + $0x1e8] sm:$0xff]
    %v449 = vld [vmem:[#allocation7 + $0x1f0] sm:$0xff]
    %v450 = vld [vmem:[#allocation7 + $0x1f8] sm:$0xff]
    %v451 = vld [vmem:[#allocation7 + $0x200] sm:$0xff]
    %v452 = vld [vmem:[#allocation7 + $0x208] sm:$0xff]
    %v453 = vld [vmem:[#allocation7 + $0x210] sm:$0xff]
    %v454 = vld [vmem:[#allocation7 + $0x218] sm:$0xff]
    %v455 = vld [vmem:[#allocation7 + $0x220] sm:$0xff]
    %v456 = vld [vmem:[#allocation7 + $0x228] sm:$0xff]
    %v457 = vld [vmem:[#allocation7 + $0x230] sm:$0xff]
    %v458 = vld [vmem:[#allocation7 + $0x238] sm:$0xff]
    %v459 = vld [vmem:[#allocation7 + $0x240] sm:$0xff]
    %v460 = vld [vmem:[#allocation7 + $0x248] sm:$0xff]
    %v461 = vld [vmem:[#allocation7 + $0x250] sm:$0xff]
    %v462 = vld [vmem:[#allocation7 + $0x258] sm:$0xff]
    %v463 = vld [vmem:[#allocation7 + $0x260] sm:$0xff]
    %v464 = vld [vmem:[#allocation7 + $0x268] sm:$0xff]
    %v465 = vld [vmem:[#allocation7 + $0x270] sm:$0xff]
    %v466 = vld [vmem:[#allocation7 + $0x278] sm:$0xff]
    %v467 = vld [vmem:[#allocation7 + $0x280] sm:$0xff]
    %v468 = vld [vmem:[#allocation7 + $0x288] sm:$0xff]
    %v469 = vld [vmem:[#allocation7 + $0x290] sm:$0xff]
    %v470 = vld [vmem:[#allocation7 + $0x298] sm:$0xff]
    %v471 = vld [vmem:[#allocation7 + $0x2a0] sm:$0xff]
    %v472 = vld [vmem:[#allocation7 + $0x2a8] sm:$0xff]
    %v473 = vld [vmem:[#allocation7 + $0x2b0] sm:$0xff]
    %v474 = vld [vmem:[#allocation7 + $0x2b8] sm:$0xff]
    %v475 = vld [vmem:[#allocation7 + $0x2c0] sm:$0xff]
    %v476 = vld [vmem:[#allocation7 + $0x2c8] sm:$0xff]
    %v477 = vld [vmem:[#allocation7 + $0x2d0] sm:$0xff]
    %v478 = vld [vmem:[#allocation7 + $0x2d8] sm:$0xff]
    %v479 = vld [vmem:[#allocation7 + $0x2e0] sm:$0xff]
    %v480 = vld [vmem:[#allocation7 + $0x2e8] sm:$0xff]
    %v481 = vld [vmem:[#allocation7 + $0x2f0] sm:$0xff]
    %v482 = vld [vmem:[#allocation7 + $0x2f8] sm:$0xff]
    %v483 = vld [vmem:[#allocation7 + $0x300] sm:$0xff]
    %v484 = vld [vmem:[#allocation7 + $0x308] sm:$0xff]
    %v485 = vld [vmem:[#allocation7 + $0x310] sm:$0xff]
    %v486 = vld [vmem:[#allocation7 + $0x318] sm:$0xff]
    %v487 = vld [vmem:[#allocation7 + $0x320] sm:$0xff]
    %v488 = vld [vmem:[#allocation7 + $0x328] sm:$0xff]
    %v489 = vld [vmem:[#allocation7 + $0x330] sm:$0xff]
    %v490 = vld [vmem:[#allocation7 + $0x338] sm:$0xff]
    %v491 = vld [vmem:[#allocation7 + $0x340] sm:$0xff]
    %v492 = vld [vmem:[#allocation7 + $0x348] sm:$0xff]
    %v493 = vld [vmem:[#allocation7 + $0x350] sm:$0xff]
    %v494 = vld [vmem:[#allocation7 + $0x358] sm:$0xff]
    %v495 = vld [vmem:[#allocation7 + $0x360] sm:$0xff]
    %v496 = vld [vmem:[#allocation7 + $0x368] sm:$0xff]
    %v497 = vld [vmem:[#allocation7 + $0x370] sm:$0xff]
    %v498 = vld [vmem:[#allocation7 + $0x378] sm:$0xff]
    %v499 = vld [vmem:[#allocation7 + $0x380] sm:$0xff]
    %v500 = vld [vmem:[#allocation7 + $0x388] sm:$0xff]
    %v501 = vld [vmem:[#allocation7 + $0x390] sm:$0xff]
    %v502 = vld [vmem:[#allocation7 + $0x398] sm:$0xff]
    %v503 = vld [vmem:[#allocation7 + $0x3a0] sm:$0xff]
    %v504 = vld [vmem:[#allocation7 + $0x3a8] sm:$0xff]
    %v505 = vld [vmem:[#allocation7 + $0x3b0] sm:$0xff]
    %v506 = vld [vmem:[#allocation7 + $0x3b8] sm:$0xff]
    %v507 = vld [vmem:[#allocation7 + $0x3c0] sm:$0xff]
    %v508 = vld [vmem:[#allocation7 + $0x3c8] sm:$0xff]
    %v509 = vld [vmem:[#allocation7 + $0x3d0] sm:$0xff]
    %v510 = vld [vmem:[#allocation7 + $0x3d8] sm:$0xff]
    %v511 = vld [vmem:[#allocation7 + $0x3e0] sm:$0xff]
    %v512 = vld [vmem:[#allocation7 + $0x3e8] sm:$0xff]
    %v513 = vld [vmem:[#allocation7 + $0x3f0] sm:$0xff]
    %v514 = vld [vmem:[#allocation7 + $0x3f8] sm:$0xff]
    %v515 = vld [vmem:[#allocation7 + $0x400] sm:$0xff]
    %v516 = vld [vmem:[#allocation7 + $0x408] sm:$0xff]
    %v517 = vld [vmem:[#allocation7 + $0x410] sm:$0xff]
    %v518 = vld [vmem:[#allocation7 + $0x418] sm:$0xff]
    %v519 = vld [vmem:[#allocation7 + $0x420] sm:$0xff]
    %v520 = vld [vmem:[#allocation7 + $0x428] sm:$0xff]
    %v521 = vld [vmem:[#allocation7 + $0x430] sm:$0xff]
    %v522 = vld [vmem:[#allocation7 + $0x438] sm:$0xff]
    %v523 = vld [vmem:[#allocation7 + $0x440] sm:$0xff]
    %v524 = vld [vmem:[#allocation7 + $0x448] sm:$0xff]
    %v525 = vld [vmem:[#allocation7 + $0x450] sm:$0xff]
    %v526 = vld [vmem:[#allocation7 + $0x458] sm:$0xff]
    %v527 = vld [vmem:[#allocation7 + $0x460] sm:$0xff]
    %v528 = vld [vmem:[#allocation7 + $0x468] sm:$0xff]
    %v529 = vld [vmem:[#allocation7 + $0x470] sm:$0xff]
    %v530 = vld [vmem:[#allocation7 + $0x478] sm:$0xff]
    %v531 = vld [vmem:[#allocation7 + $0x480] sm:$0xff]
    %v532 = vld [vmem:[#allocation7 + $0x488] sm:$0xff]
    %v533 = vld [vmem:[#allocation7 + $0x490] sm:$0xff]
    %v534 = vld [vmem:[#allocation7 + $0x498] sm:$0xff]
    %v535 = vld [vmem:[#allocation7 + $0x4a0] sm:$0xff]
    %v536 = vld [vmem:[#allocation7 + $0x4a8] sm:$0xff]
    %v537 = vld [vmem:[#allocation7 + $0x4b0] sm:$0xff]
    %v538 = vld [vmem:[#allocation7 + $0x4b8] sm:$0xff]
    %v539 = vld [vmem:[#allocation7 + $0x4c0] sm:$0xff]
    %v540 = vld [vmem:[#allocation7 + $0x4c8] sm:$0xff]
    %v541 = vld [vmem:[#allocation7 + $0x4d0] sm:$0xff]
    %v542 = vld [vmem:[#allocation7 + $0x4d8] sm:$0xff]
    %v543 = vld [vmem:[#allocation7 + $0x4e0] sm:$0xff]
    %v544 = vld [vmem:[#allocation7 + $0x4e8] sm:$0xff]
    %v545 = vld [vmem:[#allocation7 + $0x4f0] sm:$0xff]
    %v546 = vld [vmem:[#allocation7 + $0x4f8] sm:$0xff]
    %v547 = vld [vmem:[#allocation7 + $0x500] sm:$0xff]
    %v548 = vld [vmem:[#allocation7 + $0x508] sm:$0xff]
    %v549 = vld [vmem:[#allocation7 + $0x510] sm:$0xff]
    %v550 = vld [vmem:[#allocation7 + $0x518] sm:$0xff]
    %v551 = vld [vmem:[#allocation7 + $0x520] sm:$0xff]
    %v552 = vld [vmem:[#allocation7 + $0x528] sm:$0xff]
    %v553 = vld [vmem:[#allocation7 + $0x530] sm:$0xff]
    %v554 = vld [vmem:[#allocation7 + $0x538] sm:$0xff]
    %v555 = vld [vmem:[#allocation7 + $0x540] sm:$0xff]
    %v556 = vld [vmem:[#allocation7 + $0x548] sm:$0xff]
    %v557 = vld [vmem:[#allocation7 + $0x550] sm:$0xff]
    %v558 = vld [vmem:[#allocation7 + $0x558] sm:$0xff]
    %v559 = vld [vmem:[#allocation7 + $0x560] sm:$0xff]
    %v560 = vld [vmem:[#allocation7 + $0x568] sm:$0xff]
    %v561 = vld [vmem:[#allocation7 + $0x570] sm:$0xff]
    %v562 = vld [vmem:[#allocation7 + $0x578] sm:$0xff]
    %v563 = vld [vmem:[#allocation7 + $0x580] sm:$0xff]
    %v564 = vld [vmem:[#allocation7 + $0x588] sm:$0xff]
    %v565 = vld [vmem:[#allocation7 + $0x590] sm:$0xff]
    %v566 = vld [vmem:[#allocation7 + $0x598] sm:$0xff]
    %v567 = vld [vmem:[#allocation7 + $0x5a0] sm:$0xff]
    %v568 = vld [vmem:[#allocation7 + $0x5a8] sm:$0xff]
    %v569 = vld [vmem:[#allocation7 + $0x5b0] sm:$0xff]
    %v570 = vld [vmem:[#allocation7 + $0x5b8] sm:$0xff]
    %v571 = vld [vmem:[#allocation7 + $0x5c0] sm:$0xff]
    %v572 = vld [vmem:[#allocation7 + $0x5c8] sm:$0xff]
    %v573 = vld [vmem:[#allocation7 + $0x5d0] sm:$0xff]
    %v574 = vld [vmem:[#allocation7 + $0x5d8] sm:$0xff]
    %v575 = vld [vmem:[#allocation7 + $0x5e0] sm:$0xff]
    %v576 = vld [vmem:[#allocation7 + $0x5e8] sm:$0xff]
    %v577 = vld [vmem:[#allocation7 + $0x5f0] sm:$0xff]
    %v578 = vld [vmem:[#allocation7 + $0x5f8] sm:$0xff]
    %v579 = vld [vmem:[#allocation7 + $0x600] sm:$0xff]
    %v580 = vld [vmem:[#allocation7 + $0x608] sm:$0xff]
    %v581 = vld [vmem:[#allocation7 + $0x610] sm:$0xff]
    %v582 = vld [vmem:[#allocation7 + $0x618] sm:$0xff]
    %v583 = vld [vmem:[#allocation7 + $0x620] sm:$0xff]
    %v584 = vld [vmem:[#allocation7 + $0x628] sm:$0xff]
    %v585 = vld [vmem:[#allocation7 + $0x630] sm:$0xff]
    %v586 = vld [vmem:[#allocation7 + $0x638] sm:$0xff]
    %v587 = vld [vmem:[#allocation7 + $0x640] sm:$0xff]
    %v588 = vld [vmem:[#allocation7 + $0x648] sm:$0xff]
    %v589 = vld [vmem:[#allocation7 + $0x650] sm:$0xff]
    %v590 = vld [vmem:[#allocation7 + $0x658] sm:$0xff]
    %v591 = vld [vmem:[#allocation7 + $0x660] sm:$0xff]
    %v592 = vld [vmem:[#allocation7 + $0x668] sm:$0xff]
    %v593 = vld [vmem:[#allocation7 + $0x670] sm:$0xff]
    %v594 = vld [vmem:[#allocation7 + $0x678] sm:$0xff]
    %v595 = vld [vmem:[#allocation7 + $0x680] sm:$0xff]
    %v596 = vld [vmem:[#allocation7 + $0x688] sm:$0xff]
    %v597 = vld [vmem:[#allocation7 + $0x690] sm:$0xff]
    %v598 = vld [vmem:[#allocation7 + $0x698] sm:$0xff]
    %v599 = vld [vmem:[#allocation7 + $0x6a0] sm:$0xff]
    %v600 = vld [vmem:[#allocation7 + $0x6a8] sm:$0xff]
    %v601 = vld [vmem:[#allocation7 + $0x6b0] sm:$0xff]
    %v602 = vld [vmem:[#allocation7 + $0x6b8] sm:$0xff]
    %v603 = vld [vmem:[#allocation7 + $0x6c0] sm:$0xff]
    %v604 = vld [vmem:[#allocation7 + $0x6c8] sm:$0xff]
    %v605 = vld [vmem:[#allocation7 + $0x6d0] sm:$0xff]
    %v606 = vld [vmem:[#allocation7 + $0x6d8] sm:$0xff]
    %v607 = vld [vmem:[#allocation7 + $0x6e0] sm:$0xff]
    %v608 = vld [vmem:[#allocation7 + $0x6e8] sm:$0xff]
    %v609 = vld [vmem:[#allocation7 + $0x6f0] sm:$0xff]
    %v610 = vld [vmem:[#allocation7 + $0x6f8] sm:$0xff]
    %v611 = vld [vmem:[#allocation7 + $0x700] sm:$0xff]
    %v612 = vld [vmem:[#allocation7 + $0x708] sm:$0xff]
    %v613 = vld [vmem:[#allocation7 + $0x710] sm:$0xff]
    %v614 = vld [vmem:[#allocation7 + $0x718] sm:$0xff]
    %v615 = vld [vmem:[#allocation7 + $0x720] sm:$0xff]
    %v616 = vld [vmem:[#allocation7 + $0x728] sm:$0xff]
    %v617 = vld [vmem:[#allocation7 + $0x730] sm:$0xff]
    %v618 = vld [vmem:[#allocation7 + $0x738] sm:$0xff]
    %v619 = vld [vmem:[#allocation7 + $0x740] sm:$0xff]
    %v620 = vld [vmem:[#allocation7 + $0x748] sm:$0xff]
    %v621 = vld [vmem:[#allocation7 + $0x750] sm:$0xff]
    %v622 = vld [vmem:[#allocation7 + $0x758] sm:$0xff]
    %v623 = vld [vmem:[#allocation7 + $0x760] sm:$0xff]
    %v624 = vld [vmem:[#allocation7 + $0x768] sm:$0xff]
    %v625 = vld [vmem:[#allocation7 + $0x770] sm:$0xff]
    %v626 = vld [vmem:[#allocation7 + $0x778] sm:$0xff]
    %v627 = vld [vmem:[#allocation7 + $0x780] sm:$0xff]
    %v628 = vld [vmem:[#allocation7 + $0x788] sm:$0xff]
    %v629 = vld [vmem:[#allocation7 + $0x790] sm:$0xff]
    %v630 = vld [vmem:[#allocation7 + $0x798] sm:$0xff]
    %v631 = vld [vmem:[#allocation7 + $0x7a0] sm:$0xff]
    %v632 = vld [vmem:[#allocation7 + $0x7a8] sm:$0xff]
    %v633 = vld [vmem:[#allocation7 + $0x7b0] sm:$0xff]
    %v634 = vld [vmem:[#allocation7 + $0x7b8] sm:$0xff]
    %v635 = vld [vmem:[#allocation7 + $0x7c0] sm:$0xff]
    %v636 = vld [vmem:[#allocation7 + $0x7c8] sm:$0xff]
    %v637 = vld [vmem:[#allocation7 + $0x7d0] sm:$0xff]
    %v638 = vld [vmem:[#allocation7 + $0x7d8] sm:$0xff]
    %v639 = vld [vmem:[#allocation7 + $0x7e0] sm:$0xff]
    %v640 = vld [vmem:[#allocation7 + $0x7e8] sm:$0xff]
    %v641 = vld [vmem:[#allocation7 + $0x7f0] sm:$0xff]
    %v642 = vld [vmem:[#allocation7 + $0x7f8] sm:$0xff]
    %v643 = vld [vmem:[#allocation7 + $0x800] sm:$0xff]
    %v644 = vld [vmem:[#allocation7 + $0x808] sm:$0xff]
    %v645 = vld [vmem:[#allocation7 + $0x810] sm:$0xff]
    %v646 = vld [vmem:[#allocation7 + $0x818] sm:$0xff]
    %v647 = vld [vmem:[#allocation7 + $0x820] sm:$0xff]
    %v648 = vld [vmem:[#allocation7 + $0x828] sm:$0xff]
    %v649 = vld [vmem:[#allocation7 + $0x830] sm:$0xff]
    %v650 = vld [vmem:[#allocation7 + $0x838] sm:$0xff]
    %v651 = vld [vmem:[#allocation7 + $0x840] sm:$0xff]
    %v652 = vld [vmem:[#allocation7 + $0x848] sm:$0xff]
    %v653 = vld [vmem:[#allocation7 + $0x850] sm:$0xff]
    %v654 = vld [vmem:[#allocation7 + $0x858] sm:$0xff]
    %v655 = vld [vmem:[#allocation7 + $0x860] sm:$0xff]
    %v656 = vld [vmem:[#allocation7 + $0x868] sm:$0xff]
    %v657 = vld [vmem:[#allocation7 + $0x870] sm:$0xff]
    %v658 = vld [vmem:[#allocation7 + $0x878] sm:$0xff]
    %v659 = vld [vmem:[#allocation7 + $0x880] sm:$0xff]
    %v660 = vld [vmem:[#allocation7 + $0x888] sm:$0xff]
    %v661 = vld [vmem:[#allocation7 + $0x890] sm:$0xff]
    %v662 = vld [vmem:[#allocation7 + $0x898] sm:$0xff]
    %v663 = vld [vmem:[#allocation7 + $0x8a0] sm:$0xff]
    %v664 = vld [vmem:[#allocation7 + $0x8a8] sm:$0xff]
    %v665 = vld [vmem:[#allocation7 + $0x8b0] sm:$0xff]
    %v666 = vld [vmem:[#allocation7 + $0x8b8] sm:$0xff]
    %v667 = vld [vmem:[#allocation7 + $0x8c0] sm:$0xff]
    %v668 = vld [vmem:[#allocation7 + $0x8c8] sm:$0xff]
    %v669 = vld [vmem:[#allocation7 + $0x8d0] sm:$0xff]
    %v670 = vld [vmem:[#allocation7 + $0x8d8] sm:$0xff]
    %v671 = vld [vmem:[#allocation7 + $0x8e0] sm:$0xff]
    %v672 = vld [vmem:[#allocation7 + $0x8e8] sm:$0xff]
    %v673 = vld [vmem:[#allocation7 + $0x8f0] sm:$0xff]
    %v674 = vld [vmem:[#allocation7 + $0x8f8] sm:$0xff]
    %v675 = vld [vmem:[#allocation7 + $0x900] sm:$0xff]
    %v676 = vld [vmem:[#allocation7 + $0x908] sm:$0xff]
    %v677 = vld [vmem:[#allocation7 + $0x910] sm:$0xff]
    %v678 = vld [vmem:[#allocation7 + $0x918] sm:$0xff]
    %v679 = vld [vmem:[#allocation7 + $0x920] sm:$0xff]
    %v680 = vld [vmem:[#allocation7 + $0x928] sm:$0xff]
    %v681 = vld [vmem:[#allocation7 + $0x930] sm:$0xff]
    %v682 = vld [vmem:[#allocation7 + $0x938] sm:$0xff]
    %v683 = vld [vmem:[#allocation7 + $0x940] sm:$0xff]
    %v684 = vld [vmem:[#allocation7 + $0x948] sm:$0xff]
    %v685 = vld [vmem:[#allocation7 + $0x950] sm:$0xff]
    %v686 = vld [vmem:[#allocation7 + $0x958] sm:$0xff]
    %v687 = vld [vmem:[#allocation7 + $0x960] sm:$0xff]
    %v688 = vld [vmem:[#allocation7 + $0x968] sm:$0xff]
    %v689 = vld [vmem:[#allocation7 + $0x970] sm:$0xff]
    %v690 = vld [vmem:[#allocation7 + $0x978] sm:$0xff]
    %v691 = vld [vmem:[#allocation7 + $0x980] sm:$0xff]
    %v692 = vld [vmem:[#allocation7 + $0x988] sm:$0xff]
    %v693 = vld [vmem:[#allocation7 + $0x990] sm:$0xff]
    %v694 = vld [vmem:[#allocation7 + $0x998] sm:$0xff]
    %v695 = vld [vmem:[#allocation7 + $0x9a0] sm:$0xff]
    %v696 = vld [vmem:[#allocation7 + $0x9a8] sm:$0xff]
    %v697 = vld [vmem:[#allocation7 + $0x9b0] sm:$0xff]
    %v698 = vld [vmem:[#allocation7 + $0x9b8] sm:$0xff]
    %v699 = vld [vmem:[#allocation7 + $0x9c0] sm:$0xff]
    %v700 = vld [vmem:[#allocation7 + $0x9c8] sm:$0xff]
    %v701 = vld [vmem:[#allocation7 + $0x9d0] sm:$0xff]
    %v702 = vld [vmem:[#allocation7 + $0x9d8] sm:$0xff]
    %v703 = vld [vmem:[#allocation7 + $0x9e0] sm:$0xff]
    %v704 = vld [vmem:[#allocation7 + $0x9e8] sm:$0xff]
    %v705 = vld [vmem:[#allocation7 + $0x9f0] sm:$0xff]
    %v706 = vld [vmem:[#allocation7 + $0x9f8] sm:$0xff]
    %v707 = vld [vmem:[#allocation7 + $0xa00] sm:$0xff]
    %v708 = vld [vmem:[#allocation7 + $0xa08] sm:$0xff]
    %v709 = vld [vmem:[#allocation7 + $0xa10] sm:$0xff]
    %v710 = vld [vmem:[#allocation7 + $0xa18] sm:$0xff]
    %v711 = vld [vmem:[#allocation7 + $0xa20] sm:$0xff]
    %v712 = vld [vmem:[#allocation7 + $0xa28] sm:$0xff]
    %v713 = vld [vmem:[#allocation7 + $0xa30] sm:$0xff]
    %v714 = vld [vmem:[#allocation7 + $0xa38] sm:$0xff]
    %v715 = vld [vmem:[#allocation7 + $0xa40] sm:$0xff]
    %v716 = vld [vmem:[#allocation7 + $0xa48] sm:$0xff]
    %v717 = vld [vmem:[#allocation7 + $0xa50] sm:$0xff]
    %v718 = vld [vmem:[#allocation7 + $0xa58] sm:$0xff]
    %v719 = vld [vmem:[#allocation7 + $0xa60] sm:$0xff]
    %v720 = vld [vmem:[#allocation7 + $0xa68] sm:$0xff]
    %v721 = vld [vmem:[#allocation7 + $0xa70] sm:$0xff]
    %v722 = vld [vmem:[#allocation7 + $0xa78] sm:$0xff]
    %v723 = vld [vmem:[#allocation7 + $0xa80] sm:$0xff]
    %v724 = vld [vmem:[#allocation7 + $0xa88] sm:$0xff]
    %v725 = vld [vmem:[#allocation7 + $0xa90] sm:$0xff]
    %v726 = vld [vmem:[#allocation7 + $0xa98] sm:$0xff]
    %v727 = vld [vmem:[#allocation7 + $0xaa0] sm:$0xff]
    %v728 = vld [vmem:[#allocation7 + $0xaa8] sm:$0xff]
    %v729 = vld [vmem:[#allocation7 + $0xab0] sm:$0xff]
    %v730 = vld [vmem:[#allocation7 + $0xab8] sm:$0xff]
    %v731 = vld [vmem:[#allocation7 + $0xac0] sm:$0xff]
    %v732 = vld [vmem:[#allocation7 + $0xac8] sm:$0xff]
    %v733 = vld [vmem:[#allocation7 + $0xad0] sm:$0xff]
    %v734 = vld [vmem:[#allocation7 + $0xad8] sm:$0xff]
    %v735 = vld [vmem:[#allocation7 + $0xae0] sm:$0xff]
    %v736 = vld [vmem:[#allocation7 + $0xae8] sm:$0xff]
    %v737 = vld [vmem:[#allocation7 + $0xaf0] sm:$0xff]
    %v738 = vld [vmem:[#allocation7 + $0xaf8] sm:$0xff]
    %v739 = vld [vmem:[#allocation7 + $0xb00] sm:$0xff]
    %v740 = vld [vmem:[#allocation7 + $0xb08] sm:$0xff]
    %v741 = vld [vmem:[#allocation7 + $0xb10] sm:$0xff]
    %v742 = vld [vmem:[#allocation7 + $0xb18] sm:$0xff]
    %v743 = vld [vmem:[#allocation7 + $0xb20] sm:$0xff]
    %v744 = vld [vmem:[#allocation7 + $0xb28] sm:$0xff]
    %v745 = vld [vmem:[#allocation7 + $0xb30] sm:$0xff]
    %v746 = vld [vmem:[#allocation7 + $0xb38] sm:$0xff]
    %v747 = vld [vmem:[#allocation7 + $0xb40] sm:$0xff]
    %v748 = vld [vmem:[#allocation7 + $0xb48] sm:$0xff]
    %v749 = vld [vmem:[#allocation7 + $0xb50] sm:$0xff]
    %v750 = vld [vmem:[#allocation7 + $0xb58] sm:$0xff]
    %v751 = vld [vmem:[#allocation7 + $0xb60] sm:$0xff]
    %v752 = vld [vmem:[#allocation7 + $0xb68] sm:$0xff]
    %v753 = vld [vmem:[#allocation7 + $0xb70] sm:$0xff]
    %v754 = vld [vmem:[#allocation7 + $0xb78] sm:$0xff]
    %v755 = vld [vmem:[#allocation7 + $0xb80] sm:$0xff]
    %v756 = vld [vmem:[#allocation7 + $0xb88] sm:$0xff]
    %v757 = vld [vmem:[#allocation7 + $0xb90] sm:$0xff]
    %v758 = vld [vmem:[#allocation7 + $0xb98] sm:$0xff]
    %v759 = vld [vmem:[#allocation7 + $0xba0] sm:$0xff]
    %v760 = vld [vmem:[#allocation7 + $0xba8] sm:$0xff]
    %v761 = vld [vmem:[#allocation7 + $0xbb0] sm:$0xff]
    %v762 = vld [vmem:[#allocation7 + $0xbb8] sm:$0xff]
    %v763 = vld [vmem:[#allocation7 + $0xbc0] sm:$0xff]
    %v764 = vld [vmem:[#allocation7 + $0xbc8] sm:$0xff]
    %v765 = vld [vmem:[#allocation7 + $0xbd0] sm:$0xff]
    %v766 = vld [vmem:[#allocation7 + $0xbd8] sm:$0xff]
    %v767 = vld [vmem:[#allocation7 + $0xbe0] sm:$0xff]
    %v768 = vld [vmem:[#allocation7 + $0xbe8] sm:$0xff]
    %v769 = vld [vmem:[#allocation7 + $0xbf0] sm:$0xff]
    %v770 = vld [vmem:[#allocation7 + $0xbf8] sm:$0xff]
    %v771 = vld [vmem:[#allocation7 + $0xc00] sm:$0xff]
    %v772 = vld [vmem:[#allocation7 + $0xc08] sm:$0xff]
    %v773 = vld [vmem:[#allocation7 + $0xc10] sm:$0xff]
    %v774 = vld [vmem:[#allocation7 + $0xc18] sm:$0xff]
    %v775 = vld [vmem:[#allocation7 + $0xc20] sm:$0xff]
    %v776 = vld [vmem:[#allocation7 + $0xc28] sm:$0xff]
    %v777 = vld [vmem:[#allocation7 + $0xc30] sm:$0xff]
    %v778 = vld [vmem:[#allocation7 + $0xc38] sm:$0xff]
    %v779 = vld [vmem:[#allocation7 + $0xc40] sm:$0xff]
    %v780 = vld [vmem:[#allocation7 + $0xc48] sm:$0xff]
    %v781 = vld [vmem:[#allocation7 + $0xc50] sm:$0xff]
    %v782 = vld [vmem:[#allocation7 + $0xc58] sm:$0xff]
    %v783 = vld [vmem:[#allocation7 + $0xc60] sm:$0xff]
    %v784 = vld [vmem:[#allocation7 + $0xc68] sm:$0xff]
    %v785 = vld [vmem:[#allocation7 + $0xc70] sm:$0xff]
    %v786 = vld [vmem:[#allocation7 + $0xc78] sm:$0xff]
    %v787 = vld [vmem:[#allocation7 + $0xc80] sm:$0xff]
    %v788 = vld [vmem:[#allocation7 + $0xc88] sm:$0xff]
    %v789 = vld [vmem:[#allocation7 + $0xc90] sm:$0xff]
    %v790 = vld [vmem:[#allocation7 + $0xc98] sm:$0xff]
    %v791 = vld [vmem:[#allocation7 + $0xca0] sm:$0xff]
    %v792 = vld [vmem:[#allocation7 + $0xca8] sm:$0xff]
    %v793 = vld [vmem:[#allocation7 + $0xcb0] sm:$0xff]
    %v794 = vld [vmem:[#allocation7 + $0xcb8] sm:$0xff]
    %v795 = vld [vmem:[#allocation7 + $0xcc0] sm:$0xff]
    %v796 = vld [vmem:[#allocation7 + $0xcc8] sm:$0xff]
    %v797 = vld [vmem:[#allocation7 + $0xcd0] sm:$0xff]
    %v798 = vld [vmem:[#allocation7 + $0xcd8] sm:$0xff]
    %v799 = vld [vmem:[#allocation7 + $0xce0] sm:$0xff]
    %v800 = vld [vmem:[#allocation7 + $0xce8] sm:$0xff]
    %v801 = vld [vmem:[#allocation7 + $0xcf0] sm:$0xff]
    %v802 = vld [vmem:[#allocation7 + $0xcf8] sm:$0xff]
    %v803 = vld [vmem:[#allocation7 + $0xd00] sm:$0xff]
    %v804 = vld [vmem:[#allocation7 + $0xd08] sm:$0xff]
    %v805 = vld [vmem:[#allocation7 + $0xd10] sm:$0xff]
    %v806 = vld [vmem:[#allocation7 + $0xd18] sm:$0xff]
    %v807 = vld [vmem:[#allocation7 + $0xd20] sm:$0xff]
    %v808 = vld [vmem:[#allocation7 + $0xd28] sm:$0xff]
    %v809 = vld [vmem:[#allocation7 + $0xd30] sm:$0xff]
    %v810 = vld [vmem:[#allocation7 + $0xd38] sm:$0xff]
    %v811 = vld [vmem:[#allocation7 + $0xd40] sm:$0xff]
    %v812 = vld [vmem:[#allocation7 + $0xd48] sm:$0xff]
    %v813 = vld [vmem:[#allocation7 + $0xd50] sm:$0xff]
    %v814 = vld [vmem:[#allocation7 + $0xd58] sm:$0xff]
    %v815 = vld [vmem:[#allocation7 + $0xd60] sm:$0xff]
    %v816 = vld [vmem:[#allocation7 + $0xd68] sm:$0xff]
    %v817 = vld [vmem:[#allocation7 + $0xd70] sm:$0xff]
    %v818 = vld [vmem:[#allocation7 + $0xd78] sm:$0xff]
    %v819 = vld [vmem:[#allocation7 + $0xd80] sm:$0xff]
    %v820 = vld [vmem:[#allocation7 + $0xd88] sm:$0xff]
    %v821 = vld [vmem:[#allocation7 + $0xd90] sm:$0xff]
    %v822 = vld [vmem:[#allocation7 + $0xd98] sm:$0xff]
    %v823 = vld [vmem:[#allocation7 + $0xda0] sm:$0xff]
    %v824 = vld [vmem:[#allocation7 + $0xda8] sm:$0xff]
    %v825 = vld [vmem:[#allocation7 + $0xdb0] sm:$0xff]
    %v826 = vld [vmem:[#allocation7 + $0xdb8] sm:$0xff]
    %v827 = vld [vmem:[#allocation7 + $0xdc0] sm:$0xff]
    %v828 = vld [vmem:[#allocation7 + $0xdc8] sm:$0xff]
    %v829 = vld [vmem:[#allocation7 + $0xdd0] sm:$0xff]
    %v830 = vld [vmem:[#allocation7 + $0xdd8] sm:$0xff]
    %v831 = vld [vmem:[#allocation7 + $0xde0] sm:$0xff]
    %v832 = vld [vmem:[#allocation7 + $0xde8] sm:$0xff]
    %v833 = vld [vmem:[#allocation7 + $0xdf0] sm:$0xff]
    %v834 = vld [vmem:[#allocation7 + $0xdf8] sm:$0xff]
    %v835 = vld [vmem:[#allocation7 + $0xe00] sm:$0xff]
    %v836 = vld [vmem:[#allocation7 + $0xe08] sm:$0xff]
    %v837 = vld [vmem:[#allocation7 + $0xe10] sm:$0xff]
    %v838 = vld [vmem:[#allocation7 + $0xe18] sm:$0xff]
    %v839 = vld [vmem:[#allocation7 + $0xe20] sm:$0xff]
    %v840 = vld [vmem:[#allocation7 + $0xe28] sm:$0xff]
    %v841 = vld [vmem:[#allocation7 + $0xe30] sm:$0xff]
    %v842 = vld [vmem:[#allocation7 + $0xe38] sm:$0xff]
    %v843 = vld [vmem:[#allocation7 + $0xe40] sm:$0xff]
    %v844 = vld [vmem:[#allocation7 + $0xe48] sm:$0xff]
    %v845 = vld [vmem:[#allocation7 + $0xe50] sm:$0xff]
    %v846 = vld [vmem:[#allocation7 + $0xe58] sm:$0xff]
    %v847 = vld [vmem:[#allocation7 + $0xe60] sm:$0xff]
    %v848 = vld [vmem:[#allocation7 + $0xe68] sm:$0xff]
    %v849 = vld [vmem:[#allocation7 + $0xe70] sm:$0xff]
    %v850 = vld [vmem:[#allocation7 + $0xe78] sm:$0xff]
    %v851 = vld [vmem:[#allocation7 + $0xe80] sm:$0xff]
    %v852 = vld [vmem:[#allocation7 + $0xe88] sm:$0xff]
    %v853 = vld [vmem:[#allocation7 + $0xe90] sm:$0xff]
    %v854 = vld [vmem:[#allocation7 + $0xe98] sm:$0xff]
    %v855 = vld [vmem:[#allocation7 + $0xea0] sm:$0xff]
    %v856 = vld [vmem:[#allocation7 + $0xea8] sm:$0xff]
    %v857 = vld [vmem:[#allocation7 + $0xeb0] sm:$0xff]
    %v858 = vld [vmem:[#allocation7 + $0xeb8] sm:$0xff]
    %v859 = vld [vmem:[#allocation7 + $0xec0] sm:$0xff]
    %v860 = vld [vmem:[#allocation7 + $0xec8] sm:$0xff]
    %v861 = vld [vmem:[#allocation7 + $0xed0] sm:$0xff]
    %v862 = vld [vmem:[#allocation7 + $0xed8] sm:$0xff]
    %v863 = vld [vmem:[#allocation7 + $0xee0] sm:$0xff]
    %v864 = vld [vmem:[#allocation7 + $0xee8] sm:$0xff]
    %v865 = vld [vmem:[#allocation7 + $0xef0] sm:$0xff]
    %v866 = vld [vmem:[#allocation7 + $0xef8] sm:$0xff]
    %v867 = vld [vmem:[#allocation7 + $0xf00] sm:$0xff]
    %v868 = vld [vmem:[#allocation7 + $0xf08] sm:$0xff]
    %v869 = vld [vmem:[#allocation7 + $0xf10] sm:$0xff]
    %v870 = vld [vmem:[#allocation7 + $0xf18] sm:$0xff]
    %v871 = vld [vmem:[#allocation7 + $0xf20] sm:$0xff]
    %v872 = vld [vmem:[#allocation7 + $0xf28] sm:$0xff]
    %v873 = vld [vmem:[#allocation7 + $0xf30] sm:$0xff]
    %v874 = vld [vmem:[#allocation7 + $0xf38] sm:$0xff]
    %v875 = vld [vmem:[#allocation7 + $0xf40] sm:$0xff]
    %v876 = vld [vmem:[#allocation7 + $0xf48] sm:$0xff]
    %v877 = vld [vmem:[#allocation7 + $0xf50] sm:$0xff]
    %v878 = vld [vmem:[#allocation7 + $0xf58] sm:$0xff]
    %v879 = vld [vmem:[#allocation7 + $0xf60] sm:$0xff]
    %v880 = vld [vmem:[#allocation7 + $0xf68] sm:$0xff]
    %v881 = vld [vmem:[#allocation7 + $0xf70] sm:$0xff]
    %v882 = vld [vmem:[#allocation7 + $0xf78] sm:$0xff]
    %v883 = vld [vmem:[#allocation7 + $0xf80] sm:$0xff]
    %v884 = vld [vmem:[#allocation7 + $0xf88] sm:$0xff]
    %v885 = vld [vmem:[#allocation7 + $0xf90] sm:$0xff]
    %v886 = vld [vmem:[#allocation7 + $0xf98] sm:$0xff]
    %v887 = vld [vmem:[#allocation7 + $0xfa0] sm:$0xff]
    %v888 = vld [vmem:[#allocation7 + $0xfa8] sm:$0xff]
    %v889 = vld [vmem:[#allocation7 + $0xfb0] sm:$0xff]
    %v890 = vld [vmem:[#allocation7 + $0xfb8] sm:$0xff]
    %v891 = vld [vmem:[#allocation7 + $0xfc0] sm:$0xff]
    %v892 = vld [vmem:[#allocation7 + $0xfc8] sm:$0xff]
    %v893 = vld [vmem:[#allocation7 + $0xfd0] sm:$0xff]
    %v894 = vld [vmem:[#allocation7 + $0xfd8] sm:$0xff]
    %v895 = vld [vmem:[#allocation7 + $0xfe0] sm:$0xff]
    %v896 = vld [vmem:[#allocation7 + $0xfe8] sm:$0xff]
    %v897 = vld [vmem:[#allocation7 + $0xff0] sm:$0xff]
    %v898 = vld [vmem:[#allocation7 + $0xff8] sm:$0xff]
    %v899 = vld [vmem:[#allocation7 + $0x1000] sm:$0xff]
    %v900 = vld [vmem:[#allocation7 + $0x1008] sm:$0xff]
    %v901 = vld [vmem:[#allocation7 + $0x1010] sm:$0xff]
    %v902 = vld [vmem:[#allocation7 + $0x1018] sm:$0xff]
    %v903 = vld [vmem:[#allocation7 + $0x1020] sm:$0xff]
    %v904 = vld [vmem:[#allocation7 + $0x1028] sm:$0xff]
    %v905 = vld [vmem:[#allocation7 + $0x1030] sm:$0xff]
    %v906 = vld [vmem:[#allocation7 + $0x1038] sm:$0xff]
    %v907 = vld [vmem:[#allocation7 + $0x1040] sm:$0xff]
    %v908 = vld [vmem:[#allocation7 + $0x1048] sm:$0xff]
    %v909 = vld [vmem:[#allocation7 + $0x1050] sm:$0xff]
    %v910 = vld [vmem:[#allocation7 + $0x1058] sm:$0xff]
    %v911 = vld [vmem:[#allocation7 + $0x1060] sm:$0xff]
    %v912 = vld [vmem:[#allocation7 + $0x1068] sm:$0xff]
    %v913 = vld [vmem:[#allocation7 + $0x1070] sm:$0xff]
    %v914 = vld [vmem:[#allocation7 + $0x1078] sm:$0xff]
    %v915 = vld [vmem:[#allocation7 + $0x1080] sm:$0xff]
    %v916 = vld [vmem:[#allocation7 + $0x1088] sm:$0xff]
    %v917 = vld [vmem:[#allocation7 + $0x1090] sm:$0xff]
    %v918 = vld [vmem:[#allocation7 + $0x1098] sm:$0xff]
    %v919 = vld [vmem:[#allocation7 + $0x10a0] sm:$0xff]
    %v920 = vld [vmem:[#allocation7 + $0x10a8] sm:$0xff]
    %v921 = vld [vmem:[#allocation7 + $0x10b0] sm:$0xff]
    %v922 = vld [vmem:[#allocation7 + $0x10b8] sm:$0xff]
    %v923 = vld [vmem:[#allocation7 + $0x10c0] sm:$0xff]
    %v924 = vld [vmem:[#allocation7 + $0x10c8] sm:$0xff]
    %v925 = vld [vmem:[#allocation7 + $0x10d0] sm:$0xff]
    %v926 = vld [vmem:[#allocation7 + $0x10d8] sm:$0xff]
    %v927 = vld [vmem:[#allocation7 + $0x10e0] sm:$0xff]
    %v928 = vld [vmem:[#allocation7 + $0x10e8] sm:$0xff]
    %v929 = vld [vmem:[#allocation7 + $0x10f0] sm:$0xff]
    %v930 = vld [vmem:[#allocation7 + $0x10f8] sm:$0xff]
    %v931 = vld [vmem:[#allocation7 + $0x1100] sm:$0xff]
    %v932 = vld [vmem:[#allocation7 + $0x1108] sm:$0xff]
    %v933 = vld [vmem:[#allocation7 + $0x1110] sm:$0xff]
    %v934 = vld [vmem:[#allocation7 + $0x1118] sm:$0xff]
    %v935 = vld [vmem:[#allocation7 + $0x1120] sm:$0xff]
    %v936 = vld [vmem:[#allocation7 + $0x1128] sm:$0xff]
    %v937 = vld [vmem:[#allocation7 + $0x1130] sm:$0xff]
    %v938 = vld [vmem:[#allocation7 + $0x1138] sm:$0xff]
    %v939 = vld [vmem:[#allocation7 + $0x1140] sm:$0xff]
    %v940 = vld [vmem:[#allocation7 + $0x1148] sm:$0xff]
    %v941 = vld [vmem:[#allocation7 + $0x1150] sm:$0xff]
    %v942 = vld [vmem:[#allocation7 + $0x1158] sm:$0xff]
    %v943 = vld [vmem:[#allocation7 + $0x1160] sm:$0xff]
    %v944 = vld [vmem:[#allocation7 + $0x1168] sm:$0xff]
    %v945 = vld [vmem:[#allocation7 + $0x1170] sm:$0xff]
    %v946 = vld [vmem:[#allocation7 + $0x1178] sm:$0xff]
    %v947 = vld [vmem:[#allocation7 + $0x1180] sm:$0xff]
    %v948 = vld [vmem:[#allocation7 + $0x1188] sm:$0xff]
    %v949 = vld [vmem:[#allocation7 + $0x1190] sm:$0xff]
    %v950 = vld [vmem:[#allocation7 + $0x1198] sm:$0xff]
    %v951 = vld [vmem:[#allocation7 + $0x11a0] sm:$0xff]
    %v952 = vld [vmem:[#allocation7 + $0x11a8] sm:$0xff]
    %v953 = vld [vmem:[#allocation7 + $0x11b0] sm:$0xff]
    %v954 = vld [vmem:[#allocation7 + $0x11b8] sm:$0xff]
    %v955 = vld [vmem:[#allocation7 + $0x11c0] sm:$0xff]
    %v956 = vld [vmem:[#allocation7 + $0x11c8] sm:$0xff]
    %v957 = vld [vmem:[#allocation7 + $0x11d0] sm:$0xff]
    %v958 = vld [vmem:[#allocation7 + $0x11d8] sm:$0xff]
    %v959 = vld [vmem:[#allocation7 + $0x11e0] sm:$0xff]
    %v960 = vld [vmem:[#allocation7 + $0x11e8] sm:$0xff]
    %v961 = vld [vmem:[#allocation7 + $0x11f0] sm:$0xff]
    %v962 = vld [vmem:[#allocation7 + $0x11f8] sm:$0xff]
    %v963 = vld [vmem:[#allocation7 + $0x1200] sm:$0xff]
    %v964 = vld [vmem:[#allocation7 + $0x1208] sm:$0xff]
    %v965 = vld [vmem:[#allocation7 + $0x1210] sm:$0xff]
    %v966 = vld [vmem:[#allocation7 + $0x1218] sm:$0xff]
    %v967 = vld [vmem:[#allocation7 + $0x1220] sm:$0xff]
    %v968 = vld [vmem:[#allocation7 + $0x1228] sm:$0xff]
    %v969 = vld [vmem:[#allocation7 + $0x1230] sm:$0xff]
    %v970 = vld [vmem:[#allocation7 + $0x1238] sm:$0xff]
    %v971 = vld [vmem:[#allocation7 + $0x1240] sm:$0xff]
    %v972 = vld [vmem:[#allocation7 + $0x1248] sm:$0xff]
    %v973 = vld [vmem:[#allocation7 + $0x1250] sm:$0xff]
    %v974 = vld [vmem:[#allocation7 + $0x1258] sm:$0xff]
    %v975 = vld [vmem:[#allocation7 + $0x1260] sm:$0xff]
    %v976 = vld [vmem:[#allocation7 + $0x1268] sm:$0xff]
    %v977 = vld [vmem:[#allocation7 + $0x1270] sm:$0xff]
    %v978 = vld [vmem:[#allocation7 + $0x1278] sm:$0xff]
    %v979 = vld [vmem:[#allocation7 + $0x1280] sm:$0xff]
    %v980 = vld [vmem:[#allocation7 + $0x1288] sm:$0xff]
    %v981 = vld [vmem:[#allocation7 + $0x1290] sm:$0xff]
    %v982 = vld [vmem:[#allocation7 + $0x1298] sm:$0xff]
    %v983 = vld [vmem:[#allocation7 + $0x12a0] sm:$0xff]
    %v984 = vld [vmem:[#allocation7 + $0x12a8] sm:$0xff]
    %v985 = vld [vmem:[#allocation7 + $0x12b0] sm:$0xff]
    %v986 = vld [vmem:[#allocation7 + $0x12b8] sm:$0xff]
    %v987 = vld [vmem:[#allocation7 + $0x12c0] sm:$0xff]
    %v988 = vld [vmem:[#allocation7 + $0x12c8] sm:$0xff]
    %v989 = vld [vmem:[#allocation7 + $0x12d0] sm:$0xff]
    %v990 = vld [vmem:[#allocation7 + $0x12d8] sm:$0xff]
    %v991 = vld [vmem:[#allocation7 + $0x12e0] sm:$0xff]
    %v992 = vld [vmem:[#allocation7 + $0x12e8] sm:$0xff]
    %v993 = vld [vmem:[#allocation7 + $0x12f0] sm:$0xff]
    %v994 = vld [vmem:[#allocation7 + $0x12f8] sm:$0xff]
    %v995 = vld [vmem:[#allocation7 + $0x1300] sm:$0xff]
    %v996 = vld [vmem:[#allocation7 + $0x1308] sm:$0xff]
    %v997 = vld [vmem:[#allocation7 + $0x1310] sm:$0xff]
    %v998 = vld [vmem:[#allocation7 + $0x1318] sm:$0xff]
    %v999 = vld [vmem:[#allocation7 + $0x1320] sm:$0xff]
    %v1000 = vld [vmem:[#allocation7 + $0x1328] sm:$0xff]
    %v1001 = vld [vmem:[#allocation7 + $0x1330] sm:$0xff]
    %v1002 = vld [vmem:[#allocation7 + $0x1338] sm:$0xff]
    %v1003 = vld [vmem:[#allocation7 + $0x1340] sm:$0xff]
    %v1004 = vld [vmem:[#allocation7 + $0x1348] sm:$0xff]
    %v1005 = vld [vmem:[#allocation7 + $0x1350] sm:$0xff]
    %v1006 = vld [vmem:[#allocation7 + $0x1358] sm:$0xff]
    %v1007 = vld [vmem:[#allocation7 + $0x1360] sm:$0xff]
    %v1008 = vld [vmem:[#allocation7 + $0x1368] sm:$0xff]
    %v1009 = vld [vmem:[#allocation7 + $0x1370] sm:$0xff]
    %v1010 = vld [vmem:[#allocation7 + $0x1378] sm:$0xff]
    %v1011 = vld [vmem:[#allocation7 + $0x1380] sm:$0xff]
    %v1012 = vld [vmem:[#allocation7 + $0x1388] sm:$0xff]
    %v1013 = vld [vmem:[#allocation7 + $0x1390] sm:$0xff]
    %v1014 = vld [vmem:[#allocation7 + $0x1398] sm:$0xff]
    %v1015 = vld [vmem:[#allocation7 + $0x13a0] sm:$0xff]
    %v1016 = vld [vmem:[#allocation7 + $0x13a8] sm:$0xff]
    %v1017 = vld [vmem:[#allocation7 + $0x13b0] sm:$0xff]
    %v1018 = vld [vmem:[#allocation7 + $0x13b8] sm:$0xff]
    %v1019 = vld [vmem:[#allocation7 + $0x13c0] sm:$0xff]
    %v1020 = vld [vmem:[#allocation7 + $0x13c8] sm:$0xff]
    %v1021 = vld [vmem:[#allocation7 + $0x13d0] sm:$0xff]
    %v1022 = vld [vmem:[#allocation7 + $0x13d8] sm:$0xff]
    %v1023 = vld [vmem:[#allocation7 + $0x13e0] sm:$0xff]
    %v1024 = vld [vmem:[#allocation7 + $0x13e8] sm:$0xff]
    %v1025 = vld [vmem:[#allocation7 + $0x13f0] sm:$0xff]
    %v1026 = vld [vmem:[#allocation7 + $0x13f8] sm:$0xff]
    %v1027 = vld [vmem:[#allocation7 + $0x1400] sm:$0xff]
    %v1028 = vld [vmem:[#allocation7 + $0x1408] sm:$0xff]
    %v1029 = vld [vmem:[#allocation7 + $0x1410] sm:$0xff]
    %v1030 = vld [vmem:[#allocation7 + $0x1418] sm:$0xff]
    %v1031 = vld [vmem:[#allocation7 + $0x1420] sm:$0xff]
    %v1032 = vld [vmem:[#allocation7 + $0x1428] sm:$0xff]
    %v1033 = vld [vmem:[#allocation7 + $0x1430] sm:$0xff]
    %v1034 = vld [vmem:[#allocation7 + $0x1438] sm:$0xff]
    %v1035 = vld [vmem:[#allocation7 + $0x1440] sm:$0xff]
    %v1036 = vld [vmem:[#allocation7 + $0x1448] sm:$0xff]
    %v1037 = vld [vmem:[#allocation7 + $0x1450] sm:$0xff]
    %v1038 = vld [vmem:[#allocation7 + $0x1458] sm:$0xff]
    %v1039 = vld [vmem:[#allocation7 + $0x1460] sm:$0xff]
    %v1040 = vld [vmem:[#allocation7 + $0x1468] sm:$0xff]
    %v1041 = vld [vmem:[#allocation7 + $0x1470] sm:$0xff]
    %v1042 = vld [vmem:[#allocation7 + $0x1478] sm:$0xff]
    %v1043 = vld [vmem:[#allocation7 + $0x1480] sm:$0xff]
    %v1044 = vld [vmem:[#allocation7 + $0x1488] sm:$0xff]
    %v1045 = vld [vmem:[#allocation7 + $0x1490] sm:$0xff]
    %v1046 = vld [vmem:[#allocation7 + $0x1498] sm:$0xff]
    %v1047 = vld [vmem:[#allocation7 + $0x14a0] sm:$0xff]
    %v1048 = vld [vmem:[#allocation7 + $0x14a8] sm:$0xff]
    %v1049 = vld [vmem:[#allocation7 + $0x14b0] sm:$0xff]
    %v1050 = vld [vmem:[#allocation7 + $0x14b8] sm:$0xff]
    %v1051 = vld [vmem:[#allocation7 + $0x14c0] sm:$0xff]
    %v1052 = vld [vmem:[#allocation7 + $0x14c8] sm:$0xff]
    %v1053 = vld [vmem:[#allocation7 + $0x14d0] sm:$0xff]
    %v1054 = vld [vmem:[#allocation7 + $0x14d8] sm:$0xff]
    %v1055 = vld [vmem:[#allocation7 + $0x14e0] sm:$0xff]
    %v1056 = vld [vmem:[#allocation7 + $0x14e8] sm:$0xff]
    %v1057 = vld [vmem:[#allocation7 + $0x14f0] sm:$0xff]
    %v1058 = vld [vmem:[#allocation7 + $0x14f8] sm:$0xff]
    %v1059 = vld [vmem:[#allocation7 + $0x1500] sm:$0xff]
    %v1060 = vld [vmem:[#allocation7 + $0x1508] sm:$0xff]
    %v1061 = vld [vmem:[#allocation7 + $0x1510] sm:$0xff]
    %v1062 = vld [vmem:[#allocation7 + $0x1518] sm:$0xff]
    %v1063 = vld [vmem:[#allocation7 + $0x1520] sm:$0xff]
    %v1064 = vld [vmem:[#allocation7 + $0x1528] sm:$0xff]
    %v1065 = vld [vmem:[#allocation7 + $0x1530] sm:$0xff]
    %v1066 = vld [vmem:[#allocation7 + $0x1538] sm:$0xff]
    %v1067 = vld [vmem:[#allocation7 + $0x1540] sm:$0xff]
    %v1068 = vld [vmem:[#allocation7 + $0x1548] sm:$0xff]
    %v1069 = vld [vmem:[#allocation7 + $0x1550] sm:$0xff]
    %v1070 = vld [vmem:[#allocation7 + $0x1558] sm:$0xff]
    %v1071 = vld [vmem:[#allocation7 + $0x1560] sm:$0xff]
    %v1072 = vld [vmem:[#allocation7 + $0x1568] sm:$0xff]
    %v1073 = vld [vmem:[#allocation7 + $0x1570] sm:$0xff]
    %v1074 = vld [vmem:[#allocation7 + $0x1578] sm:$0xff]
    %v1075 = vld [vmem:[#allocation7 + $0x1580] sm:$0xff]
    %v1076 = vld [vmem:[#allocation7 + $0x1588] sm:$0xff]
    %v1077 = vld [vmem:[#allocation7 + $0x1590] sm:$0xff]
    %v1078 = vld [vmem:[#allocation7 + $0x1598] sm:$0xff]
    %v1079 = vld [vmem:[#allocation7 + $0x15a0] sm:$0xff]
    %v1080 = vld [vmem:[#allocation7 + $0x15a8] sm:$0xff]
    %v1081 = vld [vmem:[#allocation7 + $0x15b0] sm:$0xff]
    %v1082 = vld [vmem:[#allocation7 + $0x15b8] sm:$0xff]
    %v1083 = vld [vmem:[#allocation7 + $0x15c0] sm:$0xff]
    %v1084 = vld [vmem:[#allocation7 + $0x15c8] sm:$0xff]
    %v1085 = vld [vmem:[#allocation7 + $0x15d0] sm:$0xff]
    %v1086 = vld [vmem:[#allocation7 + $0x15d8] sm:$0xff]
    %v1087 = vld [vmem:[#allocation7 + $0x15e0] sm:$0xff]
    %v1088 = vld [vmem:[#allocation7 + $0x15e8] sm:$0xff]
    %v1089 = vld [vmem:[#allocation7 + $0x15f0] sm:$0xff]
    %v1090 = vld [vmem:[#allocation7 + $0x15f8] sm:$0xff]
    %v1091 = vld [vmem:[#allocation7 + $0x1600] sm:$0xff]
    %v1092 = vld [vmem:[#allocation7 + $0x1608] sm:$0xff]
    %v1093 = vld [vmem:[#allocation7 + $0x1610] sm:$0xff]
    %v1094 = vld [vmem:[#allocation7 + $0x1618] sm:$0xff]
    %v1095 = vld [vmem:[#allocation7 + $0x1620] sm:$0xff]
    %v1096 = vld [vmem:[#allocation7 + $0x1628] sm:$0xff]
    %v1097 = vld [vmem:[#allocation7 + $0x1630] sm:$0xff]
    %v1098 = vld [vmem:[#allocation7 + $0x1638] sm:$0xff]
    %v1099 = vld [vmem:[#allocation7 + $0x1640] sm:$0xff]
    %v1100 = vld [vmem:[#allocation7 + $0x1648] sm:$0xff]
    %v1101 = vld [vmem:[#allocation7 + $0x1650] sm:$0xff]
    %v1102 = vld [vmem:[#allocation7 + $0x1658] sm:$0xff]
    %v1103 = vld [vmem:[#allocation7 + $0x1660] sm:$0xff]
    %v1104 = vld [vmem:[#allocation7 + $0x1668] sm:$0xff]
    %v1105 = vld [vmem:[#allocation7 + $0x1670] sm:$0xff]
    %v1106 = vld [vmem:[#allocation7 + $0x1678] sm:$0xff]
    %v1107 = vld [vmem:[#allocation7 + $0x1680] sm:$0xff]
    %v1108 = vld [vmem:[#allocation7 + $0x1688] sm:$0xff]
    %v1109 = vld [vmem:[#allocation7 + $0x1690] sm:$0xff]
    %v1110 = vld [vmem:[#allocation7 + $0x1698] sm:$0xff]
    %v1111 = vld [vmem:[#allocation7 + $0x16a0] sm:$0xff]
    %v1112 = vld [vmem:[#allocation7 + $0x16a8] sm:$0xff]
    %v1113 = vld [vmem:[#allocation7 + $0x16b0] sm:$0xff]
    %v1114 = vld [vmem:[#allocation7 + $0x16b8] sm:$0xff]
    %v1115 = vld [vmem:[#allocation7 + $0x16c0] sm:$0xff]
    %v1116 = vld [vmem:[#allocation7 + $0x16c8] sm:$0xff]
    %v1117 = vld [vmem:[#allocation7 + $0x16d0] sm:$0xff]
    %v1118 = vld [vmem:[#allocation7 + $0x16d8] sm:$0xff]
    %v1119 = vld [vmem:[#allocation7 + $0x16e0] sm:$0xff]
    %v1120 = vld [vmem:[#allocation7 + $0x16e8] sm:$0xff]
    %v1121 = vld [vmem:[#allocation7 + $0x16f0] sm:$0xff]
    %v1122 = vld [vmem:[#allocation7 + $0x16f8] sm:$0xff]
    %v1123 = vld [vmem:[#allocation7 + $0x1700] sm:$0xff]
    %v1124 = vld [vmem:[#allocation7 + $0x1708] sm:$0xff]
    %v1125 = vld [vmem:[#allocation7 + $0x1710] sm:$0xff]
    %v1126 = vld [vmem:[#allocation7 + $0x1718] sm:$0xff]
    %v1127 = vld [vmem:[#allocation7 + $0x1720] sm:$0xff]
    %v1128 = vld [vmem:[#allocation7 + $0x1728] sm:$0xff]
    %v1129 = vld [vmem:[#allocation7 + $0x1730] sm:$0xff]
    %v1130 = vld [vmem:[#allocation7 + $0x1738] sm:$0xff]
    %v1131 = vld [vmem:[#allocation7 + $0x1740] sm:$0xff]
    %v1132 = vld [vmem:[#allocation7 + $0x1748] sm:$0xff]
    %v1133 = vld [vmem:[#allocation7 + $0x1750] sm:$0xff]
    %v1134 = vld [vmem:[#allocation7 + $0x1758] sm:$0xff]
    %v1135 = vld [vmem:[#allocation7 + $0x1760] sm:$0xff]
    %v1136 = vld [vmem:[#allocation7 + $0x1768] sm:$0xff]
    %v1137 = vld [vmem:[#allocation7 + $0x1770] sm:$0xff]
    %v1138 = vld [vmem:[#allocation7 + $0x1778] sm:$0xff]
    %v1139 = vld [vmem:[#allocation7 + $0x1780] sm:$0xff]
    %v1140 = vld [vmem:[#allocation7 + $0x1788] sm:$0xff]
    %v1141 = vld [vmem:[#allocation7 + $0x1790] sm:$0xff]
    %v1142 = vld [vmem:[#allocation7 + $0x1798] sm:$0xff]
    %v1143 = vld [vmem:[#allocation7 + $0x17a0] sm:$0xff]
    %v1144 = vld [vmem:[#allocation7 + $0x17a8] sm:$0xff]
    %v1145 = vld [vmem:[#allocation7 + $0x17b0] sm:$0xff]
    %v1146 = vld [vmem:[#allocation7 + $0x17b8] sm:$0xff]
    %v1147 = vld [vmem:[#allocation7 + $0x17c0] sm:$0xff]
    %v1148 = vld [vmem:[#allocation7 + $0x17c8] sm:$0xff]
    %v1149 = vld [vmem:[#allocation7 + $0x17d0] sm:$0xff]
    %v1150 = vld [vmem:[#allocation7 + $0x17d8] sm:$0xff]
    %v1151 = vld [vmem:[#allocation7 + $0x17e0] sm:$0xff]
    %v1152 = vld [vmem:[#allocation7 + $0x17e8] sm:$0xff]
    %v1153 = vld [vmem:[#allocation7 + $0x17f0] sm:$0xff]
    %v1154 = vld [vmem:[#allocation7 + $0x17f8] sm:$0xff]
    %v1155 = vld [vmem:[#allocation7 + $0x1800] sm:$0xff]
    %v1156 = vld [vmem:[#allocation7 + $0x1808] sm:$0xff]
    %v1157 = vld [vmem:[#allocation7 + $0x1810] sm:$0xff]
    %v1158 = vld [vmem:[#allocation7 + $0x1818] sm:$0xff]
    %v1159 = vld [vmem:[#allocation7 + $0x1820] sm:$0xff]
    %v1160 = vld [vmem:[#allocation7 + $0x1828] sm:$0xff]
    %v1161 = vld [vmem:[#allocation7 + $0x1830] sm:$0xff]
    %v1162 = vld [vmem:[#allocation7 + $0x1838] sm:$0xff]
    %v1163 = vld [vmem:[#allocation7 + $0x1840] sm:$0xff]
    %v1164 = vld [vmem:[#allocation7 + $0x1848] sm:$0xff]
    %v1165 = vld [vmem:[#allocation7 + $0x1850] sm:$0xff]
    %v1166 = vld [vmem:[#allocation7 + $0x1858] sm:$0xff]
    %v1167 = vld [vmem:[#allocation7 + $0x1860] sm:$0xff]
    %v1168 = vld [vmem:[#allocation7 + $0x1868] sm:$0xff]
    %v1169 = vld [vmem:[#allocation7 + $0x1870] sm:$0xff]
    %v1170 = vld [vmem:[#allocation7 + $0x1878] sm:$0xff]
    %v1171 = vld [vmem:[#allocation7 + $0x1880] sm:$0xff]
    %v1172 = vld [vmem:[#allocation7 + $0x1888] sm:$0xff]
    %v1173 = vld [vmem:[#allocation7 + $0x1890] sm:$0xff]
    %v1174 = vld [vmem:[#allocation7 + $0x1898] sm:$0xff]
    %v1175 = vld [vmem:[#allocation7 + $0x18a0] sm:$0xff]
    %v1176 = vld [vmem:[#allocation7 + $0x18a8] sm:$0xff]
    %v1177 = vld [vmem:[#allocation7 + $0x18b0] sm:$0xff]
    %v1178 = vld [vmem:[#allocation7 + $0x18b8] sm:$0xff]
    %v1179 = vld [vmem:[#allocation7 + $0x18c0] sm:$0xff]
    %v1180 = vld [vmem:[#allocation7 + $0x18c8] sm:$0xff]
    %v1181 = vld [vmem:[#allocation7 + $0x18d0] sm:$0xff]
    %v1182 = vld [vmem:[#allocation7 + $0x18d8] sm:$0xff]
    %v1183 = vld [vmem:[#allocation7 + $0x18e0] sm:$0xff]
    %v1184 = vld [vmem:[#allocation7 + $0x18e8] sm:$0xff]
    %v1185 = vld [vmem:[#allocation7 + $0x18f0] sm:$0xff]
    %v1186 = vld [vmem:[#allocation7 + $0x18f8] sm:$0xff]
    %v1187 = vld [vmem:[#allocation7 + $0x1900] sm:$0xff]
    %v1188 = vld [vmem:[#allocation7 + $0x1908] sm:$0xff]
    %v1189 = vld [vmem:[#allocation7 + $0x1910] sm:$0xff]
    %v1190 = vld [vmem:[#allocation7 + $0x1918] sm:$0xff]
    %v1191 = vld [vmem:[#allocation7 + $0x1920] sm:$0xff]
    %v1192 = vld [vmem:[#allocation7 + $0x1928] sm:$0xff]
    %v1193 = vld [vmem:[#allocation7 + $0x1930] sm:$0xff]
    %v1194 = vld [vmem:[#allocation7 + $0x1938] sm:$0xff]
    %v1195 = vld [vmem:[#allocation7 + $0x1940] sm:$0xff]
    %v1196 = vld [vmem:[#allocation7 + $0x1948] sm:$0xff]
    %v1197 = vld [vmem:[#allocation7 + $0x1950] sm:$0xff]
    %v1198 = vld [vmem:[#allocation7 + $0x1958] sm:$0xff]
    %v1199 = vld [vmem:[#allocation7 + $0x1960] sm:$0xff]
    %v1200 = vld [vmem:[#allocation7 + $0x1968] sm:$0xff]
    %v1201 = vld [vmem:[#allocation7 + $0x1970] sm:$0xff]
    %v1202 = vld [vmem:[#allocation7 + $0x1978] sm:$0xff]
    %v1203 = vld [vmem:[#allocation7 + $0x1980] sm:$0xff]
    %v1204 = vld [vmem:[#allocation7 + $0x1988] sm:$0xff]
    %v1205 = vld [vmem:[#allocation7 + $0x1990] sm:$0xff]
    %v1206 = vld [vmem:[#allocation7 + $0x1998] sm:$0xff]
    %v1207 = vld [vmem:[#allocation7 + $0x19a0] sm:$0xff]
    %v1208 = vld [vmem:[#allocation7 + $0x19a8] sm:$0xff]
    %v1209 = vld [vmem:[#allocation7 + $0x19b0] sm:$0xff]
    %v1210 = vld [vmem:[#allocation7 + $0x19b8] sm:$0xff]
    %v1211 = vld [vmem:[#allocation7 + $0x19c0] sm:$0xff]
    %v1212 = vld [vmem:[#allocation7 + $0x19c8] sm:$0xff]
    %v1213 = vld [vmem:[#allocation7 + $0x19d0] sm:$0xff]
    %v1214 = vld [vmem:[#allocation7 + $0x19d8] sm:$0xff]
    %v1215 = vld [vmem:[#allocation7 + $0x19e0] sm:$0xff]
    %v1216 = vld [vmem:[#allocation7 + $0x19e8] sm:$0xff]
    %v1217 = vld [vmem:[#allocation7 + $0x19f0] sm:$0xff]
    %v1218 = vld [vmem:[#allocation7 + $0x19f8] sm:$0xff]
    %v1219 = vld [vmem:[#allocation7 + $0x1a00] sm:$0xff]
    %v1220 = vld [vmem:[#allocation7 + $0x1a08] sm:$0xff]
    %v1221 = vld [vmem:[#allocation7 + $0x1a10] sm:$0xff]
    %v1222 = vld [vmem:[#allocation7 + $0x1a18] sm:$0xff]
    %v1223 = vld [vmem:[#allocation7 + $0x1a20] sm:$0xff]
    %v1224 = vld [vmem:[#allocation7 + $0x1a28] sm:$0xff]
    %v1225 = vld [vmem:[#allocation7 + $0x1a30] sm:$0xff]
    %v1226 = vld [vmem:[#allocation7 + $0x1a38] sm:$0xff]
    %v1227 = vld [vmem:[#allocation7 + $0x1a40] sm:$0xff]
    %v1228 = vld [vmem:[#allocation7 + $0x1a48] sm:$0xff]
    %v1229 = vld [vmem:[#allocation7 + $0x1a50] sm:$0xff]
    %v1230 = vld [vmem:[#allocation7 + $0x1a58] sm:$0xff]
    %v1231 = vld [vmem:[#allocation7 + $0x1a60] sm:$0xff]
    %v1232 = vld [vmem:[#allocation7 + $0x1a68] sm:$0xff]
    %v1233 = vld [vmem:[#allocation7 + $0x1a70] sm:$0xff]
    %v1234 = vld [vmem:[#allocation7 + $0x1a78] sm:$0xff]
    %v1235 = vld [vmem:[#allocation7 + $0x1a80] sm:$0xff]
    %v1236 = vld [vmem:[#allocation7 + $0x1a88] sm:$0xff]
    %v1237 = vld [vmem:[#allocation7 + $0x1a90] sm:$0xff]
    %v1238 = vld [vmem:[#allocation7 + $0x1a98] sm:$0xff]
    %v1239 = vld [vmem:[#allocation7 + $0x1aa0] sm:$0xff]
    %v1240 = vld [vmem:[#allocation7 + $0x1aa8] sm:$0xff]
    %v1241 = vld [vmem:[#allocation7 + $0x1ab0] sm:$0xff]
    %v1242 = vld [vmem:[#allocation7 + $0x1ab8] sm:$0xff]
    %v1243 = vld [vmem:[#allocation7 + $0x1ac0] sm:$0xff]
    %v1244 = vld [vmem:[#allocation7 + $0x1ac8] sm:$0xff]
    %v1245 = vld [vmem:[#allocation7 + $0x1ad0] sm:$0xff]
    %v1246 = vld [vmem:[#allocation7 + $0x1ad8] sm:$0xff]
    %v1247 = vld [vmem:[#allocation7 + $0x1ae0] sm:$0xff]
    %v1248 = vld [vmem:[#allocation7 + $0x1ae8] sm:$0xff]
    %v1249 = vld [vmem:[#allocation7 + $0x1af0] sm:$0xff]
    %v1250 = vld [vmem:[#allocation7 + $0x1af8] sm:$0xff]
    %v1251 = vld [vmem:[#allocation7 + $0x1b00] sm:$0xff]
    %v1252 = vld [vmem:[#allocation7 + $0x1b08] sm:$0xff]
    %v1253 = vld [vmem:[#allocation7 + $0x1b10] sm:$0xff]
    %v1254 = vld [vmem:[#allocation7 + $0x1b18] sm:$0xff]
    %v1255 = vld [vmem:[#allocation7 + $0x1b20] sm:$0xff]
    %v1256 = vld [vmem:[#allocation7 + $0x1b28] sm:$0xff]
    %v1257 = vld [vmem:[#allocation7 + $0x1b30] sm:$0xff]
    %v1258 = vld [vmem:[#allocation7 + $0x1b38] sm:$0xff]
    %v1259 = vld [vmem:[#allocation7 + $0x1b40] sm:$0xff]
    %v1260 = vld [vmem:[#allocation7 + $0x1b48] sm:$0xff]
    %v1261 = vld [vmem:[#allocation7 + $0x1b50] sm:$0xff]
    %v1262 = vld [vmem:[#allocation7 + $0x1b58] sm:$0xff]
    %v1263 = vld [vmem:[#allocation7 + $0x1b60] sm:$0xff]
    %v1264 = vld [vmem:[#allocation7 + $0x1b68] sm:$0xff]
    %v1265 = vld [vmem:[#allocation7 + $0x1b70] sm:$0xff]
    %v1266 = vld [vmem:[#allocation7 + $0x1b78] sm:$0xff]
    %v1267 = vld [vmem:[#allocation7 + $0x1b80] sm:$0xff]
    %v1268 = vld [vmem:[#allocation7 + $0x1b88] sm:$0xff]
    %v1269 = vld [vmem:[#allocation7 + $0x1b90] sm:$0xff]
    %v1270 = vld [vmem:[#allocation7 + $0x1b98] sm:$0xff]
    %v1271 = vld [vmem:[#allocation7 + $0x1ba0] sm:$0xff]
    %v1272 = vld [vmem:[#allocation7 + $0x1ba8] sm:$0xff]
    %v1273 = vld [vmem:[#allocation7 + $0x1bb0] sm:$0xff]
    %v1274 = vld [vmem:[#allocation7 + $0x1bb8] sm:$0xff]
    %v1275 = vld [vmem:[#allocation7 + $0x1bc0] sm:$0xff]
    %v1276 = vld [vmem:[#allocation7 + $0x1bc8] sm:$0xff]
    %v1277 = vld [vmem:[#allocation7 + $0x1bd0] sm:$0xff]
    %v1278 = vld [vmem:[#allocation7 + $0x1bd8] sm:$0xff]
    %v1279 = vld [vmem:[#allocation7 + $0x1be0] sm:$0xff]
    %v1280 = vld [vmem:[#allocation7 + $0x1be8] sm:$0xff]
    %v1281 = vld [vmem:[#allocation7 + $0x1bf0] sm:$0xff]
    %v1282 = vld [vmem:[#allocation7 + $0x1bf8] sm:$0xff]
    %v1283 = vld [vmem:[#allocation7 + $0x1c00] sm:$0xff]
    %v1284 = vld [vmem:[#allocation7 + $0x1c08] sm:$0xff]
    %v1285 = vld [vmem:[#allocation7 + $0x1c10] sm:$0xff]
    %v1286 = vld [vmem:[#allocation7 + $0x1c18] sm:$0xff]
    %v1287 = vld [vmem:[#allocation7 + $0x1c20] sm:$0xff]
    %v1288 = vld [vmem:[#allocation7 + $0x1c28] sm:$0xff]
    %v1289 = vld [vmem:[#allocation7 + $0x1c30] sm:$0xff]
    %v1290 = vld [vmem:[#allocation7 + $0x1c38] sm:$0xff]
    %v1291 = vld [vmem:[#allocation7 + $0x1c40] sm:$0xff]
    %v1292 = vld [vmem:[#allocation7 + $0x1c48] sm:$0xff]
    %v1293 = vld [vmem:[#allocation7 + $0x1c50] sm:$0xff]
    %v1294 = vld [vmem:[#allocation7 + $0x1c58] sm:$0xff]
    %v1295 = vld [vmem:[#allocation7 + $0x1c60] sm:$0xff]
    %v1296 = vld [vmem:[#allocation7 + $0x1c68] sm:$0xff]
    %v1297 = vld [vmem:[#allocation7 + $0x1c70] sm:$0xff]
    %v1298 = vld [vmem:[#allocation7 + $0x1c78] sm:$0xff]
    %v1299 = vld [vmem:[#allocation7 + $0x1c80] sm:$0xff]
    %v1300 = vld [vmem:[#allocation7 + $0x1c88] sm:$0xff]
    %v1301 = vld [vmem:[#allocation7 + $0x1c90] sm:$0xff]
    %v1302 = vld [vmem:[#allocation7 + $0x1c98] sm:$0xff]
    %v1303 = vld [vmem:[#allocation7 + $0x1ca0] sm:$0xff]
    %v1304 = vld [vmem:[#allocation7 + $0x1ca8] sm:$0xff]
    %v1305 = vld [vmem:[#allocation7 + $0x1cb0] sm:$0xff]
    %v1306 = vld [vmem:[#allocation7 + $0x1cb8] sm:$0xff]
    %v1307 = vld [vmem:[#allocation7 + $0x1cc0] sm:$0xff]
    %v1308 = vld [vmem:[#allocation7 + $0x1cc8] sm:$0xff]
    %v1309 = vld [vmem:[#allocation7 + $0x1cd0] sm:$0xff]
    %v1310 = vld [vmem:[#allocation7 + $0x1cd8] sm:$0xff]
    %v1311 = vld [vmem:[#allocation7 + $0x1ce0] sm:$0xff]
    %v1312 = vld [vmem:[#allocation7 + $0x1ce8] sm:$0xff]
    %v1313 = vld [vmem:[#allocation7 + $0x1cf0] sm:$0xff]
    %v1314 = vld [vmem:[#allocation7 + $0x1cf8] sm:$0xff]
    %v1315 = vld [vmem:[#allocation7 + $0x1d00] sm:$0xff]
    %v1316 = vld [vmem:[#allocation7 + $0x1d08] sm:$0xff]
    %v1317 = vld [vmem:[#allocation7 + $0x1d10] sm:$0xff]
    %v1318 = vld [vmem:[#allocation7 + $0x1d18] sm:$0xff]
    %v1319 = vld [vmem:[#allocation7 + $0x1d20] sm:$0xff]
    %v1320 = vld [vmem:[#allocation7 + $0x1d28] sm:$0xff]
    %v1321 = vld [vmem:[#allocation7 + $0x1d30] sm:$0xff]
    %v1322 = vld [vmem:[#allocation7 + $0x1d38] sm:$0xff]
    %v1323 = vld [vmem:[#allocation7 + $0x1d40] sm:$0xff]
    %v1324 = vld [vmem:[#allocation7 + $0x1d48] sm:$0xff]
    %v1325 = vld [vmem:[#allocation7 + $0x1d50] sm:$0xff]
    %v1326 = vld [vmem:[#allocation7 + $0x1d58] sm:$0xff]
    %v1327 = vld [vmem:[#allocation7 + $0x1d60] sm:$0xff]
    %v1328 = vld [vmem:[#allocation7 + $0x1d68] sm:$0xff]
    %v1329 = vld [vmem:[#allocation7 + $0x1d70] sm:$0xff]
    %v1330 = vld [vmem:[#allocation7 + $0x1d78] sm:$0xff]
    %v1331 = vld [vmem:[#allocation7 + $0x1d80] sm:$0xff]
    %v1332 = vld [vmem:[#allocation7 + $0x1d88] sm:$0xff]
    %v1333 = vld [vmem:[#allocation7 + $0x1d90] sm:$0xff]
    %v1334 = vld [vmem:[#allocation7 + $0x1d98] sm:$0xff]
    %v1335 = vld [vmem:[#allocation7 + $0x1da0] sm:$0xff]
    %v1336 = vld [vmem:[#allocation7 + $0x1da8] sm:$0xff]
    %v1337 = vld [vmem:[#allocation7 + $0x1db0] sm:$0xff]
    %v1338 = vld [vmem:[#allocation7 + $0x1db8] sm:$0xff]
    %v1339 = vld [vmem:[#allocation7 + $0x1dc0] sm:$0xff]
    %v1340 = vld [vmem:[#allocation7 + $0x1dc8] sm:$0xff]
    %v1341 = vld [vmem:[#allocation7 + $0x1dd0] sm:$0xff]
    %v1342 = vld [vmem:[#allocation7 + $0x1dd8] sm:$0xff]
    %v1343 = vld [vmem:[#allocation7 + $0x1de0] sm:$0xff]
    %v1344 = vld [vmem:[#allocation7 + $0x1de8] sm:$0xff]
    %v1345 = vld [vmem:[#allocation7 + $0x1df0] sm:$0xff]
    %v1346 = vld [vmem:[#allocation7 + $0x1df8] sm:$0xff]
    %v1347 = vld [vmem:[#allocation7 + $0x1e00] sm:$0xff]
    %v1348 = vld [vmem:[#allocation7 + $0x1e08] sm:$0xff]
    %v1349 = vld [vmem:[#allocation7 + $0x1e10] sm:$0xff]
    %v1350 = vld [vmem:[#allocation7 + $0x1e18] sm:$0xff]
    %v1351 = vld [vmem:[#allocation7 + $0x1e20] sm:$0xff]
    %v1352 = vld [vmem:[#allocation7 + $0x1e28] sm:$0xff]
    %v1353 = vld [vmem:[#allocation7 + $0x1e30] sm:$0xff]
    %v1354 = vld [vmem:[#allocation7 + $0x1e38] sm:$0xff]
    %v1355 = vld [vmem:[#allocation7 + $0x1e40] sm:$0xff]
    %v1356 = vld [vmem:[#allocation7 + $0x1e48] sm:$0xff]
    %v1357 = vld [vmem:[#allocation7 + $0x1e50] sm:$0xff]
    %v1358 = vld [vmem:[#allocation7 + $0x1e58] sm:$0xff]
    %v1359 = vld [vmem:[#allocation7 + $0x1e60] sm:$0xff]
    %v1360 = vld [vmem:[#allocation7 + $0x1e68] sm:$0xff]
    %v1361 = vld [vmem:[#allocation7 + $0x1e70] sm:$0xff]
    %v1362 = vld [vmem:[#allocation7 + $0x1e78] sm:$0xff]
    %v1363 = vld [vmem:[#allocation7 + $0x1e80] sm:$0xff]
    %v1364 = vld [vmem:[#allocation7 + $0x1e88] sm:$0xff]
    %v1365 = vld [vmem:[#allocation7 + $0x1e90] sm:$0xff]
    %v1366 = vld [vmem:[#allocation7 + $0x1e98] sm:$0xff]
    %v1367 = vld [vmem:[#allocation7 + $0x1ea0] sm:$0xff]
    %v1368 = vld [vmem:[#allocation7 + $0x1ea8] sm:$0xff]
    %v1369 = vld [vmem:[#allocation7 + $0x1eb0] sm:$0xff]
    %v1370 = vld [vmem:[#allocation7 + $0x1eb8] sm:$0xff]
    %v1371 = vld [vmem:[#allocation7 + $0x1ec0] sm:$0xff]
    %v1372 = vld [vmem:[#allocation7 + $0x1ec8] sm:$0xff]
    %v1373 = vld [vmem:[#allocation7 + $0x1ed0] sm:$0xff]
    %v1374 = vld [vmem:[#allocation7 + $0x1ed8] sm:$0xff]
    %v1375 = vld [vmem:[#allocation7 + $0x1ee0] sm:$0xff]
    %v1376 = vld [vmem:[#allocation7 + $0x1ee8] sm:$0xff]
    %v1377 = vld [vmem:[#allocation7 + $0x1ef0] sm:$0xff]
    %v1378 = vld [vmem:[#allocation7 + $0x1ef8] sm:$0xff]
    %v1379 = vld [vmem:[#allocation7 + $0x1f00] sm:$0xff]
    %v1380 = vld [vmem:[#allocation7 + $0x1f08] sm:$0xff]
    %v1381 = vld [vmem:[#allocation7 + $0x1f10] sm:$0xff]
    %v1382 = vld [vmem:[#allocation7 + $0x1f18] sm:$0xff]
    %v1383 = vld [vmem:[#allocation7 + $0x1f20] sm:$0xff]
    %v1384 = vld [vmem:[#allocation7 + $0x1f28] sm:$0xff]
    %v1385 = vld [vmem:[#allocation7 + $0x1f30] sm:$0xff]
    %v1386 = vld [vmem:[#allocation7 + $0x1f38] sm:$0xff]
    %v1387 = vld [vmem:[#allocation7 + $0x1f40] sm:$0xff]
    %v1388 = vld [vmem:[#allocation7 + $0x1f48] sm:$0xff]
    %v1389 = vld [vmem:[#allocation7 + $0x1f50] sm:$0xff]
    %v1390 = vld [vmem:[#allocation7 + $0x1f58] sm:$0xff]
    %v1391 = vld [vmem:[#allocation7 + $0x1f60] sm:$0xff]
    %v1392 = vld [vmem:[#allocation7 + $0x1f68] sm:$0xff]
    %v1393 = vld [vmem:[#allocation7 + $0x1f70] sm:$0xff]
    %v1394 = vld [vmem:[#allocation7 + $0x1f78] sm:$0xff]
    %v1395 = vld [vmem:[#allocation7 + $0x1f80] sm:$0xff]
    %v1396 = vld [vmem:[#allocation7 + $0x1f88] sm:$0xff]
    %v1397 = vld [vmem:[#allocation7 + $0x1f90] sm:$0xff]
    %v1398 = vld [vmem:[#allocation7 + $0x1f98] sm:$0xff]
    %v1399 = vld [vmem:[#allocation7 + $0x1fa0] sm:$0xff]
    %v1400 = vld [vmem:[#allocation7 + $0x1fa8] sm:$0xff]
    %v1401 = vld [vmem:[#allocation7 + $0x1fb0] sm:$0xff]
    %v1402 = vld [vmem:[#allocation7 + $0x1fb8] sm:$0xff]
    %v1403 = vld [vmem:[#allocation7 + $0x1fc0] sm:$0xff]
    %v1404 = vld [vmem:[#allocation7 + $0x1fc8] sm:$0xff]
    %v1405 = vld [vmem:[#allocation7 + $0x1fd0] sm:$0xff]
    %v1406 = vld [vmem:[#allocation7 + $0x1fd8] sm:$0xff]
    %v1407 = vld [vmem:[#allocation7 + $0x1fe0] sm:$0xff]
    %v1408 = vld [vmem:[#allocation7 + $0x1fe8] sm:$0xff]
    %v1409 = vld [vmem:[#allocation7 + $0x1ff0] sm:$0xff]
    %v1410 = vld [vmem:[#allocation7 + $0x1ff8] sm:$0xff]
    %v1411 = vld [vmem:[#allocation8] sm:$0xff]
    %v1413 = vlaneseq
    %v1414 = vshrl.u32 %v1413, 7
    %v1415 = vsub.s32 0, %v1414
    %v1416 = vrot.slane %v1411, %v1415
    %v1417 = vlaneseq
    %v1418 = vshrl.u32 %v1417, 7
    %v1419 = vsub.s32 1, %v1418
    %v1420 = vrot.slane %v1411, %v1419
    %v1421 = vlaneseq
    %v1422 = vshrl.u32 %v1421, 7
    %v1423 = vsub.s32 2, %v1422
    %v1424 = vrot.slane %v1411, %v1423
    %v1425 = vlaneseq
    %v1426 = vshrl.u32 %v1425, 7
    %v1427 = vsub.s32 3, %v1426
    %v1428 = vrot.slane %v1411, %v1427
    %v1429 = vlaneseq
    %v1430 = vshrl.u32 %v1429, 7
    %v1431 = vsub.s32 4, %v1430
    %v1432 = vrot.slane %v1411, %v1431
    %v1433 = vlaneseq
    %v1434 = vshrl.u32 %v1433, 7
    %v1435 = vsub.s32 5, %v1434
    %v1436 = vrot.slane %v1411, %v1435
    %v1437 = vlaneseq
    %v1438 = vshrl.u32 %v1437, 7
    %v1439 = vsub.s32 6, %v1438
    %v1440 = vrot.slane %v1411, %v1439
    %v1441 = vlaneseq
    %v1442 = vshrl.u32 %v1441, 7
    %v1443 = vsub.s32 7, %v1442
    %v1444 = vrot.slane %v1411, %v1443
    %v2477 = vunpack.c.l.b16 %v387
    %v2478 = vunpack.c.h.b16 %v387
    %v2479 = vunpack.c.l.b16 %v388
    %v2480 = vunpack.c.h.b16 %v388
    %v2481 = vunpack.c.l.b16 %v389
    %v2482 = vunpack.c.h.b16 %v389
    %v2483 = vunpack.c.l.b16 %v390
    %v2484 = vunpack.c.h.b16 %v390
    %v2485 = vunpack.c.l.b16 %v391
    %v2486 = vunpack.c.h.b16 %v391
    %v2487 = vunpack.c.l.b16 %v392
    %v2488 = vunpack.c.h.b16 %v392
    %v2489 = vunpack.c.l.b16 %v393
    %v2490 = vunpack.c.h.b16 %v393
    %v2491 = vunpack.c.l.b16 %v394
    %v2492 = vunpack.c.h.b16 %v394
    %v2493 = vunpack.c.l.b16 %v395
    %v2494 = vunpack.c.h.b16 %v395
    %v2495 = vunpack.c.l.b16 %v396
    %v2496 = vunpack.c.h.b16 %v396
    %v2497 = vunpack.c.l.b16 %v397
    %v2498 = vunpack.c.h.b16 %v397
    %v2499 = vunpack.c.l.b16 %v398
    %v2500 = vunpack.c.h.b16 %v398
    %v2501 = vunpack.c.l.b16 %v399
    %v2502 = vunpack.c.h.b16 %v399
    %v2503 = vunpack.c.l.b16 %v400
    %v2504 = vunpack.c.h.b16 %v400
    %v2505 = vunpack.c.l.b16 %v401
    %v2506 = vunpack.c.h.b16 %v401
    %v2507 = vunpack.c.l.b16 %v402
    %v2508 = vunpack.c.h.b16 %v402
    %v2509 = vunpack.c.l.b16 %v403
    %v2510 = vunpack.c.h.b16 %v403
    %v2511 = vunpack.c.l.b16 %v404
    %v2512 = vunpack.c.h.b16 %v404
    %v2513 = vunpack.c.l.b16 %v405
    %v2514 = vunpack.c.h.b16 %v405
    %v2515 = vunpack.c.l.b16 %v406
    %v2516 = vunpack.c.h.b16 %v406
    %v2517 = vunpack.c.l.b16 %v407
    %v2518 = vunpack.c.h.b16 %v407
    %v2519 = vunpack.c.l.b16 %v408
    %v2520 = vunpack.c.h.b16 %v408
    %v2521 = vunpack.c.l.b16 %v409
    %v2522 = vunpack.c.h.b16 %v409
    %v2523 = vunpack.c.l.b16 %v410
    %v2524 = vunpack.c.h.b16 %v410
    %v2525 = vunpack.c.l.b16 %v411
    %v2526 = vunpack.c.h.b16 %v411
    %v2527 = vunpack.c.l.b16 %v412
    %v2528 = vunpack.c.h.b16 %v412
    %v2529 = vunpack.c.l.b16 %v413
    %v2530 = vunpack.c.h.b16 %v413
    %v2531 = vunpack.c.l.b16 %v414
    %v2532 = vunpack.c.h.b16 %v414
    %v2533 = vunpack.c.l.b16 %v415
    %v2534 = vunpack.c.h.b16 %v415
    %v2535 = vunpack.c.l.b16 %v416
    %v2536 = vunpack.c.h.b16 %v416
    %v2537 = vunpack.c.l.b16 %v417
    %v2538 = vunpack.c.h.b16 %v417
    %v2539 = vunpack.c.l.b16 %v418
    %v2540 = vunpack.c.h.b16 %v418
    %v2541 = vunpack.c.l.b16 %v419
    %v2542 = vunpack.c.h.b16 %v419
    %v2543 = vunpack.c.l.b16 %v420
    %v2544 = vunpack.c.h.b16 %v420
    %v2545 = vunpack.c.l.b16 %v421
    %v2546 = vunpack.c.h.b16 %v421
    %v2547 = vunpack.c.l.b16 %v422
    %v2548 = vunpack.c.h.b16 %v422
    %v2549 = vunpack.c.l.b16 %v423
    %v2550 = vunpack.c.h.b16 %v423
    %v2551 = vunpack.c.l.b16 %v424
    %v2552 = vunpack.c.h.b16 %v424
    %v2553 = vunpack.c.l.b16 %v425
    %v2554 = vunpack.c.h.b16 %v425
    %v2555 = vunpack.c.l.b16 %v426
    %v2556 = vunpack.c.h.b16 %v426
    %v2557 = vunpack.c.l.b16 %v427
    %v2558 = vunpack.c.h.b16 %v427
    %v2559 = vunpack.c.l.b16 %v428
    %v2560 = vunpack.c.h.b16 %v428
    %v2561 = vunpack.c.l.b16 %v429
    %v2562 = vunpack.c.h.b16 %v429
    %v2563 = vunpack.c.l.b16 %v430
    %v2564 = vunpack.c.h.b16 %v430
    %v2565 = vunpack.c.l.b16 %v431
    %v2566 = vunpack.c.h.b16 %v431
    %v2567 = vunpack.c.l.b16 %v432
    %v2568 = vunpack.c.h.b16 %v432
    %v2569 = vunpack.c.l.b16 %v433
    %v2570 = vunpack.c.h.b16 %v433
    %v2571 = vunpack.c.l.b16 %v434
    %v2572 = vunpack.c.h.b16 %v434
    %v2573 = vunpack.c.l.b16 %v435
    %v2574 = vunpack.c.h.b16 %v435
    %v2575 = vunpack.c.l.b16 %v436
    %v2576 = vunpack.c.h.b16 %v436
    %v2577 = vunpack.c.l.b16 %v437
    %v2578 = vunpack.c.h.b16 %v437
    %v2579 = vunpack.c.l.b16 %v438
    %v2580 = vunpack.c.h.b16 %v438
    %v2581 = vunpack.c.l.b16 %v439
    %v2582 = vunpack.c.h.b16 %v439
    %v2583 = vunpack.c.l.b16 %v440
    %v2584 = vunpack.c.h.b16 %v440
    %v2585 = vunpack.c.l.b16 %v441
    %v2586 = vunpack.c.h.b16 %v441
    %v2587 = vunpack.c.l.b16 %v442
    %v2588 = vunpack.c.h.b16 %v442
    %v2589 = vunpack.c.l.b16 %v443
    %v2590 = vunpack.c.h.b16 %v443
    %v2591 = vunpack.c.l.b16 %v444
    %v2592 = vunpack.c.h.b16 %v444
    %v2593 = vunpack.c.l.b16 %v445
    %v2594 = vunpack.c.h.b16 %v445
    %v2595 = vunpack.c.l.b16 %v446
    %v2596 = vunpack.c.h.b16 %v446
    %v2597 = vunpack.c.l.b16 %v447
    %v2598 = vunpack.c.h.b16 %v447
    %v2599 = vunpack.c.l.b16 %v448
    %v2600 = vunpack.c.h.b16 %v448
    %v2601 = vunpack.c.l.b16 %v449
    %v2602 = vunpack.c.h.b16 %v449
    %v2603 = vunpack.c.l.b16 %v450
    %v2604 = vunpack.c.h.b16 %v450
    %v2605 = vunpack.c.l.b16 %v451
    %v2606 = vunpack.c.h.b16 %v451
    %v2607 = vunpack.c.l.b16 %v452
    %v2608 = vunpack.c.h.b16 %v452
    %v2609 = vunpack.c.l.b16 %v453
    %v2610 = vunpack.c.h.b16 %v453
    %v2611 = vunpack.c.l.b16 %v454
    %v2612 = vunpack.c.h.b16 %v454
    %v2613 = vunpack.c.l.b16 %v455
    %v2614 = vunpack.c.h.b16 %v455
    %v2615 = vunpack.c.l.b16 %v456
    %v2616 = vunpack.c.h.b16 %v456
    %v2617 = vunpack.c.l.b16 %v457
    %v2618 = vunpack.c.h.b16 %v457
    %v2619 = vunpack.c.l.b16 %v458
    %v2620 = vunpack.c.h.b16 %v458
    %v2621 = vunpack.c.l.b16 %v459
    %v2622 = vunpack.c.h.b16 %v459
    %v2623 = vunpack.c.l.b16 %v460
    %v2624 = vunpack.c.h.b16 %v460
    %v2625 = vunpack.c.l.b16 %v461
    %v2626 = vunpack.c.h.b16 %v461
    %v2627 = vunpack.c.l.b16 %v462
    %v2628 = vunpack.c.h.b16 %v462
    %v2629 = vunpack.c.l.b16 %v463
    %v2630 = vunpack.c.h.b16 %v463
    %v2631 = vunpack.c.l.b16 %v464
    %v2632 = vunpack.c.h.b16 %v464
    %v2633 = vunpack.c.l.b16 %v465
    %v2634 = vunpack.c.h.b16 %v465
    %v2635 = vunpack.c.l.b16 %v466
    %v2636 = vunpack.c.h.b16 %v466
    %v2637 = vunpack.c.l.b16 %v467
    %v2638 = vunpack.c.h.b16 %v467
    %v2639 = vunpack.c.l.b16 %v468
    %v2640 = vunpack.c.h.b16 %v468
    %v2641 = vunpack.c.l.b16 %v469
    %v2642 = vunpack.c.h.b16 %v469
    %v2643 = vunpack.c.l.b16 %v470
    %v2644 = vunpack.c.h.b16 %v470
    %v2645 = vunpack.c.l.b16 %v471
    %v2646 = vunpack.c.h.b16 %v471
    %v2647 = vunpack.c.l.b16 %v472
    %v2648 = vunpack.c.h.b16 %v472
    %v2649 = vunpack.c.l.b16 %v473
    %v2650 = vunpack.c.h.b16 %v473
    %v2651 = vunpack.c.l.b16 %v474
    %v2652 = vunpack.c.h.b16 %v474
    %v2653 = vunpack.c.l.b16 %v475
    %v2654 = vunpack.c.h.b16 %v475
    %v2655 = vunpack.c.l.b16 %v476
    %v2656 = vunpack.c.h.b16 %v476
    %v2657 = vunpack.c.l.b16 %v477
    %v2658 = vunpack.c.h.b16 %v477
    %v2659 = vunpack.c.l.b16 %v478
    %v2660 = vunpack.c.h.b16 %v478
    %v2661 = vunpack.c.l.b16 %v479
    %v2662 = vunpack.c.h.b16 %v479
    %v2663 = vunpack.c.l.b16 %v480
    %v2664 = vunpack.c.h.b16 %v480
    %v2665 = vunpack.c.l.b16 %v481
    %v2666 = vunpack.c.h.b16 %v481
    %v2667 = vunpack.c.l.b16 %v482
    %v2668 = vunpack.c.h.b16 %v482
    %v2669 = vunpack.c.l.b16 %v483
    %v2670 = vunpack.c.h.b16 %v483
    %v2671 = vunpack.c.l.b16 %v484
    %v2672 = vunpack.c.h.b16 %v484
    %v2673 = vunpack.c.l.b16 %v485
    %v2674 = vunpack.c.h.b16 %v485
    %v2675 = vunpack.c.l.b16 %v486
    %v2676 = vunpack.c.h.b16 %v486
    %v2677 = vunpack.c.l.b16 %v487
    %v2678 = vunpack.c.h.b16 %v487
    %v2679 = vunpack.c.l.b16 %v488
    %v2680 = vunpack.c.h.b16 %v488
    %v2681 = vunpack.c.l.b16 %v489
    %v2682 = vunpack.c.h.b16 %v489
    %v2683 = vunpack.c.l.b16 %v490
    %v2684 = vunpack.c.h.b16 %v490
    %v2685 = vunpack.c.l.b16 %v491
    %v2686 = vunpack.c.h.b16 %v491
    %v2687 = vunpack.c.l.b16 %v492
    %v2688 = vunpack.c.h.b16 %v492
    %v2689 = vunpack.c.l.b16 %v493
    %v2690 = vunpack.c.h.b16 %v493
    %v2691 = vunpack.c.l.b16 %v494
    %v2692 = vunpack.c.h.b16 %v494
    %v2693 = vunpack.c.l.b16 %v495
    %v2694 = vunpack.c.h.b16 %v495
    %v2695 = vunpack.c.l.b16 %v496
    %v2696 = vunpack.c.h.b16 %v496
    %v2697 = vunpack.c.l.b16 %v497
    %v2698 = vunpack.c.h.b16 %v497
    %v2699 = vunpack.c.l.b16 %v498
    %v2700 = vunpack.c.h.b16 %v498
    %v2701 = vunpack.c.l.b16 %v499
    %v2702 = vunpack.c.h.b16 %v499
    %v2703 = vunpack.c.l.b16 %v500
    %v2704 = vunpack.c.h.b16 %v500
    %v2705 = vunpack.c.l.b16 %v501
    %v2706 = vunpack.c.h.b16 %v501
    %v2707 = vunpack.c.l.b16 %v502
    %v2708 = vunpack.c.h.b16 %v502
    %v2709 = vunpack.c.l.b16 %v503
    %v2710 = vunpack.c.h.b16 %v503
    %v2711 = vunpack.c.l.b16 %v504
    %v2712 = vunpack.c.h.b16 %v504
    %v2713 = vunpack.c.l.b16 %v505
    %v2714 = vunpack.c.h.b16 %v505
    %v2715 = vunpack.c.l.b16 %v506
    %v2716 = vunpack.c.h.b16 %v506
    %v2717 = vunpack.c.l.b16 %v507
    %v2718 = vunpack.c.h.b16 %v507
    %v2719 = vunpack.c.l.b16 %v508
    %v2720 = vunpack.c.h.b16 %v508
    %v2721 = vunpack.c.l.b16 %v509
    %v2722 = vunpack.c.h.b16 %v509
    %v2723 = vunpack.c.l.b16 %v510
    %v2724 = vunpack.c.h.b16 %v510
    %v2725 = vunpack.c.l.b16 %v511
    %v2726 = vunpack.c.h.b16 %v511
    %v2727 = vunpack.c.l.b16 %v512
    %v2728 = vunpack.c.h.b16 %v512
    %v2729 = vunpack.c.l.b16 %v513
    %v2730 = vunpack.c.h.b16 %v513
    %v2731 = vunpack.c.l.b16 %v514
    %v2732 = vunpack.c.h.b16 %v514
    %v2733 = vunpack.c.l.b16 %v515
    %v2734 = vunpack.c.h.b16 %v515
    %v2735 = vunpack.c.l.b16 %v516
    %v2736 = vunpack.c.h.b16 %v516
    %v2737 = vunpack.c.l.b16 %v517
    %v2738 = vunpack.c.h.b16 %v517
    %v2739 = vunpack.c.l.b16 %v518
    %v2740 = vunpack.c.h.b16 %v518
    %v2741 = vunpack.c.l.b16 %v519
    %v2742 = vunpack.c.h.b16 %v519
    %v2743 = vunpack.c.l.b16 %v520
    %v2744 = vunpack.c.h.b16 %v520
    %v2745 = vunpack.c.l.b16 %v521
    %v2746 = vunpack.c.h.b16 %v521
    %v2747 = vunpack.c.l.b16 %v522
    %v2748 = vunpack.c.h.b16 %v522
    %v2749 = vunpack.c.l.b16 %v523
    %v2750 = vunpack.c.h.b16 %v523
    %v2751 = vunpack.c.l.b16 %v524
    %v2752 = vunpack.c.h.b16 %v524
    %v2753 = vunpack.c.l.b16 %v525
    %v2754 = vunpack.c.h.b16 %v525
    %v2755 = vunpack.c.l.b16 %v526
    %v2756 = vunpack.c.h.b16 %v526
    %v2757 = vunpack.c.l.b16 %v527
    %v2758 = vunpack.c.h.b16 %v527
    %v2759 = vunpack.c.l.b16 %v528
    %v2760 = vunpack.c.h.b16 %v528
    %v2761 = vunpack.c.l.b16 %v529
    %v2762 = vunpack.c.h.b16 %v529
    %v2763 = vunpack.c.l.b16 %v530
    %v2764 = vunpack.c.h.b16 %v530
    %v2765 = vunpack.c.l.b16 %v531
    %v2766 = vunpack.c.h.b16 %v531
    %v2767 = vunpack.c.l.b16 %v532
    %v2768 = vunpack.c.h.b16 %v532
    %v2769 = vunpack.c.l.b16 %v533
    %v2770 = vunpack.c.h.b16 %v533
    %v2771 = vunpack.c.l.b16 %v534
    %v2772 = vunpack.c.h.b16 %v534
    %v2773 = vunpack.c.l.b16 %v535
    %v2774 = vunpack.c.h.b16 %v535
    %v2775 = vunpack.c.l.b16 %v536
    %v2776 = vunpack.c.h.b16 %v536
    %v2777 = vunpack.c.l.b16 %v537
    %v2778 = vunpack.c.h.b16 %v537
    %v2779 = vunpack.c.l.b16 %v538
    %v2780 = vunpack.c.h.b16 %v538
    %v2781 = vunpack.c.l.b16 %v539
    %v2782 = vunpack.c.h.b16 %v539
    %v2783 = vunpack.c.l.b16 %v540
    %v2784 = vunpack.c.h.b16 %v540
    %v2785 = vunpack.c.l.b16 %v541
    %v2786 = vunpack.c.h.b16 %v541
    %v2787 = vunpack.c.l.b16 %v542
    %v2788 = vunpack.c.h.b16 %v542
    %v2789 = vunpack.c.l.b16 %v543
    %v2790 = vunpack.c.h.b16 %v543
    %v2791 = vunpack.c.l.b16 %v544
    %v2792 = vunpack.c.h.b16 %v544
    %v2793 = vunpack.c.l.b16 %v545
    %v2794 = vunpack.c.h.b16 %v545
    %v2795 = vunpack.c.l.b16 %v546
    %v2796 = vunpack.c.h.b16 %v546
    %v2797 = vunpack.c.l.b16 %v547
    %v2798 = vunpack.c.h.b16 %v547
    %v2799 = vunpack.c.l.b16 %v548
    %v2800 = vunpack.c.h.b16 %v548
    %v2801 = vunpack.c.l.b16 %v549
    %v2802 = vunpack.c.h.b16 %v549
    %v2803 = vunpack.c.l.b16 %v550
    %v2804 = vunpack.c.h.b16 %v550
    %v2805 = vunpack.c.l.b16 %v551
    %v2806 = vunpack.c.h.b16 %v551
    %v2807 = vunpack.c.l.b16 %v552
    %v2808 = vunpack.c.h.b16 %v552
    %v2809 = vunpack.c.l.b16 %v553
    %v2810 = vunpack.c.h.b16 %v553
    %v2811 = vunpack.c.l.b16 %v554
    %v2812 = vunpack.c.h.b16 %v554
    %v2813 = vunpack.c.l.b16 %v555
    %v2814 = vunpack.c.h.b16 %v555
    %v2815 = vunpack.c.l.b16 %v556
    %v2816 = vunpack.c.h.b16 %v556
    %v2817 = vunpack.c.l.b16 %v557
    %v2818 = vunpack.c.h.b16 %v557
    %v2819 = vunpack.c.l.b16 %v558
    %v2820 = vunpack.c.h.b16 %v558
    %v2821 = vunpack.c.l.b16 %v559
    %v2822 = vunpack.c.h.b16 %v559
    %v2823 = vunpack.c.l.b16 %v560
    %v2824 = vunpack.c.h.b16 %v560
    %v2825 = vunpack.c.l.b16 %v561
    %v2826 = vunpack.c.h.b16 %v561
    %v2827 = vunpack.c.l.b16 %v562
    %v2828 = vunpack.c.h.b16 %v562
    %v2829 = vunpack.c.l.b16 %v563
    %v2830 = vunpack.c.h.b16 %v563
    %v2831 = vunpack.c.l.b16 %v564
    %v2832 = vunpack.c.h.b16 %v564
    %v2833 = vunpack.c.l.b16 %v565
    %v2834 = vunpack.c.h.b16 %v565
    %v2835 = vunpack.c.l.b16 %v566
    %v2836 = vunpack.c.h.b16 %v566
    %v2837 = vunpack.c.l.b16 %v567
    %v2838 = vunpack.c.h.b16 %v567
    %v2839 = vunpack.c.l.b16 %v568
    %v2840 = vunpack.c.h.b16 %v568
    %v2841 = vunpack.c.l.b16 %v569
    %v2842 = vunpack.c.h.b16 %v569
    %v2843 = vunpack.c.l.b16 %v570
    %v2844 = vunpack.c.h.b16 %v570
    %v2845 = vunpack.c.l.b16 %v571
    %v2846 = vunpack.c.h.b16 %v571
    %v2847 = vunpack.c.l.b16 %v572
    %v2848 = vunpack.c.h.b16 %v572
    %v2849 = vunpack.c.l.b16 %v573
    %v2850 = vunpack.c.h.b16 %v573
    %v2851 = vunpack.c.l.b16 %v574
    %v2852 = vunpack.c.h.b16 %v574
    %v2853 = vunpack.c.l.b16 %v575
    %v2854 = vunpack.c.h.b16 %v575
    %v2855 = vunpack.c.l.b16 %v576
    %v2856 = vunpack.c.h.b16 %v576
    %v2857 = vunpack.c.l.b16 %v577
    %v2858 = vunpack.c.h.b16 %v577
    %v2859 = vunpack.c.l.b16 %v578
    %v2860 = vunpack.c.h.b16 %v578
    %v2861 = vunpack.c.l.b16 %v579
    %v2862 = vunpack.c.h.b16 %v579
    %v2863 = vunpack.c.l.b16 %v580
    %v2864 = vunpack.c.h.b16 %v580
    %v2865 = vunpack.c.l.b16 %v581
    %v2866 = vunpack.c.h.b16 %v581
    %v2867 = vunpack.c.l.b16 %v582
    %v2868 = vunpack.c.h.b16 %v582
    %v2869 = vunpack.c.l.b16 %v583
    %v2870 = vunpack.c.h.b16 %v583
    %v2871 = vunpack.c.l.b16 %v584
    %v2872 = vunpack.c.h.b16 %v584
    %v2873 = vunpack.c.l.b16 %v585
    %v2874 = vunpack.c.h.b16 %v585
    %v2875 = vunpack.c.l.b16 %v586
    %v2876 = vunpack.c.h.b16 %v586
    %v2877 = vunpack.c.l.b16 %v587
    %v2878 = vunpack.c.h.b16 %v587
    %v2879 = vunpack.c.l.b16 %v588
    %v2880 = vunpack.c.h.b16 %v588
    %v2881 = vunpack.c.l.b16 %v589
    %v2882 = vunpack.c.h.b16 %v589
    %v2883 = vunpack.c.l.b16 %v590
    %v2884 = vunpack.c.h.b16 %v590
    %v2885 = vunpack.c.l.b16 %v591
    %v2886 = vunpack.c.h.b16 %v591
    %v2887 = vunpack.c.l.b16 %v592
    %v2888 = vunpack.c.h.b16 %v592
    %v2889 = vunpack.c.l.b16 %v593
    %v2890 = vunpack.c.h.b16 %v593
    %v2891 = vunpack.c.l.b16 %v594
    %v2892 = vunpack.c.h.b16 %v594
    %v2893 = vunpack.c.l.b16 %v595
    %v2894 = vunpack.c.h.b16 %v595
    %v2895 = vunpack.c.l.b16 %v596
    %v2896 = vunpack.c.h.b16 %v596
    %v2897 = vunpack.c.l.b16 %v597
    %v2898 = vunpack.c.h.b16 %v597
    %v2899 = vunpack.c.l.b16 %v598
    %v2900 = vunpack.c.h.b16 %v598
    %v2901 = vunpack.c.l.b16 %v599
    %v2902 = vunpack.c.h.b16 %v599
    %v2903 = vunpack.c.l.b16 %v600
    %v2904 = vunpack.c.h.b16 %v600
    %v2905 = vunpack.c.l.b16 %v601
    %v2906 = vunpack.c.h.b16 %v601
    %v2907 = vunpack.c.l.b16 %v602
    %v2908 = vunpack.c.h.b16 %v602
    %v2909 = vunpack.c.l.b16 %v603
    %v2910 = vunpack.c.h.b16 %v603
    %v2911 = vunpack.c.l.b16 %v604
    %v2912 = vunpack.c.h.b16 %v604
    %v2913 = vunpack.c.l.b16 %v605
    %v2914 = vunpack.c.h.b16 %v605
    %v2915 = vunpack.c.l.b16 %v606
    %v2916 = vunpack.c.h.b16 %v606
    %v2917 = vunpack.c.l.b16 %v607
    %v2918 = vunpack.c.h.b16 %v607
    %v2919 = vunpack.c.l.b16 %v608
    %v2920 = vunpack.c.h.b16 %v608
    %v2921 = vunpack.c.l.b16 %v609
    %v2922 = vunpack.c.h.b16 %v609
    %v2923 = vunpack.c.l.b16 %v610
    %v2924 = vunpack.c.h.b16 %v610
    %v2925 = vunpack.c.l.b16 %v611
    %v2926 = vunpack.c.h.b16 %v611
    %v2927 = vunpack.c.l.b16 %v612
    %v2928 = vunpack.c.h.b16 %v612
    %v2929 = vunpack.c.l.b16 %v613
    %v2930 = vunpack.c.h.b16 %v613
    %v2931 = vunpack.c.l.b16 %v614
    %v2932 = vunpack.c.h.b16 %v614
    %v2933 = vunpack.c.l.b16 %v615
    %v2934 = vunpack.c.h.b16 %v615
    %v2935 = vunpack.c.l.b16 %v616
    %v2936 = vunpack.c.h.b16 %v616
    %v2937 = vunpack.c.l.b16 %v617
    %v2938 = vunpack.c.h.b16 %v617
    %v2939 = vunpack.c.l.b16 %v618
    %v2940 = vunpack.c.h.b16 %v618
    %v2941 = vunpack.c.l.b16 %v619
    %v2942 = vunpack.c.h.b16 %v619
    %v2943 = vunpack.c.l.b16 %v620
    %v2944 = vunpack.c.h.b16 %v620
    %v2945 = vunpack.c.l.b16 %v621
    %v2946 = vunpack.c.h.b16 %v621
    %v2947 = vunpack.c.l.b16 %v622
    %v2948 = vunpack.c.h.b16 %v622
    %v2949 = vunpack.c.l.b16 %v623
    %v2950 = vunpack.c.h.b16 %v623
    %v2951 = vunpack.c.l.b16 %v624
    %v2952 = vunpack.c.h.b16 %v624
    %v2953 = vunpack.c.l.b16 %v625
    %v2954 = vunpack.c.h.b16 %v625
    %v2955 = vunpack.c.l.b16 %v626
    %v2956 = vunpack.c.h.b16 %v626
    %v2957 = vunpack.c.l.b16 %v627
    %v2958 = vunpack.c.h.b16 %v627
    %v2959 = vunpack.c.l.b16 %v628
    %v2960 = vunpack.c.h.b16 %v628
    %v2961 = vunpack.c.l.b16 %v629
    %v2962 = vunpack.c.h.b16 %v629
    %v2963 = vunpack.c.l.b16 %v630
    %v2964 = vunpack.c.h.b16 %v630
    %v2965 = vunpack.c.l.b16 %v631
    %v2966 = vunpack.c.h.b16 %v631
    %v2967 = vunpack.c.l.b16 %v632
    %v2968 = vunpack.c.h.b16 %v632
    %v2969 = vunpack.c.l.b16 %v633
    %v2970 = vunpack.c.h.b16 %v633
    %v2971 = vunpack.c.l.b16 %v634
    %v2972 = vunpack.c.h.b16 %v634
    %v2973 = vunpack.c.l.b16 %v635
    %v2974 = vunpack.c.h.b16 %v635
    %v2975 = vunpack.c.l.b16 %v636
    %v2976 = vunpack.c.h.b16 %v636
    %v2977 = vunpack.c.l.b16 %v637
    %v2978 = vunpack.c.h.b16 %v637
    %v2979 = vunpack.c.l.b16 %v638
    %v2980 = vunpack.c.h.b16 %v638
    %v2981 = vunpack.c.l.b16 %v639
    %v2982 = vunpack.c.h.b16 %v639
    %v2983 = vunpack.c.l.b16 %v640
    %v2984 = vunpack.c.h.b16 %v640
    %v2985 = vunpack.c.l.b16 %v641
    %v2986 = vunpack.c.h.b16 %v641
    %v2987 = vunpack.c.l.b16 %v642
    %v2988 = vunpack.c.h.b16 %v642
    %v2989 = vunpack.c.l.b16 %v643
    %v2990 = vunpack.c.h.b16 %v643
    %v2991 = vunpack.c.l.b16 %v644
    %v2992 = vunpack.c.h.b16 %v644
    %v2993 = vunpack.c.l.b16 %v645
    %v2994 = vunpack.c.h.b16 %v645
    %v2995 = vunpack.c.l.b16 %v646
    %v2996 = vunpack.c.h.b16 %v646
    %v2997 = vunpack.c.l.b16 %v647
    %v2998 = vunpack.c.h.b16 %v647
    %v2999 = vunpack.c.l.b16 %v648
    %v3000 = vunpack.c.h.b16 %v648
    %v3001 = vunpack.c.l.b16 %v649
    %v3002 = vunpack.c.h.b16 %v649
    %v3003 = vunpack.c.l.b16 %v650
    %v3004 = vunpack.c.h.b16 %v650
    %v3005 = vunpack.c.l.b16 %v651
    %v3006 = vunpack.c.h.b16 %v651
    %v3007 = vunpack.c.l.b16 %v652
    %v3008 = vunpack.c.h.b16 %v652
    %v3009 = vunpack.c.l.b16 %v653
    %v3010 = vunpack.c.h.b16 %v653
    %v3011 = vunpack.c.l.b16 %v654
    %v3012 = vunpack.c.h.b16 %v654
    %v3013 = vunpack.c.l.b16 %v655
    %v3014 = vunpack.c.h.b16 %v655
    %v3015 = vunpack.c.l.b16 %v656
    %v3016 = vunpack.c.h.b16 %v656
    %v3017 = vunpack.c.l.b16 %v657
    %v3018 = vunpack.c.h.b16 %v657
    %v3019 = vunpack.c.l.b16 %v658
    %v3020 = vunpack.c.h.b16 %v658
    %v3021 = vunpack.c.l.b16 %v659
    %v3022 = vunpack.c.h.b16 %v659
    %v3023 = vunpack.c.l.b16 %v660
    %v3024 = vunpack.c.h.b16 %v660
    %v3025 = vunpack.c.l.b16 %v661
    %v3026 = vunpack.c.h.b16 %v661
    %v3027 = vunpack.c.l.b16 %v662
    %v3028 = vunpack.c.h.b16 %v662
    %v3029 = vunpack.c.l.b16 %v663
    %v3030 = vunpack.c.h.b16 %v663
    %v3031 = vunpack.c.l.b16 %v664
    %v3032 = vunpack.c.h.b16 %v664
    %v3033 = vunpack.c.l.b16 %v665
    %v3034 = vunpack.c.h.b16 %v665
    %v3035 = vunpack.c.l.b16 %v666
    %v3036 = vunpack.c.h.b16 %v666
    %v3037 = vunpack.c.l.b16 %v667
    %v3038 = vunpack.c.h.b16 %v667
    %v3039 = vunpack.c.l.b16 %v668
    %v3040 = vunpack.c.h.b16 %v668
    %v3041 = vunpack.c.l.b16 %v669
    %v3042 = vunpack.c.h.b16 %v669
    %v3043 = vunpack.c.l.b16 %v670
    %v3044 = vunpack.c.h.b16 %v670
    %v3045 = vunpack.c.l.b16 %v671
    %v3046 = vunpack.c.h.b16 %v671
    %v3047 = vunpack.c.l.b16 %v672
    %v3048 = vunpack.c.h.b16 %v672
    %v3049 = vunpack.c.l.b16 %v673
    %v3050 = vunpack.c.h.b16 %v673
    %v3051 = vunpack.c.l.b16 %v674
    %v3052 = vunpack.c.h.b16 %v674
    %v3053 = vunpack.c.l.b16 %v675
    %v3054 = vunpack.c.h.b16 %v675
    %v3055 = vunpack.c.l.b16 %v676
    %v3056 = vunpack.c.h.b16 %v676
    %v3057 = vunpack.c.l.b16 %v677
    %v3058 = vunpack.c.h.b16 %v677
    %v3059 = vunpack.c.l.b16 %v678
    %v3060 = vunpack.c.h.b16 %v678
    %v3061 = vunpack.c.l.b16 %v679
    %v3062 = vunpack.c.h.b16 %v679
    %v3063 = vunpack.c.l.b16 %v680
    %v3064 = vunpack.c.h.b16 %v680
    %v3065 = vunpack.c.l.b16 %v681
    %v3066 = vunpack.c.h.b16 %v681
    %v3067 = vunpack.c.l.b16 %v682
    %v3068 = vunpack.c.h.b16 %v682
    %v3069 = vunpack.c.l.b16 %v683
    %v3070 = vunpack.c.h.b16 %v683
    %v3071 = vunpack.c.l.b16 %v684
    %v3072 = vunpack.c.h.b16 %v684
    %v3073 = vunpack.c.l.b16 %v685
    %v3074 = vunpack.c.h.b16 %v685
    %v3075 = vunpack.c.l.b16 %v686
    %v3076 = vunpack.c.h.b16 %v686
    %v3077 = vunpack.c.l.b16 %v687
    %v3078 = vunpack.c.h.b16 %v687
    %v3079 = vunpack.c.l.b16 %v688
    %v3080 = vunpack.c.h.b16 %v688
    %v3081 = vunpack.c.l.b16 %v689
    %v3082 = vunpack.c.h.b16 %v689
    %v3083 = vunpack.c.l.b16 %v690
    %v3084 = vunpack.c.h.b16 %v690
    %v3085 = vunpack.c.l.b16 %v691
    %v3086 = vunpack.c.h.b16 %v691
    %v3087 = vunpack.c.l.b16 %v692
    %v3088 = vunpack.c.h.b16 %v692
    %v3089 = vunpack.c.l.b16 %v693
    %v3090 = vunpack.c.h.b16 %v693
    %v3091 = vunpack.c.l.b16 %v694
    %v3092 = vunpack.c.h.b16 %v694
    %v3093 = vunpack.c.l.b16 %v695
    %v3094 = vunpack.c.h.b16 %v695
    %v3095 = vunpack.c.l.b16 %v696
    %v3096 = vunpack.c.h.b16 %v696
    %v3097 = vunpack.c.l.b16 %v697
    %v3098 = vunpack.c.h.b16 %v697
    %v3099 = vunpack.c.l.b16 %v698
    %v3100 = vunpack.c.h.b16 %v698
    %v3101 = vunpack.c.l.b16 %v699
    %v3102 = vunpack.c.h.b16 %v699
    %v3103 = vunpack.c.l.b16 %v700
    %v3104 = vunpack.c.h.b16 %v700
    %v3105 = vunpack.c.l.b16 %v701
    %v3106 = vunpack.c.h.b16 %v701
    %v3107 = vunpack.c.l.b16 %v702
    %v3108 = vunpack.c.h.b16 %v702
    %v3109 = vunpack.c.l.b16 %v703
    %v3110 = vunpack.c.h.b16 %v703
    %v3111 = vunpack.c.l.b16 %v704
    %v3112 = vunpack.c.h.b16 %v704
    %v3113 = vunpack.c.l.b16 %v705
    %v3114 = vunpack.c.h.b16 %v705
    %v3115 = vunpack.c.l.b16 %v706
    %v3116 = vunpack.c.h.b16 %v706
    %v3117 = vunpack.c.l.b16 %v707
    %v3118 = vunpack.c.h.b16 %v707
    %v3119 = vunpack.c.l.b16 %v708
    %v3120 = vunpack.c.h.b16 %v708
    %v3121 = vunpack.c.l.b16 %v709
    %v3122 = vunpack.c.h.b16 %v709
    %v3123 = vunpack.c.l.b16 %v710
    %v3124 = vunpack.c.h.b16 %v710
    %v3125 = vunpack.c.l.b16 %v711
    %v3126 = vunpack.c.h.b16 %v711
    %v3127 = vunpack.c.l.b16 %v712
    %v3128 = vunpack.c.h.b16 %v712
    %v3129 = vunpack.c.l.b16 %v713
    %v3130 = vunpack.c.h.b16 %v713
    %v3131 = vunpack.c.l.b16 %v714
    %v3132 = vunpack.c.h.b16 %v714
    %v3133 = vunpack.c.l.b16 %v715
    %v3134 = vunpack.c.h.b16 %v715
    %v3135 = vunpack.c.l.b16 %v716
    %v3136 = vunpack.c.h.b16 %v716
    %v3137 = vunpack.c.l.b16 %v717
    %v3138 = vunpack.c.h.b16 %v717
    %v3139 = vunpack.c.l.b16 %v718
    %v3140 = vunpack.c.h.b16 %v718
    %v3141 = vunpack.c.l.b16 %v719
    %v3142 = vunpack.c.h.b16 %v719
    %v3143 = vunpack.c.l.b16 %v720
    %v3144 = vunpack.c.h.b16 %v720
    %v3145 = vunpack.c.l.b16 %v721
    %v3146 = vunpack.c.h.b16 %v721
    %v3147 = vunpack.c.l.b16 %v722
    %v3148 = vunpack.c.h.b16 %v722
    %v3149 = vunpack.c.l.b16 %v723
    %v3150 = vunpack.c.h.b16 %v723
    %v3151 = vunpack.c.l.b16 %v724
    %v3152 = vunpack.c.h.b16 %v724
    %v3153 = vunpack.c.l.b16 %v725
    %v3154 = vunpack.c.h.b16 %v725
    %v3155 = vunpack.c.l.b16 %v726
    %v3156 = vunpack.c.h.b16 %v726
    %v3157 = vunpack.c.l.b16 %v727
    %v3158 = vunpack.c.h.b16 %v727
    %v3159 = vunpack.c.l.b16 %v728
    %v3160 = vunpack.c.h.b16 %v728
    %v3161 = vunpack.c.l.b16 %v729
    %v3162 = vunpack.c.h.b16 %v729
    %v3163 = vunpack.c.l.b16 %v730
    %v3164 = vunpack.c.h.b16 %v730
    %v3165 = vunpack.c.l.b16 %v731
    %v3166 = vunpack.c.h.b16 %v731
    %v3167 = vunpack.c.l.b16 %v732
    %v3168 = vunpack.c.h.b16 %v732
    %v3169 = vunpack.c.l.b16 %v733
    %v3170 = vunpack.c.h.b16 %v733
    %v3171 = vunpack.c.l.b16 %v734
    %v3172 = vunpack.c.h.b16 %v734
    %v3173 = vunpack.c.l.b16 %v735
    %v3174 = vunpack.c.h.b16 %v735
    %v3175 = vunpack.c.l.b16 %v736
    %v3176 = vunpack.c.h.b16 %v736
    %v3177 = vunpack.c.l.b16 %v737
    %v3178 = vunpack.c.h.b16 %v737
    %v3179 = vunpack.c.l.b16 %v738
    %v3180 = vunpack.c.h.b16 %v738
    %v3181 = vunpack.c.l.b16 %v739
    %v3182 = vunpack.c.h.b16 %v739
    %v3183 = vunpack.c.l.b16 %v740
    %v3184 = vunpack.c.h.b16 %v740
    %v3185 = vunpack.c.l.b16 %v741
    %v3186 = vunpack.c.h.b16 %v741
    %v3187 = vunpack.c.l.b16 %v742
    %v3188 = vunpack.c.h.b16 %v742
    %v3189 = vunpack.c.l.b16 %v743
    %v3190 = vunpack.c.h.b16 %v743
    %v3191 = vunpack.c.l.b16 %v744
    %v3192 = vunpack.c.h.b16 %v744
    %v3193 = vunpack.c.l.b16 %v745
    %v3194 = vunpack.c.h.b16 %v745
    %v3195 = vunpack.c.l.b16 %v746
    %v3196 = vunpack.c.h.b16 %v746
    %v3197 = vunpack.c.l.b16 %v747
    %v3198 = vunpack.c.h.b16 %v747
    %v3199 = vunpack.c.l.b16 %v748
    %v3200 = vunpack.c.h.b16 %v748
    %v3201 = vunpack.c.l.b16 %v749
    %v3202 = vunpack.c.h.b16 %v749
    %v3203 = vunpack.c.l.b16 %v750
    %v3204 = vunpack.c.h.b16 %v750
    %v3205 = vunpack.c.l.b16 %v751
    %v3206 = vunpack.c.h.b16 %v751
    %v3207 = vunpack.c.l.b16 %v752
    %v3208 = vunpack.c.h.b16 %v752
    %v3209 = vunpack.c.l.b16 %v753
    %v3210 = vunpack.c.h.b16 %v753
    %v3211 = vunpack.c.l.b16 %v754
    %v3212 = vunpack.c.h.b16 %v754
    %v3213 = vunpack.c.l.b16 %v755
    %v3214 = vunpack.c.h.b16 %v755
    %v3215 = vunpack.c.l.b16 %v756
    %v3216 = vunpack.c.h.b16 %v756
    %v3217 = vunpack.c.l.b16 %v757
    %v3218 = vunpack.c.h.b16 %v757
    %v3219 = vunpack.c.l.b16 %v758
    %v3220 = vunpack.c.h.b16 %v758
    %v3221 = vunpack.c.l.b16 %v759
    %v3222 = vunpack.c.h.b16 %v759
    %v3223 = vunpack.c.l.b16 %v760
    %v3224 = vunpack.c.h.b16 %v760
    %v3225 = vunpack.c.l.b16 %v761
    %v3226 = vunpack.c.h.b16 %v761
    %v3227 = vunpack.c.l.b16 %v762
    %v3228 = vunpack.c.h.b16 %v762
    %v3229 = vunpack.c.l.b16 %v763
    %v3230 = vunpack.c.h.b16 %v763
    %v3231 = vunpack.c.l.b16 %v764
    %v3232 = vunpack.c.h.b16 %v764
    %v3233 = vunpack.c.l.b16 %v765
    %v3234 = vunpack.c.h.b16 %v765
    %v3235 = vunpack.c.l.b16 %v766
    %v3236 = vunpack.c.h.b16 %v766
    %v3237 = vunpack.c.l.b16 %v767
    %v3238 = vunpack.c.h.b16 %v767
    %v3239 = vunpack.c.l.b16 %v768
    %v3240 = vunpack.c.h.b16 %v768
    %v3241 = vunpack.c.l.b16 %v769
    %v3242 = vunpack.c.h.b16 %v769
    %v3243 = vunpack.c.l.b16 %v770
    %v3244 = vunpack.c.h.b16 %v770
    %v3245 = vunpack.c.l.b16 %v771
    %v3246 = vunpack.c.h.b16 %v771
    %v3247 = vunpack.c.l.b16 %v772
    %v3248 = vunpack.c.h.b16 %v772
    %v3249 = vunpack.c.l.b16 %v773
    %v3250 = vunpack.c.h.b16 %v773
    %v3251 = vunpack.c.l.b16 %v774
    %v3252 = vunpack.c.h.b16 %v774
    %v3253 = vunpack.c.l.b16 %v775
    %v3254 = vunpack.c.h.b16 %v775
    %v3255 = vunpack.c.l.b16 %v776
    %v3256 = vunpack.c.h.b16 %v776
    %v3257 = vunpack.c.l.b16 %v777
    %v3258 = vunpack.c.h.b16 %v777
    %v3259 = vunpack.c.l.b16 %v778
    %v3260 = vunpack.c.h.b16 %v778
    %v3261 = vunpack.c.l.b16 %v779
    %v3262 = vunpack.c.h.b16 %v779
    %v3263 = vunpack.c.l.b16 %v780
    %v3264 = vunpack.c.h.b16 %v780
    %v3265 = vunpack.c.l.b16 %v781
    %v3266 = vunpack.c.h.b16 %v781
    %v3267 = vunpack.c.l.b16 %v782
    %v3268 = vunpack.c.h.b16 %v782
    %v3269 = vunpack.c.l.b16 %v783
    %v3270 = vunpack.c.h.b16 %v783
    %v3271 = vunpack.c.l.b16 %v784
    %v3272 = vunpack.c.h.b16 %v784
    %v3273 = vunpack.c.l.b16 %v785
    %v3274 = vunpack.c.h.b16 %v785
    %v3275 = vunpack.c.l.b16 %v786
    %v3276 = vunpack.c.h.b16 %v786
    %v3277 = vunpack.c.l.b16 %v787
    %v3278 = vunpack.c.h.b16 %v787
    %v3279 = vunpack.c.l.b16 %v788
    %v3280 = vunpack.c.h.b16 %v788
    %v3281 = vunpack.c.l.b16 %v789
    %v3282 = vunpack.c.h.b16 %v789
    %v3283 = vunpack.c.l.b16 %v790
    %v3284 = vunpack.c.h.b16 %v790
    %v3285 = vunpack.c.l.b16 %v791
    %v3286 = vunpack.c.h.b16 %v791
    %v3287 = vunpack.c.l.b16 %v792
    %v3288 = vunpack.c.h.b16 %v792
    %v3289 = vunpack.c.l.b16 %v793
    %v3290 = vunpack.c.h.b16 %v793
    %v3291 = vunpack.c.l.b16 %v794
    %v3292 = vunpack.c.h.b16 %v794
    %v3293 = vunpack.c.l.b16 %v795
    %v3294 = vunpack.c.h.b16 %v795
    %v3295 = vunpack.c.l.b16 %v796
    %v3296 = vunpack.c.h.b16 %v796
    %v3297 = vunpack.c.l.b16 %v797
    %v3298 = vunpack.c.h.b16 %v797
    %v3299 = vunpack.c.l.b16 %v798
    %v3300 = vunpack.c.h.b16 %v798
    %v3301 = vunpack.c.l.b16 %v799
    %v3302 = vunpack.c.h.b16 %v799
    %v3303 = vunpack.c.l.b16 %v800
    %v3304 = vunpack.c.h.b16 %v800
    %v3305 = vunpack.c.l.b16 %v801
    %v3306 = vunpack.c.h.b16 %v801
    %v3307 = vunpack.c.l.b16 %v802
    %v3308 = vunpack.c.h.b16 %v802
    %v3309 = vunpack.c.l.b16 %v803
    %v3310 = vunpack.c.h.b16 %v803
    %v3311 = vunpack.c.l.b16 %v804
    %v3312 = vunpack.c.h.b16 %v804
    %v3313 = vunpack.c.l.b16 %v805
    %v3314 = vunpack.c.h.b16 %v805
    %v3315 = vunpack.c.l.b16 %v806
    %v3316 = vunpack.c.h.b16 %v806
    %v3317 = vunpack.c.l.b16 %v807
    %v3318 = vunpack.c.h.b16 %v807
    %v3319 = vunpack.c.l.b16 %v808
    %v3320 = vunpack.c.h.b16 %v808
    %v3321 = vunpack.c.l.b16 %v809
    %v3322 = vunpack.c.h.b16 %v809
    %v3323 = vunpack.c.l.b16 %v810
    %v3324 = vunpack.c.h.b16 %v810
    %v3325 = vunpack.c.l.b16 %v811
    %v3326 = vunpack.c.h.b16 %v811
    %v3327 = vunpack.c.l.b16 %v812
    %v3328 = vunpack.c.h.b16 %v812
    %v3329 = vunpack.c.l.b16 %v813
    %v3330 = vunpack.c.h.b16 %v813
    %v3331 = vunpack.c.l.b16 %v814
    %v3332 = vunpack.c.h.b16 %v814
    %v3333 = vunpack.c.l.b16 %v815
    %v3334 = vunpack.c.h.b16 %v815
    %v3335 = vunpack.c.l.b16 %v816
    %v3336 = vunpack.c.h.b16 %v816
    %v3337 = vunpack.c.l.b16 %v817
    %v3338 = vunpack.c.h.b16 %v817
    %v3339 = vunpack.c.l.b16 %v818
    %v3340 = vunpack.c.h.b16 %v818
    %v3341 = vunpack.c.l.b16 %v819
    %v3342 = vunpack.c.h.b16 %v819
    %v3343 = vunpack.c.l.b16 %v820
    %v3344 = vunpack.c.h.b16 %v820
    %v3345 = vunpack.c.l.b16 %v821
    %v3346 = vunpack.c.h.b16 %v821
    %v3347 = vunpack.c.l.b16 %v822
    %v3348 = vunpack.c.h.b16 %v822
    %v3349 = vunpack.c.l.b16 %v823
    %v3350 = vunpack.c.h.b16 %v823
    %v3351 = vunpack.c.l.b16 %v824
    %v3352 = vunpack.c.h.b16 %v824
    %v3353 = vunpack.c.l.b16 %v825
    %v3354 = vunpack.c.h.b16 %v825
    %v3355 = vunpack.c.l.b16 %v826
    %v3356 = vunpack.c.h.b16 %v826
    %v3357 = vunpack.c.l.b16 %v827
    %v3358 = vunpack.c.h.b16 %v827
    %v3359 = vunpack.c.l.b16 %v828
    %v3360 = vunpack.c.h.b16 %v828
    %v3361 = vunpack.c.l.b16 %v829
    %v3362 = vunpack.c.h.b16 %v829
    %v3363 = vunpack.c.l.b16 %v830
    %v3364 = vunpack.c.h.b16 %v830
    %v3365 = vunpack.c.l.b16 %v831
    %v3366 = vunpack.c.h.b16 %v831
    %v3367 = vunpack.c.l.b16 %v832
    %v3368 = vunpack.c.h.b16 %v832
    %v3369 = vunpack.c.l.b16 %v833
    %v3370 = vunpack.c.h.b16 %v833
    %v3371 = vunpack.c.l.b16 %v834
    %v3372 = vunpack.c.h.b16 %v834
    %v3373 = vunpack.c.l.b16 %v835
    %v3374 = vunpack.c.h.b16 %v835
    %v3375 = vunpack.c.l.b16 %v836
    %v3376 = vunpack.c.h.b16 %v836
    %v3377 = vunpack.c.l.b16 %v837
    %v3378 = vunpack.c.h.b16 %v837
    %v3379 = vunpack.c.l.b16 %v838
    %v3380 = vunpack.c.h.b16 %v838
    %v3381 = vunpack.c.l.b16 %v839
    %v3382 = vunpack.c.h.b16 %v839
    %v3383 = vunpack.c.l.b16 %v840
    %v3384 = vunpack.c.h.b16 %v840
    %v3385 = vunpack.c.l.b16 %v841
    %v3386 = vunpack.c.h.b16 %v841
    %v3387 = vunpack.c.l.b16 %v842
    %v3388 = vunpack.c.h.b16 %v842
    %v3389 = vunpack.c.l.b16 %v843
    %v3390 = vunpack.c.h.b16 %v843
    %v3391 = vunpack.c.l.b16 %v844
    %v3392 = vunpack.c.h.b16 %v844
    %v3393 = vunpack.c.l.b16 %v845
    %v3394 = vunpack.c.h.b16 %v845
    %v3395 = vunpack.c.l.b16 %v846
    %v3396 = vunpack.c.h.b16 %v846
    %v3397 = vunpack.c.l.b16 %v847
    %v3398 = vunpack.c.h.b16 %v847
    %v3399 = vunpack.c.l.b16 %v848
    %v3400 = vunpack.c.h.b16 %v848
    %v3401 = vunpack.c.l.b16 %v849
    %v3402 = vunpack.c.h.b16 %v849
    %v3403 = vunpack.c.l.b16 %v850
    %v3404 = vunpack.c.h.b16 %v850
    %v3405 = vunpack.c.l.b16 %v851
    %v3406 = vunpack.c.h.b16 %v851
    %v3407 = vunpack.c.l.b16 %v852
    %v3408 = vunpack.c.h.b16 %v852
    %v3409 = vunpack.c.l.b16 %v853
    %v3410 = vunpack.c.h.b16 %v853
    %v3411 = vunpack.c.l.b16 %v854
    %v3412 = vunpack.c.h.b16 %v854
    %v3413 = vunpack.c.l.b16 %v855
    %v3414 = vunpack.c.h.b16 %v855
    %v3415 = vunpack.c.l.b16 %v856
    %v3416 = vunpack.c.h.b16 %v856
    %v3417 = vunpack.c.l.b16 %v857
    %v3418 = vunpack.c.h.b16 %v857
    %v3419 = vunpack.c.l.b16 %v858
    %v3420 = vunpack.c.h.b16 %v858
    %v3421 = vunpack.c.l.b16 %v859
    %v3422 = vunpack.c.h.b16 %v859
    %v3423 = vunpack.c.l.b16 %v860
    %v3424 = vunpack.c.h.b16 %v860
    %v3425 = vunpack.c.l.b16 %v861
    %v3426 = vunpack.c.h.b16 %v861
    %v3427 = vunpack.c.l.b16 %v862
    %v3428 = vunpack.c.h.b16 %v862
    %v3429 = vunpack.c.l.b16 %v863
    %v3430 = vunpack.c.h.b16 %v863
    %v3431 = vunpack.c.l.b16 %v864
    %v3432 = vunpack.c.h.b16 %v864
    %v3433 = vunpack.c.l.b16 %v865
    %v3434 = vunpack.c.h.b16 %v865
    %v3435 = vunpack.c.l.b16 %v866
    %v3436 = vunpack.c.h.b16 %v866
    %v3437 = vunpack.c.l.b16 %v867
    %v3438 = vunpack.c.h.b16 %v867
    %v3439 = vunpack.c.l.b16 %v868
    %v3440 = vunpack.c.h.b16 %v868
    %v3441 = vunpack.c.l.b16 %v869
    %v3442 = vunpack.c.h.b16 %v869
    %v3443 = vunpack.c.l.b16 %v870
    %v3444 = vunpack.c.h.b16 %v870
    %v3445 = vunpack.c.l.b16 %v871
    %v3446 = vunpack.c.h.b16 %v871
    %v3447 = vunpack.c.l.b16 %v872
    %v3448 = vunpack.c.h.b16 %v872
    %v3449 = vunpack.c.l.b16 %v873
    %v3450 = vunpack.c.h.b16 %v873
    %v3451 = vunpack.c.l.b16 %v874
    %v3452 = vunpack.c.h.b16 %v874
    %v3453 = vunpack.c.l.b16 %v875
    %v3454 = vunpack.c.h.b16 %v875
    %v3455 = vunpack.c.l.b16 %v876
    %v3456 = vunpack.c.h.b16 %v876
    %v3457 = vunpack.c.l.b16 %v877
    %v3458 = vunpack.c.h.b16 %v877
    %v3459 = vunpack.c.l.b16 %v878
    %v3460 = vunpack.c.h.b16 %v878
    %v3461 = vunpack.c.l.b16 %v879
    %v3462 = vunpack.c.h.b16 %v879
    %v3463 = vunpack.c.l.b16 %v880
    %v3464 = vunpack.c.h.b16 %v880
    %v3465 = vunpack.c.l.b16 %v881
    %v3466 = vunpack.c.h.b16 %v881
    %v3467 = vunpack.c.l.b16 %v882
    %v3468 = vunpack.c.h.b16 %v882
    %v3469 = vunpack.c.l.b16 %v883
    %v3470 = vunpack.c.h.b16 %v883
    %v3471 = vunpack.c.l.b16 %v884
    %v3472 = vunpack.c.h.b16 %v884
    %v3473 = vunpack.c.l.b16 %v885
    %v3474 = vunpack.c.h.b16 %v885
    %v3475 = vunpack.c.l.b16 %v886
    %v3476 = vunpack.c.h.b16 %v886
    %v3477 = vunpack.c.l.b16 %v887
    %v3478 = vunpack.c.h.b16 %v887
    %v3479 = vunpack.c.l.b16 %v888
    %v3480 = vunpack.c.h.b16 %v888
    %v3481 = vunpack.c.l.b16 %v889
    %v3482 = vunpack.c.h.b16 %v889
    %v3483 = vunpack.c.l.b16 %v890
    %v3484 = vunpack.c.h.b16 %v890
    %v3485 = vunpack.c.l.b16 %v891
    %v3486 = vunpack.c.h.b16 %v891
    %v3487 = vunpack.c.l.b16 %v892
    %v3488 = vunpack.c.h.b16 %v892
    %v3489 = vunpack.c.l.b16 %v893
    %v3490 = vunpack.c.h.b16 %v893
    %v3491 = vunpack.c.l.b16 %v894
    %v3492 = vunpack.c.h.b16 %v894
    %v3493 = vunpack.c.l.b16 %v895
    %v3494 = vunpack.c.h.b16 %v895
    %v3495 = vunpack.c.l.b16 %v896
    %v3496 = vunpack.c.h.b16 %v896
    %v3497 = vunpack.c.l.b16 %v897
    %v3498 = vunpack.c.h.b16 %v897
    %v3499 = vunpack.c.l.b16 %v898
    %v3500 = vunpack.c.h.b16 %v898
    %v3501 = vunpack.c.l.b16 %v899
    %v3502 = vunpack.c.h.b16 %v899
    %v3503 = vunpack.c.l.b16 %v900
    %v3504 = vunpack.c.h.b16 %v900
    %v3505 = vunpack.c.l.b16 %v901
    %v3506 = vunpack.c.h.b16 %v901
    %v3507 = vunpack.c.l.b16 %v902
    %v3508 = vunpack.c.h.b16 %v902
    %v3509 = vunpack.c.l.b16 %v903
    %v3510 = vunpack.c.h.b16 %v903
    %v3511 = vunpack.c.l.b16 %v904
    %v3512 = vunpack.c.h.b16 %v904
    %v3513 = vunpack.c.l.b16 %v905
    %v3514 = vunpack.c.h.b16 %v905
    %v3515 = vunpack.c.l.b16 %v906
    %v3516 = vunpack.c.h.b16 %v906
    %v3517 = vunpack.c.l.b16 %v907
    %v3518 = vunpack.c.h.b16 %v907
    %v3519 = vunpack.c.l.b16 %v908
    %v3520 = vunpack.c.h.b16 %v908
    %v3521 = vunpack.c.l.b16 %v909
    %v3522 = vunpack.c.h.b16 %v909
    %v3523 = vunpack.c.l.b16 %v910
    %v3524 = vunpack.c.h.b16 %v910
    %v3525 = vunpack.c.l.b16 %v911
    %v3526 = vunpack.c.h.b16 %v911
    %v3527 = vunpack.c.l.b16 %v912
    %v3528 = vunpack.c.h.b16 %v912
    %v3529 = vunpack.c.l.b16 %v913
    %v3530 = vunpack.c.h.b16 %v913
    %v3531 = vunpack.c.l.b16 %v914
    %v3532 = vunpack.c.h.b16 %v914
    %v3533 = vunpack.c.l.b16 %v915
    %v3534 = vunpack.c.h.b16 %v915
    %v3535 = vunpack.c.l.b16 %v916
    %v3536 = vunpack.c.h.b16 %v916
    %v3537 = vunpack.c.l.b16 %v917
    %v3538 = vunpack.c.h.b16 %v917
    %v3539 = vunpack.c.l.b16 %v918
    %v3540 = vunpack.c.h.b16 %v918
    %v3541 = vunpack.c.l.b16 %v919
    %v3542 = vunpack.c.h.b16 %v919
    %v3543 = vunpack.c.l.b16 %v920
    %v3544 = vunpack.c.h.b16 %v920
    %v3545 = vunpack.c.l.b16 %v921
    %v3546 = vunpack.c.h.b16 %v921
    %v3547 = vunpack.c.l.b16 %v922
    %v3548 = vunpack.c.h.b16 %v922
    %v3549 = vunpack.c.l.b16 %v923
    %v3550 = vunpack.c.h.b16 %v923
    %v3551 = vunpack.c.l.b16 %v924
    %v3552 = vunpack.c.h.b16 %v924
    %v3553 = vunpack.c.l.b16 %v925
    %v3554 = vunpack.c.h.b16 %v925
    %v3555 = vunpack.c.l.b16 %v926
    %v3556 = vunpack.c.h.b16 %v926
    %v3557 = vunpack.c.l.b16 %v927
    %v3558 = vunpack.c.h.b16 %v927
    %v3559 = vunpack.c.l.b16 %v928
    %v3560 = vunpack.c.h.b16 %v928
    %v3561 = vunpack.c.l.b16 %v929
    %v3562 = vunpack.c.h.b16 %v929
    %v3563 = vunpack.c.l.b16 %v930
    %v3564 = vunpack.c.h.b16 %v930
    %v3565 = vunpack.c.l.b16 %v931
    %v3566 = vunpack.c.h.b16 %v931
    %v3567 = vunpack.c.l.b16 %v932
    %v3568 = vunpack.c.h.b16 %v932
    %v3569 = vunpack.c.l.b16 %v933
    %v3570 = vunpack.c.h.b16 %v933
    %v3571 = vunpack.c.l.b16 %v934
    %v3572 = vunpack.c.h.b16 %v934
    %v3573 = vunpack.c.l.b16 %v935
    %v3574 = vunpack.c.h.b16 %v935
    %v3575 = vunpack.c.l.b16 %v936
    %v3576 = vunpack.c.h.b16 %v936
    %v3577 = vunpack.c.l.b16 %v937
    %v3578 = vunpack.c.h.b16 %v937
    %v3579 = vunpack.c.l.b16 %v938
    %v3580 = vunpack.c.h.b16 %v938
    %v3581 = vunpack.c.l.b16 %v939
    %v3582 = vunpack.c.h.b16 %v939
    %v3583 = vunpack.c.l.b16 %v940
    %v3584 = vunpack.c.h.b16 %v940
    %v3585 = vunpack.c.l.b16 %v941
    %v3586 = vunpack.c.h.b16 %v941
    %v3587 = vunpack.c.l.b16 %v942
    %v3588 = vunpack.c.h.b16 %v942
    %v3589 = vunpack.c.l.b16 %v943
    %v3590 = vunpack.c.h.b16 %v943
    %v3591 = vunpack.c.l.b16 %v944
    %v3592 = vunpack.c.h.b16 %v944
    %v3593 = vunpack.c.l.b16 %v945
    %v3594 = vunpack.c.h.b16 %v945
    %v3595 = vunpack.c.l.b16 %v946
    %v3596 = vunpack.c.h.b16 %v946
    %v3597 = vunpack.c.l.b16 %v947
    %v3598 = vunpack.c.h.b16 %v947
    %v3599 = vunpack.c.l.b16 %v948
    %v3600 = vunpack.c.h.b16 %v948
    %v3601 = vunpack.c.l.b16 %v949
    %v3602 = vunpack.c.h.b16 %v949
    %v3603 = vunpack.c.l.b16 %v950
    %v3604 = vunpack.c.h.b16 %v950
    %v3605 = vunpack.c.l.b16 %v951
    %v3606 = vunpack.c.h.b16 %v951
    %v3607 = vunpack.c.l.b16 %v952
    %v3608 = vunpack.c.h.b16 %v952
    %v3609 = vunpack.c.l.b16 %v953
    %v3610 = vunpack.c.h.b16 %v953
    %v3611 = vunpack.c.l.b16 %v954
    %v3612 = vunpack.c.h.b16 %v954
    %v3613 = vunpack.c.l.b16 %v955
    %v3614 = vunpack.c.h.b16 %v955
    %v3615 = vunpack.c.l.b16 %v956
    %v3616 = vunpack.c.h.b16 %v956
    %v3617 = vunpack.c.l.b16 %v957
    %v3618 = vunpack.c.h.b16 %v957
    %v3619 = vunpack.c.l.b16 %v958
    %v3620 = vunpack.c.h.b16 %v958
    %v3621 = vunpack.c.l.b16 %v959
    %v3622 = vunpack.c.h.b16 %v959
    %v3623 = vunpack.c.l.b16 %v960
    %v3624 = vunpack.c.h.b16 %v960
    %v3625 = vunpack.c.l.b16 %v961
    %v3626 = vunpack.c.h.b16 %v961
    %v3627 = vunpack.c.l.b16 %v962
    %v3628 = vunpack.c.h.b16 %v962
    %v3629 = vunpack.c.l.b16 %v963
    %v3630 = vunpack.c.h.b16 %v963
    %v3631 = vunpack.c.l.b16 %v964
    %v3632 = vunpack.c.h.b16 %v964
    %v3633 = vunpack.c.l.b16 %v965
    %v3634 = vunpack.c.h.b16 %v965
    %v3635 = vunpack.c.l.b16 %v966
    %v3636 = vunpack.c.h.b16 %v966
    %v3637 = vunpack.c.l.b16 %v967
    %v3638 = vunpack.c.h.b16 %v967
    %v3639 = vunpack.c.l.b16 %v968
    %v3640 = vunpack.c.h.b16 %v968
    %v3641 = vunpack.c.l.b16 %v969
    %v3642 = vunpack.c.h.b16 %v969
    %v3643 = vunpack.c.l.b16 %v970
    %v3644 = vunpack.c.h.b16 %v970
    %v3645 = vunpack.c.l.b16 %v971
    %v3646 = vunpack.c.h.b16 %v971
    %v3647 = vunpack.c.l.b16 %v972
    %v3648 = vunpack.c.h.b16 %v972
    %v3649 = vunpack.c.l.b16 %v973
    %v3650 = vunpack.c.h.b16 %v973
    %v3651 = vunpack.c.l.b16 %v974
    %v3652 = vunpack.c.h.b16 %v974
    %v3653 = vunpack.c.l.b16 %v975
    %v3654 = vunpack.c.h.b16 %v975
    %v3655 = vunpack.c.l.b16 %v976
    %v3656 = vunpack.c.h.b16 %v976
    %v3657 = vunpack.c.l.b16 %v977
    %v3658 = vunpack.c.h.b16 %v977
    %v3659 = vunpack.c.l.b16 %v978
    %v3660 = vunpack.c.h.b16 %v978
    %v3661 = vunpack.c.l.b16 %v979
    %v3662 = vunpack.c.h.b16 %v979
    %v3663 = vunpack.c.l.b16 %v980
    %v3664 = vunpack.c.h.b16 %v980
    %v3665 = vunpack.c.l.b16 %v981
    %v3666 = vunpack.c.h.b16 %v981
    %v3667 = vunpack.c.l.b16 %v982
    %v3668 = vunpack.c.h.b16 %v982
    %v3669 = vunpack.c.l.b16 %v983
    %v3670 = vunpack.c.h.b16 %v983
    %v3671 = vunpack.c.l.b16 %v984
    %v3672 = vunpack.c.h.b16 %v984
    %v3673 = vunpack.c.l.b16 %v985
    %v3674 = vunpack.c.h.b16 %v985
    %v3675 = vunpack.c.l.b16 %v986
    %v3676 = vunpack.c.h.b16 %v986
    %v3677 = vunpack.c.l.b16 %v987
    %v3678 = vunpack.c.h.b16 %v987
    %v3679 = vunpack.c.l.b16 %v988
    %v3680 = vunpack.c.h.b16 %v988
    %v3681 = vunpack.c.l.b16 %v989
    %v3682 = vunpack.c.h.b16 %v989
    %v3683 = vunpack.c.l.b16 %v990
    %v3684 = vunpack.c.h.b16 %v990
    %v3685 = vunpack.c.l.b16 %v991
    %v3686 = vunpack.c.h.b16 %v991
    %v3687 = vunpack.c.l.b16 %v992
    %v3688 = vunpack.c.h.b16 %v992
    %v3689 = vunpack.c.l.b16 %v993
    %v3690 = vunpack.c.h.b16 %v993
    %v3691 = vunpack.c.l.b16 %v994
    %v3692 = vunpack.c.h.b16 %v994
    %v3693 = vunpack.c.l.b16 %v995
    %v3694 = vunpack.c.h.b16 %v995
    %v3695 = vunpack.c.l.b16 %v996
    %v3696 = vunpack.c.h.b16 %v996
    %v3697 = vunpack.c.l.b16 %v997
    %v3698 = vunpack.c.h.b16 %v997
    %v3699 = vunpack.c.l.b16 %v998
    %v3700 = vunpack.c.h.b16 %v998
    %v3701 = vunpack.c.l.b16 %v999
    %v3702 = vunpack.c.h.b16 %v999
    %v3703 = vunpack.c.l.b16 %v1000
    %v3704 = vunpack.c.h.b16 %v1000
    %v3705 = vunpack.c.l.b16 %v1001
    %v3706 = vunpack.c.h.b16 %v1001
    %v3707 = vunpack.c.l.b16 %v1002
    %v3708 = vunpack.c.h.b16 %v1002
    %v3709 = vunpack.c.l.b16 %v1003
    %v3710 = vunpack.c.h.b16 %v1003
    %v3711 = vunpack.c.l.b16 %v1004
    %v3712 = vunpack.c.h.b16 %v1004
    %v3713 = vunpack.c.l.b16 %v1005
    %v3714 = vunpack.c.h.b16 %v1005
    %v3715 = vunpack.c.l.b16 %v1006
    %v3716 = vunpack.c.h.b16 %v1006
    %v3717 = vunpack.c.l.b16 %v1007
    %v3718 = vunpack.c.h.b16 %v1007
    %v3719 = vunpack.c.l.b16 %v1008
    %v3720 = vunpack.c.h.b16 %v1008
    %v3721 = vunpack.c.l.b16 %v1009
    %v3722 = vunpack.c.h.b16 %v1009
    %v3723 = vunpack.c.l.b16 %v1010
    %v3724 = vunpack.c.h.b16 %v1010
    %v3725 = vunpack.c.l.b16 %v1011
    %v3726 = vunpack.c.h.b16 %v1011
    %v3727 = vunpack.c.l.b16 %v1012
    %v3728 = vunpack.c.h.b16 %v1012
    %v3729 = vunpack.c.l.b16 %v1013
    %v3730 = vunpack.c.h.b16 %v1013
    %v3731 = vunpack.c.l.b16 %v1014
    %v3732 = vunpack.c.h.b16 %v1014
    %v3733 = vunpack.c.l.b16 %v1015
    %v3734 = vunpack.c.h.b16 %v1015
    %v3735 = vunpack.c.l.b16 %v1016
    %v3736 = vunpack.c.h.b16 %v1016
    %v3737 = vunpack.c.l.b16 %v1017
    %v3738 = vunpack.c.h.b16 %v1017
    %v3739 = vunpack.c.l.b16 %v1018
    %v3740 = vunpack.c.h.b16 %v1018
    %v3741 = vunpack.c.l.b16 %v1019
    %v3742 = vunpack.c.h.b16 %v1019
    %v3743 = vunpack.c.l.b16 %v1020
    %v3744 = vunpack.c.h.b16 %v1020
    %v3745 = vunpack.c.l.b16 %v1021
    %v3746 = vunpack.c.h.b16 %v1021
    %v3747 = vunpack.c.l.b16 %v1022
    %v3748 = vunpack.c.h.b16 %v1022
    %v3749 = vunpack.c.l.b16 %v1023
    %v3750 = vunpack.c.h.b16 %v1023
    %v3751 = vunpack.c.l.b16 %v1024
    %v3752 = vunpack.c.h.b16 %v1024
    %v3753 = vunpack.c.l.b16 %v1025
    %v3754 = vunpack.c.h.b16 %v1025
    %v3755 = vunpack.c.l.b16 %v1026
    %v3756 = vunpack.c.h.b16 %v1026
    %v3757 = vunpack.c.l.b16 %v1027
    %v3758 = vunpack.c.h.b16 %v1027
    %v3759 = vunpack.c.l.b16 %v1028
    %v3760 = vunpack.c.h.b16 %v1028
    %v3761 = vunpack.c.l.b16 %v1029
    %v3762 = vunpack.c.h.b16 %v1029
    %v3763 = vunpack.c.l.b16 %v1030
    %v3764 = vunpack.c.h.b16 %v1030
    %v3765 = vunpack.c.l.b16 %v1031
    %v3766 = vunpack.c.h.b16 %v1031
    %v3767 = vunpack.c.l.b16 %v1032
    %v3768 = vunpack.c.h.b16 %v1032
    %v3769 = vunpack.c.l.b16 %v1033
    %v3770 = vunpack.c.h.b16 %v1033
    %v3771 = vunpack.c.l.b16 %v1034
    %v3772 = vunpack.c.h.b16 %v1034
    %v3773 = vunpack.c.l.b16 %v1035
    %v3774 = vunpack.c.h.b16 %v1035
    %v3775 = vunpack.c.l.b16 %v1036
    %v3776 = vunpack.c.h.b16 %v1036
    %v3777 = vunpack.c.l.b16 %v1037
    %v3778 = vunpack.c.h.b16 %v1037
    %v3779 = vunpack.c.l.b16 %v1038
    %v3780 = vunpack.c.h.b16 %v1038
    %v3781 = vunpack.c.l.b16 %v1039
    %v3782 = vunpack.c.h.b16 %v1039
    %v3783 = vunpack.c.l.b16 %v1040
    %v3784 = vunpack.c.h.b16 %v1040
    %v3785 = vunpack.c.l.b16 %v1041
    %v3786 = vunpack.c.h.b16 %v1041
    %v3787 = vunpack.c.l.b16 %v1042
    %v3788 = vunpack.c.h.b16 %v1042
    %v3789 = vunpack.c.l.b16 %v1043
    %v3790 = vunpack.c.h.b16 %v1043
    %v3791 = vunpack.c.l.b16 %v1044
    %v3792 = vunpack.c.h.b16 %v1044
    %v3793 = vunpack.c.l.b16 %v1045
    %v3794 = vunpack.c.h.b16 %v1045
    %v3795 = vunpack.c.l.b16 %v1046
    %v3796 = vunpack.c.h.b16 %v1046
    %v3797 = vunpack.c.l.b16 %v1047
    %v3798 = vunpack.c.h.b16 %v1047
    %v3799 = vunpack.c.l.b16 %v1048
    %v3800 = vunpack.c.h.b16 %v1048
    %v3801 = vunpack.c.l.b16 %v1049
    %v3802 = vunpack.c.h.b16 %v1049
    %v3803 = vunpack.c.l.b16 %v1050
    %v3804 = vunpack.c.h.b16 %v1050
    %v3805 = vunpack.c.l.b16 %v1051
    %v3806 = vunpack.c.h.b16 %v1051
    %v3807 = vunpack.c.l.b16 %v1052
    %v3808 = vunpack.c.h.b16 %v1052
    %v3809 = vunpack.c.l.b16 %v1053
    %v3810 = vunpack.c.h.b16 %v1053
    %v3811 = vunpack.c.l.b16 %v1054
    %v3812 = vunpack.c.h.b16 %v1054
    %v3813 = vunpack.c.l.b16 %v1055
    %v3814 = vunpack.c.h.b16 %v1055
    %v3815 = vunpack.c.l.b16 %v1056
    %v3816 = vunpack.c.h.b16 %v1056
    %v3817 = vunpack.c.l.b16 %v1057
    %v3818 = vunpack.c.h.b16 %v1057
    %v3819 = vunpack.c.l.b16 %v1058
    %v3820 = vunpack.c.h.b16 %v1058
    %v3821 = vunpack.c.l.b16 %v1059
    %v3822 = vunpack.c.h.b16 %v1059
    %v3823 = vunpack.c.l.b16 %v1060
    %v3824 = vunpack.c.h.b16 %v1060
    %v3825 = vunpack.c.l.b16 %v1061
    %v3826 = vunpack.c.h.b16 %v1061
    %v3827 = vunpack.c.l.b16 %v1062
    %v3828 = vunpack.c.h.b16 %v1062
    %v3829 = vunpack.c.l.b16 %v1063
    %v3830 = vunpack.c.h.b16 %v1063
    %v3831 = vunpack.c.l.b16 %v1064
    %v3832 = vunpack.c.h.b16 %v1064
    %v3833 = vunpack.c.l.b16 %v1065
    %v3834 = vunpack.c.h.b16 %v1065
    %v3835 = vunpack.c.l.b16 %v1066
    %v3836 = vunpack.c.h.b16 %v1066
    %v3837 = vunpack.c.l.b16 %v1067
    %v3838 = vunpack.c.h.b16 %v1067
    %v3839 = vunpack.c.l.b16 %v1068
    %v3840 = vunpack.c.h.b16 %v1068
    %v3841 = vunpack.c.l.b16 %v1069
    %v3842 = vunpack.c.h.b16 %v1069
    %v3843 = vunpack.c.l.b16 %v1070
    %v3844 = vunpack.c.h.b16 %v1070
    %v3845 = vunpack.c.l.b16 %v1071
    %v3846 = vunpack.c.h.b16 %v1071
    %v3847 = vunpack.c.l.b16 %v1072
    %v3848 = vunpack.c.h.b16 %v1072
    %v3849 = vunpack.c.l.b16 %v1073
    %v3850 = vunpack.c.h.b16 %v1073
    %v3851 = vunpack.c.l.b16 %v1074
    %v3852 = vunpack.c.h.b16 %v1074
    %v3853 = vunpack.c.l.b16 %v1075
    %v3854 = vunpack.c.h.b16 %v1075
    %v3855 = vunpack.c.l.b16 %v1076
    %v3856 = vunpack.c.h.b16 %v1076
    %v3857 = vunpack.c.l.b16 %v1077
    %v3858 = vunpack.c.h.b16 %v1077
    %v3859 = vunpack.c.l.b16 %v1078
    %v3860 = vunpack.c.h.b16 %v1078
    %v3861 = vunpack.c.l.b16 %v1079
    %v3862 = vunpack.c.h.b16 %v1079
    %v3863 = vunpack.c.l.b16 %v1080
    %v3864 = vunpack.c.h.b16 %v1080
    %v3865 = vunpack.c.l.b16 %v1081
    %v3866 = vunpack.c.h.b16 %v1081
    %v3867 = vunpack.c.l.b16 %v1082
    %v3868 = vunpack.c.h.b16 %v1082
    %v3869 = vunpack.c.l.b16 %v1083
    %v3870 = vunpack.c.h.b16 %v1083
    %v3871 = vunpack.c.l.b16 %v1084
    %v3872 = vunpack.c.h.b16 %v1084
    %v3873 = vunpack.c.l.b16 %v1085
    %v3874 = vunpack.c.h.b16 %v1085
    %v3875 = vunpack.c.l.b16 %v1086
    %v3876 = vunpack.c.h.b16 %v1086
    %v3877 = vunpack.c.l.b16 %v1087
    %v3878 = vunpack.c.h.b16 %v1087
    %v3879 = vunpack.c.l.b16 %v1088
    %v3880 = vunpack.c.h.b16 %v1088
    %v3881 = vunpack.c.l.b16 %v1089
    %v3882 = vunpack.c.h.b16 %v1089
    %v3883 = vunpack.c.l.b16 %v1090
    %v3884 = vunpack.c.h.b16 %v1090
    %v3885 = vunpack.c.l.b16 %v1091
    %v3886 = vunpack.c.h.b16 %v1091
    %v3887 = vunpack.c.l.b16 %v1092
    %v3888 = vunpack.c.h.b16 %v1092
    %v3889 = vunpack.c.l.b16 %v1093
    %v3890 = vunpack.c.h.b16 %v1093
    %v3891 = vunpack.c.l.b16 %v1094
    %v3892 = vunpack.c.h.b16 %v1094
    %v3893 = vunpack.c.l.b16 %v1095
    %v3894 = vunpack.c.h.b16 %v1095
    %v3895 = vunpack.c.l.b16 %v1096
    %v3896 = vunpack.c.h.b16 %v1096
    %v3897 = vunpack.c.l.b16 %v1097
    %v3898 = vunpack.c.h.b16 %v1097
    %v3899 = vunpack.c.l.b16 %v1098
    %v3900 = vunpack.c.h.b16 %v1098
    %v3901 = vunpack.c.l.b16 %v1099
    %v3902 = vunpack.c.h.b16 %v1099
    %v3903 = vunpack.c.l.b16 %v1100
    %v3904 = vunpack.c.h.b16 %v1100
    %v3905 = vunpack.c.l.b16 %v1101
    %v3906 = vunpack.c.h.b16 %v1101
    %v3907 = vunpack.c.l.b16 %v1102
    %v3908 = vunpack.c.h.b16 %v1102
    %v3909 = vunpack.c.l.b16 %v1103
    %v3910 = vunpack.c.h.b16 %v1103
    %v3911 = vunpack.c.l.b16 %v1104
    %v3912 = vunpack.c.h.b16 %v1104
    %v3913 = vunpack.c.l.b16 %v1105
    %v3914 = vunpack.c.h.b16 %v1105
    %v3915 = vunpack.c.l.b16 %v1106
    %v3916 = vunpack.c.h.b16 %v1106
    %v3917 = vunpack.c.l.b16 %v1107
    %v3918 = vunpack.c.h.b16 %v1107
    %v3919 = vunpack.c.l.b16 %v1108
    %v3920 = vunpack.c.h.b16 %v1108
    %v3921 = vunpack.c.l.b16 %v1109
    %v3922 = vunpack.c.h.b16 %v1109
    %v3923 = vunpack.c.l.b16 %v1110
    %v3924 = vunpack.c.h.b16 %v1110
    %v3925 = vunpack.c.l.b16 %v1111
    %v3926 = vunpack.c.h.b16 %v1111
    %v3927 = vunpack.c.l.b16 %v1112
    %v3928 = vunpack.c.h.b16 %v1112
    %v3929 = vunpack.c.l.b16 %v1113
    %v3930 = vunpack.c.h.b16 %v1113
    %v3931 = vunpack.c.l.b16 %v1114
    %v3932 = vunpack.c.h.b16 %v1114
    %v3933 = vunpack.c.l.b16 %v1115
    %v3934 = vunpack.c.h.b16 %v1115
    %v3935 = vunpack.c.l.b16 %v1116
    %v3936 = vunpack.c.h.b16 %v1116
    %v3937 = vunpack.c.l.b16 %v1117
    %v3938 = vunpack.c.h.b16 %v1117
    %v3939 = vunpack.c.l.b16 %v1118
    %v3940 = vunpack.c.h.b16 %v1118
    %v3941 = vunpack.c.l.b16 %v1119
    %v3942 = vunpack.c.h.b16 %v1119
    %v3943 = vunpack.c.l.b16 %v1120
    %v3944 = vunpack.c.h.b16 %v1120
    %v3945 = vunpack.c.l.b16 %v1121
    %v3946 = vunpack.c.h.b16 %v1121
    %v3947 = vunpack.c.l.b16 %v1122
    %v3948 = vunpack.c.h.b16 %v1122
    %v3949 = vunpack.c.l.b16 %v1123
    %v3950 = vunpack.c.h.b16 %v1123
    %v3951 = vunpack.c.l.b16 %v1124
    %v3952 = vunpack.c.h.b16 %v1124
    %v3953 = vunpack.c.l.b16 %v1125
    %v3954 = vunpack.c.h.b16 %v1125
    %v3955 = vunpack.c.l.b16 %v1126
    %v3956 = vunpack.c.h.b16 %v1126
    %v3957 = vunpack.c.l.b16 %v1127
    %v3958 = vunpack.c.h.b16 %v1127
    %v3959 = vunpack.c.l.b16 %v1128
    %v3960 = vunpack.c.h.b16 %v1128
    %v3961 = vunpack.c.l.b16 %v1129
    %v3962 = vunpack.c.h.b16 %v1129
    %v3963 = vunpack.c.l.b16 %v1130
    %v3964 = vunpack.c.h.b16 %v1130
    %v3965 = vunpack.c.l.b16 %v1131
    %v3966 = vunpack.c.h.b16 %v1131
    %v3967 = vunpack.c.l.b16 %v1132
    %v3968 = vunpack.c.h.b16 %v1132
    %v3969 = vunpack.c.l.b16 %v1133
    %v3970 = vunpack.c.h.b16 %v1133
    %v3971 = vunpack.c.l.b16 %v1134
    %v3972 = vunpack.c.h.b16 %v1134
    %v3973 = vunpack.c.l.b16 %v1135
    %v3974 = vunpack.c.h.b16 %v1135
    %v3975 = vunpack.c.l.b16 %v1136
    %v3976 = vunpack.c.h.b16 %v1136
    %v3977 = vunpack.c.l.b16 %v1137
    %v3978 = vunpack.c.h.b16 %v1137
    %v3979 = vunpack.c.l.b16 %v1138
    %v3980 = vunpack.c.h.b16 %v1138
    %v3981 = vunpack.c.l.b16 %v1139
    %v3982 = vunpack.c.h.b16 %v1139
    %v3983 = vunpack.c.l.b16 %v1140
    %v3984 = vunpack.c.h.b16 %v1140
    %v3985 = vunpack.c.l.b16 %v1141
    %v3986 = vunpack.c.h.b16 %v1141
    %v3987 = vunpack.c.l.b16 %v1142
    %v3988 = vunpack.c.h.b16 %v1142
    %v3989 = vunpack.c.l.b16 %v1143
    %v3990 = vunpack.c.h.b16 %v1143
    %v3991 = vunpack.c.l.b16 %v1144
    %v3992 = vunpack.c.h.b16 %v1144
    %v3993 = vunpack.c.l.b16 %v1145
    %v3994 = vunpack.c.h.b16 %v1145
    %v3995 = vunpack.c.l.b16 %v1146
    %v3996 = vunpack.c.h.b16 %v1146
    %v3997 = vunpack.c.l.b16 %v1147
    %v3998 = vunpack.c.h.b16 %v1147
    %v3999 = vunpack.c.l.b16 %v1148
    %v4000 = vunpack.c.h.b16 %v1148
    %v4001 = vunpack.c.l.b16 %v1149
    %v4002 = vunpack.c.h.b16 %v1149
    %v4003 = vunpack.c.l.b16 %v1150
    %v4004 = vunpack.c.h.b16 %v1150
    %v4005 = vunpack.c.l.b16 %v1151
    %v4006 = vunpack.c.h.b16 %v1151
    %v4007 = vunpack.c.l.b16 %v1152
    %v4008 = vunpack.c.h.b16 %v1152
    %v4009 = vunpack.c.l.b16 %v1153
    %v4010 = vunpack.c.h.b16 %v1153
    %v4011 = vunpack.c.l.b16 %v1154
    %v4012 = vunpack.c.h.b16 %v1154
    %v4013 = vunpack.c.l.b16 %v1155
    %v4014 = vunpack.c.h.b16 %v1155
    %v4015 = vunpack.c.l.b16 %v1156
    %v4016 = vunpack.c.h.b16 %v1156
    %v4017 = vunpack.c.l.b16 %v1157
    %v4018 = vunpack.c.h.b16 %v1157
    %v4019 = vunpack.c.l.b16 %v1158
    %v4020 = vunpack.c.h.b16 %v1158
    %v4021 = vunpack.c.l.b16 %v1159
    %v4022 = vunpack.c.h.b16 %v1159
    %v4023 = vunpack.c.l.b16 %v1160
    %v4024 = vunpack.c.h.b16 %v1160
    %v4025 = vunpack.c.l.b16 %v1161
    %v4026 = vunpack.c.h.b16 %v1161
    %v4027 = vunpack.c.l.b16 %v1162
    %v4028 = vunpack.c.h.b16 %v1162
    %v4029 = vunpack.c.l.b16 %v1163
    %v4030 = vunpack.c.h.b16 %v1163
    %v4031 = vunpack.c.l.b16 %v1164
    %v4032 = vunpack.c.h.b16 %v1164
    %v4033 = vunpack.c.l.b16 %v1165
    %v4034 = vunpack.c.h.b16 %v1165
    %v4035 = vunpack.c.l.b16 %v1166
    %v4036 = vunpack.c.h.b16 %v1166
    %v4037 = vunpack.c.l.b16 %v1167
    %v4038 = vunpack.c.h.b16 %v1167
    %v4039 = vunpack.c.l.b16 %v1168
    %v4040 = vunpack.c.h.b16 %v1168
    %v4041 = vunpack.c.l.b16 %v1169
    %v4042 = vunpack.c.h.b16 %v1169
    %v4043 = vunpack.c.l.b16 %v1170
    %v4044 = vunpack.c.h.b16 %v1170
    %v4045 = vunpack.c.l.b16 %v1171
    %v4046 = vunpack.c.h.b16 %v1171
    %v4047 = vunpack.c.l.b16 %v1172
    %v4048 = vunpack.c.h.b16 %v1172
    %v4049 = vunpack.c.l.b16 %v1173
    %v4050 = vunpack.c.h.b16 %v1173
    %v4051 = vunpack.c.l.b16 %v1174
    %v4052 = vunpack.c.h.b16 %v1174
    %v4053 = vunpack.c.l.b16 %v1175
    %v4054 = vunpack.c.h.b16 %v1175
    %v4055 = vunpack.c.l.b16 %v1176
    %v4056 = vunpack.c.h.b16 %v1176
    %v4057 = vunpack.c.l.b16 %v1177
    %v4058 = vunpack.c.h.b16 %v1177
    %v4059 = vunpack.c.l.b16 %v1178
    %v4060 = vunpack.c.h.b16 %v1178
    %v4061 = vunpack.c.l.b16 %v1179
    %v4062 = vunpack.c.h.b16 %v1179
    %v4063 = vunpack.c.l.b16 %v1180
    %v4064 = vunpack.c.h.b16 %v1180
    %v4065 = vunpack.c.l.b16 %v1181
    %v4066 = vunpack.c.h.b16 %v1181
    %v4067 = vunpack.c.l.b16 %v1182
    %v4068 = vunpack.c.h.b16 %v1182
    %v4069 = vunpack.c.l.b16 %v1183
    %v4070 = vunpack.c.h.b16 %v1183
    %v4071 = vunpack.c.l.b16 %v1184
    %v4072 = vunpack.c.h.b16 %v1184
    %v4073 = vunpack.c.l.b16 %v1185
    %v4074 = vunpack.c.h.b16 %v1185
    %v4075 = vunpack.c.l.b16 %v1186
    %v4076 = vunpack.c.h.b16 %v1186
    %v4077 = vunpack.c.l.b16 %v1187
    %v4078 = vunpack.c.h.b16 %v1187
    %v4079 = vunpack.c.l.b16 %v1188
    %v4080 = vunpack.c.h.b16 %v1188
    %v4081 = vunpack.c.l.b16 %v1189
    %v4082 = vunpack.c.h.b16 %v1189
    %v4083 = vunpack.c.l.b16 %v1190
    %v4084 = vunpack.c.h.b16 %v1190
    %v4085 = vunpack.c.l.b16 %v1191
    %v4086 = vunpack.c.h.b16 %v1191
    %v4087 = vunpack.c.l.b16 %v1192
    %v4088 = vunpack.c.h.b16 %v1192
    %v4089 = vunpack.c.l.b16 %v1193
    %v4090 = vunpack.c.h.b16 %v1193
    %v4091 = vunpack.c.l.b16 %v1194
    %v4092 = vunpack.c.h.b16 %v1194
    %v4093 = vunpack.c.l.b16 %v1195
    %v4094 = vunpack.c.h.b16 %v1195
    %v4095 = vunpack.c.l.b16 %v1196
    %v4096 = vunpack.c.h.b16 %v1196
    %v4097 = vunpack.c.l.b16 %v1197
    %v4098 = vunpack.c.h.b16 %v1197
    %v4099 = vunpack.c.l.b16 %v1198
    %v4100 = vunpack.c.h.b16 %v1198
    %v4101 = vunpack.c.l.b16 %v1199
    %v4102 = vunpack.c.h.b16 %v1199
    %v4103 = vunpack.c.l.b16 %v1200
    %v4104 = vunpack.c.h.b16 %v1200
    %v4105 = vunpack.c.l.b16 %v1201
    %v4106 = vunpack.c.h.b16 %v1201
    %v4107 = vunpack.c.l.b16 %v1202
    %v4108 = vunpack.c.h.b16 %v1202
    %v4109 = vunpack.c.l.b16 %v1203
    %v4110 = vunpack.c.h.b16 %v1203
    %v4111 = vunpack.c.l.b16 %v1204
    %v4112 = vunpack.c.h.b16 %v1204
    %v4113 = vunpack.c.l.b16 %v1205
    %v4114 = vunpack.c.h.b16 %v1205
    %v4115 = vunpack.c.l.b16 %v1206
    %v4116 = vunpack.c.h.b16 %v1206
    %v4117 = vunpack.c.l.b16 %v1207
    %v4118 = vunpack.c.h.b16 %v1207
    %v4119 = vunpack.c.l.b16 %v1208
    %v4120 = vunpack.c.h.b16 %v1208
    %v4121 = vunpack.c.l.b16 %v1209
    %v4122 = vunpack.c.h.b16 %v1209
    %v4123 = vunpack.c.l.b16 %v1210
    %v4124 = vunpack.c.h.b16 %v1210
    %v4125 = vunpack.c.l.b16 %v1211
    %v4126 = vunpack.c.h.b16 %v1211
    %v4127 = vunpack.c.l.b16 %v1212
    %v4128 = vunpack.c.h.b16 %v1212
    %v4129 = vunpack.c.l.b16 %v1213
    %v4130 = vunpack.c.h.b16 %v1213
    %v4131 = vunpack.c.l.b16 %v1214
    %v4132 = vunpack.c.h.b16 %v1214
    %v4133 = vunpack.c.l.b16 %v1215
    %v4134 = vunpack.c.h.b16 %v1215
    %v4135 = vunpack.c.l.b16 %v1216
    %v4136 = vunpack.c.h.b16 %v1216
    %v4137 = vunpack.c.l.b16 %v1217
    %v4138 = vunpack.c.h.b16 %v1217
    %v4139 = vunpack.c.l.b16 %v1218
    %v4140 = vunpack.c.h.b16 %v1218
    %v4141 = vunpack.c.l.b16 %v1219
    %v4142 = vunpack.c.h.b16 %v1219
    %v4143 = vunpack.c.l.b16 %v1220
    %v4144 = vunpack.c.h.b16 %v1220
    %v4145 = vunpack.c.l.b16 %v1221
    %v4146 = vunpack.c.h.b16 %v1221
    %v4147 = vunpack.c.l.b16 %v1222
    %v4148 = vunpack.c.h.b16 %v1222
    %v4149 = vunpack.c.l.b16 %v1223
    %v4150 = vunpack.c.h.b16 %v1223
    %v4151 = vunpack.c.l.b16 %v1224
    %v4152 = vunpack.c.h.b16 %v1224
    %v4153 = vunpack.c.l.b16 %v1225
    %v4154 = vunpack.c.h.b16 %v1225
    %v4155 = vunpack.c.l.b16 %v1226
    %v4156 = vunpack.c.h.b16 %v1226
    %v4157 = vunpack.c.l.b16 %v1227
    %v4158 = vunpack.c.h.b16 %v1227
    %v4159 = vunpack.c.l.b16 %v1228
    %v4160 = vunpack.c.h.b16 %v1228
    %v4161 = vunpack.c.l.b16 %v1229
    %v4162 = vunpack.c.h.b16 %v1229
    %v4163 = vunpack.c.l.b16 %v1230
    %v4164 = vunpack.c.h.b16 %v1230
    %v4165 = vunpack.c.l.b16 %v1231
    %v4166 = vunpack.c.h.b16 %v1231
    %v4167 = vunpack.c.l.b16 %v1232
    %v4168 = vunpack.c.h.b16 %v1232
    %v4169 = vunpack.c.l.b16 %v1233
    %v4170 = vunpack.c.h.b16 %v1233
    %v4171 = vunpack.c.l.b16 %v1234
    %v4172 = vunpack.c.h.b16 %v1234
    %v4173 = vunpack.c.l.b16 %v1235
    %v4174 = vunpack.c.h.b16 %v1235
    %v4175 = vunpack.c.l.b16 %v1236
    %v4176 = vunpack.c.h.b16 %v1236
    %v4177 = vunpack.c.l.b16 %v1237
    %v4178 = vunpack.c.h.b16 %v1237
    %v4179 = vunpack.c.l.b16 %v1238
    %v4180 = vunpack.c.h.b16 %v1238
    %v4181 = vunpack.c.l.b16 %v1239
    %v4182 = vunpack.c.h.b16 %v1239
    %v4183 = vunpack.c.l.b16 %v1240
    %v4184 = vunpack.c.h.b16 %v1240
    %v4185 = vunpack.c.l.b16 %v1241
    %v4186 = vunpack.c.h.b16 %v1241
    %v4187 = vunpack.c.l.b16 %v1242
    %v4188 = vunpack.c.h.b16 %v1242
    %v4189 = vunpack.c.l.b16 %v1243
    %v4190 = vunpack.c.h.b16 %v1243
    %v4191 = vunpack.c.l.b16 %v1244
    %v4192 = vunpack.c.h.b16 %v1244
    %v4193 = vunpack.c.l.b16 %v1245
    %v4194 = vunpack.c.h.b16 %v1245
    %v4195 = vunpack.c.l.b16 %v1246
    %v4196 = vunpack.c.h.b16 %v1246
    %v4197 = vunpack.c.l.b16 %v1247
    %v4198 = vunpack.c.h.b16 %v1247
    %v4199 = vunpack.c.l.b16 %v1248
    %v4200 = vunpack.c.h.b16 %v1248
    %v4201 = vunpack.c.l.b16 %v1249
    %v4202 = vunpack.c.h.b16 %v1249
    %v4203 = vunpack.c.l.b16 %v1250
    %v4204 = vunpack.c.h.b16 %v1250
    %v4205 = vunpack.c.l.b16 %v1251
    %v4206 = vunpack.c.h.b16 %v1251
    %v4207 = vunpack.c.l.b16 %v1252
    %v4208 = vunpack.c.h.b16 %v1252
    %v4209 = vunpack.c.l.b16 %v1253
    %v4210 = vunpack.c.h.b16 %v1253
    %v4211 = vunpack.c.l.b16 %v1254
    %v4212 = vunpack.c.h.b16 %v1254
    %v4213 = vunpack.c.l.b16 %v1255
    %v4214 = vunpack.c.h.b16 %v1255
    %v4215 = vunpack.c.l.b16 %v1256
    %v4216 = vunpack.c.h.b16 %v1256
    %v4217 = vunpack.c.l.b16 %v1257
    %v4218 = vunpack.c.h.b16 %v1257
    %v4219 = vunpack.c.l.b16 %v1258
    %v4220 = vunpack.c.h.b16 %v1258
    %v4221 = vunpack.c.l.b16 %v1259
    %v4222 = vunpack.c.h.b16 %v1259
    %v4223 = vunpack.c.l.b16 %v1260
    %v4224 = vunpack.c.h.b16 %v1260
    %v4225 = vunpack.c.l.b16 %v1261
    %v4226 = vunpack.c.h.b16 %v1261
    %v4227 = vunpack.c.l.b16 %v1262
    %v4228 = vunpack.c.h.b16 %v1262
    %v4229 = vunpack.c.l.b16 %v1263
    %v4230 = vunpack.c.h.b16 %v1263
    %v4231 = vunpack.c.l.b16 %v1264
    %v4232 = vunpack.c.h.b16 %v1264
    %v4233 = vunpack.c.l.b16 %v1265
    %v4234 = vunpack.c.h.b16 %v1265
    %v4235 = vunpack.c.l.b16 %v1266
    %v4236 = vunpack.c.h.b16 %v1266
    %v4237 = vunpack.c.l.b16 %v1267
    %v4238 = vunpack.c.h.b16 %v1267
    %v4239 = vunpack.c.l.b16 %v1268
    %v4240 = vunpack.c.h.b16 %v1268
    %v4241 = vunpack.c.l.b16 %v1269
    %v4242 = vunpack.c.h.b16 %v1269
    %v4243 = vunpack.c.l.b16 %v1270
    %v4244 = vunpack.c.h.b16 %v1270
    %v4245 = vunpack.c.l.b16 %v1271
    %v4246 = vunpack.c.h.b16 %v1271
    %v4247 = vunpack.c.l.b16 %v1272
    %v4248 = vunpack.c.h.b16 %v1272
    %v4249 = vunpack.c.l.b16 %v1273
    %v4250 = vunpack.c.h.b16 %v1273
    %v4251 = vunpack.c.l.b16 %v1274
    %v4252 = vunpack.c.h.b16 %v1274
    %v4253 = vunpack.c.l.b16 %v1275
    %v4254 = vunpack.c.h.b16 %v1275
    %v4255 = vunpack.c.l.b16 %v1276
    %v4256 = vunpack.c.h.b16 %v1276
    %v4257 = vunpack.c.l.b16 %v1277
    %v4258 = vunpack.c.h.b16 %v1277
    %v4259 = vunpack.c.l.b16 %v1278
    %v4260 = vunpack.c.h.b16 %v1278
    %v4261 = vunpack.c.l.b16 %v1279
    %v4262 = vunpack.c.h.b16 %v1279
    %v4263 = vunpack.c.l.b16 %v1280
    %v4264 = vunpack.c.h.b16 %v1280
    %v4265 = vunpack.c.l.b16 %v1281
    %v4266 = vunpack.c.h.b16 %v1281
    %v4267 = vunpack.c.l.b16 %v1282
    %v4268 = vunpack.c.h.b16 %v1282
    %v4269 = vunpack.c.l.b16 %v1283
    %v4270 = vunpack.c.h.b16 %v1283
    %v4271 = vunpack.c.l.b16 %v1284
    %v4272 = vunpack.c.h.b16 %v1284
    %v4273 = vunpack.c.l.b16 %v1285
    %v4274 = vunpack.c.h.b16 %v1285
    %v4275 = vunpack.c.l.b16 %v1286
    %v4276 = vunpack.c.h.b16 %v1286
    %v4277 = vunpack.c.l.b16 %v1287
    %v4278 = vunpack.c.h.b16 %v1287
    %v4279 = vunpack.c.l.b16 %v1288
    %v4280 = vunpack.c.h.b16 %v1288
    %v4281 = vunpack.c.l.b16 %v1289
    %v4282 = vunpack.c.h.b16 %v1289
    %v4283 = vunpack.c.l.b16 %v1290
    %v4284 = vunpack.c.h.b16 %v1290
    %v4285 = vunpack.c.l.b16 %v1291
    %v4286 = vunpack.c.h.b16 %v1291
    %v4287 = vunpack.c.l.b16 %v1292
    %v4288 = vunpack.c.h.b16 %v1292
    %v4289 = vunpack.c.l.b16 %v1293
    %v4290 = vunpack.c.h.b16 %v1293
    %v4291 = vunpack.c.l.b16 %v1294
    %v4292 = vunpack.c.h.b16 %v1294
    %v4293 = vunpack.c.l.b16 %v1295
    %v4294 = vunpack.c.h.b16 %v1295
    %v4295 = vunpack.c.l.b16 %v1296
    %v4296 = vunpack.c.h.b16 %v1296
    %v4297 = vunpack.c.l.b16 %v1297
    %v4298 = vunpack.c.h.b16 %v1297
    %v4299 = vunpack.c.l.b16 %v1298
    %v4300 = vunpack.c.h.b16 %v1298
    %v4301 = vunpack.c.l.b16 %v1299
    %v4302 = vunpack.c.h.b16 %v1299
    %v4303 = vunpack.c.l.b16 %v1300
    %v4304 = vunpack.c.h.b16 %v1300
    %v4305 = vunpack.c.l.b16 %v1301
    %v4306 = vunpack.c.h.b16 %v1301
    %v4307 = vunpack.c.l.b16 %v1302
    %v4308 = vunpack.c.h.b16 %v1302
    %v4309 = vunpack.c.l.b16 %v1303
    %v4310 = vunpack.c.h.b16 %v1303
    %v4311 = vunpack.c.l.b16 %v1304
    %v4312 = vunpack.c.h.b16 %v1304
    %v4313 = vunpack.c.l.b16 %v1305
    %v4314 = vunpack.c.h.b16 %v1305
    %v4315 = vunpack.c.l.b16 %v1306
    %v4316 = vunpack.c.h.b16 %v1306
    %v4317 = vunpack.c.l.b16 %v1307
    %v4318 = vunpack.c.h.b16 %v1307
    %v4319 = vunpack.c.l.b16 %v1308
    %v4320 = vunpack.c.h.b16 %v1308
    %v4321 = vunpack.c.l.b16 %v1309
    %v4322 = vunpack.c.h.b16 %v1309
    %v4323 = vunpack.c.l.b16 %v1310
    %v4324 = vunpack.c.h.b16 %v1310
    %v4325 = vunpack.c.l.b16 %v1311
    %v4326 = vunpack.c.h.b16 %v1311
    %v4327 = vunpack.c.l.b16 %v1312
    %v4328 = vunpack.c.h.b16 %v1312
    %v4329 = vunpack.c.l.b16 %v1313
    %v4330 = vunpack.c.h.b16 %v1313
    %v4331 = vunpack.c.l.b16 %v1314
    %v4332 = vunpack.c.h.b16 %v1314
    %v4333 = vunpack.c.l.b16 %v1315
    %v4334 = vunpack.c.h.b16 %v1315
    %v4335 = vunpack.c.l.b16 %v1316
    %v4336 = vunpack.c.h.b16 %v1316
    %v4337 = vunpack.c.l.b16 %v1317
    %v4338 = vunpack.c.h.b16 %v1317
    %v4339 = vunpack.c.l.b16 %v1318
    %v4340 = vunpack.c.h.b16 %v1318
    %v4341 = vunpack.c.l.b16 %v1319
    %v4342 = vunpack.c.h.b16 %v1319
    %v4343 = vunpack.c.l.b16 %v1320
    %v4344 = vunpack.c.h.b16 %v1320
    %v4345 = vunpack.c.l.b16 %v1321
    %v4346 = vunpack.c.h.b16 %v1321
    %v4347 = vunpack.c.l.b16 %v1322
    %v4348 = vunpack.c.h.b16 %v1322
    %v4349 = vunpack.c.l.b16 %v1323
    %v4350 = vunpack.c.h.b16 %v1323
    %v4351 = vunpack.c.l.b16 %v1324
    %v4352 = vunpack.c.h.b16 %v1324
    %v4353 = vunpack.c.l.b16 %v1325
    %v4354 = vunpack.c.h.b16 %v1325
    %v4355 = vunpack.c.l.b16 %v1326
    %v4356 = vunpack.c.h.b16 %v1326
    %v4357 = vunpack.c.l.b16 %v1327
    %v4358 = vunpack.c.h.b16 %v1327
    %v4359 = vunpack.c.l.b16 %v1328
    %v4360 = vunpack.c.h.b16 %v1328
    %v4361 = vunpack.c.l.b16 %v1329
    %v4362 = vunpack.c.h.b16 %v1329
    %v4363 = vunpack.c.l.b16 %v1330
    %v4364 = vunpack.c.h.b16 %v1330
    %v4365 = vunpack.c.l.b16 %v1331
    %v4366 = vunpack.c.h.b16 %v1331
    %v4367 = vunpack.c.l.b16 %v1332
    %v4368 = vunpack.c.h.b16 %v1332
    %v4369 = vunpack.c.l.b16 %v1333
    %v4370 = vunpack.c.h.b16 %v1333
    %v4371 = vunpack.c.l.b16 %v1334
    %v4372 = vunpack.c.h.b16 %v1334
    %v4373 = vunpack.c.l.b16 %v1335
    %v4374 = vunpack.c.h.b16 %v1335
    %v4375 = vunpack.c.l.b16 %v1336
    %v4376 = vunpack.c.h.b16 %v1336
    %v4377 = vunpack.c.l.b16 %v1337
    %v4378 = vunpack.c.h.b16 %v1337
    %v4379 = vunpack.c.l.b16 %v1338
    %v4380 = vunpack.c.h.b16 %v1338
    %v4381 = vunpack.c.l.b16 %v1339
    %v4382 = vunpack.c.h.b16 %v1339
    %v4383 = vunpack.c.l.b16 %v1340
    %v4384 = vunpack.c.h.b16 %v1340
    %v4385 = vunpack.c.l.b16 %v1341
    %v4386 = vunpack.c.h.b16 %v1341
    %v4387 = vunpack.c.l.b16 %v1342
    %v4388 = vunpack.c.h.b16 %v1342
    %v4389 = vunpack.c.l.b16 %v1343
    %v4390 = vunpack.c.h.b16 %v1343
    %v4391 = vunpack.c.l.b16 %v1344
    %v4392 = vunpack.c.h.b16 %v1344
    %v4393 = vunpack.c.l.b16 %v1345
    %v4394 = vunpack.c.h.b16 %v1345
    %v4395 = vunpack.c.l.b16 %v1346
    %v4396 = vunpack.c.h.b16 %v1346
    %v4397 = vunpack.c.l.b16 %v1347
    %v4398 = vunpack.c.h.b16 %v1347
    %v4399 = vunpack.c.l.b16 %v1348
    %v4400 = vunpack.c.h.b16 %v1348
    %v4401 = vunpack.c.l.b16 %v1349
    %v4402 = vunpack.c.h.b16 %v1349
    %v4403 = vunpack.c.l.b16 %v1350
    %v4404 = vunpack.c.h.b16 %v1350
    %v4405 = vunpack.c.l.b16 %v1351
    %v4406 = vunpack.c.h.b16 %v1351
    %v4407 = vunpack.c.l.b16 %v1352
    %v4408 = vunpack.c.h.b16 %v1352
    %v4409 = vunpack.c.l.b16 %v1353
    %v4410 = vunpack.c.h.b16 %v1353
    %v4411 = vunpack.c.l.b16 %v1354
    %v4412 = vunpack.c.h.b16 %v1354
    %v4413 = vunpack.c.l.b16 %v1355
    %v4414 = vunpack.c.h.b16 %v1355
    %v4415 = vunpack.c.l.b16 %v1356
    %v4416 = vunpack.c.h.b16 %v1356
    %v4417 = vunpack.c.l.b16 %v1357
    %v4418 = vunpack.c.h.b16 %v1357
    %v4419 = vunpack.c.l.b16 %v1358
    %v4420 = vunpack.c.h.b16 %v1358
    %v4421 = vunpack.c.l.b16 %v1359
    %v4422 = vunpack.c.h.b16 %v1359
    %v4423 = vunpack.c.l.b16 %v1360
    %v4424 = vunpack.c.h.b16 %v1360
    %v4425 = vunpack.c.l.b16 %v1361
    %v4426 = vunpack.c.h.b16 %v1361
    %v4427 = vunpack.c.l.b16 %v1362
    %v4428 = vunpack.c.h.b16 %v1362
    %v4429 = vunpack.c.l.b16 %v1363
    %v4430 = vunpack.c.h.b16 %v1363
    %v4431 = vunpack.c.l.b16 %v1364
    %v4432 = vunpack.c.h.b16 %v1364
    %v4433 = vunpack.c.l.b16 %v1365
    %v4434 = vunpack.c.h.b16 %v1365
    %v4435 = vunpack.c.l.b16 %v1366
    %v4436 = vunpack.c.h.b16 %v1366
    %v4437 = vunpack.c.l.b16 %v1367
    %v4438 = vunpack.c.h.b16 %v1367
    %v4439 = vunpack.c.l.b16 %v1368
    %v4440 = vunpack.c.h.b16 %v1368
    %v4441 = vunpack.c.l.b16 %v1369
    %v4442 = vunpack.c.h.b16 %v1369
    %v4443 = vunpack.c.l.b16 %v1370
    %v4444 = vunpack.c.h.b16 %v1370
    %v4445 = vunpack.c.l.b16 %v1371
    %v4446 = vunpack.c.h.b16 %v1371
    %v4447 = vunpack.c.l.b16 %v1372
    %v4448 = vunpack.c.h.b16 %v1372
    %v4449 = vunpack.c.l.b16 %v1373
    %v4450 = vunpack.c.h.b16 %v1373
    %v4451 = vunpack.c.l.b16 %v1374
    %v4452 = vunpack.c.h.b16 %v1374
    %v4453 = vunpack.c.l.b16 %v1375
    %v4454 = vunpack.c.h.b16 %v1375
    %v4455 = vunpack.c.l.b16 %v1376
    %v4456 = vunpack.c.h.b16 %v1376
    %v4457 = vunpack.c.l.b16 %v1377
    %v4458 = vunpack.c.h.b16 %v1377
    %v4459 = vunpack.c.l.b16 %v1378
    %v4460 = vunpack.c.h.b16 %v1378
    %v4461 = vunpack.c.l.b16 %v1379
    %v4462 = vunpack.c.h.b16 %v1379
    %v4463 = vunpack.c.l.b16 %v1380
    %v4464 = vunpack.c.h.b16 %v1380
    %v4465 = vunpack.c.l.b16 %v1381
    %v4466 = vunpack.c.h.b16 %v1381
    %v4467 = vunpack.c.l.b16 %v1382
    %v4468 = vunpack.c.h.b16 %v1382
    %v4469 = vunpack.c.l.b16 %v1383
    %v4470 = vunpack.c.h.b16 %v1383
    %v4471 = vunpack.c.l.b16 %v1384
    %v4472 = vunpack.c.h.b16 %v1384
    %v4473 = vunpack.c.l.b16 %v1385
    %v4474 = vunpack.c.h.b16 %v1385
    %v4475 = vunpack.c.l.b16 %v1386
    %v4476 = vunpack.c.h.b16 %v1386
    %v4477 = vunpack.c.l.b16 %v1387
    %v4478 = vunpack.c.h.b16 %v1387
    %v4479 = vunpack.c.l.b16 %v1388
    %v4480 = vunpack.c.h.b16 %v1388
    %v4481 = vunpack.c.l.b16 %v1389
    %v4482 = vunpack.c.h.b16 %v1389
    %v4483 = vunpack.c.l.b16 %v1390
    %v4484 = vunpack.c.h.b16 %v1390
    %v4485 = vunpack.c.l.b16 %v1391
    %v4486 = vunpack.c.h.b16 %v1391
    %v4487 = vunpack.c.l.b16 %v1392
    %v4488 = vunpack.c.h.b16 %v1392
    %v4489 = vunpack.c.l.b16 %v1393
    %v4490 = vunpack.c.h.b16 %v1393
    %v4491 = vunpack.c.l.b16 %v1394
    %v4492 = vunpack.c.h.b16 %v1394
    %v4493 = vunpack.c.l.b16 %v1395
    %v4494 = vunpack.c.h.b16 %v1395
    %v4495 = vunpack.c.l.b16 %v1396
    %v4496 = vunpack.c.h.b16 %v1396
    %v4497 = vunpack.c.l.b16 %v1397
    %v4498 = vunpack.c.h.b16 %v1397
    %v4499 = vunpack.c.l.b16 %v1398
    %v4500 = vunpack.c.h.b16 %v1398
    %v4501 = vunpack.c.l.b16 %v1399
    %v4502 = vunpack.c.h.b16 %v1399
    %v4503 = vunpack.c.l.b16 %v1400
    %v4504 = vunpack.c.h.b16 %v1400
    %v4505 = vunpack.c.l.b16 %v1401
    %v4506 = vunpack.c.h.b16 %v1401
    %v4507 = vunpack.c.l.b16 %v1402
    %v4508 = vunpack.c.h.b16 %v1402
    %v4509 = vunpack.c.l.b16 %v1403
    %v4510 = vunpack.c.h.b16 %v1403
    %v4511 = vunpack.c.l.b16 %v1404
    %v4512 = vunpack.c.h.b16 %v1404
    %v4513 = vunpack.c.l.b16 %v1405
    %v4514 = vunpack.c.h.b16 %v1405
    %v4515 = vunpack.c.l.b16 %v1406
    %v4516 = vunpack.c.h.b16 %v1406
    %v4517 = vunpack.c.l.b16 %v1407
    %v4518 = vunpack.c.h.b16 %v1407
    %v4519 = vunpack.c.l.b16 %v1408
    %v4520 = vunpack.c.h.b16 %v1408
    %v4521 = vunpack.c.l.b16 %v1409
    %v4522 = vunpack.c.h.b16 %v1409
    %v4523 = vunpack.c.l.b16 %v1410
    %v4524 = vunpack.c.h.b16 %v1410
    %v4525 = vpack.c.b16 %v2485, %v2477
    %v4526 = vpack.c.b16 %v2486, %v2478
    %v4527 = vpack.c.b16 %v2487, %v2479
    %v4528 = vpack.c.b16 %v2488, %v2480
    %v4529 = vpack.c.b16 %v2489, %v2481
    %v4530 = vpack.c.b16 %v2490, %v2482
    %v4531 = vpack.c.b16 %v2491, %v2483
    %v4532 = vpack.c.b16 %v2492, %v2484
    %v4533 = vpack.c.b16 %v2501, %v2493
    %v4534 = vpack.c.b16 %v2502, %v2494
    %v4535 = vpack.c.b16 %v2503, %v2495
    %v4536 = vpack.c.b16 %v2504, %v2496
    %v4537 = vpack.c.b16 %v2505, %v2497
    %v4538 = vpack.c.b16 %v2506, %v2498
    %v4539 = vpack.c.b16 %v2507, %v2499
    %v4540 = vpack.c.b16 %v2508, %v2500
    %v4541 = vpack.c.b16 %v2517, %v2509
    %v4542 = vpack.c.b16 %v2518, %v2510
    %v4543 = vpack.c.b16 %v2519, %v2511
    %v4544 = vpack.c.b16 %v2520, %v2512
    %v4545 = vpack.c.b16 %v2521, %v2513
    %v4546 = vpack.c.b16 %v2522, %v2514
    %v4547 = vpack.c.b16 %v2523, %v2515
    %v4548 = vpack.c.b16 %v2524, %v2516
    %v4549 = vpack.c.b16 %v2533, %v2525
    %v4550 = vpack.c.b16 %v2534, %v2526
    %v4551 = vpack.c.b16 %v2535, %v2527
    %v4552 = vpack.c.b16 %v2536, %v2528
    %v4553 = vpack.c.b16 %v2537, %v2529
    %v4554 = vpack.c.b16 %v2538, %v2530
    %v4555 = vpack.c.b16 %v2539, %v2531
    %v4556 = vpack.c.b16 %v2540, %v2532
    %v4557 = vpack.c.b16 %v2549, %v2541
    %v4558 = vpack.c.b16 %v2550, %v2542
    %v4559 = vpack.c.b16 %v2551, %v2543
    %v4560 = vpack.c.b16 %v2552, %v2544
    %v4561 = vpack.c.b16 %v2553, %v2545
    %v4562 = vpack.c.b16 %v2554, %v2546
    %v4563 = vpack.c.b16 %v2555, %v2547
    %v4564 = vpack.c.b16 %v2556, %v2548
    %v4565 = vpack.c.b16 %v2565, %v2557
    %v4566 = vpack.c.b16 %v2566, %v2558
    %v4567 = vpack.c.b16 %v2567, %v2559
    %v4568 = vpack.c.b16 %v2568, %v2560
    %v4569 = vpack.c.b16 %v2569, %v2561
    %v4570 = vpack.c.b16 %v2570, %v2562
    %v4571 = vpack.c.b16 %v2571, %v2563
    %v4572 = vpack.c.b16 %v2572, %v2564
    %v4573 = vpack.c.b16 %v2581, %v2573
    %v4574 = vpack.c.b16 %v2582, %v2574
    %v4575 = vpack.c.b16 %v2583, %v2575
    %v4576 = vpack.c.b16 %v2584, %v2576
    %v4577 = vpack.c.b16 %v2585, %v2577
    %v4578 = vpack.c.b16 %v2586, %v2578
    %v4579 = vpack.c.b16 %v2587, %v2579
    %v4580 = vpack.c.b16 %v2588, %v2580
    %v4581 = vpack.c.b16 %v2597, %v2589
    %v4582 = vpack.c.b16 %v2598, %v2590
    %v4583 = vpack.c.b16 %v2599, %v2591
    %v4584 = vpack.c.b16 %v2600, %v2592
    %v4585 = vpack.c.b16 %v2601, %v2593
    %v4586 = vpack.c.b16 %v2602, %v2594
    %v4587 = vpack.c.b16 %v2603, %v2595
    %v4588 = vpack.c.b16 %v2604, %v2596
    %v4589 = vpack.c.b16 %v2613, %v2605
    %v4590 = vpack.c.b16 %v2614, %v2606
    %v4591 = vpack.c.b16 %v2615, %v2607
    %v4592 = vpack.c.b16 %v2616, %v2608
    %v4593 = vpack.c.b16 %v2617, %v2609
    %v4594 = vpack.c.b16 %v2618, %v2610
    %v4595 = vpack.c.b16 %v2619, %v2611
    %v4596 = vpack.c.b16 %v2620, %v2612
    %v4597 = vpack.c.b16 %v2629, %v2621
    %v4598 = vpack.c.b16 %v2630, %v2622
    %v4599 = vpack.c.b16 %v2631, %v2623
    %v4600 = vpack.c.b16 %v2632, %v2624
    %v4601 = vpack.c.b16 %v2633, %v2625
    %v4602 = vpack.c.b16 %v2634, %v2626
    %v4603 = vpack.c.b16 %v2635, %v2627
    %v4604 = vpack.c.b16 %v2636, %v2628
    %v4605 = vpack.c.b16 %v2645, %v2637
    %v4606 = vpack.c.b16 %v2646, %v2638
    %v4607 = vpack.c.b16 %v2647, %v2639
    %v4608 = vpack.c.b16 %v2648, %v2640
    %v4609 = vpack.c.b16 %v2649, %v2641
    %v4610 = vpack.c.b16 %v2650, %v2642
    %v4611 = vpack.c.b16 %v2651, %v2643
    %v4612 = vpack.c.b16 %v2652, %v2644
    %v4613 = vpack.c.b16 %v2661, %v2653
    %v4614 = vpack.c.b16 %v2662, %v2654
    %v4615 = vpack.c.b16 %v2663, %v2655
    %v4616 = vpack.c.b16 %v2664, %v2656
    %v4617 = vpack.c.b16 %v2665, %v2657
    %v4618 = vpack.c.b16 %v2666, %v2658
    %v4619 = vpack.c.b16 %v2667, %v2659
    %v4620 = vpack.c.b16 %v2668, %v2660
    %v4621 = vpack.c.b16 %v2677, %v2669
    %v4622 = vpack.c.b16 %v2678, %v2670
    %v4623 = vpack.c.b16 %v2679, %v2671
    %v4624 = vpack.c.b16 %v2680, %v2672
    %v4625 = vpack.c.b16 %v2681, %v2673
    %v4626 = vpack.c.b16 %v2682, %v2674
    %v4627 = vpack.c.b16 %v2683, %v2675
    %v4628 = vpack.c.b16 %v2684, %v2676
    %v4629 = vpack.c.b16 %v2693, %v2685
    %v4630 = vpack.c.b16 %v2694, %v2686
    %v4631 = vpack.c.b16 %v2695, %v2687
    %v4632 = vpack.c.b16 %v2696, %v2688
    %v4633 = vpack.c.b16 %v2697, %v2689
    %v4634 = vpack.c.b16 %v2698, %v2690
    %v4635 = vpack.c.b16 %v2699, %v2691
    %v4636 = vpack.c.b16 %v2700, %v2692
    %v4637 = vpack.c.b16 %v2709, %v2701
    %v4638 = vpack.c.b16 %v2710, %v2702
    %v4639 = vpack.c.b16 %v2711, %v2703
    %v4640 = vpack.c.b16 %v2712, %v2704
    %v4641 = vpack.c.b16 %v2713, %v2705
    %v4642 = vpack.c.b16 %v2714, %v2706
    %v4643 = vpack.c.b16 %v2715, %v2707
    %v4644 = vpack.c.b16 %v2716, %v2708
    %v4645 = vpack.c.b16 %v2725, %v2717
    %v4646 = vpack.c.b16 %v2726, %v2718
    %v4647 = vpack.c.b16 %v2727, %v2719
    %v4648 = vpack.c.b16 %v2728, %v2720
    %v4649 = vpack.c.b16 %v2729, %v2721
    %v4650 = vpack.c.b16 %v2730, %v2722
    %v4651 = vpack.c.b16 %v2731, %v2723
    %v4652 = vpack.c.b16 %v2732, %v2724
    %v4653 = vpack.c.b16 %v2741, %v2733
    %v4654 = vpack.c.b16 %v2742, %v2734
    %v4655 = vpack.c.b16 %v2743, %v2735
    %v4656 = vpack.c.b16 %v2744, %v2736
    %v4657 = vpack.c.b16 %v2745, %v2737
    %v4658 = vpack.c.b16 %v2746, %v2738
    %v4659 = vpack.c.b16 %v2747, %v2739
    %v4660 = vpack.c.b16 %v2748, %v2740
    %v4661 = vpack.c.b16 %v2757, %v2749
    %v4662 = vpack.c.b16 %v2758, %v2750
    %v4663 = vpack.c.b16 %v2759, %v2751
    %v4664 = vpack.c.b16 %v2760, %v2752
    %v4665 = vpack.c.b16 %v2761, %v2753
    %v4666 = vpack.c.b16 %v2762, %v2754
    %v4667 = vpack.c.b16 %v2763, %v2755
    %v4668 = vpack.c.b16 %v2764, %v2756
    %v4669 = vpack.c.b16 %v2773, %v2765
    %v4670 = vpack.c.b16 %v2774, %v2766
    %v4671 = vpack.c.b16 %v2775, %v2767
    %v4672 = vpack.c.b16 %v2776, %v2768
    %v4673 = vpack.c.b16 %v2777, %v2769
    %v4674 = vpack.c.b16 %v2778, %v2770
    %v4675 = vpack.c.b16 %v2779, %v2771
    %v4676 = vpack.c.b16 %v2780, %v2772
    %v4677 = vpack.c.b16 %v2789, %v2781
    %v4678 = vpack.c.b16 %v2790, %v2782
    %v4679 = vpack.c.b16 %v2791, %v2783
    %v4680 = vpack.c.b16 %v2792, %v2784
    %v4681 = vpack.c.b16 %v2793, %v2785
    %v4682 = vpack.c.b16 %v2794, %v2786
    %v4683 = vpack.c.b16 %v2795, %v2787
    %v4684 = vpack.c.b16 %v2796, %v2788
    %v4685 = vpack.c.b16 %v2805, %v2797
    %v4686 = vpack.c.b16 %v2806, %v2798
    %v4687 = vpack.c.b16 %v2807, %v2799
    %v4688 = vpack.c.b16 %v2808, %v2800
    %v4689 = vpack.c.b16 %v2809, %v2801
    %v4690 = vpack.c.b16 %v2810, %v2802
    %v4691 = vpack.c.b16 %v2811, %v2803
    %v4692 = vpack.c.b16 %v2812, %v2804
    %v4693 = vpack.c.b16 %v2821, %v2813
    %v4694 = vpack.c.b16 %v2822, %v2814
    %v4695 = vpack.c.b16 %v2823, %v2815
    %v4696 = vpack.c.b16 %v2824, %v2816
    %v4697 = vpack.c.b16 %v2825, %v2817
    %v4698 = vpack.c.b16 %v2826, %v2818
    %v4699 = vpack.c.b16 %v2827, %v2819
    %v4700 = vpack.c.b16 %v2828, %v2820
    %v4701 = vpack.c.b16 %v2837, %v2829
    %v4702 = vpack.c.b16 %v2838, %v2830
    %v4703 = vpack.c.b16 %v2839, %v2831
    %v4704 = vpack.c.b16 %v2840, %v2832
    %v4705 = vpack.c.b16 %v2841, %v2833
    %v4706 = vpack.c.b16 %v2842, %v2834
    %v4707 = vpack.c.b16 %v2843, %v2835
    %v4708 = vpack.c.b16 %v2844, %v2836
    %v4709 = vpack.c.b16 %v2853, %v2845
    %v4710 = vpack.c.b16 %v2854, %v2846
    %v4711 = vpack.c.b16 %v2855, %v2847
    %v4712 = vpack.c.b16 %v2856, %v2848
    %v4713 = vpack.c.b16 %v2857, %v2849
    %v4714 = vpack.c.b16 %v2858, %v2850
    %v4715 = vpack.c.b16 %v2859, %v2851
    %v4716 = vpack.c.b16 %v2860, %v2852
    %v4717 = vpack.c.b16 %v2869, %v2861
    %v4718 = vpack.c.b16 %v2870, %v2862
    %v4719 = vpack.c.b16 %v2871, %v2863
    %v4720 = vpack.c.b16 %v2872, %v2864
    %v4721 = vpack.c.b16 %v2873, %v2865
    %v4722 = vpack.c.b16 %v2874, %v2866
    %v4723 = vpack.c.b16 %v2875, %v2867
    %v4724 = vpack.c.b16 %v2876, %v2868
    %v4725 = vpack.c.b16 %v2885, %v2877
    %v4726 = vpack.c.b16 %v2886, %v2878
    %v4727 = vpack.c.b16 %v2887, %v2879
    %v4728 = vpack.c.b16 %v2888, %v2880
    %v4729 = vpack.c.b16 %v2889, %v2881
    %v4730 = vpack.c.b16 %v2890, %v2882
    %v4731 = vpack.c.b16 %v2891, %v2883
    %v4732 = vpack.c.b16 %v2892, %v2884
    %v4733 = vpack.c.b16 %v2901, %v2893
    %v4734 = vpack.c.b16 %v2902, %v2894
    %v4735 = vpack.c.b16 %v2903, %v2895
    %v4736 = vpack.c.b16 %v2904, %v2896
    %v4737 = vpack.c.b16 %v2905, %v2897
    %v4738 = vpack.c.b16 %v2906, %v2898
    %v4739 = vpack.c.b16 %v2907, %v2899
    %v4740 = vpack.c.b16 %v2908, %v2900
    %v4741 = vpack.c.b16 %v2917, %v2909
    %v4742 = vpack.c.b16 %v2918, %v2910
    %v4743 = vpack.c.b16 %v2919, %v2911
    %v4744 = vpack.c.b16 %v2920, %v2912
    %v4745 = vpack.c.b16 %v2921, %v2913
    %v4746 = vpack.c.b16 %v2922, %v2914
    %v4747 = vpack.c.b16 %v2923, %v2915
    %v4748 = vpack.c.b16 %v2924, %v2916
    %v4749 = vpack.c.b16 %v2933, %v2925
    %v4750 = vpack.c.b16 %v2934, %v2926
    %v4751 = vpack.c.b16 %v2935, %v2927
    %v4752 = vpack.c.b16 %v2936, %v2928
    %v4753 = vpack.c.b16 %v2937, %v2929
    %v4754 = vpack.c.b16 %v2938, %v2930
    %v4755 = vpack.c.b16 %v2939, %v2931
    %v4756 = vpack.c.b16 %v2940, %v2932
    %v4757 = vpack.c.b16 %v2949, %v2941
    %v4758 = vpack.c.b16 %v2950, %v2942
    %v4759 = vpack.c.b16 %v2951, %v2943
    %v4760 = vpack.c.b16 %v2952, %v2944
    %v4761 = vpack.c.b16 %v2953, %v2945
    %v4762 = vpack.c.b16 %v2954, %v2946
    %v4763 = vpack.c.b16 %v2955, %v2947
    %v4764 = vpack.c.b16 %v2956, %v2948
    %v4765 = vpack.c.b16 %v2965, %v2957
    %v4766 = vpack.c.b16 %v2966, %v2958
    %v4767 = vpack.c.b16 %v2967, %v2959
    %v4768 = vpack.c.b16 %v2968, %v2960
    %v4769 = vpack.c.b16 %v2969, %v2961
    %v4770 = vpack.c.b16 %v2970, %v2962
    %v4771 = vpack.c.b16 %v2971, %v2963
    %v4772 = vpack.c.b16 %v2972, %v2964
    %v4773 = vpack.c.b16 %v2981, %v2973
    %v4774 = vpack.c.b16 %v2982, %v2974
    %v4775 = vpack.c.b16 %v2983, %v2975
    %v4776 = vpack.c.b16 %v2984, %v2976
    %v4777 = vpack.c.b16 %v2985, %v2977
    %v4778 = vpack.c.b16 %v2986, %v2978
    %v4779 = vpack.c.b16 %v2987, %v2979
    %v4780 = vpack.c.b16 %v2988, %v2980
    %v4781 = vpack.c.b16 %v2997, %v2989
    %v4782 = vpack.c.b16 %v2998, %v2990
    %v4783 = vpack.c.b16 %v2999, %v2991
    %v4784 = vpack.c.b16 %v3000, %v2992
    %v4785 = vpack.c.b16 %v3001, %v2993
    %v4786 = vpack.c.b16 %v3002, %v2994
    %v4787 = vpack.c.b16 %v3003, %v2995
    %v4788 = vpack.c.b16 %v3004, %v2996
    %v4789 = vpack.c.b16 %v3013, %v3005
    %v4790 = vpack.c.b16 %v3014, %v3006
    %v4791 = vpack.c.b16 %v3015, %v3007
    %v4792 = vpack.c.b16 %v3016, %v3008
    %v4793 = vpack.c.b16 %v3017, %v3009
    %v4794 = vpack.c.b16 %v3018, %v3010
    %v4795 = vpack.c.b16 %v3019, %v3011
    %v4796 = vpack.c.b16 %v3020, %v3012
    %v4797 = vpack.c.b16 %v3029, %v3021
    %v4798 = vpack.c.b16 %v3030, %v3022
    %v4799 = vpack.c.b16 %v3031, %v3023
    %v4800 = vpack.c.b16 %v3032, %v3024
    %v4801 = vpack.c.b16 %v3033, %v3025
    %v4802 = vpack.c.b16 %v3034, %v3026
    %v4803 = vpack.c.b16 %v3035, %v3027
    %v4804 = vpack.c.b16 %v3036, %v3028
    %v4805 = vpack.c.b16 %v3045, %v3037
    %v4806 = vpack.c.b16 %v3046, %v3038
    %v4807 = vpack.c.b16 %v3047, %v3039
    %v4808 = vpack.c.b16 %v3048, %v3040
    %v4809 = vpack.c.b16 %v3049, %v3041
    %v4810 = vpack.c.b16 %v3050, %v3042
    %v4811 = vpack.c.b16 %v3051, %v3043
    %v4812 = vpack.c.b16 %v3052, %v3044
    %v4813 = vpack.c.b16 %v3061, %v3053
    %v4814 = vpack.c.b16 %v3062, %v3054
    %v4815 = vpack.c.b16 %v3063, %v3055
    %v4816 = vpack.c.b16 %v3064, %v3056
    %v4817 = vpack.c.b16 %v3065, %v3057
    %v4818 = vpack.c.b16 %v3066, %v3058
    %v4819 = vpack.c.b16 %v3067, %v3059
    %v4820 = vpack.c.b16 %v3068, %v3060
    %v4821 = vpack.c.b16 %v3077, %v3069
    %v4822 = vpack.c.b16 %v3078, %v3070
    %v4823 = vpack.c.b16 %v3079, %v3071
    %v4824 = vpack.c.b16 %v3080, %v3072
    %v4825 = vpack.c.b16 %v3081, %v3073
    %v4826 = vpack.c.b16 %v3082, %v3074
    %v4827 = vpack.c.b16 %v3083, %v3075
    %v4828 = vpack.c.b16 %v3084, %v3076
    %v4829 = vpack.c.b16 %v3093, %v3085
    %v4830 = vpack.c.b16 %v3094, %v3086
    %v4831 = vpack.c.b16 %v3095, %v3087
    %v4832 = vpack.c.b16 %v3096, %v3088
    %v4833 = vpack.c.b16 %v3097, %v3089
    %v4834 = vpack.c.b16 %v3098, %v3090
    %v4835 = vpack.c.b16 %v3099, %v3091
    %v4836 = vpack.c.b16 %v3100, %v3092
    %v4837 = vpack.c.b16 %v3109, %v3101
    %v4838 = vpack.c.b16 %v3110, %v3102
    %v4839 = vpack.c.b16 %v3111, %v3103
    %v4840 = vpack.c.b16 %v3112, %v3104
    %v4841 = vpack.c.b16 %v3113, %v3105
    %v4842 = vpack.c.b16 %v3114, %v3106
    %v4843 = vpack.c.b16 %v3115, %v3107
    %v4844 = vpack.c.b16 %v3116, %v3108
    %v4845 = vpack.c.b16 %v3125, %v3117
    %v4846 = vpack.c.b16 %v3126, %v3118
    %v4847 = vpack.c.b16 %v3127, %v3119
    %v4848 = vpack.c.b16 %v3128, %v3120
    %v4849 = vpack.c.b16 %v3129, %v3121
    %v4850 = vpack.c.b16 %v3130, %v3122
    %v4851 = vpack.c.b16 %v3131, %v3123
    %v4852 = vpack.c.b16 %v3132, %v3124
    %v4853 = vpack.c.b16 %v3141, %v3133
    %v4854 = vpack.c.b16 %v3142, %v3134
    %v4855 = vpack.c.b16 %v3143, %v3135
    %v4856 = vpack.c.b16 %v3144, %v3136
    %v4857 = vpack.c.b16 %v3145, %v3137
    %v4858 = vpack.c.b16 %v3146, %v3138
    %v4859 = vpack.c.b16 %v3147, %v3139
    %v4860 = vpack.c.b16 %v3148, %v3140
    %v4861 = vpack.c.b16 %v3157, %v3149
    %v4862 = vpack.c.b16 %v3158, %v3150
    %v4863 = vpack.c.b16 %v3159, %v3151
    %v4864 = vpack.c.b16 %v3160, %v3152
    %v4865 = vpack.c.b16 %v3161, %v3153
    %v4866 = vpack.c.b16 %v3162, %v3154
    %v4867 = vpack.c.b16 %v3163, %v3155
    %v4868 = vpack.c.b16 %v3164, %v3156
    %v4869 = vpack.c.b16 %v3173, %v3165
    %v4870 = vpack.c.b16 %v3174, %v3166
    %v4871 = vpack.c.b16 %v3175, %v3167
    %v4872 = vpack.c.b16 %v3176, %v3168
    %v4873 = vpack.c.b16 %v3177, %v3169
    %v4874 = vpack.c.b16 %v3178, %v3170
    %v4875 = vpack.c.b16 %v3179, %v3171
    %v4876 = vpack.c.b16 %v3180, %v3172
    %v4877 = vpack.c.b16 %v3189, %v3181
    %v4878 = vpack.c.b16 %v3190, %v3182
    %v4879 = vpack.c.b16 %v3191, %v3183
    %v4880 = vpack.c.b16 %v3192, %v3184
    %v4881 = vpack.c.b16 %v3193, %v3185
    %v4882 = vpack.c.b16 %v3194, %v3186
    %v4883 = vpack.c.b16 %v3195, %v3187
    %v4884 = vpack.c.b16 %v3196, %v3188
    %v4885 = vpack.c.b16 %v3205, %v3197
    %v4886 = vpack.c.b16 %v3206, %v3198
    %v4887 = vpack.c.b16 %v3207, %v3199
    %v4888 = vpack.c.b16 %v3208, %v3200
    %v4889 = vpack.c.b16 %v3209, %v3201
    %v4890 = vpack.c.b16 %v3210, %v3202
    %v4891 = vpack.c.b16 %v3211, %v3203
    %v4892 = vpack.c.b16 %v3212, %v3204
    %v4893 = vpack.c.b16 %v3221, %v3213
    %v4894 = vpack.c.b16 %v3222, %v3214
    %v4895 = vpack.c.b16 %v3223, %v3215
    %v4896 = vpack.c.b16 %v3224, %v3216
    %v4897 = vpack.c.b16 %v3225, %v3217
    %v4898 = vpack.c.b16 %v3226, %v3218
    %v4899 = vpack.c.b16 %v3227, %v3219
    %v4900 = vpack.c.b16 %v3228, %v3220
    %v4901 = vpack.c.b16 %v3237, %v3229
    %v4902 = vpack.c.b16 %v3238, %v3230
    %v4903 = vpack.c.b16 %v3239, %v3231
    %v4904 = vpack.c.b16 %v3240, %v3232
    %v4905 = vpack.c.b16 %v3241, %v3233
    %v4906 = vpack.c.b16 %v3242, %v3234
    %v4907 = vpack.c.b16 %v3243, %v3235
    %v4908 = vpack.c.b16 %v3244, %v3236
    %v4909 = vpack.c.b16 %v3253, %v3245
    %v4910 = vpack.c.b16 %v3254, %v3246
    %v4911 = vpack.c.b16 %v3255, %v3247
    %v4912 = vpack.c.b16 %v3256, %v3248
    %v4913 = vpack.c.b16 %v3257, %v3249
    %v4914 = vpack.c.b16 %v3258, %v3250
    %v4915 = vpack.c.b16 %v3259, %v3251
    %v4916 = vpack.c.b16 %v3260, %v3252
    %v4917 = vpack.c.b16 %v3269, %v3261
    %v4918 = vpack.c.b16 %v3270, %v3262
    %v4919 = vpack.c.b16 %v3271, %v3263
    %v4920 = vpack.c.b16 %v3272, %v3264
    %v4921 = vpack.c.b16 %v3273, %v3265
    %v4922 = vpack.c.b16 %v3274, %v3266
    %v4923 = vpack.c.b16 %v3275, %v3267
    %v4924 = vpack.c.b16 %v3276, %v3268
    %v4925 = vpack.c.b16 %v3285, %v3277
    %v4926 = vpack.c.b16 %v3286, %v3278
    %v4927 = vpack.c.b16 %v3287, %v3279
    %v4928 = vpack.c.b16 %v3288, %v3280
    %v4929 = vpack.c.b16 %v3289, %v3281
    %v4930 = vpack.c.b16 %v3290, %v3282
    %v4931 = vpack.c.b16 %v3291, %v3283
    %v4932 = vpack.c.b16 %v3292, %v3284
    %v4933 = vpack.c.b16 %v3301, %v3293
    %v4934 = vpack.c.b16 %v3302, %v3294
    %v4935 = vpack.c.b16 %v3303, %v3295
    %v4936 = vpack.c.b16 %v3304, %v3296
    %v4937 = vpack.c.b16 %v3305, %v3297
    %v4938 = vpack.c.b16 %v3306, %v3298
    %v4939 = vpack.c.b16 %v3307, %v3299
    %v4940 = vpack.c.b16 %v3308, %v3300
    %v4941 = vpack.c.b16 %v3317, %v3309
    %v4942 = vpack.c.b16 %v3318, %v3310
    %v4943 = vpack.c.b16 %v3319, %v3311
    %v4944 = vpack.c.b16 %v3320, %v3312
    %v4945 = vpack.c.b16 %v3321, %v3313
    %v4946 = vpack.c.b16 %v3322, %v3314
    %v4947 = vpack.c.b16 %v3323, %v3315
    %v4948 = vpack.c.b16 %v3324, %v3316
    %v4949 = vpack.c.b16 %v3333, %v3325
    %v4950 = vpack.c.b16 %v3334, %v3326
    %v4951 = vpack.c.b16 %v3335, %v3327
    %v4952 = vpack.c.b16 %v3336, %v3328
    %v4953 = vpack.c.b16 %v3337, %v3329
    %v4954 = vpack.c.b16 %v3338, %v3330
    %v4955 = vpack.c.b16 %v3339, %v3331
    %v4956 = vpack.c.b16 %v3340, %v3332
    %v4957 = vpack.c.b16 %v3349, %v3341
    %v4958 = vpack.c.b16 %v3350, %v3342
    %v4959 = vpack.c.b16 %v3351, %v3343
    %v4960 = vpack.c.b16 %v3352, %v3344
    %v4961 = vpack.c.b16 %v3353, %v3345
    %v4962 = vpack.c.b16 %v3354, %v3346
    %v4963 = vpack.c.b16 %v3355, %v3347
    %v4964 = vpack.c.b16 %v3356, %v3348
    %v4965 = vpack.c.b16 %v3365, %v3357
    %v4966 = vpack.c.b16 %v3366, %v3358
    %v4967 = vpack.c.b16 %v3367, %v3359
    %v4968 = vpack.c.b16 %v3368, %v3360
    %v4969 = vpack.c.b16 %v3369, %v3361
    %v4970 = vpack.c.b16 %v3370, %v3362
    %v4971 = vpack.c.b16 %v3371, %v3363
    %v4972 = vpack.c.b16 %v3372, %v3364
    %v4973 = vpack.c.b16 %v3381, %v3373
    %v4974 = vpack.c.b16 %v3382, %v3374
    %v4975 = vpack.c.b16 %v3383, %v3375
    %v4976 = vpack.c.b16 %v3384, %v3376
    %v4977 = vpack.c.b16 %v3385, %v3377
    %v4978 = vpack.c.b16 %v3386, %v3378
    %v4979 = vpack.c.b16 %v3387, %v3379
    %v4980 = vpack.c.b16 %v3388, %v3380
    %v4981 = vpack.c.b16 %v3397, %v3389
    %v4982 = vpack.c.b16 %v3398, %v3390
    %v4983 = vpack.c.b16 %v3399, %v3391
    %v4984 = vpack.c.b16 %v3400, %v3392
    %v4985 = vpack.c.b16 %v3401, %v3393
    %v4986 = vpack.c.b16 %v3402, %v3394
    %v4987 = vpack.c.b16 %v3403, %v3395
    %v4988 = vpack.c.b16 %v3404, %v3396
    %v4989 = vpack.c.b16 %v3413, %v3405
    %v4990 = vpack.c.b16 %v3414, %v3406
    %v4991 = vpack.c.b16 %v3415, %v3407
    %v4992 = vpack.c.b16 %v3416, %v3408
    %v4993 = vpack.c.b16 %v3417, %v3409
    %v4994 = vpack.c.b16 %v3418, %v3410
    %v4995 = vpack.c.b16 %v3419, %v3411
    %v4996 = vpack.c.b16 %v3420, %v3412
    %v4997 = vpack.c.b16 %v3429, %v3421
    %v4998 = vpack.c.b16 %v3430, %v3422
    %v4999 = vpack.c.b16 %v3431, %v3423
    %v5000 = vpack.c.b16 %v3432, %v3424
    %v5001 = vpack.c.b16 %v3433, %v3425
    %v5002 = vpack.c.b16 %v3434, %v3426
    %v5003 = vpack.c.b16 %v3435, %v3427
    %v5004 = vpack.c.b16 %v3436, %v3428
    %v5005 = vpack.c.b16 %v3445, %v3437
    %v5006 = vpack.c.b16 %v3446, %v3438
    %v5007 = vpack.c.b16 %v3447, %v3439
    %v5008 = vpack.c.b16 %v3448, %v3440
    %v5009 = vpack.c.b16 %v3449, %v3441
    %v5010 = vpack.c.b16 %v3450, %v3442
    %v5011 = vpack.c.b16 %v3451, %v3443
    %v5012 = vpack.c.b16 %v3452, %v3444
    %v5013 = vpack.c.b16 %v3461, %v3453
    %v5014 = vpack.c.b16 %v3462, %v3454
    %v5015 = vpack.c.b16 %v3463, %v3455
    %v5016 = vpack.c.b16 %v3464, %v3456
    %v5017 = vpack.c.b16 %v3465, %v3457
    %v5018 = vpack.c.b16 %v3466, %v3458
    %v5019 = vpack.c.b16 %v3467, %v3459
    %v5020 = vpack.c.b16 %v3468, %v3460
    %v5021 = vpack.c.b16 %v3477, %v3469
    %v5022 = vpack.c.b16 %v3478, %v3470
    %v5023 = vpack.c.b16 %v3479, %v3471
    %v5024 = vpack.c.b16 %v3480, %v3472
    %v5025 = vpack.c.b16 %v3481, %v3473
    %v5026 = vpack.c.b16 %v3482, %v3474
    %v5027 = vpack.c.b16 %v3483, %v3475
    %v5028 = vpack.c.b16 %v3484, %v3476
    %v5029 = vpack.c.b16 %v3493, %v3485
    %v5030 = vpack.c.b16 %v3494, %v3486
    %v5031 = vpack.c.b16 %v3495, %v3487
    %v5032 = vpack.c.b16 %v3496, %v3488
    %v5033 = vpack.c.b16 %v3497, %v3489
    %v5034 = vpack.c.b16 %v3498, %v3490
    %v5035 = vpack.c.b16 %v3499, %v3491
    %v5036 = vpack.c.b16 %v3500, %v3492
    %v5037 = vpack.c.b16 %v3509, %v3501
    %v5038 = vpack.c.b16 %v3510, %v3502
    %v5039 = vpack.c.b16 %v3511, %v3503
    %v5040 = vpack.c.b16 %v3512, %v3504
    %v5041 = vpack.c.b16 %v3513, %v3505
    %v5042 = vpack.c.b16 %v3514, %v3506
    %v5043 = vpack.c.b16 %v3515, %v3507
    %v5044 = vpack.c.b16 %v3516, %v3508
    %v5045 = vpack.c.b16 %v3525, %v3517
    %v5046 = vpack.c.b16 %v3526, %v3518
    %v5047 = vpack.c.b16 %v3527, %v3519
    %v5048 = vpack.c.b16 %v3528, %v3520
    %v5049 = vpack.c.b16 %v3529, %v3521
    %v5050 = vpack.c.b16 %v3530, %v3522
    %v5051 = vpack.c.b16 %v3531, %v3523
    %v5052 = vpack.c.b16 %v3532, %v3524
    %v5053 = vpack.c.b16 %v3541, %v3533
    %v5054 = vpack.c.b16 %v3542, %v3534
    %v5055 = vpack.c.b16 %v3543, %v3535
    %v5056 = vpack.c.b16 %v3544, %v3536
    %v5057 = vpack.c.b16 %v3545, %v3537
    %v5058 = vpack.c.b16 %v3546, %v3538
    %v5059 = vpack.c.b16 %v3547, %v3539
    %v5060 = vpack.c.b16 %v3548, %v3540
    %v5061 = vpack.c.b16 %v3557, %v3549
    %v5062 = vpack.c.b16 %v3558, %v3550
    %v5063 = vpack.c.b16 %v3559, %v3551
    %v5064 = vpack.c.b16 %v3560, %v3552
    %v5065 = vpack.c.b16 %v3561, %v3553
    %v5066 = vpack.c.b16 %v3562, %v3554
    %v5067 = vpack.c.b16 %v3563, %v3555
    %v5068 = vpack.c.b16 %v3564, %v3556
    %v5069 = vpack.c.b16 %v3573, %v3565
    %v5070 = vpack.c.b16 %v3574, %v3566
    %v5071 = vpack.c.b16 %v3575, %v3567
    %v5072 = vpack.c.b16 %v3576, %v3568
    %v5073 = vpack.c.b16 %v3577, %v3569
    %v5074 = vpack.c.b16 %v3578, %v3570
    %v5075 = vpack.c.b16 %v3579, %v3571
    %v5076 = vpack.c.b16 %v3580, %v3572
    %v5077 = vpack.c.b16 %v3589, %v3581
    %v5078 = vpack.c.b16 %v3590, %v3582
    %v5079 = vpack.c.b16 %v3591, %v3583
    %v5080 = vpack.c.b16 %v3592, %v3584
    %v5081 = vpack.c.b16 %v3593, %v3585
    %v5082 = vpack.c.b16 %v3594, %v3586
    %v5083 = vpack.c.b16 %v3595, %v3587
    %v5084 = vpack.c.b16 %v3596, %v3588
    %v5085 = vpack.c.b16 %v3605, %v3597
    %v5086 = vpack.c.b16 %v3606, %v3598
    %v5087 = vpack.c.b16 %v3607, %v3599
    %v5088 = vpack.c.b16 %v3608, %v3600
    %v5089 = vpack.c.b16 %v3609, %v3601
    %v5090 = vpack.c.b16 %v3610, %v3602
    %v5091 = vpack.c.b16 %v3611, %v3603
    %v5092 = vpack.c.b16 %v3612, %v3604
    %v5093 = vpack.c.b16 %v3621, %v3613
    %v5094 = vpack.c.b16 %v3622, %v3614
    %v5095 = vpack.c.b16 %v3623, %v3615
    %v5096 = vpack.c.b16 %v3624, %v3616
    %v5097 = vpack.c.b16 %v3625, %v3617
    %v5098 = vpack.c.b16 %v3626, %v3618
    %v5099 = vpack.c.b16 %v3627, %v3619
    %v5100 = vpack.c.b16 %v3628, %v3620
    %v5101 = vpack.c.b16 %v3637, %v3629
    %v5102 = vpack.c.b16 %v3638, %v3630
    %v5103 = vpack.c.b16 %v3639, %v3631
    %v5104 = vpack.c.b16 %v3640, %v3632
    %v5105 = vpack.c.b16 %v3641, %v3633
    %v5106 = vpack.c.b16 %v3642, %v3634
    %v5107 = vpack.c.b16 %v3643, %v3635
    %v5108 = vpack.c.b16 %v3644, %v3636
    %v5109 = vpack.c.b16 %v3653, %v3645
    %v5110 = vpack.c.b16 %v3654, %v3646
    %v5111 = vpack.c.b16 %v3655, %v3647
    %v5112 = vpack.c.b16 %v3656, %v3648
    %v5113 = vpack.c.b16 %v3657, %v3649
    %v5114 = vpack.c.b16 %v3658, %v3650
    %v5115 = vpack.c.b16 %v3659, %v3651
    %v5116 = vpack.c.b16 %v3660, %v3652
    %v5117 = vpack.c.b16 %v3669, %v3661
    %v5118 = vpack.c.b16 %v3670, %v3662
    %v5119 = vpack.c.b16 %v3671, %v3663
    %v5120 = vpack.c.b16 %v3672, %v3664
    %v5121 = vpack.c.b16 %v3673, %v3665
    %v5122 = vpack.c.b16 %v3674, %v3666
    %v5123 = vpack.c.b16 %v3675, %v3667
    %v5124 = vpack.c.b16 %v3676, %v3668
    %v5125 = vpack.c.b16 %v3685, %v3677
    %v5126 = vpack.c.b16 %v3686, %v3678
    %v5127 = vpack.c.b16 %v3687, %v3679
    %v5128 = vpack.c.b16 %v3688, %v3680
    %v5129 = vpack.c.b16 %v3689, %v3681
    %v5130 = vpack.c.b16 %v3690, %v3682
    %v5131 = vpack.c.b16 %v3691, %v3683
    %v5132 = vpack.c.b16 %v3692, %v3684
    %v5133 = vpack.c.b16 %v3701, %v3693
    %v5134 = vpack.c.b16 %v3702, %v3694
    %v5135 = vpack.c.b16 %v3703, %v3695
    %v5136 = vpack.c.b16 %v3704, %v3696
    %v5137 = vpack.c.b16 %v3705, %v3697
    %v5138 = vpack.c.b16 %v3706, %v3698
    %v5139 = vpack.c.b16 %v3707, %v3699
    %v5140 = vpack.c.b16 %v3708, %v3700
    %v5141 = vpack.c.b16 %v3717, %v3709
    %v5142 = vpack.c.b16 %v3718, %v3710
    %v5143 = vpack.c.b16 %v3719, %v3711
    %v5144 = vpack.c.b16 %v3720, %v3712
    %v5145 = vpack.c.b16 %v3721, %v3713
    %v5146 = vpack.c.b16 %v3722, %v3714
    %v5147 = vpack.c.b16 %v3723, %v3715
    %v5148 = vpack.c.b16 %v3724, %v3716
    %v5149 = vpack.c.b16 %v3733, %v3725
    %v5150 = vpack.c.b16 %v3734, %v3726
    %v5151 = vpack.c.b16 %v3735, %v3727
    %v5152 = vpack.c.b16 %v3736, %v3728
    %v5153 = vpack.c.b16 %v3737, %v3729
    %v5154 = vpack.c.b16 %v3738, %v3730
    %v5155 = vpack.c.b16 %v3739, %v3731
    %v5156 = vpack.c.b16 %v3740, %v3732
    %v5157 = vpack.c.b16 %v3749, %v3741
    %v5158 = vpack.c.b16 %v3750, %v3742
    %v5159 = vpack.c.b16 %v3751, %v3743
    %v5160 = vpack.c.b16 %v3752, %v3744
    %v5161 = vpack.c.b16 %v3753, %v3745
    %v5162 = vpack.c.b16 %v3754, %v3746
    %v5163 = vpack.c.b16 %v3755, %v3747
    %v5164 = vpack.c.b16 %v3756, %v3748
    %v5165 = vpack.c.b16 %v3765, %v3757
    %v5166 = vpack.c.b16 %v3766, %v3758
    %v5167 = vpack.c.b16 %v3767, %v3759
    %v5168 = vpack.c.b16 %v3768, %v3760
    %v5169 = vpack.c.b16 %v3769, %v3761
    %v5170 = vpack.c.b16 %v3770, %v3762
    %v5171 = vpack.c.b16 %v3771, %v3763
    %v5172 = vpack.c.b16 %v3772, %v3764
    %v5173 = vpack.c.b16 %v3781, %v3773
    %v5174 = vpack.c.b16 %v3782, %v3774
    %v5175 = vpack.c.b16 %v3783, %v3775
    %v5176 = vpack.c.b16 %v3784, %v3776
    %v5177 = vpack.c.b16 %v3785, %v3777
    %v5178 = vpack.c.b16 %v3786, %v3778
    %v5179 = vpack.c.b16 %v3787, %v3779
    %v5180 = vpack.c.b16 %v3788, %v3780
    %v5181 = vpack.c.b16 %v3797, %v3789
    %v5182 = vpack.c.b16 %v3798, %v3790
    %v5183 = vpack.c.b16 %v3799, %v3791
    %v5184 = vpack.c.b16 %v3800, %v3792
    %v5185 = vpack.c.b16 %v3801, %v3793
    %v5186 = vpack.c.b16 %v3802, %v3794
    %v5187 = vpack.c.b16 %v3803, %v3795
    %v5188 = vpack.c.b16 %v3804, %v3796
    %v5189 = vpack.c.b16 %v3813, %v3805
    %v5190 = vpack.c.b16 %v3814, %v3806
    %v5191 = vpack.c.b16 %v3815, %v3807
    %v5192 = vpack.c.b16 %v3816, %v3808
    %v5193 = vpack.c.b16 %v3817, %v3809
    %v5194 = vpack.c.b16 %v3818, %v3810
    %v5195 = vpack.c.b16 %v3819, %v3811
    %v5196 = vpack.c.b16 %v3820, %v3812
    %v5197 = vpack.c.b16 %v3829, %v3821
    %v5198 = vpack.c.b16 %v3830, %v3822
    %v5199 = vpack.c.b16 %v3831, %v3823
    %v5200 = vpack.c.b16 %v3832, %v3824
    %v5201 = vpack.c.b16 %v3833, %v3825
    %v5202 = vpack.c.b16 %v3834, %v3826
    %v5203 = vpack.c.b16 %v3835, %v3827
    %v5204 = vpack.c.b16 %v3836, %v3828
    %v5205 = vpack.c.b16 %v3845, %v3837
    %v5206 = vpack.c.b16 %v3846, %v3838
    %v5207 = vpack.c.b16 %v3847, %v3839
    %v5208 = vpack.c.b16 %v3848, %v3840
    %v5209 = vpack.c.b16 %v3849, %v3841
    %v5210 = vpack.c.b16 %v3850, %v3842
    %v5211 = vpack.c.b16 %v3851, %v3843
    %v5212 = vpack.c.b16 %v3852, %v3844
    %v5213 = vpack.c.b16 %v3861, %v3853
    %v5214 = vpack.c.b16 %v3862, %v3854
    %v5215 = vpack.c.b16 %v3863, %v3855
    %v5216 = vpack.c.b16 %v3864, %v3856
    %v5217 = vpack.c.b16 %v3865, %v3857
    %v5218 = vpack.c.b16 %v3866, %v3858
    %v5219 = vpack.c.b16 %v3867, %v3859
    %v5220 = vpack.c.b16 %v3868, %v3860
    %v5221 = vpack.c.b16 %v3877, %v3869
    %v5222 = vpack.c.b16 %v3878, %v3870
    %v5223 = vpack.c.b16 %v3879, %v3871
    %v5224 = vpack.c.b16 %v3880, %v3872
    %v5225 = vpack.c.b16 %v3881, %v3873
    %v5226 = vpack.c.b16 %v3882, %v3874
    %v5227 = vpack.c.b16 %v3883, %v3875
    %v5228 = vpack.c.b16 %v3884, %v3876
    %v5229 = vpack.c.b16 %v3893, %v3885
    %v5230 = vpack.c.b16 %v3894, %v3886
    %v5231 = vpack.c.b16 %v3895, %v3887
    %v5232 = vpack.c.b16 %v3896, %v3888
    %v5233 = vpack.c.b16 %v3897, %v3889
    %v5234 = vpack.c.b16 %v3898, %v3890
    %v5235 = vpack.c.b16 %v3899, %v3891
    %v5236 = vpack.c.b16 %v3900, %v3892
    %v5237 = vpack.c.b16 %v3909, %v3901
    %v5238 = vpack.c.b16 %v3910, %v3902
    %v5239 = vpack.c.b16 %v3911, %v3903
    %v5240 = vpack.c.b16 %v3912, %v3904
    %v5241 = vpack.c.b16 %v3913, %v3905
    %v5242 = vpack.c.b16 %v3914, %v3906
    %v5243 = vpack.c.b16 %v3915, %v3907
    %v5244 = vpack.c.b16 %v3916, %v3908
    %v5245 = vpack.c.b16 %v3925, %v3917
    %v5246 = vpack.c.b16 %v3926, %v3918
    %v5247 = vpack.c.b16 %v3927, %v3919
    %v5248 = vpack.c.b16 %v3928, %v3920
    %v5249 = vpack.c.b16 %v3929, %v3921
    %v5250 = vpack.c.b16 %v3930, %v3922
    %v5251 = vpack.c.b16 %v3931, %v3923
    %v5252 = vpack.c.b16 %v3932, %v3924
    %v5253 = vpack.c.b16 %v3941, %v3933
    %v5254 = vpack.c.b16 %v3942, %v3934
    %v5255 = vpack.c.b16 %v3943, %v3935
    %v5256 = vpack.c.b16 %v3944, %v3936
    %v5257 = vpack.c.b16 %v3945, %v3937
    %v5258 = vpack.c.b16 %v3946, %v3938
    %v5259 = vpack.c.b16 %v3947, %v3939
    %v5260 = vpack.c.b16 %v3948, %v3940
    %v5261 = vpack.c.b16 %v3957, %v3949
    %v5262 = vpack.c.b16 %v3958, %v3950
    %v5263 = vpack.c.b16 %v3959, %v3951
    %v5264 = vpack.c.b16 %v3960, %v3952
    %v5265 = vpack.c.b16 %v3961, %v3953
    %v5266 = vpack.c.b16 %v3962, %v3954
    %v5267 = vpack.c.b16 %v3963, %v3955
    %v5268 = vpack.c.b16 %v3964, %v3956
    %v5269 = vpack.c.b16 %v3973, %v3965
    %v5270 = vpack.c.b16 %v3974, %v3966
    %v5271 = vpack.c.b16 %v3975, %v3967
    %v5272 = vpack.c.b16 %v3976, %v3968
    %v5273 = vpack.c.b16 %v3977, %v3969
    %v5274 = vpack.c.b16 %v3978, %v3970
    %v5275 = vpack.c.b16 %v3979, %v3971
    %v5276 = vpack.c.b16 %v3980, %v3972
    %v5277 = vpack.c.b16 %v3989, %v3981
    %v5278 = vpack.c.b16 %v3990, %v3982
    %v5279 = vpack.c.b16 %v3991, %v3983
    %v5280 = vpack.c.b16 %v3992, %v3984
    %v5281 = vpack.c.b16 %v3993, %v3985
    %v5282 = vpack.c.b16 %v3994, %v3986
    %v5283 = vpack.c.b16 %v3995, %v3987
    %v5284 = vpack.c.b16 %v3996, %v3988
    %v5285 = vpack.c.b16 %v4005, %v3997
    %v5286 = vpack.c.b16 %v4006, %v3998
    %v5287 = vpack.c.b16 %v4007, %v3999
    %v5288 = vpack.c.b16 %v4008, %v4000
    %v5289 = vpack.c.b16 %v4009, %v4001
    %v5290 = vpack.c.b16 %v4010, %v4002
    %v5291 = vpack.c.b16 %v4011, %v4003
    %v5292 = vpack.c.b16 %v4012, %v4004
    %v5293 = vpack.c.b16 %v4021, %v4013
    %v5294 = vpack.c.b16 %v4022, %v4014
    %v5295 = vpack.c.b16 %v4023, %v4015
    %v5296 = vpack.c.b16 %v4024, %v4016
    %v5297 = vpack.c.b16 %v4025, %v4017
    %v5298 = vpack.c.b16 %v4026, %v4018
    %v5299 = vpack.c.b16 %v4027, %v4019
    %v5300 = vpack.c.b16 %v4028, %v4020
    %v5301 = vpack.c.b16 %v4037, %v4029
    %v5302 = vpack.c.b16 %v4038, %v4030
    %v5303 = vpack.c.b16 %v4039, %v4031
    %v5304 = vpack.c.b16 %v4040, %v4032
    %v5305 = vpack.c.b16 %v4041, %v4033
    %v5306 = vpack.c.b16 %v4042, %v4034
    %v5307 = vpack.c.b16 %v4043, %v4035
    %v5308 = vpack.c.b16 %v4044, %v4036
    %v5309 = vpack.c.b16 %v4053, %v4045
    %v5310 = vpack.c.b16 %v4054, %v4046
    %v5311 = vpack.c.b16 %v4055, %v4047
    %v5312 = vpack.c.b16 %v4056, %v4048
    %v5313 = vpack.c.b16 %v4057, %v4049
    %v5314 = vpack.c.b16 %v4058, %v4050
    %v5315 = vpack.c.b16 %v4059, %v4051
    %v5316 = vpack.c.b16 %v4060, %v4052
    %v5317 = vpack.c.b16 %v4069, %v4061
    %v5318 = vpack.c.b16 %v4070, %v4062
    %v5319 = vpack.c.b16 %v4071, %v4063
    %v5320 = vpack.c.b16 %v4072, %v4064
    %v5321 = vpack.c.b16 %v4073, %v4065
    %v5322 = vpack.c.b16 %v4074, %v4066
    %v5323 = vpack.c.b16 %v4075, %v4067
    %v5324 = vpack.c.b16 %v4076, %v4068
    %v5325 = vpack.c.b16 %v4085, %v4077
    %v5326 = vpack.c.b16 %v4086, %v4078
    %v5327 = vpack.c.b16 %v4087, %v4079
    %v5328 = vpack.c.b16 %v4088, %v4080
    %v5329 = vpack.c.b16 %v4089, %v4081
    %v5330 = vpack.c.b16 %v4090, %v4082
    %v5331 = vpack.c.b16 %v4091, %v4083
    %v5332 = vpack.c.b16 %v4092, %v4084
    %v5333 = vpack.c.b16 %v4101, %v4093
    %v5334 = vpack.c.b16 %v4102, %v4094
    %v5335 = vpack.c.b16 %v4103, %v4095
    %v5336 = vpack.c.b16 %v4104, %v4096
    %v5337 = vpack.c.b16 %v4105, %v4097
    %v5338 = vpack.c.b16 %v4106, %v4098
    %v5339 = vpack.c.b16 %v4107, %v4099
    %v5340 = vpack.c.b16 %v4108, %v4100
    %v5341 = vpack.c.b16 %v4117, %v4109
    %v5342 = vpack.c.b16 %v4118, %v4110
    %v5343 = vpack.c.b16 %v4119, %v4111
    %v5344 = vpack.c.b16 %v4120, %v4112
    %v5345 = vpack.c.b16 %v4121, %v4113
    %v5346 = vpack.c.b16 %v4122, %v4114
    %v5347 = vpack.c.b16 %v4123, %v4115
    %v5348 = vpack.c.b16 %v4124, %v4116
    %v5349 = vpack.c.b16 %v4133, %v4125
    %v5350 = vpack.c.b16 %v4134, %v4126
    %v5351 = vpack.c.b16 %v4135, %v4127
    %v5352 = vpack.c.b16 %v4136, %v4128
    %v5353 = vpack.c.b16 %v4137, %v4129
    %v5354 = vpack.c.b16 %v4138, %v4130
    %v5355 = vpack.c.b16 %v4139, %v4131
    %v5356 = vpack.c.b16 %v4140, %v4132
    %v5357 = vpack.c.b16 %v4149, %v4141
    %v5358 = vpack.c.b16 %v4150, %v4142
    %v5359 = vpack.c.b16 %v4151, %v4143
    %v5360 = vpack.c.b16 %v4152, %v4144
    %v5361 = vpack.c.b16 %v4153, %v4145
    %v5362 = vpack.c.b16 %v4154, %v4146
    %v5363 = vpack.c.b16 %v4155, %v4147
    %v5364 = vpack.c.b16 %v4156, %v4148
    %v5365 = vpack.c.b16 %v4165, %v4157
    %v5366 = vpack.c.b16 %v4166, %v4158
    %v5367 = vpack.c.b16 %v4167, %v4159
    %v5368 = vpack.c.b16 %v4168, %v4160
    %v5369 = vpack.c.b16 %v4169, %v4161
    %v5370 = vpack.c.b16 %v4170, %v4162
    %v5371 = vpack.c.b16 %v4171, %v4163
    %v5372 = vpack.c.b16 %v4172, %v4164
    %v5373 = vpack.c.b16 %v4181, %v4173
    %v5374 = vpack.c.b16 %v4182, %v4174
    %v5375 = vpack.c.b16 %v4183, %v4175
    %v5376 = vpack.c.b16 %v4184, %v4176
    %v5377 = vpack.c.b16 %v4185, %v4177
    %v5378 = vpack.c.b16 %v4186, %v4178
    %v5379 = vpack.c.b16 %v4187, %v4179
    %v5380 = vpack.c.b16 %v4188, %v4180
    %v5381 = vpack.c.b16 %v4197, %v4189
    %v5382 = vpack.c.b16 %v4198, %v4190
    %v5383 = vpack.c.b16 %v4199, %v4191
    %v5384 = vpack.c.b16 %v4200, %v4192
    %v5385 = vpack.c.b16 %v4201, %v4193
    %v5386 = vpack.c.b16 %v4202, %v4194
    %v5387 = vpack.c.b16 %v4203, %v4195
    %v5388 = vpack.c.b16 %v4204, %v4196
    %v5389 = vpack.c.b16 %v4213, %v4205
    %v5390 = vpack.c.b16 %v4214, %v4206
    %v5391 = vpack.c.b16 %v4215, %v4207
    %v5392 = vpack.c.b16 %v4216, %v4208
    %v5393 = vpack.c.b16 %v4217, %v4209
    %v5394 = vpack.c.b16 %v4218, %v4210
    %v5395 = vpack.c.b16 %v4219, %v4211
    %v5396 = vpack.c.b16 %v4220, %v4212
    %v5397 = vpack.c.b16 %v4229, %v4221
    %v5398 = vpack.c.b16 %v4230, %v4222
    %v5399 = vpack.c.b16 %v4231, %v4223
    %v5400 = vpack.c.b16 %v4232, %v4224
    %v5401 = vpack.c.b16 %v4233, %v4225
    %v5402 = vpack.c.b16 %v4234, %v4226
    %v5403 = vpack.c.b16 %v4235, %v4227
    %v5404 = vpack.c.b16 %v4236, %v4228
    %v5405 = vpack.c.b16 %v4245, %v4237
    %v5406 = vpack.c.b16 %v4246, %v4238
    %v5407 = vpack.c.b16 %v4247, %v4239
    %v5408 = vpack.c.b16 %v4248, %v4240
    %v5409 = vpack.c.b16 %v4249, %v4241
    %v5410 = vpack.c.b16 %v4250, %v4242
    %v5411 = vpack.c.b16 %v4251, %v4243
    %v5412 = vpack.c.b16 %v4252, %v4244
    %v5413 = vpack.c.b16 %v4261, %v4253
    %v5414 = vpack.c.b16 %v4262, %v4254
    %v5415 = vpack.c.b16 %v4263, %v4255
    %v5416 = vpack.c.b16 %v4264, %v4256
    %v5417 = vpack.c.b16 %v4265, %v4257
    %v5418 = vpack.c.b16 %v4266, %v4258
    %v5419 = vpack.c.b16 %v4267, %v4259
    %v5420 = vpack.c.b16 %v4268, %v4260
    %v5421 = vpack.c.b16 %v4277, %v4269
    %v5422 = vpack.c.b16 %v4278, %v4270
    %v5423 = vpack.c.b16 %v4279, %v4271
    %v5424 = vpack.c.b16 %v4280, %v4272
    %v5425 = vpack.c.b16 %v4281, %v4273
    %v5426 = vpack.c.b16 %v4282, %v4274
    %v5427 = vpack.c.b16 %v4283, %v4275
    %v5428 = vpack.c.b16 %v4284, %v4276
    %v5429 = vpack.c.b16 %v4293, %v4285
    %v5430 = vpack.c.b16 %v4294, %v4286
    %v5431 = vpack.c.b16 %v4295, %v4287
    %v5432 = vpack.c.b16 %v4296, %v4288
    %v5433 = vpack.c.b16 %v4297, %v4289
    %v5434 = vpack.c.b16 %v4298, %v4290
    %v5435 = vpack.c.b16 %v4299, %v4291
    %v5436 = vpack.c.b16 %v4300, %v4292
    %v5437 = vpack.c.b16 %v4309, %v4301
    %v5438 = vpack.c.b16 %v4310, %v4302
    %v5439 = vpack.c.b16 %v4311, %v4303
    %v5440 = vpack.c.b16 %v4312, %v4304
    %v5441 = vpack.c.b16 %v4313, %v4305
    %v5442 = vpack.c.b16 %v4314, %v4306
    %v5443 = vpack.c.b16 %v4315, %v4307
    %v5444 = vpack.c.b16 %v4316, %v4308
    %v5445 = vpack.c.b16 %v4325, %v4317
    %v5446 = vpack.c.b16 %v4326, %v4318
    %v5447 = vpack.c.b16 %v4327, %v4319
    %v5448 = vpack.c.b16 %v4328, %v4320
    %v5449 = vpack.c.b16 %v4329, %v4321
    %v5450 = vpack.c.b16 %v4330, %v4322
    %v5451 = vpack.c.b16 %v4331, %v4323
    %v5452 = vpack.c.b16 %v4332, %v4324
    %v5453 = vpack.c.b16 %v4341, %v4333
    %v5454 = vpack.c.b16 %v4342, %v4334
    %v5455 = vpack.c.b16 %v4343, %v4335
    %v5456 = vpack.c.b16 %v4344, %v4336
    %v5457 = vpack.c.b16 %v4345, %v4337
    %v5458 = vpack.c.b16 %v4346, %v4338
    %v5459 = vpack.c.b16 %v4347, %v4339
    %v5460 = vpack.c.b16 %v4348, %v4340
    %v5461 = vpack.c.b16 %v4357, %v4349
    %v5462 = vpack.c.b16 %v4358, %v4350
    %v5463 = vpack.c.b16 %v4359, %v4351
    %v5464 = vpack.c.b16 %v4360, %v4352
    %v5465 = vpack.c.b16 %v4361, %v4353
    %v5466 = vpack.c.b16 %v4362, %v4354
    %v5467 = vpack.c.b16 %v4363, %v4355
    %v5468 = vpack.c.b16 %v4364, %v4356
    %v5469 = vpack.c.b16 %v4373, %v4365
    %v5470 = vpack.c.b16 %v4374, %v4366
    %v5471 = vpack.c.b16 %v4375, %v4367
    %v5472 = vpack.c.b16 %v4376, %v4368
    %v5473 = vpack.c.b16 %v4377, %v4369
    %v5474 = vpack.c.b16 %v4378, %v4370
    %v5475 = vpack.c.b16 %v4379, %v4371
    %v5476 = vpack.c.b16 %v4380, %v4372
    %v5477 = vpack.c.b16 %v4389, %v4381
    %v5478 = vpack.c.b16 %v4390, %v4382
    %v5479 = vpack.c.b16 %v4391, %v4383
    %v5480 = vpack.c.b16 %v4392, %v4384
    %v5481 = vpack.c.b16 %v4393, %v4385
    %v5482 = vpack.c.b16 %v4394, %v4386
    %v5483 = vpack.c.b16 %v4395, %v4387
    %v5484 = vpack.c.b16 %v4396, %v4388
    %v5485 = vpack.c.b16 %v4405, %v4397
    %v5486 = vpack.c.b16 %v4406, %v4398
    %v5487 = vpack.c.b16 %v4407, %v4399
    %v5488 = vpack.c.b16 %v4408, %v4400
    %v5489 = vpack.c.b16 %v4409, %v4401
    %v5490 = vpack.c.b16 %v4410, %v4402
    %v5491 = vpack.c.b16 %v4411, %v4403
    %v5492 = vpack.c.b16 %v4412, %v4404
    %v5493 = vpack.c.b16 %v4421, %v4413
    %v5494 = vpack.c.b16 %v4422, %v4414
    %v5495 = vpack.c.b16 %v4423, %v4415
    %v5496 = vpack.c.b16 %v4424, %v4416
    %v5497 = vpack.c.b16 %v4425, %v4417
    %v5498 = vpack.c.b16 %v4426, %v4418
    %v5499 = vpack.c.b16 %v4427, %v4419
    %v5500 = vpack.c.b16 %v4428, %v4420
    %v5501 = vpack.c.b16 %v4437, %v4429
    %v5502 = vpack.c.b16 %v4438, %v4430
    %v5503 = vpack.c.b16 %v4439, %v4431
    %v5504 = vpack.c.b16 %v4440, %v4432
    %v5505 = vpack.c.b16 %v4441, %v4433
    %v5506 = vpack.c.b16 %v4442, %v4434
    %v5507 = vpack.c.b16 %v4443, %v4435
    %v5508 = vpack.c.b16 %v4444, %v4436
    %v5509 = vpack.c.b16 %v4453, %v4445
    %v5510 = vpack.c.b16 %v4454, %v4446
    %v5511 = vpack.c.b16 %v4455, %v4447
    %v5512 = vpack.c.b16 %v4456, %v4448
    %v5513 = vpack.c.b16 %v4457, %v4449
    %v5514 = vpack.c.b16 %v4458, %v4450
    %v5515 = vpack.c.b16 %v4459, %v4451
    %v5516 = vpack.c.b16 %v4460, %v4452
    %v5517 = vpack.c.b16 %v4469, %v4461
    %v5518 = vpack.c.b16 %v4470, %v4462
    %v5519 = vpack.c.b16 %v4471, %v4463
    %v5520 = vpack.c.b16 %v4472, %v4464
    %v5521 = vpack.c.b16 %v4473, %v4465
    %v5522 = vpack.c.b16 %v4474, %v4466
    %v5523 = vpack.c.b16 %v4475, %v4467
    %v5524 = vpack.c.b16 %v4476, %v4468
    %v5525 = vpack.c.b16 %v4485, %v4477
    %v5526 = vpack.c.b16 %v4486, %v4478
    %v5527 = vpack.c.b16 %v4487, %v4479
    %v5528 = vpack.c.b16 %v4488, %v4480
    %v5529 = vpack.c.b16 %v4489, %v4481
    %v5530 = vpack.c.b16 %v4490, %v4482
    %v5531 = vpack.c.b16 %v4491, %v4483
    %v5532 = vpack.c.b16 %v4492, %v4484
    %v5533 = vpack.c.b16 %v4501, %v4493
    %v5534 = vpack.c.b16 %v4502, %v4494
    %v5535 = vpack.c.b16 %v4503, %v4495
    %v5536 = vpack.c.b16 %v4504, %v4496
    %v5537 = vpack.c.b16 %v4505, %v4497
    %v5538 = vpack.c.b16 %v4506, %v4498
    %v5539 = vpack.c.b16 %v4507, %v4499
    %v5540 = vpack.c.b16 %v4508, %v4500
    %v5541 = vpack.c.b16 %v4517, %v4509
    %v5542 = vpack.c.b16 %v4518, %v4510
    %v5543 = vpack.c.b16 %v4519, %v4511
    %v5544 = vpack.c.b16 %v4520, %v4512
    %v5545 = vpack.c.b16 %v4521, %v4513
    %v5546 = vpack.c.b16 %v4522, %v4514
    %v5547 = vpack.c.b16 %v4523, %v4515
    %v5548 = vpack.c.b16 %v4524, %v4516
    %6573 = vmatprep.subr.bf16.mxu0 %v4582
    %6574 = vmatpush1.bf16.msra.mxu0 %v4581
    %6575 = vmatprep.subr.bf16.mxu0 %v4574
    %6576 = vmatpush1.bf16.msra.mxu0 %v4573
    %6577 = vmatprep.subr.bf16.mxu0 %v4566
    %6578 = vmatpush1.bf16.msra.mxu0 %v4565
    %6579 = vmatprep.subr.bf16.mxu0 %v4558
    %6580 = vmatpush1.bf16.msra.mxu0 %v4557
    %6581 = vmatprep.subr.bf16.mxu0 %v4550
    %6582 = vmatpush1.bf16.msra.mxu0 %v4549
    %6583 = vmatprep.subr.bf16.mxu0 %v4542
    %6584 = vmatpush1.bf16.msra.mxu0 %v4541
    %6585 = vmatprep.subr.bf16.mxu0 %v4534
    %6586 = vmatpush1.bf16.msra.mxu0 %v4533
    %6587 = vmatprep.subr.bf16.mxu0 %v4526
    %6588 = vmatpush1.bf16.msra.mxu0 %v4525
    %6589 = vmatprep.subr.bf16.mxu0 %v4646
    %6590 = vmatpush2.bf16.msra.mxu0 %v4645
    %6591 = vmatprep.subr.bf16.mxu0 %v4638
    %6592 = vmatpush2.bf16.msra.mxu0 %v4637
    %6593 = vmatprep.subr.bf16.mxu0 %v4630
    %6594 = vmatpush2.bf16.msra.mxu0 %v4629
    %6595 = vmatprep.subr.bf16.mxu0 %v4622
    %6596 = vmatpush2.bf16.msra.mxu0 %v4621
    %6597 = vmatprep.subr.bf16.mxu0 %v4614
    %6598 = vmatpush2.bf16.msra.mxu0 %v4613
    %6599 = vmatprep.subr.bf16.mxu0 %v4606
    %6600 = vmatpush2.bf16.msra.mxu0 %v4605
    %6601 = vmatprep.subr.bf16.mxu0 %v4598
    %6602 = vmatpush2.bf16.msra.mxu0 %v4597
    %6603 = vmatprep.subr.bf16.mxu0 %v4590
    %6604 = vmatpush2.bf16.msra.mxu0 %v4589
    %6605 = vmatprep.mubr.bf16.mxu0 %v372
    %6606 = vmatmul.mubr.bf16.gmra.mxu0 %v371
    %v6607 = vpop.f32.mrf.mxu0
    %v6608 = vadd.f32 %v1416, %v6607
    %v6609 = vpop.f32.mrf.mxu0
    %v6610 = vadd.f32 %v1420, %v6609
    %v6611 = vpop.f32.mrf.mxu0
    %v6612 = vpop.f32.mrf.mxu0
    %6613 = vdwg.mxu0
    %6614 = vmatprep.subr.bf16.mxu0 %v4710
    %6615 = vmatpush1.bf16.msra.mxu0 %v4709
    %6616 = vmatprep.subr.bf16.mxu0 %v4702
    %6617 = vmatpush1.bf16.msra.mxu0 %v4701
    %6618 = vmatprep.subr.bf16.mxu0 %v4694
    %6619 = vmatpush1.bf16.msra.mxu0 %v4693
    %6620 = vmatprep.subr.bf16.mxu0 %v4686
    %6621 = vmatpush1.bf16.msra.mxu0 %v4685
    %6622 = vmatprep.subr.bf16.mxu0 %v4678
    %6623 = vmatpush1.bf16.msra.mxu0 %v4677
    %6624 = vmatprep.subr.bf16.mxu0 %v4670
    %6625 = vmatpush1.bf16.msra.mxu0 %v4669
    %6626 = vmatprep.subr.bf16.mxu0 %v4662
    %6627 = vmatpush1.bf16.msra.mxu0 %v4661
    %6628 = vmatprep.subr.bf16.mxu0 %v4654
    %6629 = vmatpush1.bf16.msra.mxu0 %v4653
    %6630 = vmatprep.subr.bf16.mxu0 %v4774
    %6631 = vmatpush2.bf16.msra.mxu0 %v4773
    %6632 = vmatprep.subr.bf16.mxu0 %v4766
    %6633 = vmatpush2.bf16.msra.mxu0 %v4765
    %6634 = vmatprep.subr.bf16.mxu0 %v4758
    %6635 = vmatpush2.bf16.msra.mxu0 %v4757
    %6636 = vmatprep.subr.bf16.mxu0 %v4750
    %6637 = vmatpush2.bf16.msra.mxu0 %v4749
    %6638 = vmatprep.subr.bf16.mxu0 %v4742
    %6639 = vmatpush2.bf16.msra.mxu0 %v4741
    %6640 = vmatprep.subr.bf16.mxu0 %v4734
    %6641 = vmatpush2.bf16.msra.mxu0 %v4733
    %6642 = vmatprep.subr.bf16.mxu0 %v4726
    %6643 = vmatpush2.bf16.msra.mxu0 %v4725
    %6644 = vmatprep.subr.bf16.mxu0 %v4718
    %6645 = vmatpush2.bf16.msra.mxu0 %v4717
    %6646 = vmatprep.mubr.bf16.mxu0 %v374
    %6647 = vmatmul.mubr.bf16.gmra.mxu0 %v373
    %v6648 = vpop.f32.mrf.mxu0
    %v6649 = vadd.f32 %v6608, %v6648
    %v6650 = vpop.f32.mrf.mxu0
    %v6651 = vadd.f32 %v6610, %v6650
    %v6652 = vpop.f32.mrf.mxu0
    %v6653 = vpop.f32.mrf.mxu0
    %6654 = vdwg.mxu0
    %6655 = vmatprep.subr.bf16.mxu0 %v4838
    %6656 = vmatpush1.bf16.msra.mxu0 %v4837
    %6657 = vmatprep.subr.bf16.mxu0 %v4830
    %6658 = vmatpush1.bf16.msra.mxu0 %v4829
    %6659 = vmatprep.subr.bf16.mxu0 %v4822
    %6660 = vmatpush1.bf16.msra.mxu0 %v4821
    %6661 = vmatprep.subr.bf16.mxu0 %v4814
    %6662 = vmatpush1.bf16.msra.mxu0 %v4813
    %6663 = vmatprep.subr.bf16.mxu0 %v4806
    %6664 = vmatpush1.bf16.msra.mxu0 %v4805
    %6665 = vmatprep.subr.bf16.mxu0 %v4798
    %6666 = vmatpush1.bf16.msra.mxu0 %v4797
    %6667 = vmatprep.subr.bf16.mxu0 %v4790
    %6668 = vmatpush1.bf16.msra.mxu0 %v4789
    %6669 = vmatprep.subr.bf16.mxu0 %v4782
    %6670 = vmatpush1.bf16.msra.mxu0 %v4781
    %6671 = vmatprep.subr.bf16.mxu0 %v4902
    %6672 = vmatpush2.bf16.msra.mxu0 %v4901
    %6673 = vmatprep.subr.bf16.mxu0 %v4894
    %6674 = vmatpush2.bf16.msra.mxu0 %v4893
    %6675 = vmatprep.subr.bf16.mxu0 %v4886
    %6676 = vmatpush2.bf16.msra.mxu0 %v4885
    %6677 = vmatprep.subr.bf16.mxu0 %v4878
    %6678 = vmatpush2.bf16.msra.mxu0 %v4877
    %6679 = vmatprep.subr.bf16.mxu0 %v4870
    %6680 = vmatpush2.bf16.msra.mxu0 %v4869
    %6681 = vmatprep.subr.bf16.mxu0 %v4862
    %6682 = vmatpush2.bf16.msra.mxu0 %v4861
    %6683 = vmatprep.subr.bf16.mxu0 %v4854
    %6684 = vmatpush2.bf16.msra.mxu0 %v4853
    %6685 = vmatprep.subr.bf16.mxu0 %v4846
    %6686 = vmatpush2.bf16.msra.mxu0 %v4845
    %6687 = vmatprep.mubr.bf16.mxu0 %v376
    %6688 = vmatmul.mubr.bf16.gmra.mxu0 %v375
    %v6689 = vpop.f32.mrf.mxu0
    %v6690 = vadd.f32 %v6649, %v6689
    %v6691 = vpop.f32.mrf.mxu0
    %v6692 = vadd.f32 %v6651, %v6691
    %v6693 = vpop.f32.mrf.mxu0
    %v6694 = vpop.f32.mrf.mxu0
    %6695 = vdwg.mxu0
    %6696 = vmatprep.subr.bf16.mxu0 %v4966
    %6697 = vmatpush1.bf16.msra.mxu0 %v4965
    %6698 = vmatprep.subr.bf16.mxu0 %v4958
    %6699 = vmatpush1.bf16.msra.mxu0 %v4957
    %6700 = vmatprep.subr.bf16.mxu0 %v4950
    %6701 = vmatpush1.bf16.msra.mxu0 %v4949
    %6702 = vmatprep.subr.bf16.mxu0 %v4942
    %6703 = vmatpush1.bf16.msra.mxu0 %v4941
    %6704 = vmatprep.subr.bf16.mxu0 %v4934
    %6705 = vmatpush1.bf16.msra.mxu0 %v4933
    %6706 = vmatprep.subr.bf16.mxu0 %v4926
    %6707 = vmatpush1.bf16.msra.mxu0 %v4925
    %6708 = vmatprep.subr.bf16.mxu0 %v4918
    %6709 = vmatpush1.bf16.msra.mxu0 %v4917
    %6710 = vmatprep.subr.bf16.mxu0 %v4910
    %6711 = vmatpush1.bf16.msra.mxu0 %v4909
    %6712 = vmatprep.subr.bf16.mxu0 %v5030
    %6713 = vmatpush2.bf16.msra.mxu0 %v5029
    %6714 = vmatprep.subr.bf16.mxu0 %v5022
    %6715 = vmatpush2.bf16.msra.mxu0 %v5021
    %6716 = vmatprep.subr.bf16.mxu0 %v5014
    %6717 = vmatpush2.bf16.msra.mxu0 %v5013
    %6718 = vmatprep.subr.bf16.mxu0 %v5006
    %6719 = vmatpush2.bf16.msra.mxu0 %v5005
    %6720 = vmatprep.subr.bf16.mxu0 %v4998
    %6721 = vmatpush2.bf16.msra.mxu0 %v4997
    %6722 = vmatprep.subr.bf16.mxu0 %v4990
    %6723 = vmatpush2.bf16.msra.mxu0 %v4989
    %6724 = vmatprep.subr.bf16.mxu0 %v4982
    %6725 = vmatpush2.bf16.msra.mxu0 %v4981
    %6726 = vmatprep.subr.bf16.mxu0 %v4974
    %6727 = vmatpush2.bf16.msra.mxu0 %v4973
    %6728 = vmatprep.mubr.bf16.mxu0 %v378
    %6729 = vmatmul.mubr.bf16.gmra.mxu0 %v377
    %v6730 = vpop.f32.mrf.mxu0
    %v6731 = vadd.f32 %v6690, %v6730
    %v6732 = vpop.f32.mrf.mxu0
    %v6733 = vadd.f32 %v6692, %v6732
    %v6734 = vpop.f32.mrf.mxu0
    %v6735 = vpop.f32.mrf.mxu0
    %6736 = vdwg.mxu0
    %6737 = vmatprep.subr.bf16.mxu0 %v5094
    %6738 = vmatpush1.bf16.msra.mxu0 %v5093
    %6739 = vmatprep.subr.bf16.mxu0 %v5086
    %6740 = vmatpush1.bf16.msra.mxu0 %v5085
    %6741 = vmatprep.subr.bf16.mxu0 %v5078
    %6742 = vmatpush1.bf16.msra.mxu0 %v5077
    %6743 = vmatprep.subr.bf16.mxu0 %v5070
    %6744 = vmatpush1.bf16.msra.mxu0 %v5069
    %6745 = vmatprep.subr.bf16.mxu0 %v5062
    %6746 = vmatpush1.bf16.msra.mxu0 %v5061
    %6747 = vmatprep.subr.bf16.mxu0 %v5054
    %6748 = vmatpush1.bf16.msra.mxu0 %v5053
    %6749 = vmatprep.subr.bf16.mxu0 %v5046
    %6750 = vmatpush1.bf16.msra.mxu0 %v5045
    %6751 = vmatprep.subr.bf16.mxu0 %v5038
    %6752 = vmatpush1.bf16.msra.mxu0 %v5037
    %6753 = vmatprep.subr.bf16.mxu0 %v5158
    %6754 = vmatpush2.bf16.msra.mxu0 %v5157
    %6755 = vmatprep.subr.bf16.mxu0 %v5150
    %6756 = vmatpush2.bf16.msra.mxu0 %v5149
    %6757 = vmatprep.subr.bf16.mxu0 %v5142
    %6758 = vmatpush2.bf16.msra.mxu0 %v5141
    %6759 = vmatprep.subr.bf16.mxu0 %v5134
    %6760 = vmatpush2.bf16.msra.mxu0 %v5133
    %6761 = vmatprep.subr.bf16.mxu0 %v5126
    %6762 = vmatpush2.bf16.msra.mxu0 %v5125
    %6763 = vmatprep.subr.bf16.mxu0 %v5118
    %6764 = vmatpush2.bf16.msra.mxu0 %v5117
    %6765 = vmatprep.subr.bf16.mxu0 %v5110
    %6766 = vmatpush2.bf16.msra.mxu0 %v5109
    %6767 = vmatprep.subr.bf16.mxu0 %v5102
    %6768 = vmatpush2.bf16.msra.mxu0 %v5101
    %6769 = vmatprep.mubr.bf16.mxu0 %v380
    %6770 = vmatmul.mubr.bf16.gmra.mxu0 %v379
    %v6771 = vpop.f32.mrf.mxu0
    %v6772 = vadd.f32 %v6731, %v6771
    %v6773 = vpop.f32.mrf.mxu0
    %v6774 = vadd.f32 %v6733, %v6773
    %v6775 = vpop.f32.mrf.mxu0
    %v6776 = vpop.f32.mrf.mxu0
    %6777 = vdwg.mxu0
    %6778 = vmatprep.subr.bf16.mxu0 %v5222
    %6779 = vmatpush1.bf16.msra.mxu0 %v5221
    %6780 = vmatprep.subr.bf16.mxu0 %v5214
    %6781 = vmatpush1.bf16.msra.mxu0 %v5213
    %6782 = vmatprep.subr.bf16.mxu0 %v5206
    %6783 = vmatpush1.bf16.msra.mxu0 %v5205
    %6784 = vmatprep.subr.bf16.mxu0 %v5198
    %6785 = vmatpush1.bf16.msra.mxu0 %v5197
    %6786 = vmatprep.subr.bf16.mxu0 %v5190
    %6787 = vmatpush1.bf16.msra.mxu0 %v5189
    %6788 = vmatprep.subr.bf16.mxu0 %v5182
    %6789 = vmatpush1.bf16.msra.mxu0 %v5181
    %6790 = vmatprep.subr.bf16.mxu0 %v5174
    %6791 = vmatpush1.bf16.msra.mxu0 %v5173
    %6792 = vmatprep.subr.bf16.mxu0 %v5166
    %6793 = vmatpush1.bf16.msra.mxu0 %v5165
    %6794 = vmatprep.subr.bf16.mxu0 %v5286
    %6795 = vmatpush2.bf16.msra.mxu0 %v5285
    %6796 = vmatprep.subr.bf16.mxu0 %v5278
    %6797 = vmatpush2.bf16.msra.mxu0 %v5277
    %6798 = vmatprep.subr.bf16.mxu0 %v5270
    %6799 = vmatpush2.bf16.msra.mxu0 %v5269
    %6800 = vmatprep.subr.bf16.mxu0 %v5262
    %6801 = vmatpush2.bf16.msra.mxu0 %v5261
    %6802 = vmatprep.subr.bf16.mxu0 %v5254
    %6803 = vmatpush2.bf16.msra.mxu0 %v5253
    %6804 = vmatprep.subr.bf16.mxu0 %v5246
    %6805 = vmatpush2.bf16.msra.mxu0 %v5245
    %6806 = vmatprep.subr.bf16.mxu0 %v5238
    %6807 = vmatpush2.bf16.msra.mxu0 %v5237
    %6808 = vmatprep.subr.bf16.mxu0 %v5230
    %6809 = vmatpush2.bf16.msra.mxu0 %v5229
    %6810 = vmatprep.mubr.bf16.mxu0 %v382
    %6811 = vmatmul.mubr.bf16.gmra.mxu0 %v381
    %v6812 = vpop.f32.mrf.mxu0
    %v6813 = vadd.f32 %v6772, %v6812
    %v6814 = vpop.f32.mrf.mxu0
    %v6815 = vadd.f32 %v6774, %v6814
    %v6816 = vpop.f32.mrf.mxu0
    %v6817 = vpop.f32.mrf.mxu0
    %6818 = vdwg.mxu0
    %6819 = vmatprep.subr.bf16.mxu0 %v5350
    %6820 = vmatpush1.bf16.msra.mxu0 %v5349
    %6821 = vmatprep.subr.bf16.mxu0 %v5342
    %6822 = vmatpush1.bf16.msra.mxu0 %v5341
    %6823 = vmatprep.subr.bf16.mxu0 %v5334
    %6824 = vmatpush1.bf16.msra.mxu0 %v5333
    %6825 = vmatprep.subr.bf16.mxu0 %v5326
    %6826 = vmatpush1.bf16.msra.mxu0 %v5325
    %6827 = vmatprep.subr.bf16.mxu0 %v5318
    %6828 = vmatpush1.bf16.msra.mxu0 %v5317
    %6829 = vmatprep.subr.bf16.mxu0 %v5310
    %6830 = vmatpush1.bf16.msra.mxu0 %v5309
    %6831 = vmatprep.subr.bf16.mxu0 %v5302
    %6832 = vmatpush1.bf16.msra.mxu0 %v5301
    %6833 = vmatprep.subr.bf16.mxu0 %v5294
    %6834 = vmatpush1.bf16.msra.mxu0 %v5293
    %6835 = vmatprep.subr.bf16.mxu0 %v5414
    %6836 = vmatpush2.bf16.msra.mxu0 %v5413
    %6837 = vmatprep.subr.bf16.mxu0 %v5406
    %6838 = vmatpush2.bf16.msra.mxu0 %v5405
    %6839 = vmatprep.subr.bf16.mxu0 %v5398
    %6840 = vmatpush2.bf16.msra.mxu0 %v5397
    %6841 = vmatprep.subr.bf16.mxu0 %v5390
    %6842 = vmatpush2.bf16.msra.mxu0 %v5389
    %6843 = vmatprep.subr.bf16.mxu0 %v5382
    %6844 = vmatpush2.bf16.msra.mxu0 %v5381
    %6845 = vmatprep.subr.bf16.mxu0 %v5374
    %6846 = vmatpush2.bf16.msra.mxu0 %v5373
    %6847 = vmatprep.subr.bf16.mxu0 %v5366
    %6848 = vmatpush2.bf16.msra.mxu0 %v5365
    %6849 = vmatprep.subr.bf16.mxu0 %v5358
    %6850 = vmatpush2.bf16.msra.mxu0 %v5357
    %6851 = vmatprep.mubr.bf16.mxu0 %v384
    %6852 = vmatmul.mubr.bf16.gmra.mxu0 %v383
    %v6853 = vpop.f32.mrf.mxu0
    %v6854 = vadd.f32 %v6813, %v6853
    %v6855 = vpop.f32.mrf.mxu0
    %v6856 = vadd.f32 %v6815, %v6855
    %v6857 = vpop.f32.mrf.mxu0
    %v6858 = vpop.f32.mrf.mxu0
    %6859 = vdwg.mxu0
    %6860 = vmatprep.subr.bf16.mxu0 %v5478
    %6861 = vmatpush1.bf16.msra.mxu0 %v5477
    %6862 = vmatprep.subr.bf16.mxu0 %v5470
    %6863 = vmatpush1.bf16.msra.mxu0 %v5469
    %6864 = vmatprep.subr.bf16.mxu0 %v5462
    %6865 = vmatpush1.bf16.msra.mxu0 %v5461
    %6866 = vmatprep.subr.bf16.mxu0 %v5454
    %6867 = vmatpush1.bf16.msra.mxu0 %v5453
    %6868 = vmatprep.subr.bf16.mxu0 %v5446
    %6869 = vmatpush1.bf16.msra.mxu0 %v5445
    %6870 = vmatprep.subr.bf16.mxu0 %v5438
    %6871 = vmatpush1.bf16.msra.mxu0 %v5437
    %6872 = vmatprep.subr.bf16.mxu0 %v5430
    %6873 = vmatpush1.bf16.msra.mxu0 %v5429
    %6874 = vmatprep.subr.bf16.mxu0 %v5422
    %6875 = vmatpush1.bf16.msra.mxu0 %v5421
    %6876 = vmatprep.subr.bf16.mxu0 %v5542
    %6877 = vmatpush2.bf16.msra.mxu0 %v5541
    %6878 = vmatprep.subr.bf16.mxu0 %v5534
    %6879 = vmatpush2.bf16.msra.mxu0 %v5533
    %6880 = vmatprep.subr.bf16.mxu0 %v5526
    %6881 = vmatpush2.bf16.msra.mxu0 %v5525
    %6882 = vmatprep.subr.bf16.mxu0 %v5518
    %6883 = vmatpush2.bf16.msra.mxu0 %v5517
    %6884 = vmatprep.subr.bf16.mxu0 %v5510
    %6885 = vmatpush2.bf16.msra.mxu0 %v5509
    %6886 = vmatprep.subr.bf16.mxu0 %v5502
    %6887 = vmatpush2.bf16.msra.mxu0 %v5501
    %6888 = vmatprep.subr.bf16.mxu0 %v5494
    %6889 = vmatpush2.bf16.msra.mxu0 %v5493
    %6890 = vmatprep.subr.bf16.mxu0 %v5486
    %6891 = vmatpush2.bf16.msra.mxu0 %v5485
    %6892 = vmatprep.mubr.bf16.mxu0 %v386
    %6893 = vmatmul.mubr.bf16.gmra.mxu0 %v385
    %v6894 = vpop.f32.mrf.mxu0
    %v6895 = vadd.f32 %v6854, %v6894
    %v6896 = vpop.f32.mrf.mxu0
    %v6897 = vadd.f32 %v6856, %v6896
    %v6898 = vpop.f32.mrf.mxu0
    %v6899 = vpop.f32.mrf.mxu0
    %6900 = vdwg.mxu0
    %6901 = vmatprep.subr.bf16.mxu0 %v4584
    %6902 = vmatpush1.bf16.msra.mxu0 %v4583
    %6903 = vmatprep.subr.bf16.mxu0 %v4576
    %6904 = vmatpush1.bf16.msra.mxu0 %v4575
    %6905 = vmatprep.subr.bf16.mxu0 %v4568
    %6906 = vmatpush1.bf16.msra.mxu0 %v4567
    %6907 = vmatprep.subr.bf16.mxu0 %v4560
    %6908 = vmatpush1.bf16.msra.mxu0 %v4559
    %6909 = vmatprep.subr.bf16.mxu0 %v4552
    %6910 = vmatpush1.bf16.msra.mxu0 %v4551
    %6911 = vmatprep.subr.bf16.mxu0 %v4544
    %6912 = vmatpush1.bf16.msra.mxu0 %v4543
    %6913 = vmatprep.subr.bf16.mxu0 %v4536
    %6914 = vmatpush1.bf16.msra.mxu0 %v4535
    %6915 = vmatprep.subr.bf16.mxu0 %v4528
    %6916 = vmatpush1.bf16.msra.mxu0 %v4527
    %6917 = vmatprep.subr.bf16.mxu0 %v4648
    %6918 = vmatpush2.bf16.msra.mxu0 %v4647
    %6919 = vmatprep.subr.bf16.mxu0 %v4640
    %6920 = vmatpush2.bf16.msra.mxu0 %v4639
    %6921 = vmatprep.subr.bf16.mxu0 %v4632
    %6922 = vmatpush2.bf16.msra.mxu0 %v4631
    %6923 = vmatprep.subr.bf16.mxu0 %v4624
    %6924 = vmatpush2.bf16.msra.mxu0 %v4623
    %6925 = vmatprep.subr.bf16.mxu0 %v4616
    %6926 = vmatpush2.bf16.msra.mxu0 %v4615
    %6927 = vmatprep.subr.bf16.mxu0 %v4608
    %6928 = vmatpush2.bf16.msra.mxu0 %v4607
    %6929 = vmatprep.subr.bf16.mxu0 %v4600
    %6930 = vmatpush2.bf16.msra.mxu0 %v4599
    %6931 = vmatprep.subr.bf16.mxu0 %v4592
    %6932 = vmatpush2.bf16.msra.mxu0 %v4591
    %6933 = vmatprep.mubr.bf16.mxu0 %v372
    %6934 = vmatmul.mubr.bf16.gmra.mxu0 %v371
    %v6935 = vpop.f32.mrf.mxu0
    %v6936 = vadd.f32 %v1424, %v6935
    %v6937 = vpop.f32.mrf.mxu0
    %v6938 = vadd.f32 %v1428, %v6937
    %v6939 = vpop.f32.mrf.mxu0
    %v6940 = vpop.f32.mrf.mxu0
    %6941 = vdwg.mxu0
    %6942 = vmatprep.subr.bf16.mxu0 %v4712
    %6943 = vmatpush1.bf16.msra.mxu0 %v4711
    %6944 = vmatprep.subr.bf16.mxu0 %v4704
    %6945 = vmatpush1.bf16.msra.mxu0 %v4703
    %6946 = vmatprep.subr.bf16.mxu0 %v4696
    %6947 = vmatpush1.bf16.msra.mxu0 %v4695
    %6948 = vmatprep.subr.bf16.mxu0 %v4688
    %6949 = vmatpush1.bf16.msra.mxu0 %v4687
    %6950 = vmatprep.subr.bf16.mxu0 %v4680
    %6951 = vmatpush1.bf16.msra.mxu0 %v4679
    %6952 = vmatprep.subr.bf16.mxu0 %v4672
    %6953 = vmatpush1.bf16.msra.mxu0 %v4671
    %6954 = vmatprep.subr.bf16.mxu0 %v4664
    %6955 = vmatpush1.bf16.msra.mxu0 %v4663
    %6956 = vmatprep.subr.bf16.mxu0 %v4656
    %6957 = vmatpush1.bf16.msra.mxu0 %v4655
    %6958 = vmatprep.subr.bf16.mxu0 %v4776
    %6959 = vmatpush2.bf16.msra.mxu0 %v4775
    %6960 = vmatprep.subr.bf16.mxu0 %v4768
    %6961 = vmatpush2.bf16.msra.mxu0 %v4767
    %6962 = vmatprep.subr.bf16.mxu0 %v4760
    %6963 = vmatpush2.bf16.msra.mxu0 %v4759
    %6964 = vmatprep.subr.bf16.mxu0 %v4752
    %6965 = vmatpush2.bf16.msra.mxu0 %v4751
    %6966 = vmatprep.subr.bf16.mxu0 %v4744
    %6967 = vmatpush2.bf16.msra.mxu0 %v4743
    %6968 = vmatprep.subr.bf16.mxu0 %v4736
    %6969 = vmatpush2.bf16.msra.mxu0 %v4735
    %6970 = vmatprep.subr.bf16.mxu0 %v4728
    %6971 = vmatpush2.bf16.msra.mxu0 %v4727
    %6972 = vmatprep.subr.bf16.mxu0 %v4720
    %6973 = vmatpush2.bf16.msra.mxu0 %v4719
    %6974 = vmatprep.mubr.bf16.mxu0 %v374
    %6975 = vmatmul.mubr.bf16.gmra.mxu0 %v373
    %v6976 = vpop.f32.mrf.mxu0
    %v6977 = vadd.f32 %v6936, %v6976
    %v6978 = vpop.f32.mrf.mxu0
    %v6979 = vadd.f32 %v6938, %v6978
    %v6980 = vpop.f32.mrf.mxu0
    %v6981 = vpop.f32.mrf.mxu0
    %6982 = vdwg.mxu0
    %6983 = vmatprep.subr.bf16.mxu0 %v4840
    %6984 = vmatpush1.bf16.msra.mxu0 %v4839
    %6985 = vmatprep.subr.bf16.mxu0 %v4832
    %6986 = vmatpush1.bf16.msra.mxu0 %v4831
    %6987 = vmatprep.subr.bf16.mxu0 %v4824
    %6988 = vmatpush1.bf16.msra.mxu0 %v4823
    %6989 = vmatprep.subr.bf16.mxu0 %v4816
    %6990 = vmatpush1.bf16.msra.mxu0 %v4815
    %6991 = vmatprep.subr.bf16.mxu0 %v4808
    %6992 = vmatpush1.bf16.msra.mxu0 %v4807
    %6993 = vmatprep.subr.bf16.mxu0 %v4800
    %6994 = vmatpush1.bf16.msra.mxu0 %v4799
    %6995 = vmatprep.subr.bf16.mxu0 %v4792
    %6996 = vmatpush1.bf16.msra.mxu0 %v4791
    %6997 = vmatprep.subr.bf16.mxu0 %v4784
    %6998 = vmatpush1.bf16.msra.mxu0 %v4783
    %6999 = vmatprep.subr.bf16.mxu0 %v4904
    %7000 = vmatpush2.bf16.msra.mxu0 %v4903
    %7001 = vmatprep.subr.bf16.mxu0 %v4896
    %7002 = vmatpush2.bf16.msra.mxu0 %v4895
    %7003 = vmatprep.subr.bf16.mxu0 %v4888
    %7004 = vmatpush2.bf16.msra.mxu0 %v4887
    %7005 = vmatprep.subr.bf16.mxu0 %v4880
    %7006 = vmatpush2.bf16.msra.mxu0 %v4879
    %7007 = vmatprep.subr.bf16.mxu0 %v4872
    %7008 = vmatpush2.bf16.msra.mxu0 %v4871
    %7009 = vmatprep.subr.bf16.mxu0 %v4864
    %7010 = vmatpush2.bf16.msra.mxu0 %v4863
    %7011 = vmatprep.subr.bf16.mxu0 %v4856
    %7012 = vmatpush2.bf16.msra.mxu0 %v4855
    %7013 = vmatprep.subr.bf16.mxu0 %v4848
    %7014 = vmatpush2.bf16.msra.mxu0 %v4847
    %7015 = vmatprep.mubr.bf16.mxu0 %v376
    %7016 = vmatmul.mubr.bf16.gmra.mxu0 %v375
    %v7017 = vpop.f32.mrf.mxu0
    %v7018 = vadd.f32 %v6977, %v7017
    %v7019 = vpop.f32.mrf.mxu0
    %v7020 = vadd.f32 %v6979, %v7019
    %v7021 = vpop.f32.mrf.mxu0
    %v7022 = vpop.f32.mrf.mxu0
    %7023 = vdwg.mxu0
    %7024 = vmatprep.subr.bf16.mxu0 %v4968
    %7025 = vmatpush1.bf16.msra.mxu0 %v4967
    %7026 = vmatprep.subr.bf16.mxu0 %v4960
    %7027 = vmatpush1.bf16.msra.mxu0 %v4959
    %7028 = vmatprep.subr.bf16.mxu0 %v4952
    %7029 = vmatpush1.bf16.msra.mxu0 %v4951
    %7030 = vmatprep.subr.bf16.mxu0 %v4944
    %7031 = vmatpush1.bf16.msra.mxu0 %v4943
    %7032 = vmatprep.subr.bf16.mxu0 %v4936
    %7033 = vmatpush1.bf16.msra.mxu0 %v4935
    %7034 = vmatprep.subr.bf16.mxu0 %v4928
    %7035 = vmatpush1.bf16.msra.mxu0 %v4927
    %7036 = vmatprep.subr.bf16.mxu0 %v4920
    %7037 = vmatpush1.bf16.msra.mxu0 %v4919
    %7038 = vmatprep.subr.bf16.mxu0 %v4912
    %7039 = vmatpush1.bf16.msra.mxu0 %v4911
    %7040 = vmatprep.subr.bf16.mxu0 %v5032
    %7041 = vmatpush2.bf16.msra.mxu0 %v5031
    %7042 = vmatprep.subr.bf16.mxu0 %v5024
    %7043 = vmatpush2.bf16.msra.mxu0 %v5023
    %7044 = vmatprep.subr.bf16.mxu0 %v5016
    %7045 = vmatpush2.bf16.msra.mxu0 %v5015
    %7046 = vmatprep.subr.bf16.mxu0 %v5008
    %7047 = vmatpush2.bf16.msra.mxu0 %v5007
    %7048 = vmatprep.subr.bf16.mxu0 %v5000
    %7049 = vmatpush2.bf16.msra.mxu0 %v4999
    %7050 = vmatprep.subr.bf16.mxu0 %v4992
    %7051 = vmatpush2.bf16.msra.mxu0 %v4991
    %7052 = vmatprep.subr.bf16.mxu0 %v4984
    %7053 = vmatpush2.bf16.msra.mxu0 %v4983
    %7054 = vmatprep.subr.bf16.mxu0 %v4976
    %7055 = vmatpush2.bf16.msra.mxu0 %v4975
    %7056 = vmatprep.mubr.bf16.mxu0 %v378
    %7057 = vmatmul.mubr.bf16.gmra.mxu0 %v377
    %v7058 = vpop.f32.mrf.mxu0
    %v7059 = vadd.f32 %v7018, %v7058
    %v7060 = vpop.f32.mrf.mxu0
    %v7061 = vadd.f32 %v7020, %v7060
    %v7062 = vpop.f32.mrf.mxu0
    %v7063 = vpop.f32.mrf.mxu0
    %7064 = vdwg.mxu0
    %7065 = vmatprep.subr.bf16.mxu0 %v5096
    %7066 = vmatpush1.bf16.msra.mxu0 %v5095
    %7067 = vmatprep.subr.bf16.mxu0 %v5088
    %7068 = vmatpush1.bf16.msra.mxu0 %v5087
    %7069 = vmatprep.subr.bf16.mxu0 %v5080
    %7070 = vmatpush1.bf16.msra.mxu0 %v5079
    %7071 = vmatprep.subr.bf16.mxu0 %v5072
    %7072 = vmatpush1.bf16.msra.mxu0 %v5071
    %7073 = vmatprep.subr.bf16.mxu0 %v5064
    %7074 = vmatpush1.bf16.msra.mxu0 %v5063
    %7075 = vmatprep.subr.bf16.mxu0 %v5056
    %7076 = vmatpush1.bf16.msra.mxu0 %v5055
    %7077 = vmatprep.subr.bf16.mxu0 %v5048
    %7078 = vmatpush1.bf16.msra.mxu0 %v5047
    %7079 = vmatprep.subr.bf16.mxu0 %v5040
    %7080 = vmatpush1.bf16.msra.mxu0 %v5039
    %7081 = vmatprep.subr.bf16.mxu0 %v5160
    %7082 = vmatpush2.bf16.msra.mxu0 %v5159
    %7083 = vmatprep.subr.bf16.mxu0 %v5152
    %7084 = vmatpush2.bf16.msra.mxu0 %v5151
    %7085 = vmatprep.subr.bf16.mxu0 %v5144
    %7086 = vmatpush2.bf16.msra.mxu0 %v5143
    %7087 = vmatprep.subr.bf16.mxu0 %v5136
    %7088 = vmatpush2.bf16.msra.mxu0 %v5135
    %7089 = vmatprep.subr.bf16.mxu0 %v5128
    %7090 = vmatpush2.bf16.msra.mxu0 %v5127
    %7091 = vmatprep.subr.bf16.mxu0 %v5120
    %7092 = vmatpush2.bf16.msra.mxu0 %v5119
    %7093 = vmatprep.subr.bf16.mxu0 %v5112
    %7094 = vmatpush2.bf16.msra.mxu0 %v5111
    %7095 = vmatprep.subr.bf16.mxu0 %v5104
    %7096 = vmatpush2.bf16.msra.mxu0 %v5103
    %7097 = vmatprep.mubr.bf16.mxu0 %v380
    %7098 = vmatmul.mubr.bf16.gmra.mxu0 %v379
    %v7099 = vpop.f32.mrf.mxu0
    %v7100 = vadd.f32 %v7059, %v7099
    %v7101 = vpop.f32.mrf.mxu0
    %v7102 = vadd.f32 %v7061, %v7101
    %v7103 = vpop.f32.mrf.mxu0
    %v7104 = vpop.f32.mrf.mxu0
    %7105 = vdwg.mxu0
    %7106 = vmatprep.subr.bf16.mxu0 %v5224
    %7107 = vmatpush1.bf16.msra.mxu0 %v5223
    %7108 = vmatprep.subr.bf16.mxu0 %v5216
    %7109 = vmatpush1.bf16.msra.mxu0 %v5215
    %7110 = vmatprep.subr.bf16.mxu0 %v5208
    %7111 = vmatpush1.bf16.msra.mxu0 %v5207
    %7112 = vmatprep.subr.bf16.mxu0 %v5200
    %7113 = vmatpush1.bf16.msra.mxu0 %v5199
    %7114 = vmatprep.subr.bf16.mxu0 %v5192
    %7115 = vmatpush1.bf16.msra.mxu0 %v5191
    %7116 = vmatprep.subr.bf16.mxu0 %v5184
    %7117 = vmatpush1.bf16.msra.mxu0 %v5183
    %7118 = vmatprep.subr.bf16.mxu0 %v5176
    %7119 = vmatpush1.bf16.msra.mxu0 %v5175
    %7120 = vmatprep.subr.bf16.mxu0 %v5168
    %7121 = vmatpush1.bf16.msra.mxu0 %v5167
    %7122 = vmatprep.subr.bf16.mxu0 %v5288
    %7123 = vmatpush2.bf16.msra.mxu0 %v5287
    %7124 = vmatprep.subr.bf16.mxu0 %v5280
    %7125 = vmatpush2.bf16.msra.mxu0 %v5279
    %7126 = vmatprep.subr.bf16.mxu0 %v5272
    %7127 = vmatpush2.bf16.msra.mxu0 %v5271
    %7128 = vmatprep.subr.bf16.mxu0 %v5264
    %7129 = vmatpush2.bf16.msra.mxu0 %v5263
    %7130 = vmatprep.subr.bf16.mxu0 %v5256
    %7131 = vmatpush2.bf16.msra.mxu0 %v5255
    %7132 = vmatprep.subr.bf16.mxu0 %v5248
    %7133 = vmatpush2.bf16.msra.mxu0 %v5247
    %7134 = vmatprep.subr.bf16.mxu0 %v5240
    %7135 = vmatpush2.bf16.msra.mxu0 %v5239
    %7136 = vmatprep.subr.bf16.mxu0 %v5232
    %7137 = vmatpush2.bf16.msra.mxu0 %v5231
    %7138 = vmatprep.mubr.bf16.mxu0 %v382
    %7139 = vmatmul.mubr.bf16.gmra.mxu0 %v381
    %v7140 = vpop.f32.mrf.mxu0
    %v7141 = vadd.f32 %v7100, %v7140
    %v7142 = vpop.f32.mrf.mxu0
    %v7143 = vadd.f32 %v7102, %v7142
    %v7144 = vpop.f32.mrf.mxu0
    %v7145 = vpop.f32.mrf.mxu0
    %7146 = vdwg.mxu0
    %7147 = vmatprep.subr.bf16.mxu0 %v5352
    %7148 = vmatpush1.bf16.msra.mxu0 %v5351
    %7149 = vmatprep.subr.bf16.mxu0 %v5344
    %7150 = vmatpush1.bf16.msra.mxu0 %v5343
    %7151 = vmatprep.subr.bf16.mxu0 %v5336
    %7152 = vmatpush1.bf16.msra.mxu0 %v5335
    %7153 = vmatprep.subr.bf16.mxu0 %v5328
    %7154 = vmatpush1.bf16.msra.mxu0 %v5327
    %7155 = vmatprep.subr.bf16.mxu0 %v5320
    %7156 = vmatpush1.bf16.msra.mxu0 %v5319
    %7157 = vmatprep.subr.bf16.mxu0 %v5312
    %7158 = vmatpush1.bf16.msra.mxu0 %v5311
    %7159 = vmatprep.subr.bf16.mxu0 %v5304
    %7160 = vmatpush1.bf16.msra.mxu0 %v5303
    %7161 = vmatprep.subr.bf16.mxu0 %v5296
    %7162 = vmatpush1.bf16.msra.mxu0 %v5295
    %7163 = vmatprep.subr.bf16.mxu0 %v5416
    %7164 = vmatpush2.bf16.msra.mxu0 %v5415
    %7165 = vmatprep.subr.bf16.mxu0 %v5408
    %7166 = vmatpush2.bf16.msra.mxu0 %v5407
    %7167 = vmatprep.subr.bf16.mxu0 %v5400
    %7168 = vmatpush2.bf16.msra.mxu0 %v5399
    %7169 = vmatprep.subr.bf16.mxu0 %v5392
    %7170 = vmatpush2.bf16.msra.mxu0 %v5391
    %7171 = vmatprep.subr.bf16.mxu0 %v5384
    %7172 = vmatpush2.bf16.msra.mxu0 %v5383
    %7173 = vmatprep.subr.bf16.mxu0 %v5376
    %7174 = vmatpush2.bf16.msra.mxu0 %v5375
    %7175 = vmatprep.subr.bf16.mxu0 %v5368
    %7176 = vmatpush2.bf16.msra.mxu0 %v5367
    %7177 = vmatprep.subr.bf16.mxu0 %v5360
    %7178 = vmatpush2.bf16.msra.mxu0 %v5359
    %7179 = vmatprep.mubr.bf16.mxu0 %v384
    %7180 = vmatmul.mubr.bf16.gmra.mxu0 %v383
    %v7181 = vpop.f32.mrf.mxu0
    %v7182 = vadd.f32 %v7141, %v7181
    %v7183 = vpop.f32.mrf.mxu0
    %v7184 = vadd.f32 %v7143, %v7183
    %v7185 = vpop.f32.mrf.mxu0
    %v7186 = vpop.f32.mrf.mxu0
    %7187 = vdwg.mxu0
    %7188 = vmatprep.subr.bf16.mxu0 %v5480
    %7189 = vmatpush1.bf16.msra.mxu0 %v5479
    %7190 = vmatprep.subr.bf16.mxu0 %v5472
    %7191 = vmatpush1.bf16.msra.mxu0 %v5471
    %7192 = vmatprep.subr.bf16.mxu0 %v5464
    %7193 = vmatpush1.bf16.msra.mxu0 %v5463
    %7194 = vmatprep.subr.bf16.mxu0 %v5456
    %7195 = vmatpush1.bf16.msra.mxu0 %v5455
    %7196 = vmatprep.subr.bf16.mxu0 %v5448
    %7197 = vmatpush1.bf16.msra.mxu0 %v5447
    %7198 = vmatprep.subr.bf16.mxu0 %v5440
    %7199 = vmatpush1.bf16.msra.mxu0 %v5439
    %7200 = vmatprep.subr.bf16.mxu0 %v5432
    %7201 = vmatpush1.bf16.msra.mxu0 %v5431
    %7202 = vmatprep.subr.bf16.mxu0 %v5424
    %7203 = vmatpush1.bf16.msra.mxu0 %v5423
    %7204 = vmatprep.subr.bf16.mxu0 %v5544
    %7205 = vmatpush2.bf16.msra.mxu0 %v5543
    %7206 = vmatprep.subr.bf16.mxu0 %v5536
    %7207 = vmatpush2.bf16.msra.mxu0 %v5535
    %7208 = vmatprep.subr.bf16.mxu0 %v5528
    %7209 = vmatpush2.bf16.msra.mxu0 %v5527
    %7210 = vmatprep.subr.bf16.mxu0 %v5520
    %7211 = vmatpush2.bf16.msra.mxu0 %v5519
    %7212 = vmatprep.subr.bf16.mxu0 %v5512
    %7213 = vmatpush2.bf16.msra.mxu0 %v5511
    %7214 = vmatprep.subr.bf16.mxu0 %v5504
    %7215 = vmatpush2.bf16.msra.mxu0 %v5503
    %7216 = vmatprep.subr.bf16.mxu0 %v5496
    %7217 = vmatpush2.bf16.msra.mxu0 %v5495
    %7218 = vmatprep.subr.bf16.mxu0 %v5488
    %7219 = vmatpush2.bf16.msra.mxu0 %v5487
    %7220 = vmatprep.mubr.bf16.mxu0 %v386
    %7221 = vmatmul.mubr.bf16.gmra.mxu0 %v385
    %v7222 = vpop.f32.mrf.mxu0
    %v7223 = vadd.f32 %v7182, %v7222
    %v7224 = vpop.f32.mrf.mxu0
    %v7225 = vadd.f32 %v7184, %v7224
    %v7226 = vpop.f32.mrf.mxu0
    %v7227 = vpop.f32.mrf.mxu0
    %7228 = vdwg.mxu0
    %7229 = vmatprep.subr.bf16.mxu0 %v4586
    %7230 = vmatpush1.bf16.msra.mxu0 %v4585
    %7231 = vmatprep.subr.bf16.mxu0 %v4578
    %7232 = vmatpush1.bf16.msra.mxu0 %v4577
    %7233 = vmatprep.subr.bf16.mxu0 %v4570
    %7234 = vmatpush1.bf16.msra.mxu0 %v4569
    %7235 = vmatprep.subr.bf16.mxu0 %v4562
    %7236 = vmatpush1.bf16.msra.mxu0 %v4561
    %7237 = vmatprep.subr.bf16.mxu0 %v4554
    %7238 = vmatpush1.bf16.msra.mxu0 %v4553
    %7239 = vmatprep.subr.bf16.mxu0 %v4546
    %7240 = vmatpush1.bf16.msra.mxu0 %v4545
    %7241 = vmatprep.subr.bf16.mxu0 %v4538
    %7242 = vmatpush1.bf16.msra.mxu0 %v4537
    %7243 = vmatprep.subr.bf16.mxu0 %v4530
    %7244 = vmatpush1.bf16.msra.mxu0 %v4529
    %7245 = vmatprep.subr.bf16.mxu0 %v4650
    %7246 = vmatpush2.bf16.msra.mxu0 %v4649
    %7247 = vmatprep.subr.bf16.mxu0 %v4642
    %7248 = vmatpush2.bf16.msra.mxu0 %v4641
    %7249 = vmatprep.subr.bf16.mxu0 %v4634
    %7250 = vmatpush2.bf16.msra.mxu0 %v4633
    %7251 = vmatprep.subr.bf16.mxu0 %v4626
    %7252 = vmatpush2.bf16.msra.mxu0 %v4625
    %7253 = vmatprep.subr.bf16.mxu0 %v4618
    %7254 = vmatpush2.bf16.msra.mxu0 %v4617
    %7255 = vmatprep.subr.bf16.mxu0 %v4610
    %7256 = vmatpush2.bf16.msra.mxu0 %v4609
    %7257 = vmatprep.subr.bf16.mxu0 %v4602
    %7258 = vmatpush2.bf16.msra.mxu0 %v4601
    %7259 = vmatprep.subr.bf16.mxu0 %v4594
    %7260 = vmatpush2.bf16.msra.mxu0 %v4593
    %7261 = vmatprep.mubr.bf16.mxu0 %v372
    %7262 = vmatmul.mubr.bf16.gmra.mxu0 %v371
    %v7263 = vpop.f32.mrf.mxu0
    %v7264 = vadd.f32 %v1432, %v7263
    %v7265 = vpop.f32.mrf.mxu0
    %v7266 = vadd.f32 %v1436, %v7265
    %v7267 = vpop.f32.mrf.mxu0
    %v7268 = vpop.f32.mrf.mxu0
    %7269 = vdwg.mxu0
    %7270 = vmatprep.subr.bf16.mxu0 %v4714
    %7271 = vmatpush1.bf16.msra.mxu0 %v4713
    %7272 = vmatprep.subr.bf16.mxu0 %v4706
    %7273 = vmatpush1.bf16.msra.mxu0 %v4705
    %7274 = vmatprep.subr.bf16.mxu0 %v4698
    %7275 = vmatpush1.bf16.msra.mxu0 %v4697
    %7276 = vmatprep.subr.bf16.mxu0 %v4690
    %7277 = vmatpush1.bf16.msra.mxu0 %v4689
    %7278 = vmatprep.subr.bf16.mxu0 %v4682
    %7279 = vmatpush1.bf16.msra.mxu0 %v4681
    %7280 = vmatprep.subr.bf16.mxu0 %v4674
    %7281 = vmatpush1.bf16.msra.mxu0 %v4673
    %7282 = vmatprep.subr.bf16.mxu0 %v4666
    %7283 = vmatpush1.bf16.msra.mxu0 %v4665
    %7284 = vmatprep.subr.bf16.mxu0 %v4658
    %7285 = vmatpush1.bf16.msra.mxu0 %v4657
    %7286 = vmatprep.subr.bf16.mxu0 %v4778
    %7287 = vmatpush2.bf16.msra.mxu0 %v4777
    %7288 = vmatprep.subr.bf16.mxu0 %v4770
    %7289 = vmatpush2.bf16.msra.mxu0 %v4769
    %7290 = vmatprep.subr.bf16.mxu0 %v4762
    %7291 = vmatpush2.bf16.msra.mxu0 %v4761
    %7292 = vmatprep.subr.bf16.mxu0 %v4754
    %7293 = vmatpush2.bf16.msra.mxu0 %v4753
    %7294 = vmatprep.subr.bf16.mxu0 %v4746
    %7295 = vmatpush2.bf16.msra.mxu0 %v4745
    %7296 = vmatprep.subr.bf16.mxu0 %v4738
    %7297 = vmatpush2.bf16.msra.mxu0 %v4737
    %7298 = vmatprep.subr.bf16.mxu0 %v4730
    %7299 = vmatpush2.bf16.msra.mxu0 %v4729
    %7300 = vmatprep.subr.bf16.mxu0 %v4722
    %7301 = vmatpush2.bf16.msra.mxu0 %v4721
    %7302 = vmatprep.mubr.bf16.mxu0 %v374
    %7303 = vmatmul.mubr.bf16.gmra.mxu0 %v373
    %v7304 = vpop.f32.mrf.mxu0
    %v7305 = vadd.f32 %v7264, %v7304
    %v7306 = vpop.f32.mrf.mxu0
    %v7307 = vadd.f32 %v7266, %v7306
    %v7308 = vpop.f32.mrf.mxu0
    %v7309 = vpop.f32.mrf.mxu0
    %7310 = vdwg.mxu0
    %7311 = vmatprep.subr.bf16.mxu0 %v4842
    %7312 = vmatpush1.bf16.msra.mxu0 %v4841
    %7313 = vmatprep.subr.bf16.mxu0 %v4834
    %7314 = vmatpush1.bf16.msra.mxu0 %v4833
    %7315 = vmatprep.subr.bf16.mxu0 %v4826
    %7316 = vmatpush1.bf16.msra.mxu0 %v4825
    %7317 = vmatprep.subr.bf16.mxu0 %v4818
    %7318 = vmatpush1.bf16.msra.mxu0 %v4817
    %7319 = vmatprep.subr.bf16.mxu0 %v4810
    %7320 = vmatpush1.bf16.msra.mxu0 %v4809
    %7321 = vmatprep.subr.bf16.mxu0 %v4802
    %7322 = vmatpush1.bf16.msra.mxu0 %v4801
    %7323 = vmatprep.subr.bf16.mxu0 %v4794
    %7324 = vmatpush1.bf16.msra.mxu0 %v4793
    %7325 = vmatprep.subr.bf16.mxu0 %v4786
    %7326 = vmatpush1.bf16.msra.mxu0 %v4785
    %7327 = vmatprep.subr.bf16.mxu0 %v4906
    %7328 = vmatpush2.bf16.msra.mxu0 %v4905
    %7329 = vmatprep.subr.bf16.mxu0 %v4898
    %7330 = vmatpush2.bf16.msra.mxu0 %v4897
    %7331 = vmatprep.subr.bf16.mxu0 %v4890
    %7332 = vmatpush2.bf16.msra.mxu0 %v4889
    %7333 = vmatprep.subr.bf16.mxu0 %v4882
    %7334 = vmatpush2.bf16.msra.mxu0 %v4881
    %7335 = vmatprep.subr.bf16.mxu0 %v4874
    %7336 = vmatpush2.bf16.msra.mxu0 %v4873
    %7337 = vmatprep.subr.bf16.mxu0 %v4866
    %7338 = vmatpush2.bf16.msra.mxu0 %v4865
    %7339 = vmatprep.subr.bf16.mxu0 %v4858
    %7340 = vmatpush2.bf16.msra.mxu0 %v4857
    %7341 = vmatprep.subr.bf16.mxu0 %v4850
    %7342 = vmatpush2.bf16.msra.mxu0 %v4849
    %7343 = vmatprep.mubr.bf16.mxu0 %v376
    %7344 = vmatmul.mubr.bf16.gmra.mxu0 %v375
    %v7345 = vpop.f32.mrf.mxu0
    %v7346 = vadd.f32 %v7305, %v7345
    %v7347 = vpop.f32.mrf.mxu0
    %v7348 = vadd.f32 %v7307, %v7347
    %v7349 = vpop.f32.mrf.mxu0
    %v7350 = vpop.f32.mrf.mxu0
    %7351 = vdwg.mxu0
    %7352 = vmatprep.subr.bf16.mxu0 %v4970
    %7353 = vmatpush1.bf16.msra.mxu0 %v4969
    %7354 = vmatprep.subr.bf16.mxu0 %v4962
    %7355 = vmatpush1.bf16.msra.mxu0 %v4961
    %7356 = vmatprep.subr.bf16.mxu0 %v4954
    %7357 = vmatpush1.bf16.msra.mxu0 %v4953
    %7358 = vmatprep.subr.bf16.mxu0 %v4946
    %7359 = vmatpush1.bf16.msra.mxu0 %v4945
    %7360 = vmatprep.subr.bf16.mxu0 %v4938
    %7361 = vmatpush1.bf16.msra.mxu0 %v4937
    %7362 = vmatprep.subr.bf16.mxu0 %v4930
    %7363 = vmatpush1.bf16.msra.mxu0 %v4929
    %7364 = vmatprep.subr.bf16.mxu0 %v4922
    %7365 = vmatpush1.bf16.msra.mxu0 %v4921
    %7366 = vmatprep.subr.bf16.mxu0 %v4914
    %7367 = vmatpush1.bf16.msra.mxu0 %v4913
    %7368 = vmatprep.subr.bf16.mxu0 %v5034
    %7369 = vmatpush2.bf16.msra.mxu0 %v5033
    %7370 = vmatprep.subr.bf16.mxu0 %v5026
    %7371 = vmatpush2.bf16.msra.mxu0 %v5025
    %7372 = vmatprep.subr.bf16.mxu0 %v5018
    %7373 = vmatpush2.bf16.msra.mxu0 %v5017
    %7374 = vmatprep.subr.bf16.mxu0 %v5010
    %7375 = vmatpush2.bf16.msra.mxu0 %v5009
    %7376 = vmatprep.subr.bf16.mxu0 %v5002
    %7377 = vmatpush2.bf16.msra.mxu0 %v5001
    %7378 = vmatprep.subr.bf16.mxu0 %v4994
    %7379 = vmatpush2.bf16.msra.mxu0 %v4993
    %7380 = vmatprep.subr.bf16.mxu0 %v4986
    %7381 = vmatpush2.bf16.msra.mxu0 %v4985
    %7382 = vmatprep.subr.bf16.mxu0 %v4978
    %7383 = vmatpush2.bf16.msra.mxu0 %v4977
    %7384 = vmatprep.mubr.bf16.mxu0 %v378
    %7385 = vmatmul.mubr.bf16.gmra.mxu0 %v377
    %v7386 = vpop.f32.mrf.mxu0
    %v7387 = vadd.f32 %v7346, %v7386
    %v7388 = vpop.f32.mrf.mxu0
    %v7389 = vadd.f32 %v7348, %v7388
    %v7390 = vpop.f32.mrf.mxu0
    %v7391 = vpop.f32.mrf.mxu0
    %7392 = vdwg.mxu0
    %7393 = vmatprep.subr.bf16.mxu0 %v5098
    %7394 = vmatpush1.bf16.msra.mxu0 %v5097
    %7395 = vmatprep.subr.bf16.mxu0 %v5090
    %7396 = vmatpush1.bf16.msra.mxu0 %v5089
    %7397 = vmatprep.subr.bf16.mxu0 %v5082
    %7398 = vmatpush1.bf16.msra.mxu0 %v5081
    %7399 = vmatprep.subr.bf16.mxu0 %v5074
    %7400 = vmatpush1.bf16.msra.mxu0 %v5073
    %7401 = vmatprep.subr.bf16.mxu0 %v5066
    %7402 = vmatpush1.bf16.msra.mxu0 %v5065
    %7403 = vmatprep.subr.bf16.mxu0 %v5058
    %7404 = vmatpush1.bf16.msra.mxu0 %v5057
    %7405 = vmatprep.subr.bf16.mxu0 %v5050
    %7406 = vmatpush1.bf16.msra.mxu0 %v5049
    %7407 = vmatprep.subr.bf16.mxu0 %v5042
    %7408 = vmatpush1.bf16.msra.mxu0 %v5041
    %7409 = vmatprep.subr.bf16.mxu0 %v5162
    %7410 = vmatpush2.bf16.msra.mxu0 %v5161
    %7411 = vmatprep.subr.bf16.mxu0 %v5154
    %7412 = vmatpush2.bf16.msra.mxu0 %v5153
    %7413 = vmatprep.subr.bf16.mxu0 %v5146
    %7414 = vmatpush2.bf16.msra.mxu0 %v5145
    %7415 = vmatprep.subr.bf16.mxu0 %v5138
    %7416 = vmatpush2.bf16.msra.mxu0 %v5137
    %7417 = vmatprep.subr.bf16.mxu0 %v5130
    %7418 = vmatpush2.bf16.msra.mxu0 %v5129
    %7419 = vmatprep.subr.bf16.mxu0 %v5122
    %7420 = vmatpush2.bf16.msra.mxu0 %v5121
    %7421 = vmatprep.subr.bf16.mxu0 %v5114
    %7422 = vmatpush2.bf16.msra.mxu0 %v5113
    %7423 = vmatprep.subr.bf16.mxu0 %v5106
    %7424 = vmatpush2.bf16.msra.mxu0 %v5105
    %7425 = vmatprep.mubr.bf16.mxu0 %v380
    %7426 = vmatmul.mubr.bf16.gmra.mxu0 %v379
    %v7427 = vpop.f32.mrf.mxu0
    %v7428 = vadd.f32 %v7387, %v7427
    %v7429 = vpop.f32.mrf.mxu0
    %v7430 = vadd.f32 %v7389, %v7429
    %v7431 = vpop.f32.mrf.mxu0
    %v7432 = vpop.f32.mrf.mxu0
    %7433 = vdwg.mxu0
    %7434 = vmatprep.subr.bf16.mxu0 %v5226
    %7435 = vmatpush1.bf16.msra.mxu0 %v5225
    %7436 = vmatprep.subr.bf16.mxu0 %v5218
    %7437 = vmatpush1.bf16.msra.mxu0 %v5217
    %7438 = vmatprep.subr.bf16.mxu0 %v5210
    %7439 = vmatpush1.bf16.msra.mxu0 %v5209
    %7440 = vmatprep.subr.bf16.mxu0 %v5202
    %7441 = vmatpush1.bf16.msra.mxu0 %v5201
    %7442 = vmatprep.subr.bf16.mxu0 %v5194
    %7443 = vmatpush1.bf16.msra.mxu0 %v5193
    %7444 = vmatprep.subr.bf16.mxu0 %v5186
    %7445 = vmatpush1.bf16.msra.mxu0 %v5185
    %7446 = vmatprep.subr.bf16.mxu0 %v5178
    %7447 = vmatpush1.bf16.msra.mxu0 %v5177
    %7448 = vmatprep.subr.bf16.mxu0 %v5170
    %7449 = vmatpush1.bf16.msra.mxu0 %v5169
    %7450 = vmatprep.subr.bf16.mxu0 %v5290
    %7451 = vmatpush2.bf16.msra.mxu0 %v5289
    %7452 = vmatprep.subr.bf16.mxu0 %v5282
    %7453 = vmatpush2.bf16.msra.mxu0 %v5281
    %7454 = vmatprep.subr.bf16.mxu0 %v5274
    %7455 = vmatpush2.bf16.msra.mxu0 %v5273
    %7456 = vmatprep.subr.bf16.mxu0 %v5266
    %7457 = vmatpush2.bf16.msra.mxu0 %v5265
    %7458 = vmatprep.subr.bf16.mxu0 %v5258
    %7459 = vmatpush2.bf16.msra.mxu0 %v5257
    %7460 = vmatprep.subr.bf16.mxu0 %v5250
    %7461 = vmatpush2.bf16.msra.mxu0 %v5249
    %7462 = vmatprep.subr.bf16.mxu0 %v5242
    %7463 = vmatpush2.bf16.msra.mxu0 %v5241
    %7464 = vmatprep.subr.bf16.mxu0 %v5234
    %7465 = vmatpush2.bf16.msra.mxu0 %v5233
    %7466 = vmatprep.mubr.bf16.mxu0 %v382
    %7467 = vmatmul.mubr.bf16.gmra.mxu0 %v381
    %v7468 = vpop.f32.mrf.mxu0
    %v7469 = vadd.f32 %v7428, %v7468
    %v7470 = vpop.f32.mrf.mxu0
    %v7471 = vadd.f32 %v7430, %v7470
    %v7472 = vpop.f32.mrf.mxu0
    %v7473 = vpop.f32.mrf.mxu0
    %7474 = vdwg.mxu0
    %7475 = vmatprep.subr.bf16.mxu0 %v5354
    %7476 = vmatpush1.bf16.msra.mxu0 %v5353
    %7477 = vmatprep.subr.bf16.mxu0 %v5346
    %7478 = vmatpush1.bf16.msra.mxu0 %v5345
    %7479 = vmatprep.subr.bf16.mxu0 %v5338
    %7480 = vmatpush1.bf16.msra.mxu0 %v5337
    %7481 = vmatprep.subr.bf16.mxu0 %v5330
    %7482 = vmatpush1.bf16.msra.mxu0 %v5329
    %7483 = vmatprep.subr.bf16.mxu0 %v5322
    %7484 = vmatpush1.bf16.msra.mxu0 %v5321
    %7485 = vmatprep.subr.bf16.mxu0 %v5314
    %7486 = vmatpush1.bf16.msra.mxu0 %v5313
    %7487 = vmatprep.subr.bf16.mxu0 %v5306
    %7488 = vmatpush1.bf16.msra.mxu0 %v5305
    %7489 = vmatprep.subr.bf16.mxu0 %v5298
    %7490 = vmatpush1.bf16.msra.mxu0 %v5297
    %7491 = vmatprep.subr.bf16.mxu0 %v5418
    %7492 = vmatpush2.bf16.msra.mxu0 %v5417
    %7493 = vmatprep.subr.bf16.mxu0 %v5410
    %7494 = vmatpush2.bf16.msra.mxu0 %v5409
    %7495 = vmatprep.subr.bf16.mxu0 %v5402
    %7496 = vmatpush2.bf16.msra.mxu0 %v5401
    %7497 = vmatprep.subr.bf16.mxu0 %v5394
    %7498 = vmatpush2.bf16.msra.mxu0 %v5393
    %7499 = vmatprep.subr.bf16.mxu0 %v5386
    %7500 = vmatpush2.bf16.msra.mxu0 %v5385
    %7501 = vmatprep.subr.bf16.mxu0 %v5378
    %7502 = vmatpush2.bf16.msra.mxu0 %v5377
    %7503 = vmatprep.subr.bf16.mxu0 %v5370
    %7504 = vmatpush2.bf16.msra.mxu0 %v5369
    %7505 = vmatprep.subr.bf16.mxu0 %v5362
    %7506 = vmatpush2.bf16.msra.mxu0 %v5361
    %7507 = vmatprep.mubr.bf16.mxu0 %v384
    %7508 = vmatmul.mubr.bf16.gmra.mxu0 %v383
    %v7509 = vpop.f32.mrf.mxu0
    %v7510 = vadd.f32 %v7469, %v7509
    %v7511 = vpop.f32.mrf.mxu0
    %v7512 = vadd.f32 %v7471, %v7511
    %v7513 = vpop.f32.mrf.mxu0
    %v7514 = vpop.f32.mrf.mxu0
    %7515 = vdwg.mxu0
    %7516 = vmatprep.subr.bf16.mxu0 %v5482
    %7517 = vmatpush1.bf16.msra.mxu0 %v5481
    %7518 = vmatprep.subr.bf16.mxu0 %v5474
    %7519 = vmatpush1.bf16.msra.mxu0 %v5473
    %7520 = vmatprep.subr.bf16.mxu0 %v5466
    %7521 = vmatpush1.bf16.msra.mxu0 %v5465
    %7522 = vmatprep.subr.bf16.mxu0 %v5458
    %7523 = vmatpush1.bf16.msra.mxu0 %v5457
    %7524 = vmatprep.subr.bf16.mxu0 %v5450
    %7525 = vmatpush1.bf16.msra.mxu0 %v5449
    %7526 = vmatprep.subr.bf16.mxu0 %v5442
    %7527 = vmatpush1.bf16.msra.mxu0 %v5441
    %7528 = vmatprep.subr.bf16.mxu0 %v5434
    %7529 = vmatpush1.bf16.msra.mxu0 %v5433
    %7530 = vmatprep.subr.bf16.mxu0 %v5426
    %7531 = vmatpush1.bf16.msra.mxu0 %v5425
    %7532 = vmatprep.subr.bf16.mxu0 %v5546
    %7533 = vmatpush2.bf16.msra.mxu0 %v5545
    %7534 = vmatprep.subr.bf16.mxu0 %v5538
    %7535 = vmatpush2.bf16.msra.mxu0 %v5537
    %7536 = vmatprep.subr.bf16.mxu0 %v5530
    %7537 = vmatpush2.bf16.msra.mxu0 %v5529
    %7538 = vmatprep.subr.bf16.mxu0 %v5522
    %7539 = vmatpush2.bf16.msra.mxu0 %v5521
    %7540 = vmatprep.subr.bf16.mxu0 %v5514
    %7541 = vmatpush2.bf16.msra.mxu0 %v5513
    %7542 = vmatprep.subr.bf16.mxu0 %v5506
    %7543 = vmatpush2.bf16.msra.mxu0 %v5505
    %7544 = vmatprep.subr.bf16.mxu0 %v5498
    %7545 = vmatpush2.bf16.msra.mxu0 %v5497
    %7546 = vmatprep.subr.bf16.mxu0 %v5490
    %7547 = vmatpush2.bf16.msra.mxu0 %v5489
    %7548 = vmatprep.mubr.bf16.mxu0 %v386
    %7549 = vmatmul.mubr.bf16.gmra.mxu0 %v385
    %v7550 = vpop.f32.mrf.mxu0
    %v7551 = vadd.f32 %v7510, %v7550
    %v7552 = vpop.f32.mrf.mxu0
    %v7553 = vadd.f32 %v7512, %v7552
    %v7554 = vpop.f32.mrf.mxu0
    %v7555 = vpop.f32.mrf.mxu0
    %7556 = vdwg.mxu0
    %7557 = vmatprep.subr.bf16.mxu0 %v4588
    %7558 = vmatpush1.bf16.msra.mxu0 %v4587
    %7559 = vmatprep.subr.bf16.mxu0 %v4580
    %7560 = vmatpush1.bf16.msra.mxu0 %v4579
    %7561 = vmatprep.subr.bf16.mxu0 %v4572
    %7562 = vmatpush1.bf16.msra.mxu0 %v4571
    %7563 = vmatprep.subr.bf16.mxu0 %v4564
    %7564 = vmatpush1.bf16.msra.mxu0 %v4563
    %7565 = vmatprep.subr.bf16.mxu0 %v4556
    %7566 = vmatpush1.bf16.msra.mxu0 %v4555
    %7567 = vmatprep.subr.bf16.mxu0 %v4548
    %7568 = vmatpush1.bf16.msra.mxu0 %v4547
    %7569 = vmatprep.subr.bf16.mxu0 %v4540
    %7570 = vmatpush1.bf16.msra.mxu0 %v4539
    %7571 = vmatprep.subr.bf16.mxu0 %v4532
    %7572 = vmatpush1.bf16.msra.mxu0 %v4531
    %7573 = vmatprep.subr.bf16.mxu0 %v4652
    %7574 = vmatpush2.bf16.msra.mxu0 %v4651
    %7575 = vmatprep.subr.bf16.mxu0 %v4644
    %7576 = vmatpush2.bf16.msra.mxu0 %v4643
    %7577 = vmatprep.subr.bf16.mxu0 %v4636
    %7578 = vmatpush2.bf16.msra.mxu0 %v4635
    %7579 = vmatprep.subr.bf16.mxu0 %v4628
    %7580 = vmatpush2.bf16.msra.mxu0 %v4627
    %7581 = vmatprep.subr.bf16.mxu0 %v4620
    %7582 = vmatpush2.bf16.msra.mxu0 %v4619
    %7583 = vmatprep.subr.bf16.mxu0 %v4612
    %7584 = vmatpush2.bf16.msra.mxu0 %v4611
    %7585 = vmatprep.subr.bf16.mxu0 %v4604
    %7586 = vmatpush2.bf16.msra.mxu0 %v4603
    %7587 = vmatprep.subr.bf16.mxu0 %v4596
    %7588 = vmatpush2.bf16.msra.mxu0 %v4595
    %7589 = vmatprep.mubr.bf16.mxu0 %v372
    %7590 = vmatmul.mubr.bf16.gmra.mxu0 %v371
    %v7591 = vpop.f32.mrf.mxu0
    %v7592 = vadd.f32 %v1440, %v7591
    %v7593 = vpop.f32.mrf.mxu0
    %v7594 = vadd.f32 %v1444, %v7593
    %v7595 = vpop.f32.mrf.mxu0
    %v7596 = vpop.f32.mrf.mxu0
    %7597 = vdwg.mxu0
    %7598 = vmatprep.subr.bf16.mxu0 %v4716
    %7599 = vmatpush1.bf16.msra.mxu0 %v4715
    %7600 = vmatprep.subr.bf16.mxu0 %v4708
    %7601 = vmatpush1.bf16.msra.mxu0 %v4707
    %7602 = vmatprep.subr.bf16.mxu0 %v4700
    %7603 = vmatpush1.bf16.msra.mxu0 %v4699
    %7604 = vmatprep.subr.bf16.mxu0 %v4692
    %7605 = vmatpush1.bf16.msra.mxu0 %v4691
    %7606 = vmatprep.subr.bf16.mxu0 %v4684
    %7607 = vmatpush1.bf16.msra.mxu0 %v4683
    %7608 = vmatprep.subr.bf16.mxu0 %v4676
    %7609 = vmatpush1.bf16.msra.mxu0 %v4675
    %7610 = vmatprep.subr.bf16.mxu0 %v4668
    %7611 = vmatpush1.bf16.msra.mxu0 %v4667
    %7612 = vmatprep.subr.bf16.mxu0 %v4660
    %7613 = vmatpush1.bf16.msra.mxu0 %v4659
    %7614 = vmatprep.subr.bf16.mxu0 %v4780
    %7615 = vmatpush2.bf16.msra.mxu0 %v4779
    %7616 = vmatprep.subr.bf16.mxu0 %v4772
    %7617 = vmatpush2.bf16.msra.mxu0 %v4771
    %7618 = vmatprep.subr.bf16.mxu0 %v4764
    %7619 = vmatpush2.bf16.msra.mxu0 %v4763
    %7620 = vmatprep.subr.bf16.mxu0 %v4756
    %7621 = vmatpush2.bf16.msra.mxu0 %v4755
    %7622 = vmatprep.subr.bf16.mxu0 %v4748
    %7623 = vmatpush2.bf16.msra.mxu0 %v4747
    %7624 = vmatprep.subr.bf16.mxu0 %v4740
    %7625 = vmatpush2.bf16.msra.mxu0 %v4739
    %7626 = vmatprep.subr.bf16.mxu0 %v4732
    %7627 = vmatpush2.bf16.msra.mxu0 %v4731
    %7628 = vmatprep.subr.bf16.mxu0 %v4724
    %7629 = vmatpush2.bf16.msra.mxu0 %v4723
    %7630 = vmatprep.mubr.bf16.mxu0 %v374
    %7631 = vmatmul.mubr.bf16.gmra.mxu0 %v373
    %v7632 = vpop.f32.mrf.mxu0
    %v7633 = vadd.f32 %v7592, %v7632
    %v7634 = vpop.f32.mrf.mxu0
    %v7635 = vadd.f32 %v7594, %v7634
    %v7636 = vpop.f32.mrf.mxu0
    %v7637 = vpop.f32.mrf.mxu0
    %7638 = vdwg.mxu0
    %7639 = vmatprep.subr.bf16.mxu0 %v4844
    %7640 = vmatpush1.bf16.msra.mxu0 %v4843
    %7641 = vmatprep.subr.bf16.mxu0 %v4836
    %7642 = vmatpush1.bf16.msra.mxu0 %v4835
    %7643 = vmatprep.subr.bf16.mxu0 %v4828
    %7644 = vmatpush1.bf16.msra.mxu0 %v4827
    %7645 = vmatprep.subr.bf16.mxu0 %v4820
    %7646 = vmatpush1.bf16.msra.mxu0 %v4819
    %7647 = vmatprep.subr.bf16.mxu0 %v4812
    %7648 = vmatpush1.bf16.msra.mxu0 %v4811
    %7649 = vmatprep.subr.bf16.mxu0 %v4804
    %7650 = vmatpush1.bf16.msra.mxu0 %v4803
    %7651 = vmatprep.subr.bf16.mxu0 %v4796
    %7652 = vmatpush1.bf16.msra.mxu0 %v4795
    %7653 = vmatprep.subr.bf16.mxu0 %v4788
    %7654 = vmatpush1.bf16.msra.mxu0 %v4787
    %7655 = vmatprep.subr.bf16.mxu0 %v4908
    %7656 = vmatpush2.bf16.msra.mxu0 %v4907
    %7657 = vmatprep.subr.bf16.mxu0 %v4900
    %7658 = vmatpush2.bf16.msra.mxu0 %v4899
    %7659 = vmatprep.subr.bf16.mxu0 %v4892
    %7660 = vmatpush2.bf16.msra.mxu0 %v4891
    %7661 = vmatprep.subr.bf16.mxu0 %v4884
    %7662 = vmatpush2.bf16.msra.mxu0 %v4883
    %7663 = vmatprep.subr.bf16.mxu0 %v4876
    %7664 = vmatpush2.bf16.msra.mxu0 %v4875
    %7665 = vmatprep.subr.bf16.mxu0 %v4868
    %7666 = vmatpush2.bf16.msra.mxu0 %v4867
    %7667 = vmatprep.subr.bf16.mxu0 %v4860
    %7668 = vmatpush2.bf16.msra.mxu0 %v4859
    %7669 = vmatprep.subr.bf16.mxu0 %v4852
    %7670 = vmatpush2.bf16.msra.mxu0 %v4851
    %7671 = vmatprep.mubr.bf16.mxu0 %v376
    %7672 = vmatmul.mubr.bf16.gmra.mxu0 %v375
    %v7673 = vpop.f32.mrf.mxu0
    %v7674 = vadd.f32 %v7633, %v7673
    %v7675 = vpop.f32.mrf.mxu0
    %v7676 = vadd.f32 %v7635, %v7675
    %v7677 = vpop.f32.mrf.mxu0
    %v7678 = vpop.f32.mrf.mxu0
    %7679 = vdwg.mxu0
    %7680 = vmatprep.subr.bf16.mxu0 %v4972
    %7681 = vmatpush1.bf16.msra.mxu0 %v4971
    %7682 = vmatprep.subr.bf16.mxu0 %v4964
    %7683 = vmatpush1.bf16.msra.mxu0 %v4963
    %7684 = vmatprep.subr.bf16.mxu0 %v4956
    %7685 = vmatpush1.bf16.msra.mxu0 %v4955
    %7686 = vmatprep.subr.bf16.mxu0 %v4948
    %7687 = vmatpush1.bf16.msra.mxu0 %v4947
    %7688 = vmatprep.subr.bf16.mxu0 %v4940
    %7689 = vmatpush1.bf16.msra.mxu0 %v4939
    %7690 = vmatprep.subr.bf16.mxu0 %v4932
    %7691 = vmatpush1.bf16.msra.mxu0 %v4931
    %7692 = vmatprep.subr.bf16.mxu0 %v4924
    %7693 = vmatpush1.bf16.msra.mxu0 %v4923
    %7694 = vmatprep.subr.bf16.mxu0 %v4916
    %7695 = vmatpush1.bf16.msra.mxu0 %v4915
    %7696 = vmatprep.subr.bf16.mxu0 %v5036
    %7697 = vmatpush2.bf16.msra.mxu0 %v5035
    %7698 = vmatprep.subr.bf16.mxu0 %v5028
    %7699 = vmatpush2.bf16.msra.mxu0 %v5027
    %7700 = vmatprep.subr.bf16.mxu0 %v5020
    %7701 = vmatpush2.bf16.msra.mxu0 %v5019
    %7702 = vmatprep.subr.bf16.mxu0 %v5012
    %7703 = vmatpush2.bf16.msra.mxu0 %v5011
    %7704 = vmatprep.subr.bf16.mxu0 %v5004
    %7705 = vmatpush2.bf16.msra.mxu0 %v5003
    %7706 = vmatprep.subr.bf16.mxu0 %v4996
    %7707 = vmatpush2.bf16.msra.mxu0 %v4995
    %7708 = vmatprep.subr.bf16.mxu0 %v4988
    %7709 = vmatpush2.bf16.msra.mxu0 %v4987
    %7710 = vmatprep.subr.bf16.mxu0 %v4980
    %7711 = vmatpush2.bf16.msra.mxu0 %v4979
    %7712 = vmatprep.mubr.bf16.mxu0 %v378
    %7713 = vmatmul.mubr.bf16.gmra.mxu0 %v377
    %v7714 = vpop.f32.mrf.mxu0
    %v7715 = vadd.f32 %v7674, %v7714
    %v7716 = vpop.f32.mrf.mxu0
    %v7717 = vadd.f32 %v7676, %v7716
    %v7718 = vpop.f32.mrf.mxu0
    %v7719 = vpop.f32.mrf.mxu0
    %7720 = vdwg.mxu0
    %7721 = vmatprep.subr.bf16.mxu0 %v5100
    %7722 = vmatpush1.bf16.msra.mxu0 %v5099
    %7723 = vmatprep.subr.bf16.mxu0 %v5092
    %7724 = vmatpush1.bf16.msra.mxu0 %v5091
    %7725 = vmatprep.subr.bf16.mxu0 %v5084
    %7726 = vmatpush1.bf16.msra.mxu0 %v5083
    %7727 = vmatprep.subr.bf16.mxu0 %v5076
    %7728 = vmatpush1.bf16.msra.mxu0 %v5075
    %7729 = vmatprep.subr.bf16.mxu0 %v5068
    %7730 = vmatpush1.bf16.msra.mxu0 %v5067
    %7731 = vmatprep.subr.bf16.mxu0 %v5060
    %7732 = vmatpush1.bf16.msra.mxu0 %v5059
    %7733 = vmatprep.subr.bf16.mxu0 %v5052
    %7734 = vmatpush1.bf16.msra.mxu0 %v5051
    %7735 = vmatprep.subr.bf16.mxu0 %v5044
    %7736 = vmatpush1.bf16.msra.mxu0 %v5043
    %7737 = vmatprep.subr.bf16.mxu0 %v5164
    %7738 = vmatpush2.bf16.msra.mxu0 %v5163
    %7739 = vmatprep.subr.bf16.mxu0 %v5156
    %7740 = vmatpush2.bf16.msra.mxu0 %v5155
    %7741 = vmatprep.subr.bf16.mxu0 %v5148
    %7742 = vmatpush2.bf16.msra.mxu0 %v5147
    %7743 = vmatprep.subr.bf16.mxu0 %v5140
    %7744 = vmatpush2.bf16.msra.mxu0 %v5139
    %7745 = vmatprep.subr.bf16.mxu0 %v5132
    %7746 = vmatpush2.bf16.msra.mxu0 %v5131
    %7747 = vmatprep.subr.bf16.mxu0 %v5124
    %7748 = vmatpush2.bf16.msra.mxu0 %v5123
    %7749 = vmatprep.subr.bf16.mxu0 %v5116
    %7750 = vmatpush2.bf16.msra.mxu0 %v5115
    %7751 = vmatprep.subr.bf16.mxu0 %v5108
    %7752 = vmatpush2.bf16.msra.mxu0 %v5107
    %7753 = vmatprep.mubr.bf16.mxu0 %v380
    %7754 = vmatmul.mubr.bf16.gmra.mxu0 %v379
    %v7755 = vpop.f32.mrf.mxu0
    %v7756 = vadd.f32 %v7715, %v7755
    %v7757 = vpop.f32.mrf.mxu0
    %v7758 = vadd.f32 %v7717, %v7757
    %v7759 = vpop.f32.mrf.mxu0
    %v7760 = vpop.f32.mrf.mxu0
    %7761 = vdwg.mxu0
    %7762 = vmatprep.subr.bf16.mxu0 %v5228
    %7763 = vmatpush1.bf16.msra.mxu0 %v5227
    %7764 = vmatprep.subr.bf16.mxu0 %v5220
    %7765 = vmatpush1.bf16.msra.mxu0 %v5219
    %7766 = vmatprep.subr.bf16.mxu0 %v5212
    %7767 = vmatpush1.bf16.msra.mxu0 %v5211
    %7768 = vmatprep.subr.bf16.mxu0 %v5204
    %7769 = vmatpush1.bf16.msra.mxu0 %v5203
    %7770 = vmatprep.subr.bf16.mxu0 %v5196
    %7771 = vmatpush1.bf16.msra.mxu0 %v5195
    %7772 = vmatprep.subr.bf16.mxu0 %v5188
    %7773 = vmatpush1.bf16.msra.mxu0 %v5187
    %7774 = vmatprep.subr.bf16.mxu0 %v5180
    %7775 = vmatpush1.bf16.msra.mxu0 %v5179
    %7776 = vmatprep.subr.bf16.mxu0 %v5172
    %7777 = vmatpush1.bf16.msra.mxu0 %v5171
    %7778 = vmatprep.subr.bf16.mxu0 %v5292
    %7779 = vmatpush2.bf16.msra.mxu0 %v5291
    %7780 = vmatprep.subr.bf16.mxu0 %v5284
    %7781 = vmatpush2.bf16.msra.mxu0 %v5283
    %7782 = vmatprep.subr.bf16.mxu0 %v5276
    %7783 = vmatpush2.bf16.msra.mxu0 %v5275
    %7784 = vmatprep.subr.bf16.mxu0 %v5268
    %7785 = vmatpush2.bf16.msra.mxu0 %v5267
    %7786 = vmatprep.subr.bf16.mxu0 %v5260
    %7787 = vmatpush2.bf16.msra.mxu0 %v5259
    %7788 = vmatprep.subr.bf16.mxu0 %v5252
    %7789 = vmatpush2.bf16.msra.mxu0 %v5251
    %7790 = vmatprep.subr.bf16.mxu0 %v5244
    %7791 = vmatpush2.bf16.msra.mxu0 %v5243
    %7792 = vmatprep.subr.bf16.mxu0 %v5236
    %7793 = vmatpush2.bf16.msra.mxu0 %v5235
    %7794 = vmatprep.mubr.bf16.mxu0 %v382
    %7795 = vmatmul.mubr.bf16.gmra.mxu0 %v381
    %v7796 = vpop.f32.mrf.mxu0
    %v7797 = vadd.f32 %v7756, %v7796
    %v7798 = vpop.f32.mrf.mxu0
    %v7799 = vadd.f32 %v7758, %v7798
    %v7800 = vpop.f32.mrf.mxu0
    %v7801 = vpop.f32.mrf.mxu0
    %7802 = vdwg.mxu0
    %7803 = vmatprep.subr.bf16.mxu0 %v5356
    %7804 = vmatpush1.bf16.msra.mxu0 %v5355
    %7805 = vmatprep.subr.bf16.mxu0 %v5348
    %7806 = vmatpush1.bf16.msra.mxu0 %v5347
    %7807 = vmatprep.subr.bf16.mxu0 %v5340
    %7808 = vmatpush1.bf16.msra.mxu0 %v5339
    %7809 = vmatprep.subr.bf16.mxu0 %v5332
    %7810 = vmatpush1.bf16.msra.mxu0 %v5331
    %7811 = vmatprep.subr.bf16.mxu0 %v5324
    %7812 = vmatpush1.bf16.msra.mxu0 %v5323
    %7813 = vmatprep.subr.bf16.mxu0 %v5316
    %7814 = vmatpush1.bf16.msra.mxu0 %v5315
    %7815 = vmatprep.subr.bf16.mxu0 %v5308
    %7816 = vmatpush1.bf16.msra.mxu0 %v5307
    %7817 = vmatprep.subr.bf16.mxu0 %v5300
    %7818 = vmatpush1.bf16.msra.mxu0 %v5299
    %7819 = vmatprep.subr.bf16.mxu0 %v5420
    %7820 = vmatpush2.bf16.msra.mxu0 %v5419
    %7821 = vmatprep.subr.bf16.mxu0 %v5412
    %7822 = vmatpush2.bf16.msra.mxu0 %v5411
    %7823 = vmatprep.subr.bf16.mxu0 %v5404
    %7824 = vmatpush2.bf16.msra.mxu0 %v5403
    %7825 = vmatprep.subr.bf16.mxu0 %v5396
    %7826 = vmatpush2.bf16.msra.mxu0 %v5395
    %7827 = vmatprep.subr.bf16.mxu0 %v5388
    %7828 = vmatpush2.bf16.msra.mxu0 %v5387
    %7829 = vmatprep.subr.bf16.mxu0 %v5380
    %7830 = vmatpush2.bf16.msra.mxu0 %v5379
    %7831 = vmatprep.subr.bf16.mxu0 %v5372
    %7832 = vmatpush2.bf16.msra.mxu0 %v5371
    %7833 = vmatprep.subr.bf16.mxu0 %v5364
    %7834 = vmatpush2.bf16.msra.mxu0 %v5363
    %7835 = vmatprep.mubr.bf16.mxu0 %v384
    %7836 = vmatmul.mubr.bf16.gmra.mxu0 %v383
    %v7837 = vpop.f32.mrf.mxu0
    %v7838 = vadd.f32 %v7797, %v7837
    %v7839 = vpop.f32.mrf.mxu0
    %v7840 = vadd.f32 %v7799, %v7839
    %v7841 = vpop.f32.mrf.mxu0
    %v7842 = vpop.f32.mrf.mxu0
    %7843 = vdwg.mxu0
    %7844 = vmatprep.subr.bf16.mxu0 %v5484
    %7845 = vmatpush1.bf16.msra.mxu0 %v5483
    %7846 = vmatprep.subr.bf16.mxu0 %v5476
    %7847 = vmatpush1.bf16.msra.mxu0 %v5475
    %7848 = vmatprep.subr.bf16.mxu0 %v5468
    %7849 = vmatpush1.bf16.msra.mxu0 %v5467
    %7850 = vmatprep.subr.bf16.mxu0 %v5460
    %7851 = vmatpush1.bf16.msra.mxu0 %v5459
    %7852 = vmatprep.subr.bf16.mxu0 %v5452
    %7853 = vmatpush1.bf16.msra.mxu0 %v5451
    %7854 = vmatprep.subr.bf16.mxu0 %v5444
    %7855 = vmatpush1.bf16.msra.mxu0 %v5443
    %7856 = vmatprep.subr.bf16.mxu0 %v5436
    %7857 = vmatpush1.bf16.msra.mxu0 %v5435
    %7858 = vmatprep.subr.bf16.mxu0 %v5428
    %7859 = vmatpush1.bf16.msra.mxu0 %v5427
    %7860 = vmatprep.subr.bf16.mxu0 %v5548
    %7861 = vmatpush2.bf16.msra.mxu0 %v5547
    %7862 = vmatprep.subr.bf16.mxu0 %v5540
    %7863 = vmatpush2.bf16.msra.mxu0 %v5539
    %7864 = vmatprep.subr.bf16.mxu0 %v5532
    %7865 = vmatpush2.bf16.msra.mxu0 %v5531
    %7866 = vmatprep.subr.bf16.mxu0 %v5524
    %7867 = vmatpush2.bf16.msra.mxu0 %v5523
    %7868 = vmatprep.subr.bf16.mxu0 %v5516
    %7869 = vmatpush2.bf16.msra.mxu0 %v5515
    %7870 = vmatprep.subr.bf16.mxu0 %v5508
    %7871 = vmatpush2.bf16.msra.mxu0 %v5507
    %7872 = vmatprep.subr.bf16.mxu0 %v5500
    %7873 = vmatpush2.bf16.msra.mxu0 %v5499
    %7874 = vmatprep.subr.bf16.mxu0 %v5492
    %7875 = vmatpush2.bf16.msra.mxu0 %v5491
    %7876 = vmatprep.mubr.bf16.mxu0 %v386
    %7877 = vmatmul.mubr.bf16.gmra.mxu0 %v385
    %v7878 = vpop.f32.mrf.mxu0
    %v7879 = vadd.f32 %v7838, %v7878
    %v7880 = vpop.f32.mrf.mxu0
    %v7881 = vadd.f32 %v7840, %v7880
    %v7882 = vpop.f32.mrf.mxu0
    %v7883 = vpop.f32.mrf.mxu0
    %7884 = vdwg.mxu0
    %v7885 = vmax.f32 %v6895, 0.0
    %v7886 = vmax.f32 %v6897, 0.0
    %v7887 = vmax.f32 %v7223, 0.0
    %v7888 = vmax.f32 %v7225, 0.0
    %v7889 = vmax.f32 %v7551, 0.0
    %v7890 = vmax.f32 %v7553, 0.0
    %v7891 = vmax.f32 %v7879, 0.0
    %v7892 = vmax.f32 %v7881, 0.0
    %v7893 = vpack.c.bf16 %v7885, %v7885
    %v7894 = vpack.c.bf16 %v7886, %v7886
    %v7895 = vpack.c.bf16 %v7887, %v7887
    %v7896 = vpack.c.bf16 %v7888, %v7888
    %v7897 = vpack.c.bf16 %v7889, %v7889
    %v7898 = vpack.c.bf16 %v7890, %v7890
    %v7899 = vpack.c.bf16 %v7891, %v7891
    %v7900 = vpack.c.bf16 %v7892, %v7892
    %v7901 = vld [vmem:[#allocation10] sm:$0xf]
    %v7902 = vld [vmem:[#allocation10 + $0x4] sm:$0xf]
    %v7903 = vld [vmem:[#allocation10 + $0x8] sm:$0xf]
    %v7904 = vld [vmem:[#allocation10 + $0xc] sm:$0xf]
    %v7905 = vld [vmem:[#allocation10 + $0x10] sm:$0xf]
    %v7906 = vld [vmem:[#allocation10 + $0x14] sm:$0xf]
    %v7907 = vld [vmem:[#allocation10 + $0x18] sm:$0xf]
    %v7908 = vld [vmem:[#allocation10 + $0x1c] sm:$0xf]
    %v7909 = vld [vmem:[#allocation10 + $0x20] sm:$0xf]
    %v7910 = vld [vmem:[#allocation10 + $0x24] sm:$0xf]
    %v7911 = vld [vmem:[#allocation10 + $0x28] sm:$0xf]
    %v7912 = vld [vmem:[#allocation10 + $0x2c] sm:$0xf]
    %v7913 = vld [vmem:[#allocation10 + $0x30] sm:$0xf]
    %v7914 = vld [vmem:[#allocation10 + $0x34] sm:$0xf]
    %v7915 = vld [vmem:[#allocation10 + $0x38] sm:$0xf]
    %v7916 = vld [vmem:[#allocation10 + $0x3c] sm:$0xf]
    %v7917 = vld [vmem:[#allocation10 + $0x40] sm:$0xf]
    %v7918 = vld [vmem:[#allocation10 + $0x44] sm:$0xf]
    %v7919 = vld [vmem:[#allocation10 + $0x48] sm:$0xf]
    %v7920 = vld [vmem:[#allocation10 + $0x4c] sm:$0xf]
    %v7921 = vld [vmem:[#allocation10 + $0x50] sm:$0xf]
    %v7922 = vld [vmem:[#allocation10 + $0x54] sm:$0xf]
    %v7923 = vld [vmem:[#allocation10 + $0x58] sm:$0xf]
    %v7924 = vld [vmem:[#allocation10 + $0x5c] sm:$0xf]
    %v7925 = vld [vmem:[#allocation10 + $0x60] sm:$0xf]
    %v7926 = vld [vmem:[#allocation10 + $0x64] sm:$0xf]
    %v7927 = vld [vmem:[#allocation10 + $0x68] sm:$0xf]
    %v7928 = vld [vmem:[#allocation10 + $0x6c] sm:$0xf]
    %v7929 = vld [vmem:[#allocation10 + $0x70] sm:$0xf]
    %v7930 = vld [vmem:[#allocation10 + $0x74] sm:$0xf]
    %v7931 = vld [vmem:[#allocation10 + $0x78] sm:$0xf]
    %v7932 = vld [vmem:[#allocation10 + $0x7c] sm:$0xf]
    %v7933 = vld [vmem:[#allocation10 + $0x80] sm:$0xf]
    %v7934 = vld [vmem:[#allocation10 + $0x84] sm:$0xf]
    %v7935 = vld [vmem:[#allocation10 + $0x88] sm:$0xf]
    %v7936 = vld [vmem:[#allocation10 + $0x8c] sm:$0xf]
    %v7937 = vld [vmem:[#allocation10 + $0x90] sm:$0xf]
    %v7938 = vld [vmem:[#allocation10 + $0x94] sm:$0xf]
    %v7939 = vld [vmem:[#allocation10 + $0x98] sm:$0xf]
    %v7940 = vld [vmem:[#allocation10 + $0x9c] sm:$0xf]
    %v7941 = vld [vmem:[#allocation10 + $0xa0] sm:$0xf]
    %v7942 = vld [vmem:[#allocation10 + $0xa4] sm:$0xf]
    %v7943 = vld [vmem:[#allocation10 + $0xa8] sm:$0xf]
    %v7944 = vld [vmem:[#allocation10 + $0xac] sm:$0xf]
    %v7945 = vld [vmem:[#allocation10 + $0xb0] sm:$0xf]
    %v7946 = vld [vmem:[#allocation10 + $0xb4] sm:$0xf]
    %v7947 = vld [vmem:[#allocation10 + $0xb8] sm:$0xf]
    %v7948 = vld [vmem:[#allocation10 + $0xbc] sm:$0xf]
    %v7949 = vld [vmem:[#allocation10 + $0xc0] sm:$0xf]
    %v7950 = vld [vmem:[#allocation10 + $0xc4] sm:$0xf]
    %v7951 = vld [vmem:[#allocation10 + $0xc8] sm:$0xf]
    %v7952 = vld [vmem:[#allocation10 + $0xcc] sm:$0xf]
    %v7953 = vld [vmem:[#allocation10 + $0xd0] sm:$0xf]
    %v7954 = vld [vmem:[#allocation10 + $0xd4] sm:$0xf]
    %v7955 = vld [vmem:[#allocation10 + $0xd8] sm:$0xf]
    %v7956 = vld [vmem:[#allocation10 + $0xdc] sm:$0xf]
    %v7957 = vld [vmem:[#allocation10 + $0xe0] sm:$0xf]
    %v7958 = vld [vmem:[#allocation10 + $0xe4] sm:$0xf]
    %v7959 = vld [vmem:[#allocation10 + $0xe8] sm:$0xf]
    %v7960 = vld [vmem:[#allocation10 + $0xec] sm:$0xf]
    %v7961 = vld [vmem:[#allocation10 + $0xf0] sm:$0xf]
    %v7962 = vld [vmem:[#allocation10 + $0xf4] sm:$0xf]
    %v7963 = vld [vmem:[#allocation10 + $0xf8] sm:$0xf]
    %v7964 = vld [vmem:[#allocation10 + $0xfc] sm:$0xf]
    %v7965 = vld [vmem:[#allocation10 + $0x100] sm:$0xf]
    %v7966 = vld [vmem:[#allocation10 + $0x104] sm:$0xf]
    %v7967 = vld [vmem:[#allocation10 + $0x108] sm:$0xf]
    %v7968 = vld [vmem:[#allocation10 + $0x10c] sm:$0xf]
    %v7969 = vld [vmem:[#allocation10 + $0x110] sm:$0xf]
    %v7970 = vld [vmem:[#allocation10 + $0x114] sm:$0xf]
    %v7971 = vld [vmem:[#allocation10 + $0x118] sm:$0xf]
    %v7972 = vld [vmem:[#allocation10 + $0x11c] sm:$0xf]
    %v7973 = vld [vmem:[#allocation10 + $0x120] sm:$0xf]
    %v7974 = vld [vmem:[#allocation10 + $0x124] sm:$0xf]
    %v7975 = vld [vmem:[#allocation10 + $0x128] sm:$0xf]
    %v7976 = vld [vmem:[#allocation10 + $0x12c] sm:$0xf]
    %v7977 = vld [vmem:[#allocation10 + $0x130] sm:$0xf]
    %v7978 = vld [vmem:[#allocation10 + $0x134] sm:$0xf]
    %v7979 = vld [vmem:[#allocation10 + $0x138] sm:$0xf]
    %v7980 = vld [vmem:[#allocation10 + $0x13c] sm:$0xf]
    %v7981 = vld [vmem:[#allocation10 + $0x140] sm:$0xf]
    %v7982 = vld [vmem:[#allocation10 + $0x144] sm:$0xf]
    %v7983 = vld [vmem:[#allocation10 + $0x148] sm:$0xf]
    %v7984 = vld [vmem:[#allocation10 + $0x14c] sm:$0xf]
    %v7985 = vld [vmem:[#allocation10 + $0x150] sm:$0xf]
    %v7986 = vld [vmem:[#allocation10 + $0x154] sm:$0xf]
    %v7987 = vld [vmem:[#allocation10 + $0x158] sm:$0xf]
    %v7988 = vld [vmem:[#allocation10 + $0x15c] sm:$0xf]
    %v7989 = vld [vmem:[#allocation10 + $0x160] sm:$0xf]
    %v7990 = vld [vmem:[#allocation10 + $0x164] sm:$0xf]
    %v7991 = vld [vmem:[#allocation10 + $0x168] sm:$0xf]
    %v7992 = vld [vmem:[#allocation10 + $0x16c] sm:$0xf]
    %v7993 = vld [vmem:[#allocation10 + $0x170] sm:$0xf]
    %v7994 = vld [vmem:[#allocation10 + $0x174] sm:$0xf]
    %v7995 = vld [vmem:[#allocation10 + $0x178] sm:$0xf]
    %v7996 = vld [vmem:[#allocation10 + $0x17c] sm:$0xf]
    %v7997 = vld [vmem:[#allocation10 + $0x180] sm:$0xf]
    %v7998 = vld [vmem:[#allocation10 + $0x184] sm:$0xf]
    %v7999 = vld [vmem:[#allocation10 + $0x188] sm:$0xf]
    %v8000 = vld [vmem:[#allocation10 + $0x18c] sm:$0xf]
    %v8001 = vld [vmem:[#allocation10 + $0x190] sm:$0xf]
    %v8002 = vld [vmem:[#allocation10 + $0x194] sm:$0xf]
    %v8003 = vld [vmem:[#allocation10 + $0x198] sm:$0xf]
    %v8004 = vld [vmem:[#allocation10 + $0x19c] sm:$0xf]
    %v8005 = vld [vmem:[#allocation10 + $0x1a0] sm:$0xf]
    %v8006 = vld [vmem:[#allocation10 + $0x1a4] sm:$0xf]
    %v8007 = vld [vmem:[#allocation10 + $0x1a8] sm:$0xf]
    %v8008 = vld [vmem:[#allocation10 + $0x1ac] sm:$0xf]
    %v8009 = vld [vmem:[#allocation10 + $0x1b0] sm:$0xf]
    %v8010 = vld [vmem:[#allocation10 + $0x1b4] sm:$0xf]
    %v8011 = vld [vmem:[#allocation10 + $0x1b8] sm:$0xf]
    %v8012 = vld [vmem:[#allocation10 + $0x1bc] sm:$0xf]
    %v8013 = vld [vmem:[#allocation10 + $0x1c0] sm:$0xf]
    %v8014 = vld [vmem:[#allocation10 + $0x1c4] sm:$0xf]
    %v8015 = vld [vmem:[#allocation10 + $0x1c8] sm:$0xf]
    %v8016 = vld [vmem:[#allocation10 + $0x1cc] sm:$0xf]
    %v8017 = vld [vmem:[#allocation10 + $0x1d0] sm:$0xf]
    %v8018 = vld [vmem:[#allocation10 + $0x1d4] sm:$0xf]
    %v8019 = vld [vmem:[#allocation10 + $0x1d8] sm:$0xf]
    %v8020 = vld [vmem:[#allocation10 + $0x1dc] sm:$0xf]
    %v8021 = vld [vmem:[#allocation10 + $0x1e0] sm:$0xf]
    %v8022 = vld [vmem:[#allocation10 + $0x1e4] sm:$0xf]
    %v8023 = vld [vmem:[#allocation10 + $0x1e8] sm:$0xf]
    %v8024 = vld [vmem:[#allocation10 + $0x1ec] sm:$0xf]
    %v8025 = vld [vmem:[#allocation10 + $0x1f0] sm:$0xf]
    %v8026 = vld [vmem:[#allocation10 + $0x1f4] sm:$0xf]
    %v8027 = vld [vmem:[#allocation10 + $0x1f8] sm:$0xf]
    %v8028 = vld [vmem:[#allocation10 + $0x1fc] sm:$0xf]
    %v8029 = vld [vmem:[#allocation11] sm:$0x1]
    %v8031 = vlaneseq
    %v8032 = vshrl.u32 %v8031, 7
    %v8033 = vsub.s32 0, %v8032
    %v8034 = vrot.slane %v8029, %v8033
    %v8164 = vunpack.c.l.b16 %v7901
    %v8165 = vunpack.c.l.b16 %v7902
    %v8166 = vunpack.c.l.b16 %v7903
    %v8167 = vunpack.c.l.b16 %v7904
    %v8168 = vunpack.c.l.b16 %v7905
    %v8169 = vunpack.c.l.b16 %v7906
    %v8170 = vunpack.c.l.b16 %v7907
    %v8171 = vunpack.c.l.b16 %v7908
    %v8172 = vunpack.c.l.b16 %v7909
    %v8173 = vunpack.c.l.b16 %v7910
    %v8174 = vunpack.c.l.b16 %v7911
    %v8175 = vunpack.c.l.b16 %v7912
    %v8176 = vunpack.c.l.b16 %v7913
    %v8177 = vunpack.c.l.b16 %v7914
    %v8178 = vunpack.c.l.b16 %v7915
    %v8179 = vunpack.c.l.b16 %v7916
    %v8180 = vunpack.c.l.b16 %v7917
    %v8181 = vunpack.c.l.b16 %v7918
    %v8182 = vunpack.c.l.b16 %v7919
    %v8183 = vunpack.c.l.b16 %v7920
    %v8184 = vunpack.c.l.b16 %v7921
    %v8185 = vunpack.c.l.b16 %v7922
    %v8186 = vunpack.c.l.b16 %v7923
    %v8187 = vunpack.c.l.b16 %v7924
    %v8188 = vunpack.c.l.b16 %v7925
    %v8189 = vunpack.c.l.b16 %v7926
    %v8190 = vunpack.c.l.b16 %v7927
    %v8191 = vunpack.c.l.b16 %v7928
    %v8192 = vunpack.c.l.b16 %v7929
    %v8193 = vunpack.c.l.b16 %v7930
    %v8194 = vunpack.c.l.b16 %v7931
    %v8195 = vunpack.c.l.b16 %v7932
    %v8196 = vunpack.c.l.b16 %v7933
    %v8197 = vunpack.c.l.b16 %v7934
    %v8198 = vunpack.c.l.b16 %v7935
    %v8199 = vunpack.c.l.b16 %v7936
    %v8200 = vunpack.c.l.b16 %v7937
    %v8201 = vunpack.c.l.b16 %v7938
    %v8202 = vunpack.c.l.b16 %v7939
    %v8203 = vunpack.c.l.b16 %v7940
    %v8204 = vunpack.c.l.b16 %v7941
    %v8205 = vunpack.c.l.b16 %v7942
    %v8206 = vunpack.c.l.b16 %v7943
    %v8207 = vunpack.c.l.b16 %v7944
    %v8208 = vunpack.c.l.b16 %v7945
    %v8209 = vunpack.c.l.b16 %v7946
    %v8210 = vunpack.c.l.b16 %v7947
    %v8211 = vunpack.c.l.b16 %v7948
    %v8212 = vunpack.c.l.b16 %v7949
    %v8213 = vunpack.c.l.b16 %v7950
    %v8214 = vunpack.c.l.b16 %v7951
    %v8215 = vunpack.c.l.b16 %v7952
    %v8216 = vunpack.c.l.b16 %v7953
    %v8217 = vunpack.c.l.b16 %v7954
    %v8218 = vunpack.c.l.b16 %v7955
    %v8219 = vunpack.c.l.b16 %v7956
    %v8220 = vunpack.c.l.b16 %v7957
    %v8221 = vunpack.c.l.b16 %v7958
    %v8222 = vunpack.c.l.b16 %v7959
    %v8223 = vunpack.c.l.b16 %v7960
    %v8224 = vunpack.c.l.b16 %v7961
    %v8225 = vunpack.c.l.b16 %v7962
    %v8226 = vunpack.c.l.b16 %v7963
    %v8227 = vunpack.c.l.b16 %v7964
    %v8228 = vunpack.c.l.b16 %v7965
    %v8229 = vunpack.c.l.b16 %v7966
    %v8230 = vunpack.c.l.b16 %v7967
    %v8231 = vunpack.c.l.b16 %v7968
    %v8232 = vunpack.c.l.b16 %v7969
    %v8233 = vunpack.c.l.b16 %v7970
    %v8234 = vunpack.c.l.b16 %v7971
    %v8235 = vunpack.c.l.b16 %v7972
    %v8236 = vunpack.c.l.b16 %v7973
    %v8237 = vunpack.c.l.b16 %v7974
    %v8238 = vunpack.c.l.b16 %v7975
    %v8239 = vunpack.c.l.b16 %v7976
    %v8240 = vunpack.c.l.b16 %v7977
    %v8241 = vunpack.c.l.b16 %v7978
    %v8242 = vunpack.c.l.b16 %v7979
    %v8243 = vunpack.c.l.b16 %v7980
    %v8244 = vunpack.c.l.b16 %v7981
    %v8245 = vunpack.c.l.b16 %v7982
    %v8246 = vunpack.c.l.b16 %v7983
    %v8247 = vunpack.c.l.b16 %v7984
    %v8248 = vunpack.c.l.b16 %v7985
    %v8249 = vunpack.c.l.b16 %v7986
    %v8250 = vunpack.c.l.b16 %v7987
    %v8251 = vunpack.c.l.b16 %v7988
    %v8252 = vunpack.c.l.b16 %v7989
    %v8253 = vunpack.c.l.b16 %v7990
    %v8254 = vunpack.c.l.b16 %v7991
    %v8255 = vunpack.c.l.b16 %v7992
    %v8256 = vunpack.c.l.b16 %v7993
    %v8257 = vunpack.c.l.b16 %v7994
    %v8258 = vunpack.c.l.b16 %v7995
    %v8259 = vunpack.c.l.b16 %v7996
    %v8260 = vunpack.c.l.b16 %v7997
    %v8261 = vunpack.c.l.b16 %v7998
    %v8262 = vunpack.c.l.b16 %v7999
    %v8263 = vunpack.c.l.b16 %v8000
    %v8264 = vunpack.c.l.b16 %v8001
    %v8265 = vunpack.c.l.b16 %v8002
    %v8266 = vunpack.c.l.b16 %v8003
    %v8267 = vunpack.c.l.b16 %v8004
    %v8268 = vunpack.c.l.b16 %v8005
    %v8269 = vunpack.c.l.b16 %v8006
    %v8270 = vunpack.c.l.b16 %v8007
    %v8271 = vunpack.c.l.b16 %v8008
    %v8272 = vunpack.c.l.b16 %v8009
    %v8273 = vunpack.c.l.b16 %v8010
    %v8274 = vunpack.c.l.b16 %v8011
    %v8275 = vunpack.c.l.b16 %v8012
    %v8276 = vunpack.c.l.b16 %v8013
    %v8277 = vunpack.c.l.b16 %v8014
    %v8278 = vunpack.c.l.b16 %v8015
    %v8279 = vunpack.c.l.b16 %v8016
    %v8280 = vunpack.c.l.b16 %v8017
    %v8281 = vunpack.c.l.b16 %v8018
    %v8282 = vunpack.c.l.b16 %v8019
    %v8283 = vunpack.c.l.b16 %v8020
    %v8284 = vunpack.c.l.b16 %v8021
    %v8285 = vunpack.c.l.b16 %v8022
    %v8286 = vunpack.c.l.b16 %v8023
    %v8287 = vunpack.c.l.b16 %v8024
    %v8288 = vunpack.c.l.b16 %v8025
    %v8289 = vunpack.c.l.b16 %v8026
    %v8290 = vunpack.c.l.b16 %v8027
    %v8291 = vunpack.c.l.b16 %v8028
    %v8292 = vpack.c.b16 %v8165, %v8164
    %v8293 = vpack.c.b16 %v8167, %v8166
    %v8294 = vpack.c.b16 %v8169, %v8168
    %v8295 = vpack.c.b16 %v8171, %v8170
    %v8296 = vpack.c.b16 %v8173, %v8172
    %v8297 = vpack.c.b16 %v8175, %v8174
    %v8298 = vpack.c.b16 %v8177, %v8176
    %v8299 = vpack.c.b16 %v8179, %v8178
    %v8300 = vpack.c.b16 %v8181, %v8180
    %v8301 = vpack.c.b16 %v8183, %v8182
    %v8302 = vpack.c.b16 %v8185, %v8184
    %v8303 = vpack.c.b16 %v8187, %v8186
    %v8304 = vpack.c.b16 %v8189, %v8188
    %v8305 = vpack.c.b16 %v8191, %v8190
    %v8306 = vpack.c.b16 %v8193, %v8192
    %v8307 = vpack.c.b16 %v8195, %v8194
    %v8308 = vpack.c.b16 %v8197, %v8196
    %v8309 = vpack.c.b16 %v8199, %v8198
    %v8310 = vpack.c.b16 %v8201, %v8200
    %v8311 = vpack.c.b16 %v8203, %v8202
    %v8312 = vpack.c.b16 %v8205, %v8204
    %v8313 = vpack.c.b16 %v8207, %v8206
    %v8314 = vpack.c.b16 %v8209, %v8208
    %v8315 = vpack.c.b16 %v8211, %v8210
    %v8316 = vpack.c.b16 %v8213, %v8212
    %v8317 = vpack.c.b16 %v8215, %v8214
    %v8318 = vpack.c.b16 %v8217, %v8216
    %v8319 = vpack.c.b16 %v8219, %v8218
    %v8320 = vpack.c.b16 %v8221, %v8220
    %v8321 = vpack.c.b16 %v8223, %v8222
    %v8322 = vpack.c.b16 %v8225, %v8224
    %v8323 = vpack.c.b16 %v8227, %v8226
    %v8324 = vpack.c.b16 %v8229, %v8228
    %v8325 = vpack.c.b16 %v8231, %v8230
    %v8326 = vpack.c.b16 %v8233, %v8232
    %v8327 = vpack.c.b16 %v8235, %v8234
    %v8328 = vpack.c.b16 %v8237, %v8236
    %v8329 = vpack.c.b16 %v8239, %v8238
    %v8330 = vpack.c.b16 %v8241, %v8240
    %v8331 = vpack.c.b16 %v8243, %v8242
    %v8332 = vpack.c.b16 %v8245, %v8244
    %v8333 = vpack.c.b16 %v8247, %v8246
    %v8334 = vpack.c.b16 %v8249, %v8248
    %v8335 = vpack.c.b16 %v8251, %v8250
    %v8336 = vpack.c.b16 %v8253, %v8252
    %v8337 = vpack.c.b16 %v8255, %v8254
    %v8338 = vpack.c.b16 %v8257, %v8256
    %v8339 = vpack.c.b16 %v8259, %v8258
    %v8340 = vpack.c.b16 %v8261, %v8260
    %v8341 = vpack.c.b16 %v8263, %v8262
    %v8342 = vpack.c.b16 %v8265, %v8264
    %v8343 = vpack.c.b16 %v8267, %v8266
    %v8344 = vpack.c.b16 %v8269, %v8268
    %v8345 = vpack.c.b16 %v8271, %v8270
    %v8346 = vpack.c.b16 %v8273, %v8272
    %v8347 = vpack.c.b16 %v8275, %v8274
    %v8348 = vpack.c.b16 %v8277, %v8276
    %v8349 = vpack.c.b16 %v8279, %v8278
    %v8350 = vpack.c.b16 %v8281, %v8280
    %v8351 = vpack.c.b16 %v8283, %v8282
    %v8352 = vpack.c.b16 %v8285, %v8284
    %v8353 = vpack.c.b16 %v8287, %v8286
    %v8354 = vpack.c.b16 %v8289, %v8288
    %v8355 = vpack.c.b16 %v8291, %v8290
    %8420 = vmatprep.subr.bf16.mxu0 0
    %8421 = vmatpush1.bf16.msra.mxu0 %v8299
    %8422 = vmatprep.subr.bf16.mxu0 0
    %8423 = vmatpush1.bf16.msra.mxu0 %v8298
    %8424 = vmatprep.subr.bf16.mxu0 0
    %8425 = vmatpush1.bf16.msra.mxu0 %v8297
    %8426 = vmatprep.subr.bf16.mxu0 0
    %8427 = vmatpush1.bf16.msra.mxu0 %v8296
    %8428 = vmatprep.subr.bf16.mxu0 0
    %8429 = vmatpush1.bf16.msra.mxu0 %v8295
    %8430 = vmatprep.subr.bf16.mxu0 0
    %8431 = vmatpush1.bf16.msra.mxu0 %v8294
    %8432 = vmatprep.subr.bf16.mxu0 0
    %8433 = vmatpush1.bf16.msra.mxu0 %v8293
    %8434 = vmatprep.subr.bf16.mxu0 0
    %8435 = vmatpush1.bf16.msra.mxu0 %v8292
    %8436 = vmatprep.subr.bf16.mxu0 0
    %8437 = vmatpush2.bf16.msra.mxu0 %v8307
    %8438 = vmatprep.subr.bf16.mxu0 0
    %8439 = vmatpush2.bf16.msra.mxu0 %v8306
    %8440 = vmatprep.subr.bf16.mxu0 0
    %8441 = vmatpush2.bf16.msra.mxu0 %v8305
    %8442 = vmatprep.subr.bf16.mxu0 0
    %8443 = vmatpush2.bf16.msra.mxu0 %v8304
    %8444 = vmatprep.subr.bf16.mxu0 0
    %8445 = vmatpush2.bf16.msra.mxu0 %v8303
    %8446 = vmatprep.subr.bf16.mxu0 0
    %8447 = vmatpush2.bf16.msra.mxu0 %v8302
    %8448 = vmatprep.subr.bf16.mxu0 0
    %8449 = vmatpush2.bf16.msra.mxu0 %v8301
    %8450 = vmatprep.subr.bf16.mxu0 0
    %8451 = vmatpush2.bf16.msra.mxu0 %v8300
    %8452 = vmatprep.mubr.bf16.mxu0 %v7894
    %8453 = vmatmul.mubr.bf16.gmra.mxu0 %v7893
    %v8454 = vpop.f32.mrf.mxu0
    %v8455 = vadd.f32 %v8034, %v8454
    %v8456 = vpop.f32.mrf.mxu0
    %v8457 = vpop.f32.mrf.mxu0
    %v8458 = vpop.f32.mrf.mxu0
    %8459 = vdwg.mxu0
    %8460 = vmatprep.subr.bf16.mxu0 0
    %8461 = vmatpush1.bf16.msra.mxu0 %v8315
    %8462 = vmatprep.subr.bf16.mxu0 0
    %8463 = vmatpush1.bf16.msra.mxu0 %v8314
    %8464 = vmatprep.subr.bf16.mxu0 0
    %8465 = vmatpush1.bf16.msra.mxu0 %v8313
    %8466 = vmatprep.subr.bf16.mxu0 0
    %8467 = vmatpush1.bf16.msra.mxu0 %v8312
    %8468 = vmatprep.subr.bf16.mxu0 0
    %8469 = vmatpush1.bf16.msra.mxu0 %v8311
    %8470 = vmatprep.subr.bf16.mxu0 0
    %8471 = vmatpush1.bf16.msra.mxu0 %v8310
    %8472 = vmatprep.subr.bf16.mxu0 0
    %8473 = vmatpush1.bf16.msra.mxu0 %v8309
    %8474 = vmatprep.subr.bf16.mxu0 0
    %8475 = vmatpush1.bf16.msra.mxu0 %v8308
    %8476 = vmatprep.subr.bf16.mxu0 0
    %8477 = vmatpush2.bf16.msra.mxu0 %v8323
    %8478 = vmatprep.subr.bf16.mxu0 0
    %8479 = vmatpush2.bf16.msra.mxu0 %v8322
    %8480 = vmatprep.subr.bf16.mxu0 0
    %8481 = vmatpush2.bf16.msra.mxu0 %v8321
    %8482 = vmatprep.subr.bf16.mxu0 0
    %8483 = vmatpush2.bf16.msra.mxu0 %v8320
    %8484 = vmatprep.subr.bf16.mxu0 0
    %8485 = vmatpush2.bf16.msra.mxu0 %v8319
    %8486 = vmatprep.subr.bf16.mxu0 0
    %8487 = vmatpush2.bf16.msra.mxu0 %v8318
    %8488 = vmatprep.subr.bf16.mxu0 0
    %8489 = vmatpush2.bf16.msra.mxu0 %v8317
    %8490 = vmatprep.subr.bf16.mxu0 0
    %8491 = vmatpush2.bf16.msra.mxu0 %v8316
    %8492 = vmatprep.mubr.bf16.mxu0 %v7896
    %8493 = vmatmul.mubr.bf16.gmra.mxu0 %v7895
    %v8494 = vpop.f32.mrf.mxu0
    %v8495 = vadd.f32 %v8455, %v8494
    %v8496 = vpop.f32.mrf.mxu0
    %v8497 = vpop.f32.mrf.mxu0
    %v8498 = vpop.f32.mrf.mxu0
    %8499 = vdwg.mxu0
    %8500 = vmatprep.subr.bf16.mxu0 0
    %8501 = vmatpush1.bf16.msra.mxu0 %v8331
    %8502 = vmatprep.subr.bf16.mxu0 0
    %8503 = vmatpush1.bf16.msra.mxu0 %v8330
    %8504 = vmatprep.subr.bf16.mxu0 0
    %8505 = vmatpush1.bf16.msra.mxu0 %v8329
    %8506 = vmatprep.subr.bf16.mxu0 0
    %8507 = vmatpush1.bf16.msra.mxu0 %v8328
    %8508 = vmatprep.subr.bf16.mxu0 0
    %8509 = vmatpush1.bf16.msra.mxu0 %v8327
    %8510 = vmatprep.subr.bf16.mxu0 0
    %8511 = vmatpush1.bf16.msra.mxu0 %v8326
    %8512 = vmatprep.subr.bf16.mxu0 0
    %8513 = vmatpush1.bf16.msra.mxu0 %v8325
    %8514 = vmatprep.subr.bf16.mxu0 0
    %8515 = vmatpush1.bf16.msra.mxu0 %v8324
    %8516 = vmatprep.subr.bf16.mxu0 0
    %8517 = vmatpush2.bf16.msra.mxu0 %v8339
    %8518 = vmatprep.subr.bf16.mxu0 0
    %8519 = vmatpush2.bf16.msra.mxu0 %v8338
    %8520 = vmatprep.subr.bf16.mxu0 0
    %8521 = vmatpush2.bf16.msra.mxu0 %v8337
    %8522 = vmatprep.subr.bf16.mxu0 0
    %8523 = vmatpush2.bf16.msra.mxu0 %v8336
    %8524 = vmatprep.subr.bf16.mxu0 0
    %8525 = vmatpush2.bf16.msra.mxu0 %v8335
    %8526 = vmatprep.subr.bf16.mxu0 0
    %8527 = vmatpush2.bf16.msra.mxu0 %v8334
    %8528 = vmatprep.subr.bf16.mxu0 0
    %8529 = vmatpush2.bf16.msra.mxu0 %v8333
    %8530 = vmatprep.subr.bf16.mxu0 0
    %8531 = vmatpush2.bf16.msra.mxu0 %v8332
    %8532 = vmatprep.mubr.bf16.mxu0 %v7898
    %8533 = vmatmul.mubr.bf16.gmra.mxu0 %v7897
    %v8534 = vpop.f32.mrf.mxu0
    %v8535 = vadd.f32 %v8495, %v8534
    %v8536 = vpop.f32.mrf.mxu0
    %v8537 = vpop.f32.mrf.mxu0
    %v8538 = vpop.f32.mrf.mxu0
    %8539 = vdwg.mxu0
    %8540 = vmatprep.subr.bf16.mxu0 0
    %8541 = vmatpush1.bf16.msra.mxu0 %v8347
    %8542 = vmatprep.subr.bf16.mxu0 0
    %8543 = vmatpush1.bf16.msra.mxu0 %v8346
    %8544 = vmatprep.subr.bf16.mxu0 0
    %8545 = vmatpush1.bf16.msra.mxu0 %v8345
    %8546 = vmatprep.subr.bf16.mxu0 0
    %8547 = vmatpush1.bf16.msra.mxu0 %v8344
    %8548 = vmatprep.subr.bf16.mxu0 0
    %8549 = vmatpush1.bf16.msra.mxu0 %v8343
    %8550 = vmatprep.subr.bf16.mxu0 0
    %8551 = vmatpush1.bf16.msra.mxu0 %v8342
    %8552 = vmatprep.subr.bf16.mxu0 0
    %8553 = vmatpush1.bf16.msra.mxu0 %v8341
    %8554 = vmatprep.subr.bf16.mxu0 0
    %8555 = vmatpush1.bf16.msra.mxu0 %v8340
    %8556 = vmatprep.subr.bf16.mxu0 0
    %8557 = vmatpush2.bf16.msra.mxu0 %v8355
    %8558 = vmatprep.subr.bf16.mxu0 0
    %8559 = vmatpush2.bf16.msra.mxu0 %v8354
    %8560 = vmatprep.subr.bf16.mxu0 0
    %8561 = vmatpush2.bf16.msra.mxu0 %v8353
    %8562 = vmatprep.subr.bf16.mxu0 0
    %8563 = vmatpush2.bf16.msra.mxu0 %v8352
    %8564 = vmatprep.subr.bf16.mxu0 0
    %8565 = vmatpush2.bf16.msra.mxu0 %v8351
    %8566 = vmatprep.subr.bf16.mxu0 0
    %8567 = vmatpush2.bf16.msra.mxu0 %v8350
    %8568 = vmatprep.subr.bf16.mxu0 0
    %8569 = vmatpush2.bf16.msra.mxu0 %v8349
    %8570 = vmatprep.subr.bf16.mxu0 0
    %8571 = vmatpush2.bf16.msra.mxu0 %v8348
    %8572 = vmatprep.mubr.bf16.mxu0 %v7900
    %8573 = vmatmul.mubr.bf16.gmra.mxu0 %v7899
    %v8574 = vpop.f32.mrf.mxu0
    %v8575 = vadd.f32 %v8535, %v8574
    %v8576 = vpop.f32.mrf.mxu0
    %v8577 = vpop.f32.mrf.mxu0
    %v8578 = vpop.f32.mrf.mxu0
    %8579 = vdwg.mxu0
    %8580 = vst [vmem:[%s7] sm:$0xff] %v8575
    // Predicated region
    $region54: #{inception_aux_forward.1} parent=1 // pred_check
      _
    $region55: #{inception_aux_forward.1} parent=1 // pred_check_branch
      %8582 = sbr.rel (0) target = $region57
    $region56: #{inception_aux_forward.1} parent=1 // pred_region
      _
    $region57: #{inception_aux_forward.1} parent=1 // pred_fallthru
      _
    // Predicated region
    $region58: #{inception_aux_forward.1} parent=1 // pred_check
      _
    $region59: #{inception_aux_forward.1} parent=1 // pred_check_branch
      %8584 = sbr.rel (0) target = $region61
    $region60: #{inception_aux_forward.1} parent=1 // pred_region
      _
    $region61: #{inception_aux_forward.1} parent=1 // pred_fallthru
      _
    %8585 = vsyncpa [#allocation4], 1
    %8586 = vsyncpa [#allocation6], 1
    %8587 = vsyncpa [#allocation9], 1
    %8588 = vsyncpa [#allocation12], 1

</llo_original>
